<compile_context>
chip_gen: v7x
topology: tpu7x:2x2x1
jax: 0.10.0
libtpu: 0.0.40
codegen_flags: <defaults>
</compile_context>

<pallas_src>
import functools

import jax
import jax.numpy as jnp
from jax.experimental import pallas as pl
from jax.experimental.pallas import tpu as pltpu

EPS = 1e-5   # torch LayerNorm / GroupNorm / HF layer_norm_eps default
LANE = 128


def _rpad(n):
    return ((n + LANE - 1) // LANE) * LANE


# ---------------------------------------------------------------------------
# BlockSpec helpers
# ---------------------------------------------------------------------------
def _wspec(shape):
    """Weight broadcast over the batch grid axis (same block every step)."""
    n = len(shape)
    return pl.BlockSpec(shape, lambda b, _n=n: (0,) * _n)


def _bspec(tail):
    """Per-batch block: leading batch dim squeezed, rest full-extent."""
    n = len(tail)
    return pl.BlockSpec((None,) + tuple(tail), lambda b, _n=n: (b,) + (0,) * _n)


def _fullspec(shape):
    n = len(shape)
    return pl.BlockSpec(shape, lambda i, _n=n: (0,) * _n)


# ---------------------------------------------------------------------------
# in-kernel math helpers
# ---------------------------------------------------------------------------
def _gelu(x):
    # TODO(synk): tanh-approx GELU kept in-kernel; exact erf-GELU lowering in Mosaic
    # is not guaranteed (difference is negligible at these magnitudes).
    c = 0.7978845608028654  # sqrt(2/pi)
    return 0.5 * x * (1.0 + jnp.tanh(c * (x + 0.044715 * x * x * x)))


def _masked_layernorm(x, gamma, beta, n_valid, mask):
    """LayerNorm over the last dim, counting only the first n_valid (real) lanes.

    gamma/beta are zero in padded lanes, so padded lanes of the result are 0.
    """
    mu = jnp.sum(x * mask, axis=-1, keepdims=True) * (1.0 / n_valid)
    d = (x - mu) * mask
    var = jnp.sum(d * d, axis=-1, keepdims=True) * (1.0 / n_valid)
    return d * jax.lax.rsqrt(var + EPS) * gamma + beta


# ---------------------------------------------------------------------------
# Pallas kernels
# ---------------------------------------------------------------------------
def _global_ln_kernel(valid_lanes, count, x_ref, o_ref):
    """F.layer_norm(x, x.shape): one mean/var over the entire tensor, no affine."""
    x = x_ref[...]
    if valid_lanes is None:
        mask = None
        xm = x
    else:
        lane = jax.lax.broadcasted_iota(jnp.int32, x.shape, 1)
        mask = (lane < valid_lanes).astype(jnp.float32)
        xm = x * mask
    mu = jnp.sum(xm, axis=(0, 1), keepdims=True) * (1.0 / count)
    d = x - mu
    if mask is not None:
        d = d * mask
    var = jnp.sum(d * d, axis=(0, 1), keepdims=True) * (1.0 / count)
    o_ref[...] = d * jax.lax.rsqrt(var + EPS)


def _conv0_gn_gelu_kernel(p_ref, w_ref, g_ref, b_ref, o_ref):
    """(L0,K0) patches @ (K0,CP) weight -> GroupNorm(C,C) over time -> GELU."""
    h = jnp.dot(p_ref[...], w_ref[...], preferred_element_type=jnp.float32)  # (L0, CP)
    n = h.shape[0]
    mu = jnp.sum(h, axis=0, keepdims=True) * (1.0 / n)      # per-channel stats over time
    d = h - mu
    var = jnp.sum(d * d, axis=0, keepdims=True) * (1.0 / n)
    o_ref[...] = _gelu(d * jax.lax.rsqrt(var + EPS) * g_ref[...] + b_ref[...])


def _conv1_featproj_kernel(C, p_ref, w1_ref, lng_ref, lnb_ref, fpw_ref, fpb_ref, o_ref):
    """conv1 matmul + GELU + feature-projection LayerNorm(C) + Linear(C->H)."""
    h = _gelu(jnp.dot(p_ref[...], w1_ref[...], preferred_element_type=jnp.float32))
    lane = jax.lax.broadcasted_iota(jnp.int32, (1, h.shape[1]), 1)
    mask = (lane < C).astype(jnp.float32)
    ln = _masked_layernorm(h, lng_ref[...], lnb_ref[...], C, mask)
    o_ref[...] = jnp.dot(ln, fpw_ref[...], preferred_element_type=jnp.float32) + fpb_ref[...]


def _posconv_encln_kernel(H, x_ref, w_ref, b_ref, g_ref, bb_ref, o_ref):
    """Grouped conv positional embedding (kept grouped) + GELU + residual + encoder LN."""
    x = x_ref[...]                                   # (L, HP), lanes >= H are zero
    L, HP = x.shape
    w = w_ref[...]                                   # (G, K, Cin_g, Cout_g) grouped weight
    G, K, Cg, _ = w.shape
    pad = K // 2
    z = jnp.zeros((pad, HP), jnp.float32)
    xp = jnp.concatenate([z, x, z], axis=0)          # zero pad along time (L + 2*pad, HP)
    cols = []
    for g in range(G):                               # no dense (block-diag) expansion
        acc = jnp.zeros((L, Cg), jnp.float32)
        for k in range(K):
            xs = xp[k:k + L, g * Cg:(g + 1) * Cg]
            acc = acc + jnp.dot(xs, w[g, k], preferred_element_type=jnp.float32)
        cols.append(acc)
    if HP > G * Cg:
        cols.append(jnp.zeros((L, HP - G * Cg), jnp.float32))
    # taking the first L outputs == Wav2Vec2SamePadLayer drop-last for even kernels
    pos = jnp.concatenate(cols, axis=-1)             # (L, HP)
    pos = _gelu(pos + b_ref[...])
    y = x + pos
    lane = jax.lax.broadcasted_iota(jnp.int32, (1, HP), 1)
    mask = (lane < H).astype(jnp.float32)
    o_ref[...] = _masked_layernorm(y, g_ref[...], bb_ref[...], H, mask)


def _encoder_layer_kernel(n_heads, H, x_ref, qkvw_ref, qkvb_ref, ow_ref, ob_ref,
                          ln1g_ref, ln1b_ref, f1w_ref, f1b_ref, f2w_ref, f2b_ref,
                          ln2g_ref, ln2b_ref, o_ref):
    """One whole (post-LN) wav2vec2 encoder layer fused into a single kernel."""
    x = x_ref[...]                                   # (L, HP) f32, lanes >= H are zero
    L, HP = x.shape
    Dh = H // n_heads
    lane = jax.lax.broadcasted_iota(jnp.int32, (1, HP), 1)
    hmask = (lane < H).astype(jnp.float32)

    # fused QKV projection (bf16 operands, f32 accumulation); q-scale folded in weights
    qkv = jnp.dot(x.astype(jnp.bfloat16), qkvw_ref[...],
                  preferred_element_type=jnp.float32) + qkvb_ref[...]        # (L, 3*HP)
    q = qkv[:, :HP]
    k = qkv[:, HP:2 * HP]
    v = qkv[:, 2 * HP:]
    kb = k.astype(jnp.bfloat16)

    # per-head attention via lane masks (no head split/merge transposes or HBM trips)
    ctx = jnp.zeros((L, HP), jnp.float32)
    for h in range(n_heads):
        m = ((lane >= h * Dh) & (lane < (h + 1) * Dh)).astype(jnp.float32)
        qh = (q * m).astype(jnp.bfloat16)
        s = jax.lax.dot_general(qh, kb, (((1,), (1,)), ((), ())),
                                preferred_element_type=jnp.float32)          # (L, L)
        s = s - jnp.max(s, axis=-1, keepdims=True)
        e = jnp.exp(s)
        p = e * pl.reciprocal(jnp.sum(e, axis=-1, keepdims=True), approx=True)
        ctx = ctx + jnp.dot(p.astype(jnp.bfloat16), (v * m).astype(jnp.bfloat16),
                            preferred_element_type=jnp.float32)
    attn = jnp.dot(ctx.astype(jnp.bfloat16), ow_ref[...],
                   preferred_element_type=jnp.float32) + ob_ref[...]

    h1 = _masked_layernorm(x + attn, ln1g_ref[...], ln1b_ref[...], H, hmask)
    ff = _gelu(jnp.dot(h1.astype(jnp.bfloat16), f1w_ref[...],
                       preferred_element_type=jnp.float32) + f1b_ref[...])
    ff = jnp.dot(ff.astype(jnp.bfloat16), f2w_ref[...],
                 preferred_element_type=jnp.float32) + f2b_ref[...]
    o_ref[...] = _masked_layernorm(h1 + ff, ln2g_ref[...], ln2b_ref[...], H, hmask)


# ---------------------------------------------------------------------------
# wrappers
# ---------------------------------------------------------------------------
def _global_layernorm(x2d, valid_lanes, count):
    M, N = x2d.shape
    return pl.pallas_call(
        functools.partial(_global_ln_kernel, valid_lanes, float(count)),
        out_shape=jax.ShapeDtypeStruct((M, N), jnp.float32),
        grid=(1,),
        in_specs=[_fullspec((M, N))],
        out_specs=_fullspec((M, N)),
    )(x2d)


def _encoder_layer(hs, lp, n_heads, H):
    B, L, HP = hs.shape
    FFP = lp["ff1_w"].shape[1]
    return pl.pallas_call(
        functools.partial(_encoder_layer_kernel, n_heads, H),
        out_shape=jax.ShapeDtypeStruct((B, L, HP), jnp.float32),
        grid=(B,),
        in_specs=[
            _bspec((L, HP)),
            _wspec((HP, 3 * HP)), _wspec((1, 3 * HP)),
            _wspec((HP, HP)), _wspec((1, HP)),
            _wspec((1, HP)), _wspec((1, HP)),
            _wspec((HP, FFP)), _wspec((1, FFP)),
            _wspec((FFP, HP)), _wspec((1, HP)),
            _wspec((1, HP)), _wspec((1, HP)),
        ],
        out_specs=_bspec((L, HP)),
        compiler_params=pltpu.CompilerParams(dimension_semantics=("parallel",)),
    )(hs, lp["qkv_w"], lp["qkv_b"], lp["o_w"], lp["o_b"], lp["ln1_g"], lp["ln1_b"],
      lp["ff1_w"], lp["ff1_b"], lp["ff2_w"], lp["ff2_b"], lp["ln2_g"], lp["ln2_b"])


def wav2vec2_forward(wav, pp, *, C, H, n_heads):
    B, T = wav.shape
    CP = pp["w0"].shape[1]
    HP = pp["fp_w"].shape[1]
    K0 = pp["w0"].shape[0]
    S0 = 5                                   # synthetic feature-extractor strides
    K1 = pp["w1"].shape[0] // CP
    S1 = 2

    # 1) SpeechBrain normalize_wav: F.layer_norm(wav, wav.shape)
    xn = _global_layernorm(wav, valid_lanes=None, count=B * T)

    # 2) conv0 (no bias) + GroupNorm(C, C) + GELU   (fused, one call, grid over batch)
    L0 = (T - K0) // S0 + 1
    # TODO(synk): im2col gathers stay in XLA glue; at real 16 kHz lengths they should
    # move in-kernel via strided DMA to avoid the HBM round-trip.
    idx0 = jnp.arange(L0)[:, None] * S0 + jnp.arange(K0)[None, :]
    p0 = xn[:, idx0]                                        # (B, L0, K0)
    h0 = pl.pallas_call(
        _conv0_gn_gelu_kernel,
        out_shape=jax.ShapeDtypeStruct((B, L0, CP), jnp.float32),
        grid=(B,),
        in_specs=[_bspec((L0, K0)), _wspec((K0, CP)), _wspec((1, CP)), _wspec((1, CP))],
        out_specs=_bspec((L0, CP)),
        compiler_params=pltpu.CompilerParams(dimension_semantics=("parallel",)),
    )(p0, pp["w0"], pp["gn_g"], pp["gn_b"])

    # 3) conv1 (no bias) + GELU + featproj LayerNorm + Linear   (fused)
    L = (L0 - K1) // S1 + 1
    idx1 = jnp.arange(L)[:, None] * S1 + jnp.arange(K1)[None, :]
    p1 = h0[:, idx1, :].reshape(B, L, K1 * CP)              # (B, L, K1*CP), lane-dense
    hs = pl.pallas_call(
        functools.partial(_conv1_featproj_kernel, C),
        out_shape=jax.ShapeDtypeStruct((B, L, HP), jnp.float32),
        grid=(B,),
        in_specs=[_bspec((L, K1 * CP)), _wspec((K1 * CP, CP)), _wspec((1, CP)),
                  _wspec((1, CP)), _wspec((CP, HP)), _wspec((1, HP))],
        out_specs=_bspec((L, HP)),
        compiler_params=pltpu.CompilerParams(dimension_semantics=("parallel",)),
    )(p1, pp["w1"], pp["fp_ln_g"], pp["fp_ln_b"], pp["fp_w"], pp["fp_b"])

    # 4) grouped positional conv + GELU + residual + encoder LayerNorm   (fused)
    G, K, Cg = pp["pos_w"].shape[0], pp["pos_w"].shape[1], pp["pos_w"].shape[2]
    hs = pl.pallas_call(
        functools.partial(_posconv_encln_kernel, H),
        out_shape=jax.ShapeDtypeStruct((B, L, HP), jnp.float32),
        grid=(B,),
        in_specs=[_bspec((L, HP)), _wspec((G, K, Cg, Cg)), _wspec((1, HP)),
                  _wspec((1, HP)), _wspec((1, HP))],
        out_specs=_bspec((L, HP)),
        compiler_params=pltpu.CompilerParams(dimension_semantics=("parallel",)),
    )(hs, pp["pos_w"], pp["pos_b"], pp["enc_ln_g"], pp["enc_ln_b"])

    # 5) transformer encoder layers (one fused pallas_call per layer)
    for lp in pp["layers"]:
        hs = _encoder_layer(hs, lp, n_heads, H)

    # 6) SpeechBrain output_norm: F.layer_norm(out, out.shape), then drop lane padding
    y = _global_layernorm(hs.reshape(B * L, HP), valid_lanes=H, count=B * L * H)
    return y.reshape(B, L, HP)[:, :, :H]


# ---------------------------------------------------------------------------
# deterministic synthetic parameters (small wav2vec2-like config, torch layouts)
# ---------------------------------------------------------------------------
def init_params(key, C=32, H=32, FF=64, n_layers=2, n_heads=4, pos_kernel=4, pos_groups=4):
    keys = iter(jax.random.split(key, 64))

    def nrm(shape):
        return 0.02 * jax.random.normal(next(keys), shape, dtype=jnp.float32)

    ones = lambda n: jnp.ones((n,), jnp.float32)
    zeros = lambda n: jnp.zeros((n,), jnp.float32)

    p = dict(
        conv0_w=nrm((C, 1, 10)),                 # (Cout, Cin, K), bias-free conv
        gn_g=ones(C), gn_b=zeros(C),
        conv1_w=nrm((C, C, 3)),
        fp_ln_g=ones(C), fp_ln_b=zeros(C),
        fp_w=nrm((C, H)), fp_b=zeros(H),
        # TODO(synk): weight_norm reparameterization of the pos-conv weight is folded
        # into a single effective weight (forward-equivalent).
        pos_conv_w=nrm((H, H // pos_groups, pos_kernel)), pos_conv_b=zeros(H),
        enc_ln_g=ones(H), enc_ln_b=zeros(H),
    )
    layers = []
    for _ in range(n_layers):
        layers.append(dict(
            q_w=nrm((H, H)), q_b=zeros(H),
            k_w=nrm((H, H)), k_b=zeros(H),
            v_w=nrm((H, H)), v_b=zeros(H),
            o_w=nrm((H, H)), o_b=zeros(H),
            ln1_g=ones(H), ln1_b=zeros(H),
            ff1_w=nrm((H, FF)), ff1_b=zeros(FF),
            ff2_w=nrm((FF, H)), ff2_b=zeros(H),
            ln2_g=ones(H), ln2_b=zeros(H),
        ))
    p["layers"] = layers
    return p


def pack_params(p, C=32, H=32, FF=64, n_layers=2, n_heads=4, pos_kernel=4, pos_groups=4):
    """Pad / fuse / cast torch-layout params into lane-dense Pallas layouts."""
    CP, HP, FFP = _rpad(C), _rpad(H), _rpad(FF)

    def pad2(a, r, c, dtype=jnp.float32):
        out = jnp.zeros((r, c), jnp.float32).at[:a.shape[0], :a.shape[1]].set(a)
        return out.astype(dtype)

    def row(v, n):
        return jnp.zeros((1, n), jnp.float32).at[0, :v.shape[0]].set(v)

    K0 = p["conv0_w"].shape[2]
    K1 = p["conv1_w"].shape[2]
    G = pos_groups
    Cg = H // G

    w0 = pad2(jnp.transpose(p["conv0_w"], (1, 2, 0)).reshape(K0, C), K0, CP)
    w1 = jnp.zeros((K1, CP, CP), jnp.float32).at[:, :C, :C].set(
        jnp.transpose(p["conv1_w"], (2, 1, 0))).reshape(K1 * CP, CP)
    # grouped pos-conv weight kept grouped: (G, K, Cin_g, Cout_g)
    pos_w = jnp.transpose(p["pos_conv_w"].reshape(G, Cg, Cg, pos_kernel), (0, 3, 2, 1))

    packed = dict(
        w0=w0, gn_g=row(p["gn_g"], CP), gn_b=row(p["gn_b"], CP),
        w1=w1,
        fp_ln_g=row(p["fp_ln_g"], CP), fp_ln_b=row(p["fp_ln_b"], CP),
        fp_w=pad2(p["fp_w"], CP, HP), fp_b=row(p["fp_b"], HP),
        pos_w=pos_w, pos_b=row(p["pos_conv_b"], HP),
        enc_ln_g=row(p["enc_ln_g"], HP), enc_ln_b=row(p["enc_ln_b"], HP),
    )

    scale = (H // n_heads) ** -0.5          # HF q pre-scaling folded into q projection
    layers = []
    for lp in p["layers"]:
        qkv_w = jnp.zeros((HP, 3 * HP), jnp.float32)
        qkv_w = qkv_w.at[:H, 0:H].set(lp["q_w"] * scale)
        qkv_w = qkv_w.at[:H, HP:HP + H].set(lp["k_w"])
        qkv_w = qkv_w.at[:H, 2 * HP:2 * HP + H].set(lp["v_w"])
        qkv_b = jnp.zeros((1, 3 * HP), jnp.float32)
        qkv_b = qkv_b.at[0, 0:H].set(lp["q_b"] * scale)
        qkv_b = qkv_b.at[0, HP:HP + H].set(lp["k_b"])
        qkv_b = qkv_b.at[0, 2 * HP:2 * HP + H].set(lp["v_b"])
        layers.append(dict(
            qkv_w=qkv_w.astype(jnp.bfloat16), qkv_b=qkv_b,
            o_w=pad2(lp["o_w"], HP, HP, jnp.bfloat16), o_b=row(lp["o_b"], HP),
            ln1_g=row(lp["ln1_g"], HP), ln1_b=row(lp["ln1_b"], HP),
            ff1_w=pad2(lp["ff1_w"], HP, FFP, jnp.bfloat16), ff1_b=row(lp["ff1_b"], FFP),
            ff2_w=pad2(lp["ff2_w"], FFP, HP, jnp.bfloat16), ff2_b=row(lp["ff2_b"], HP),
            ln2_g=row(lp["ln2_g"], HP), ln2_b=row(lp["ln2_b"], HP),
        ))
    packed["layers"] = layers
    return packed


if __name__ == "__main__":
    key = jax.random.PRNGKey(0)
    pkey, xkey = jax.random.split(key)

    cfg = dict(C=32, H=32, FF=64, n_layers=2, n_heads=4, pos_kernel=4, pos_groups=4)
    params = init_params(pkey, **cfg)
    packed = pack_params(params, **cfg)

    B, T = 2, 320
    wav = jax.random.normal(xkey, (B, T), dtype=jnp.float32)

    fwd = jax.jit(lambda w: wav2vec2_forward(
        w, packed, C=cfg["C"], H=cfg["H"], n_heads=cfg["n_heads"]))
    out = fwd(wav)
    jax.block_until_ready(out)

    # expected sequence length: conv0 k=10,s=5 ; conv1 k=3,s=2
    L0 = (T - 10) // 5 + 1
    L = (L0 - 3) // 2 + 1
    assert out.shape == (B, L, cfg["H"]), out.shape
    assert out.dtype == jnp.float32
    print("KERNEL_OK")
</pallas_src>

<mosaic_0001>
module attributes {stable_mosaic.version = 11 : i64} {
  func.func @_global_ln_kernel(%arg0: i32, %arg1: memref<2x320xf32, #tpu.memory_space<vmem>>, %arg2: memref<2x320xf32, #tpu.memory_space<vmem>>) attributes {dimension_semantics = [#tpu.dimension_semantics<arbitrary>], iteration_bounds = array<i64: 1>, scalar_prefetch = 0 : i64, scratch_operands = 0 : i64, tpu.core_type = #tpu.core_type<tc>, window_params = [{pipeline_mode = #tpu.pipeline_mode<synchronous>, transform_indices = @transform_0, window_bounds = array<i64: 2, 320>}, {pipeline_mode = #tpu.pipeline_mode<synchronous>, transform_indices = @transform_1, window_bounds = array<i64: 2, 320>}]} {
    %c0 = arith.constant 0 : index
    %c0_0 = arith.constant 0 : index
    %0 = vector.load %arg1[%c0, %c0_0] : memref<2x320xf32, #tpu.memory_space<vmem>>, vector<2x320xf32>
    %1 = vector.shape_cast %0 : vector<2x320xf32> to vector<1x2x320xf32>
    %cst = arith.constant dense<0.000000e+00> : vector<1xf32>
    %2 = vector.multi_reduction <add>, %1, %cst [1, 2] : vector<1x2x320xf32> to vector<1xf32>
    %3 = vector.shape_cast %2 : vector<1xf32> to vector<1x1x1xf32>
    %4 = vector.extract %3[0, 0, 0] : f32 from vector<1x1x1xf32>
    %5 = vector.broadcast %4 : f32 to vector<1x1xf32>
    %cst_1 = arith.constant 1.562500e-03 : f32
    %6 = vector.broadcast %cst_1 : f32 to vector<1x1xf32>
    %7 = arith.mulf %5, %6 : vector<1x1xf32>
    %8 = vector.broadcast %7 : vector<1x1xf32> to vector<2x320xf32>
    %9 = arith.subf %0, %8 : vector<2x320xf32>
    %10 = arith.mulf %9, %9 : vector<2x320xf32>
    %11 = vector.shape_cast %10 : vector<2x320xf32> to vector<1x2x320xf32>
    %cst_2 = arith.constant dense<0.000000e+00> : vector<1xf32>
    %12 = vector.multi_reduction <add>, %11, %cst_2 [1, 2] : vector<1x2x320xf32> to vector<1xf32>
    %13 = vector.shape_cast %12 : vector<1xf32> to vector<1x1x1xf32>
    %14 = vector.extract %13[0, 0, 0] : f32 from vector<1x1x1xf32>
    %15 = vector.broadcast %14 : f32 to vector<1x1xf32>
    %cst_3 = arith.constant 1.562500e-03 : f32
    %16 = vector.broadcast %cst_3 : f32 to vector<1x1xf32>
    %17 = arith.mulf %15, %16 : vector<1x1xf32>
    %cst_4 = arith.constant 9.99999974E-6 : f32
    %18 = vector.broadcast %cst_4 : f32 to vector<1x1xf32>
    %19 = arith.addf %17, %18 : vector<1x1xf32>
    %20 = math.rsqrt %19 : vector<1x1xf32>
    %21 = vector.broadcast %20 : vector<1x1xf32> to vector<2x320xf32>
    %22 = arith.mulf %9, %21 : vector<2x320xf32>
    %c0_5 = arith.constant 0 : index
    %c0_6 = arith.constant 0 : index
    %23 = vector.load %arg2[%c0_5, %c0_6] : memref<2x320xf32, #tpu.memory_space<vmem>>, vector<2x320xf32>
    tpu.vector_store %arg2[%c0_5, %c0_6], %22 {strides = array<i32>} : memref<2x320xf32, #tpu.memory_space<vmem>>, vector<2x320xf32>,
    return
  }
  func.func @transform_0(%arg0: i32) -> (i32, i32) {
    %c0_i32 = arith.constant 0 : i32
    %c0_i32_0 = arith.constant 0 : i32
    %c0_i32_1 = arith.constant 0 : i32
    return %c0_i32, %c0_i32_0 : i32, i32
  }
  func.func @transform_1(%arg0: i32) -> (i32, i32) {
    %c0_i32 = arith.constant 0 : i32
    %c0_i32_0 = arith.constant 0 : i32
    %c0_i32_1 = arith.constant 0 : i32
    return %c0_i32, %c0_i32_0 : i32, i32
  }
}

module attributes {stable_mosaic.version = 11 : i64} {
  func.func @_conv0_gn_gelu_kernel(%arg0: i32, %arg1: memref<1x63x10xf32, #tpu.memory_space<vmem>>, %arg2: memref<10x128xf32, #tpu.memory_space<vmem>>, %arg3: memref<1x128xf32, #tpu.memory_space<vmem>>, %arg4: memref<1x128xf32, #tpu.memory_space<vmem>>, %arg5: memref<1x63x128xf32, #tpu.memory_space<vmem>>) attributes {dimension_semantics = [#tpu.dimension_semantics<parallel>], iteration_bounds = array<i64: 2>, scalar_prefetch = 0 : i64, scratch_operands = 0 : i64, tpu.core_type = #tpu.core_type<tc>, window_params = [{transform_indices = @transform_0, window_bounds = array<i64: 1, 63, 10>}, {pipeline_mode = #tpu.pipeline_mode<synchronous>, transform_indices = @transform_1, window_bounds = array<i64: 10, 128>}, {pipeline_mode = #tpu.pipeline_mode<synchronous>, transform_indices = @transform_2, window_bounds = array<i64: 1, 128>}, {pipeline_mode = #tpu.pipeline_mode<synchronous>, transform_indices = @transform_3, window_bounds = array<i64: 1, 128>}, {transform_indices = @transform_4, window_bounds = array<i64: 1, 63, 128>}]} {
    %c0 = arith.constant 0 : index
    %c0_0 = arith.constant 0 : index
    %c0_1 = arith.constant 0 : index
    %0 = vector.load %arg1[%c0, %c0_0, %c0_1] : memref<1x63x10xf32, #tpu.memory_space<vmem>>, vector<1x63x10xf32>
    %1 = vector.shape_cast %0 : vector<1x63x10xf32> to vector<63x10xf32>
    %c0_2 = arith.constant 0 : index
    %c0_3 = arith.constant 0 : index
    %2 = vector.load %arg2[%c0_2, %c0_3] : memref<10x128xf32, #tpu.memory_space<vmem>>, vector<10x128xf32>
    %cst = arith.constant dense<0.000000e+00> : vector<63x128xf32>
    %3 = tpu.matmul %1, %2, %cst {dimension_numbers = #tpu.dot_dimension_numbers<[1], [0], [0], [1], [0, 0, 1, 1], [], []>} : vector<63x10xf32>, vector<10x128xf32>, vector<63x128xf32> -> vector<63x128xf32>
    %cst_4 = arith.constant dense<0.000000e+00> : vector<128xf32>
    %4 = vector.multi_reduction <add>, %3, %cst_4 [0] : vector<63x128xf32> to vector<128xf32>
    %5 = vector.shape_cast %4 : vector<128xf32> to vector<1x128xf32>
    %cst_5 = arith.constant 0.0158730168 : f32
    %6 = vector.broadcast %cst_5 : f32 to vector<1x128xf32>
    %7 = arith.mulf %5, %6 : vector<1x128xf32>
    %8 = vector.broadcast %7 : vector<1x128xf32> to vector<63x128xf32>
    %9 = arith.subf %3, %8 : vector<63x128xf32>
    %10 = arith.mulf %9, %9 : vector<63x128xf32>
    %cst_6 = arith.constant dense<0.000000e+00> : vector<128xf32>
    %11 = vector.multi_reduction <add>, %10, %cst_6 [0] : vector<63x128xf32> to vector<128xf32>
    %12 = vector.shape_cast %11 : vector<128xf32> to vector<1x128xf32>
    %cst_7 = arith.constant 0.0158730168 : f32
    %13 = vector.broadcast %cst_7 : f32 to vector<1x128xf32>
    %14 = arith.mulf %12, %13 : vector<1x128xf32>
    %cst_8 = arith.constant 9.99999974E-6 : f32
    %15 = vector.broadcast %cst_8 : f32 to vector<1x128xf32>
    %16 = arith.addf %14, %15 : vector<1x128xf32>
    %17 = math.rsqrt %16 : vector<1x128xf32>
    %18 = vector.broadcast %17 : vector<1x128xf32> to vector<63x128xf32>
    %19 = arith.mulf %9, %18 : vector<63x128xf32>
    %c0_9 = arith.constant 0 : index
    %c0_10 = arith.constant 0 : index
    %20 = vector.load %arg3[%c0_9, %c0_10] : memref<1x128xf32, #tpu.memory_space<vmem>>, vector<1x128xf32>
    %21 = vector.broadcast %20 : vector<1x128xf32> to vector<63x128xf32>
    %22 = arith.mulf %19, %21 : vector<63x128xf32>
    %c0_11 = arith.constant 0 : index
    %c0_12 = arith.constant 0 : index
    %23 = vector.load %arg4[%c0_11, %c0_12] : memref<1x128xf32, #tpu.memory_space<vmem>>, vector<1x128xf32>
    %24 = vector.broadcast %23 : vector<1x128xf32> to vector<63x128xf32>
    %25 = arith.addf %22, %24 : vector<63x128xf32>
    %cst_13 = arith.constant 5.000000e-01 : f32
    %26 = vector.broadcast %cst_13 : f32 to vector<63x128xf32>
    %27 = arith.mulf %26, %25 : vector<63x128xf32>
    %cst_14 = arith.constant 4.471500e-02 : f32
    %28 = vector.broadcast %cst_14 : f32 to vector<63x128xf32>
    %29 = arith.mulf %28, %25 : vector<63x128xf32>
    %30 = arith.mulf %29, %25 : vector<63x128xf32>
    %31 = arith.mulf %30, %25 : vector<63x128xf32>
    %32 = arith.addf %25, %31 : vector<63x128xf32>
    %cst_15 = arith.constant 0.797884583 : f32
    %33 = vector.broadcast %cst_15 : f32 to vector<63x128xf32>
    %34 = arith.mulf %33, %32 : vector<63x128xf32>
    %35 = math.tanh %34 : vector<63x128xf32>
    %cst_16 = arith.constant 1.000000e+00 : f32
    %36 = vector.broadcast %cst_16 : f32 to vector<63x128xf32>
    %37 = arith.addf %36, %35 : vector<63x128xf32>
    %38 = arith.mulf %27, %37 : vector<63x128xf32>
    %c0_17 = arith.constant 0 : index
    %c0_18 = arith.constant 0 : index
    %c0_19 = arith.constant 0 : index
    %39 = vector.load %arg5[%c0_17, %c0_18, %c0_19] : memref<1x63x128xf32, #tpu.memory_space<vmem>>, vector<1x63x128xf32>
    %40 = vector.shape_cast %39 : vector<1x63x128xf32> to vector<63x128xf32>
    %41 = vector.shape_cast %38 : vector<63x128xf32> to vector<1x63x128xf32>
    tpu.vector_store %arg5[%c0_17, %c0_18, %c0_19], %41 {strides = array<i32>} : memref<1x63x128xf32, #tpu.memory_space<vmem>>, vector<1x63x128xf32>,
    return
  }
  func.func @transform_0(%arg0: i32) -> (i32, i32, i32) {
    %c0_i32 = arith.constant 0 : i32
    %c0_i32_0 = arith.constant 0 : i32
    %c0_i32_1 = arith.constant 0 : i32
    return %arg0, %c0_i32, %c0_i32_0 : i32, i32, i32
  }
  func.func @transform_1(%arg0: i32) -> (i32, i32) {
    %c0_i32 = arith.constant 0 : i32
    %c0_i32_0 = arith.constant 0 : i32
    %c0_i32_1 = arith.constant 0 : i32
    return %c0_i32, %c0_i32_0 : i32, i32
  }
  func.func @transform_2(%arg0: i32) -> (i32, i32) {
    %c0_i32 = arith.constant 0 : i32
    %c0_i32_0 = arith.constant 0 : i32
    %c0_i32_1 = arith.constant 0 : i32
    return %c0_i32, %c0_i32_0 : i32, i32
  }
  func.func @transform_3(%arg0: i32) -> (i32, i32) {
    %c0_i32 = arith.constant 0 : i32
    %c0_i32_0 = arith.constant 0 : i32
    %c0_i32_1 = arith.constant 0 : i32
    return %c0_i32, %c0_i32_0 : i32, i32
  }
  func.func @transform_4(%arg0: i32) -> (i32, i32, i32) {
    %c0_i32 = arith.constant 0 : i32
    %c0_i32_0 = arith.constant 0 : i32
    %c0_i32_1 = arith.constant 0 : i32
    return %arg0, %c0_i32, %c0_i32_0 : i32, i32, i32
  }
}

module attributes {stable_mosaic.version = 11 : i64} {
  func.func @_conv1_featproj_kernel(%arg0: i32, %arg1: memref<1x31x384xf32, #tpu.memory_space<vmem>>, %arg2: memref<384x128xf32, #tpu.memory_space<vmem>>, %arg3: memref<1x128xf32, #tpu.memory_space<vmem>>, %arg4: memref<1x128xf32, #tpu.memory_space<vmem>>, %arg5: memref<128x128xf32, #tpu.memory_space<vmem>>, %arg6: memref<1x128xf32, #tpu.memory_space<vmem>>, %arg7: memref<1x31x128xf32, #tpu.memory_space<vmem>>) attributes {dimension_semantics = [#tpu.dimension_semantics<parallel>], iteration_bounds = array<i64: 2>, scalar_prefetch = 0 : i64, scratch_operands = 0 : i64, tpu.core_type = #tpu.core_type<tc>, window_params = [{transform_indices = @transform_0, window_bounds = array<i64: 1, 31, 384>}, {pipeline_mode = #tpu.pipeline_mode<synchronous>, transform_indices = @transform_1, window_bounds = array<i64: 384, 128>}, {pipeline_mode = #tpu.pipeline_mode<synchronous>, transform_indices = @transform_2, window_bounds = array<i64: 1, 128>}, {pipeline_mode = #tpu.pipeline_mode<synchronous>, transform_indices = @transform_3, window_bounds = array<i64: 1, 128>}, {pipeline_mode = #tpu.pipeline_mode<synchronous>, transform_indices = @transform_4, window_bounds = array<i64: 128, 128>}, {pipeline_mode = #tpu.pipeline_mode<synchronous>, transform_indices = @transform_5, window_bounds = array<i64: 1, 128>}, {transform_indices = @transform_6, window_bounds = array<i64: 1, 31, 128>}]} {
    %c0 = arith.constant 0 : index
    %c0_0 = arith.constant 0 : index
    %c0_1 = arith.constant 0 : index
    %0 = vector.load %arg1[%c0, %c0_0, %c0_1] : memref<1x31x384xf32, #tpu.memory_space<vmem>>, vector<1x31x384xf32>
    %1 = vector.shape_cast %0 : vector<1x31x384xf32> to vector<31x384xf32>
    %c0_2 = arith.constant 0 : index
    %c0_3 = arith.constant 0 : index
    %2 = vector.load %arg2[%c0_2, %c0_3] : memref<384x128xf32, #tpu.memory_space<vmem>>, vector<384x128xf32>
    %cst = arith.constant dense<0.000000e+00> : vector<31x128xf32>
    %3 = tpu.matmul %1, %2, %cst {dimension_numbers = #tpu.dot_dimension_numbers<[1], [0], [0], [1], [0, 0, 1, 1], [], []>} : vector<31x384xf32>, vector<384x128xf32>, vector<31x128xf32> -> vector<31x128xf32>
    %cst_4 = arith.constant 5.000000e-01 : f32
    %4 = vector.broadcast %cst_4 : f32 to vector<31x128xf32>
    %5 = arith.mulf %4, %3 : vector<31x128xf32>
    %cst_5 = arith.constant 4.471500e-02 : f32
    %6 = vector.broadcast %cst_5 : f32 to vector<31x128xf32>
    %7 = arith.mulf %6, %3 : vector<31x128xf32>
    %8 = arith.mulf %7, %3 : vector<31x128xf32>
    %9 = arith.mulf %8, %3 : vector<31x128xf32>
    %10 = arith.addf %3, %9 : vector<31x128xf32>
    %cst_6 = arith.constant 0.797884583 : f32
    %11 = vector.broadcast %cst_6 : f32 to vector<31x128xf32>
    %12 = arith.mulf %11, %10 : vector<31x128xf32>
    %13 = math.tanh %12 : vector<31x128xf32>
    %cst_7 = arith.constant 1.000000e+00 : f32
    %14 = vector.broadcast %cst_7 : f32 to vector<31x128xf32>
    %15 = arith.addf %14, %13 : vector<31x128xf32>
    %16 = arith.mulf %5, %15 : vector<31x128xf32>
    %17 = tpu.iota {dimensions = array<i32: 1>} : vector<1x128xi32>
    %c32_i32 = arith.constant 32 : i32
    %18 = vector.broadcast %c32_i32 : i32 to vector<1x128xi32>
    %19 = arith.cmpi slt, %17, %18 : vector<1x128xi32>
    %20 = arith.extui %19 : vector<1x128xi1> to vector<1x128xi32>
    %21 = arith.sitofp %20 : vector<1x128xi32> to vector<1x128xf32>
    %c0_8 = arith.constant 0 : index
    %c0_9 = arith.constant 0 : index
    %22 = vector.load %arg3[%c0_8, %c0_9] : memref<1x128xf32, #tpu.memory_space<vmem>>, vector<1x128xf32>
    %c0_10 = arith.constant 0 : index
    %c0_11 = arith.constant 0 : index
    %23 = vector.load %arg4[%c0_10, %c0_11] : memref<1x128xf32, #tpu.memory_space<vmem>>, vector<1x128xf32>
    %24 = vector.broadcast %21 : vector<1x128xf32> to vector<31x128xf32>
    %25 = arith.mulf %16, %24 : vector<31x128xf32>
    %cst_12 = arith.constant dense<0.000000e+00> : vector<31xf32>
    %26 = vector.multi_reduction <add>, %25, %cst_12 [1] : vector<31x128xf32> to vector<31xf32>
    %27 = vector.shape_cast %26 : vector<31xf32> to vector<31x1xf32>
    %cst_13 = arith.constant 3.125000e-02 : f32
    %28 = vector.broadcast %cst_13 : f32 to vector<31x1xf32>
    %29 = arith.mulf %27, %28 : vector<31x1xf32>
    %30 = vector.broadcast %29 : vector<31x1xf32> to vector<31x128xf32>
    %31 = arith.subf %16, %30 : vector<31x128xf32>
    %32 = vector.broadcast %21 : vector<1x128xf32> to vector<31x128xf32>
    %33 = arith.mulf %31, %32 : vector<31x128xf32>
    %34 = arith.mulf %33, %33 : vector<31x128xf32>
    %cst_14 = arith.constant dense<0.000000e+00> : vector<31xf32>
    %35 = vector.multi_reduction <add>, %34, %cst_14 [1] : vector<31x128xf32> to vector<31xf32>
    %36 = vector.shape_cast %35 : vector<31xf32> to vector<31x1xf32>
    %cst_15 = arith.constant 3.125000e-02 : f32
    %37 = vector.broadcast %cst_15 : f32 to vector<31x1xf32>
    %38 = arith.mulf %36, %37 : vector<31x1xf32>
    %cst_16 = arith.constant 9.99999974E-6 : f32
    %39 = vector.broadcast %cst_16 : f32 to vector<31x1xf32>
    %40 = arith.addf %38, %39 : vector<31x1xf32>
    %41 = math.rsqrt %40 : vector<31x1xf32>
    %42 = vector.broadcast %41 : vector<31x1xf32> to vector<31x128xf32>
    %43 = arith.mulf %33, %42 : vector<31x128xf32>
    %44 = vector.broadcast %22 : vector<1x128xf32> to vector<31x128xf32>
    %45 = arith.mulf %43, %44 : vector<31x128xf32>
    %46 = vector.broadcast %23 : vector<1x128xf32> to vector<31x128xf32>
    %47 = arith.addf %45, %46 : vector<31x128xf32>
    %c0_17 = arith.constant 0 : index
    %c0_18 = arith.constant 0 : index
    %48 = vector.load %arg5[%c0_17, %c0_18] : memref<128x128xf32, #tpu.memory_space<vmem>>, vector<128x128xf32>
    %cst_19 = arith.constant dense<0.000000e+00> : vector<31x128xf32>
    %49 = tpu.matmul %47, %48, %cst_19 {dimension_numbers = #tpu.dot_dimension_numbers<[1], [0], [0], [1], [0, 0, 1, 1], [], []>} : vector<31x128xf32>, vector<128x128xf32>, vector<31x128xf32> -> vector<31x128xf32>
    %c0_20 = arith.constant 0 : index
    %c0_21 = arith.constant 0 : index
    %50 = vector.load %arg6[%c0_20, %c0_21] : memref<1x128xf32, #tpu.memory_space<vmem>>, vector<1x128xf32>
    %51 = vector.broadcast %50 : vector<1x128xf32> to vector<31x128xf32>
    %52 = arith.addf %49, %51 : vector<31x128xf32>
    %c0_22 = arith.constant 0 : index
    %c0_23 = arith.constant 0 : index
    %c0_24 = arith.constant 0 : index
    %53 = vector.load %arg7[%c0_22, %c0_23, %c0_24] : memref<1x31x128xf32, #tpu.memory_space<vmem>>, vector<1x31x128xf32>
    %54 = vector.shape_cast %53 : vector<1x31x128xf32> to vector<31x128xf32>
    %55 = vector.shape_cast %52 : vector<31x128xf32> to vector<1x31x128xf32>
    tpu.vector_store %arg7[%c0_22, %c0_23, %c0_24], %55 {strides = array<i32>} : memref<1x31x128xf32, #tpu.memory_space<vmem>>, vector<1x31x128xf32>,
    return
  }
  func.func @transform_0(%arg0: i32) -> (i32, i32, i32) {
    %c0_i32 = arith.constant 0 : i32
    %c0_i32_0 = arith.constant 0 : i32
    %c0_i32_1 = arith.constant 0 : i32
    return %arg0, %c0_i32, %c0_i32_0 : i32, i32, i32
  }
  func.func @transform_1(%arg0: i32) -> (i32, i32) {
    %c0_i32 = arith.constant 0 : i32
    %c0_i32_0 = arith.constant 0 : i32
    %c0_i32_1 = arith.constant 0 : i32
    return %c0_i32, %c0_i32_0 : i32, i32
  }
  func.func @transform_2(%arg0: i32) -> (i32, i32) {
    %c0_i32 = arith.constant 0 : i32
    %c0_i32_0 = arith.constant 0 : i32
    %c0_i32_1 = arith.constant 0 : i32
    return %c0_i32, %c0_i32_0 : i32, i32
  }
  func.func @transform_3(%arg0: i32) -> (i32, i32) {
    %c0_i32 = arith.constant 0 : i32
    %c0_i32_0 = arith.constant 0 : i32
    %c0_i32_1 = arith.constant 0 : i32
    return %c0_i32, %c0_i32_0 : i32, i32
  }
  func.func @transform_4(%arg0: i32) -> (i32, i32) {
    %c0_i32 = arith.constant 0 : i32
    %c0_i32_0 = arith.constant 0 : i32
    %c0_i32_1 = arith.constant 0 : i32
    return %c0_i32, %c0_i32_0 : i32, i32
  }
  func.func @transform_5(%arg0: i32) -> (i32, i32) {
    %c0_i32 = arith.constant 0 : i32
    %c0_i32_0 = arith.constant 0 : i32
    %c0_i32_1 = arith.constant 0 : i32
    return %c0_i32, %c0_i32_0 : i32, i32
  }
  func.func @transform_6(%arg0: i32) -> (i32, i32, i32) {
    %c0_i32 = arith.constant 0 : i32
    %c0_i32_0 = arith.constant 0 : i32
    %c0_i32_1 = arith.constant 0 : i32
    return %arg0, %c0_i32, %c0_i32_0 : i32, i32, i32
  }
}

module attributes {stable_mosaic.version = 11 : i64} {
  func.func @_posconv_encln_kernel(%arg0: i32, %arg1: memref<1x31x128xf32, #tpu.memory_space<vmem>>, %arg2: memref<4x4x8x8xf32, #tpu.memory_space<vmem>>, %arg3: memref<1x128xf32, #tpu.memory_space<vmem>>, %arg4: memref<1x128xf32, #tpu.memory_space<vmem>>, %arg5: memref<1x128xf32, #tpu.memory_space<vmem>>, %arg6: memref<1x31x128xf32, #tpu.memory_space<vmem>>) attributes {dimension_semantics = [#tpu.dimension_semantics<parallel>], iteration_bounds = array<i64: 2>, scalar_prefetch = 0 : i64, scratch_operands = 0 : i64, tpu.core_type = #tpu.core_type<tc>, window_params = [{transform_indices = @transform_0, window_bounds = array<i64: 1, 31, 128>}, {pipeline_mode = #tpu.pipeline_mode<synchronous>, transform_indices = @transform_1, window_bounds = array<i64: 4, 4, 8, 8>}, {pipeline_mode = #tpu.pipeline_mode<synchronous>, transform_indices = @transform_2, window_bounds = array<i64: 1, 128>}, {pipeline_mode = #tpu.pipeline_mode<synchronous>, transform_indices = @transform_3, window_bounds = array<i64: 1, 128>}, {pipeline_mode = #tpu.pipeline_mode<synchronous>, transform_indices = @transform_4, window_bounds = array<i64: 1, 128>}, {transform_indices = @transform_5, window_bounds = array<i64: 1, 31, 128>}]} {
    %c0 = arith.constant 0 : index
    %c0_0 = arith.constant 0 : index
    %c0_1 = arith.constant 0 : index
    %0 = vector.load %arg1[%c0, %c0_0, %c0_1] : memref<1x31x128xf32, #tpu.memory_space<vmem>>, vector<1x31x128xf32>
    %1 = vector.shape_cast %0 : vector<1x31x128xf32> to vector<31x128xf32>
    %c0_2 = arith.constant 0 : index
    %c0_3 = arith.constant 0 : index
    %c0_4 = arith.constant 0 : index
    %c0_5 = arith.constant 0 : index
    %2 = vector.load %arg2[%c0_2, %c0_3, %c0_4, %c0_5] : memref<4x4x8x8xf32, #tpu.memory_space<vmem>>, vector<4x4x8x8xf32>
    %cst = arith.constant 0.000000e+00 : f32
    %3 = vector.broadcast %cst : f32 to vector<2x128xf32>
    %4 = tpu.concatenate %3, %1, %3 in 0 : vector<2x128xf32>, vector<31x128xf32>, vector<2x128xf32> -> vector<35x128xf32>
    %cst_6 = arith.constant 0.000000e+00 : f32
    %5 = vector.broadcast %cst_6 : f32 to vector<31x8xf32>
    %6 = vector.extract_strided_slice %4 {offsets = [0, 0], sizes = [31, 8], strides = [1, 1]} : vector<35x128xf32> to vector<31x8xf32>
    %7 = vector.extract_strided_slice %2 {offsets = [0, 0, 0, 0], sizes = [1, 1, 8, 8], strides = [1, 1, 1, 1]} : vector<4x4x8x8xf32> to vector<1x1x8x8xf32>
    %8 = vector.shape_cast %7 : vector<1x1x8x8xf32> to vector<8x8xf32>
    %cst_7 = arith.constant dense<0.000000e+00> : vector<31x8xf32>
    %9 = tpu.matmul %6, %8, %cst_7 {dimension_numbers = #tpu.dot_dimension_numbers<[1], [0], [0], [1], [0, 0, 1, 1], [], []>} : vector<31x8xf32>, vector<8x8xf32>, vector<31x8xf32> -> vector<31x8xf32>
    %10 = arith.addf %5, %9 : vector<31x8xf32>
    %11 = vector.extract_strided_slice %4 {offsets = [1, 0], sizes = [31, 8], strides = [1, 1]} : vector<35x128xf32> to vector<31x8xf32>
    %12 = vector.extract_strided_slice %2 {offsets = [0, 1, 0, 0], sizes = [1, 1, 8, 8], strides = [1, 1, 1, 1]} : vector<4x4x8x8xf32> to vector<1x1x8x8xf32>
    %13 = vector.shape_cast %12 : vector<1x1x8x8xf32> to vector<8x8xf32>
    %cst_8 = arith.constant dense<0.000000e+00> : vector<31x8xf32>
    %14 = tpu.matmul %11, %13, %cst_8 {dimension_numbers = #tpu.dot_dimension_numbers<[1], [0], [0], [1], [0, 0, 1, 1], [], []>} : vector<31x8xf32>, vector<8x8xf32>, vector<31x8xf32> -> vector<31x8xf32>
    %15 = arith.addf %10, %14 : vector<31x8xf32>
    %16 = vector.extract_strided_slice %4 {offsets = [2, 0], sizes = [31, 8], strides = [1, 1]} : vector<35x128xf32> to vector<31x8xf32>
    %17 = vector.extract_strided_slice %2 {offsets = [0, 2, 0, 0], sizes = [1, 1, 8, 8], strides = [1, 1, 1, 1]} : vector<4x4x8x8xf32> to vector<1x1x8x8xf32>
    %18 = vector.shape_cast %17 : vector<1x1x8x8xf32> to vector<8x8xf32>
    %cst_9 = arith.constant dense<0.000000e+00> : vector<31x8xf32>
    %19 = tpu.matmul %16, %18, %cst_9 {dimension_numbers = #tpu.dot_dimension_numbers<[1], [0], [0], [1], [0, 0, 1, 1], [], []>} : vector<31x8xf32>, vector<8x8xf32>, vector<31x8xf32> -> vector<31x8xf32>
    %20 = arith.addf %15, %19 : vector<31x8xf32>
    %21 = vector.extract_strided_slice %4 {offsets = [3, 0], sizes = [31, 8], strides = [1, 1]} : vector<35x128xf32> to vector<31x8xf32>
    %22 = vector.extract_strided_slice %2 {offsets = [0, 3, 0, 0], sizes = [1, 1, 8, 8], strides = [1, 1, 1, 1]} : vector<4x4x8x8xf32> to vector<1x1x8x8xf32>
    %23 = vector.shape_cast %22 : vector<1x1x8x8xf32> to vector<8x8xf32>
    %cst_10 = arith.constant dense<0.000000e+00> : vector<31x8xf32>
    %24 = tpu.matmul %21, %23, %cst_10 {dimension_numbers = #tpu.dot_dimension_numbers<[1], [0], [0], [1], [0, 0, 1, 1], [], []>} : vector<31x8xf32>, vector<8x8xf32>, vector<31x8xf32> -> vector<31x8xf32>
    %25 = arith.addf %20, %24 : vector<31x8xf32>
    %cst_11 = arith.constant 0.000000e+00 : f32
    %26 = vector.broadcast %cst_11 : f32 to vector<31x8xf32>
    %27 = vector.extract_strided_slice %4 {offsets = [0, 8], sizes = [31, 8], strides = [1, 1]} : vector<35x128xf32> to vector<31x8xf32>
    %28 = vector.extract_strided_slice %2 {offsets = [1, 0, 0, 0], sizes = [1, 1, 8, 8], strides = [1, 1, 1, 1]} : vector<4x4x8x8xf32> to vector<1x1x8x8xf32>
    %29 = vector.shape_cast %28 : vector<1x1x8x8xf32> to vector<8x8xf32>
    %cst_12 = arith.constant dense<0.000000e+00> : vector<31x8xf32>
    %30 = tpu.matmul %27, %29, %cst_12 {dimension_numbers = #tpu.dot_dimension_numbers<[1], [0], [0], [1], [0, 0, 1, 1], [], []>} : vector<31x8xf32>, vector<8x8xf32>, vector<31x8xf32> -> vector<31x8xf32>
    %31 = arith.addf %26, %30 : vector<31x8xf32>
    %32 = vector.extract_strided_slice %4 {offsets = [1, 8], sizes = [31, 8], strides = [1, 1]} : vector<35x128xf32> to vector<31x8xf32>
    %33 = vector.extract_strided_slice %2 {offsets = [1, 1, 0, 0], sizes = [1, 1, 8, 8], strides = [1, 1, 1, 1]} : vector<4x4x8x8xf32> to vector<1x1x8x8xf32>
    %34 = vector.shape_cast %33 : vector<1x1x8x8xf32> to vector<8x8xf32>
    %cst_13 = arith.constant dense<0.000000e+00> : vector<31x8xf32>
    %35 = tpu.matmul %32, %34, %cst_13 {dimension_numbers = #tpu.dot_dimension_numbers<[1], [0], [0], [1], [0, 0, 1, 1], [], []>} : vector<31x8xf32>, vector<8x8xf32>, vector<31x8xf32> -> vector<31x8xf32>
    %36 = arith.addf %31, %35 : vector<31x8xf32>
    %37 = vector.extract_strided_slice %4 {offsets = [2, 8], sizes = [31, 8], strides = [1, 1]} : vector<35x128xf32> to vector<31x8xf32>
    %38 = vector.extract_strided_slice %2 {offsets = [1, 2, 0, 0], sizes = [1, 1, 8, 8], strides = [1, 1, 1, 1]} : vector<4x4x8x8xf32> to vector<1x1x8x8xf32>
    %39 = vector.shape_cast %38 : vector<1x1x8x8xf32> to vector<8x8xf32>
    %cst_14 = arith.constant dense<0.000000e+00> : vector<31x8xf32>
    %40 = tpu.matmul %37, %39, %cst_14 {dimension_numbers = #tpu.dot_dimension_numbers<[1], [0], [0], [1], [0, 0, 1, 1], [], []>} : vector<31x8xf32>, vector<8x8xf32>, vector<31x8xf32> -> vector<31x8xf32>
    %41 = arith.addf %36, %40 : vector<31x8xf32>
    %42 = vector.extract_strided_slice %4 {offsets = [3, 8], sizes = [31, 8], strides = [1, 1]} : vector<35x128xf32> to vector<31x8xf32>
    %43 = vector.extract_strided_slice %2 {offsets = [1, 3, 0, 0], sizes = [1, 1, 8, 8], strides = [1, 1, 1, 1]} : vector<4x4x8x8xf32> to vector<1x1x8x8xf32>
    %44 = vector.shape_cast %43 : vector<1x1x8x8xf32> to vector<8x8xf32>
    %cst_15 = arith.constant dense<0.000000e+00> : vector<31x8xf32>
    %45 = tpu.matmul %42, %44, %cst_15 {dimension_numbers = #tpu.dot_dimension_numbers<[1], [0], [0], [1], [0, 0, 1, 1], [], []>} : vector<31x8xf32>, vector<8x8xf32>, vector<31x8xf32> -> vector<31x8xf32>
    %46 = arith.addf %41, %45 : vector<31x8xf32>
    %cst_16 = arith.constant 0.000000e+00 : f32
    %47 = vector.broadcast %cst_16 : f32 to vector<31x8xf32>
    %48 = vector.extract_strided_slice %4 {offsets = [0, 16], sizes = [31, 8], strides = [1, 1]} : vector<35x128xf32> to vector<31x8xf32>
    %49 = vector.extract_strided_slice %2 {offsets = [2, 0, 0, 0], sizes = [1, 1, 8, 8], strides = [1, 1, 1, 1]} : vector<4x4x8x8xf32> to vector<1x1x8x8xf32>
    %50 = vector.shape_cast %49 : vector<1x1x8x8xf32> to vector<8x8xf32>
    %cst_17 = arith.constant dense<0.000000e+00> : vector<31x8xf32>
    %51 = tpu.matmul %48, %50, %cst_17 {dimension_numbers = #tpu.dot_dimension_numbers<[1], [0], [0], [1], [0, 0, 1, 1], [], []>} : vector<31x8xf32>, vector<8x8xf32>, vector<31x8xf32> -> vector<31x8xf32>
    %52 = arith.addf %47, %51 : vector<31x8xf32>
    %53 = vector.extract_strided_slice %4 {offsets = [1, 16], sizes = [31, 8], strides = [1, 1]} : vector<35x128xf32> to vector<31x8xf32>
    %54 = vector.extract_strided_slice %2 {offsets = [2, 1, 0, 0], sizes = [1, 1, 8, 8], strides = [1, 1, 1, 1]} : vector<4x4x8x8xf32> to vector<1x1x8x8xf32>
    %55 = vector.shape_cast %54 : vector<1x1x8x8xf32> to vector<8x8xf32>
    %cst_18 = arith.constant dense<0.000000e+00> : vector<31x8xf32>
    %56 = tpu.matmul %53, %55, %cst_18 {dimension_numbers = #tpu.dot_dimension_numbers<[1], [0], [0], [1], [0, 0, 1, 1], [], []>} : vector<31x8xf32>, vector<8x8xf32>, vector<31x8xf32> -> vector<31x8xf32>
    %57 = arith.addf %52, %56 : vector<31x8xf32>
    %58 = vector.extract_strided_slice %4 {offsets = [2, 16], sizes = [31, 8], strides = [1, 1]} : vector<35x128xf32> to vector<31x8xf32>
    %59 = vector.extract_strided_slice %2 {offsets = [2, 2, 0, 0], sizes = [1, 1, 8, 8], strides = [1, 1, 1, 1]} : vector<4x4x8x8xf32> to vector<1x1x8x8xf32>
    %60 = vector.shape_cast %59 : vector<1x1x8x8xf32> to vector<8x8xf32>
    %cst_19 = arith.constant dense<0.000000e+00> : vector<31x8xf32>
    %61 = tpu.matmul %58, %60, %cst_19 {dimension_numbers = #tpu.dot_dimension_numbers<[1], [0], [0], [1], [0, 0, 1, 1], [], []>} : vector<31x8xf32>, vector<8x8xf32>, vector<31x8xf32> -> vector<31x8xf32>
    %62 = arith.addf %57, %61 : vector<31x8xf32>
    %63 = vector.extract_strided_slice %4 {offsets = [3, 16], sizes = [31, 8], strides = [1, 1]} : vector<35x128xf32> to vector<31x8xf32>
    %64 = vector.extract_strided_slice %2 {offsets = [2, 3, 0, 0], sizes = [1, 1, 8, 8], strides = [1, 1, 1, 1]} : vector<4x4x8x8xf32> to vector<1x1x8x8xf32>
    %65 = vector.shape_cast %64 : vector<1x1x8x8xf32> to vector<8x8xf32>
    %cst_20 = arith.constant dense<0.000000e+00> : vector<31x8xf32>
    %66 = tpu.matmul %63, %65, %cst_20 {dimension_numbers = #tpu.dot_dimension_numbers<[1], [0], [0], [1], [0, 0, 1, 1], [], []>} : vector<31x8xf32>, vector<8x8xf32>, vector<31x8xf32> -> vector<31x8xf32>
    %67 = arith.addf %62, %66 : vector<31x8xf32>
    %cst_21 = arith.constant 0.000000e+00 : f32
    %68 = vector.broadcast %cst_21 : f32 to vector<31x8xf32>
    %69 = vector.extract_strided_slice %4 {offsets = [0, 24], sizes = [31, 8], strides = [1, 1]} : vector<35x128xf32> to vector<31x8xf32>
    %70 = vector.extract_strided_slice %2 {offsets = [3, 0, 0, 0], sizes = [1, 1, 8, 8], strides = [1, 1, 1, 1]} : vector<4x4x8x8xf32> to vector<1x1x8x8xf32>
    %71 = vector.shape_cast %70 : vector<1x1x8x8xf32> to vector<8x8xf32>
    %cst_22 = arith.constant dense<0.000000e+00> : vector<31x8xf32>
    %72 = tpu.matmul %69, %71, %cst_22 {dimension_numbers = #tpu.dot_dimension_numbers<[1], [0], [0], [1], [0, 0, 1, 1], [], []>} : vector<31x8xf32>, vector<8x8xf32>, vector<31x8xf32> -> vector<31x8xf32>
    %73 = arith.addf %68, %72 : vector<31x8xf32>
    %74 = vector.extract_strided_slice %4 {offsets = [1, 24], sizes = [31, 8], strides = [1, 1]} : vector<35x128xf32> to vector<31x8xf32>
    %75 = vector.extract_strided_slice %2 {offsets = [3, 1, 0, 0], sizes = [1, 1, 8, 8], strides = [1, 1, 1, 1]} : vector<4x4x8x8xf32> to vector<1x1x8x8xf32>
    %76 = vector.shape_cast %75 : vector<1x1x8x8xf32> to vector<8x8xf32>
    %cst_23 = arith.constant dense<0.000000e+00> : vector<31x8xf32>
    %77 = tpu.matmul %74, %76, %cst_23 {dimension_numbers = #tpu.dot_dimension_numbers<[1], [0], [0], [1], [0, 0, 1, 1], [], []>} : vector<31x8xf32>, vector<8x8xf32>, vector<31x8xf32> -> vector<31x8xf32>
    %78 = arith.addf %73, %77 : vector<31x8xf32>
    %79 = vector.extract_strided_slice %4 {offsets = [2, 24], sizes = [31, 8], strides = [1, 1]} : vector<35x128xf32> to vector<31x8xf32>
    %80 = vector.extract_strided_slice %2 {offsets = [3, 2, 0, 0], sizes = [1, 1, 8, 8], strides = [1, 1, 1, 1]} : vector<4x4x8x8xf32> to vector<1x1x8x8xf32>
    %81 = vector.shape_cast %80 : vector<1x1x8x8xf32> to vector<8x8xf32>
    %cst_24 = arith.constant dense<0.000000e+00> : vector<31x8xf32>
    %82 = tpu.matmul %79, %81, %cst_24 {dimension_numbers = #tpu.dot_dimension_numbers<[1], [0], [0], [1], [0, 0, 1, 1], [], []>} : vector<31x8xf32>, vector<8x8xf32>, vector<31x8xf32> -> vector<31x8xf32>
    %83 = arith.addf %78, %82 : vector<31x8xf32>
    %84 = vector.extract_strided_slice %4 {offsets = [3, 24], sizes = [31, 8], strides = [1, 1]} : vector<35x128xf32> to vector<31x8xf32>
    %85 = vector.extract_strided_slice %2 {offsets = [3, 3, 0, 0], sizes = [1, 1, 8, 8], strides = [1, 1, 1, 1]} : vector<4x4x8x8xf32> to vector<1x1x8x8xf32>
    %86 = vector.shape_cast %85 : vector<1x1x8x8xf32> to vector<8x8xf32>
    %cst_25 = arith.constant dense<0.000000e+00> : vector<31x8xf32>
    %87 = tpu.matmul %84, %86, %cst_25 {dimension_numbers = #tpu.dot_dimension_numbers<[1], [0], [0], [1], [0, 0, 1, 1], [], []>} : vector<31x8xf32>, vector<8x8xf32>, vector<31x8xf32> -> vector<31x8xf32>
    %88 = arith.addf %83, %87 : vector<31x8xf32>
    %cst_26 = arith.constant 0.000000e+00 : f32
    %89 = vector.broadcast %cst_26 : f32 to vector<31x96xf32>
    %90 = tpu.concatenate %25, %46, %67, %88, %89 in 1 : vector<31x8xf32>, vector<31x8xf32>, vector<31x8xf32>, vector<31x8xf32>, vector<31x96xf32> -> vector<31x128xf32>
    %c0_27 = arith.constant 0 : index
    %c0_28 = arith.constant 0 : index
    %91 = vector.load %arg3[%c0_27, %c0_28] : memref<1x128xf32, #tpu.memory_space<vmem>>, vector<1x128xf32>
    %92 = vector.broadcast %91 : vector<1x128xf32> to vector<31x128xf32>
    %93 = arith.addf %90, %92 : vector<31x128xf32>
    %cst_29 = arith.constant 5.000000e-01 : f32
    %94 = vector.broadcast %cst_29 : f32 to vector<31x128xf32>
    %95 = arith.mulf %94, %93 : vector<31x128xf32>
    %cst_30 = arith.constant 4.471500e-02 : f32
    %96 = vector.broadcast %cst_30 : f32 to vector<31x128xf32>
    %97 = arith.mulf %96, %93 : vector<31x128xf32>
    %98 = arith.mulf %97, %93 : vector<31x128xf32>
    %99 = arith.mulf %98, %93 : vector<31x128xf32>
    %100 = arith.addf %93, %99 : vector<31x128xf32>
    %cst_31 = arith.constant 0.797884583 : f32
    %101 = vector.broadcast %cst_31 : f32 to vector<31x128xf32>
    %102 = arith.mulf %101, %100 : vector<31x128xf32>
    %103 = math.tanh %102 : vector<31x128xf32>
    %cst_32 = arith.constant 1.000000e+00 : f32
    %104 = vector.broadcast %cst_32 : f32 to vector<31x128xf32>
    %105 = arith.addf %104, %103 : vector<31x128xf32>
    %106 = arith.mulf %95, %105 : vector<31x128xf32>
    %107 = arith.addf %1, %106 : vector<31x128xf32>
    %108 = tpu.iota {dimensions = array<i32: 1>} : vector<1x128xi32>
    %c32_i32 = arith.constant 32 : i32
    %109 = vector.broadcast %c32_i32 : i32 to vector<1x128xi32>
    %110 = arith.cmpi slt, %108, %109 : vector<1x128xi32>
    %111 = arith.extui %110 : vector<1x128xi1> to vector<1x128xi32>
    %112 = arith.sitofp %111 : vector<1x128xi32> to vector<1x128xf32>
    %c0_33 = arith.constant 0 : index
    %c0_34 = arith.constant 0 : index
    %113 = vector.load %arg4[%c0_33, %c0_34] : memref<1x128xf32, #tpu.memory_space<vmem>>, vector<1x128xf32>
    %c0_35 = arith.constant 0 : index
    %c0_36 = arith.constant 0 : index
    %114 = vector.load %arg5[%c0_35, %c0_36] : memref<1x128xf32, #tpu.memory_space<vmem>>, vector<1x128xf32>
    %115 = vector.broadcast %112 : vector<1x128xf32> to vector<31x128xf32>
    %116 = arith.mulf %107, %115 : vector<31x128xf32>
    %cst_37 = arith.constant dense<0.000000e+00> : vector<31xf32>
    %117 = vector.multi_reduction <add>, %116, %cst_37 [1] : vector<31x128xf32> to vector<31xf32>
    %118 = vector.shape_cast %117 : vector<31xf32> to vector<31x1xf32>
    %cst_38 = arith.constant 3.125000e-02 : f32
    %119 = vector.broadcast %cst_38 : f32 to vector<31x1xf32>
    %120 = arith.mulf %118, %119 : vector<31x1xf32>
    %121 = vector.broadcast %120 : vector<31x1xf32> to vector<31x128xf32>
    %122 = arith.subf %107, %121 : vector<31x128xf32>
    %123 = vector.broadcast %112 : vector<1x128xf32> to vector<31x128xf32>
    %124 = arith.mulf %122, %123 : vector<31x128xf32>
    %125 = arith.mulf %124, %124 : vector<31x128xf32>
    %cst_39 = arith.constant dense<0.000000e+00> : vector<31xf32>
    %126 = vector.multi_reduction <add>, %125, %cst_39 [1] : vector<31x128xf32> to vector<31xf32>
    %127 = vector.shape_cast %126 : vector<31xf32> to vector<31x1xf32>
    %cst_40 = arith.constant 3.125000e-02 : f32
    %128 = vector.broadcast %cst_40 : f32 to vector<31x1xf32>
    %129 = arith.mulf %127, %128 : vector<31x1xf32>
    %cst_41 = arith.constant 9.99999974E-6 : f32
    %130 = vector.broadcast %cst_41 : f32 to vector<31x1xf32>
    %131 = arith.addf %129, %130 : vector<31x1xf32>
    %132 = math.rsqrt %131 : vector<31x1xf32>
    %133 = vector.broadcast %132 : vector<31x1xf32> to vector<31x128xf32>
    %134 = arith.mulf %124, %133 : vector<31x128xf32>
    %135 = vector.broadcast %113 : vector<1x128xf32> to vector<31x128xf32>
    %136 = arith.mulf %134, %135 : vector<31x128xf32>
    %137 = vector.broadcast %114 : vector<1x128xf32> to vector<31x128xf32>
    %138 = arith.addf %136, %137 : vector<31x128xf32>
    %c0_42 = arith.constant 0 : index
    %c0_43 = arith.constant 0 : index
    %c0_44 = arith.constant 0 : index
    %139 = vector.load %arg6[%c0_42, %c0_43, %c0_44] : memref<1x31x128xf32, #tpu.memory_space<vmem>>, vector<1x31x128xf32>
    %140 = vector.shape_cast %139 : vector<1x31x128xf32> to vector<31x128xf32>
    %141 = vector.shape_cast %138 : vector<31x128xf32> to vector<1x31x128xf32>
    tpu.vector_store %arg6[%c0_42, %c0_43, %c0_44], %141 {strides = array<i32>} : memref<1x31x128xf32, #tpu.memory_space<vmem>>, vector<1x31x128xf32>,
    return
  }
  func.func @transform_0(%arg0: i32) -> (i32, i32, i32) {
    %c0_i32 = arith.constant 0 : i32
    %c0_i32_0 = arith.constant 0 : i32
    %c0_i32_1 = arith.constant 0 : i32
    return %arg0, %c0_i32, %c0_i32_0 : i32, i32, i32
  }
  func.func @transform_1(%arg0: i32) -> (i32, i32, i32, i32) {
    %c0_i32 = arith.constant 0 : i32
    %c0_i32_0 = arith.constant 0 : i32
    %c0_i32_1 = arith.constant 0 : i32
    %c0_i32_2 = arith.constant 0 : i32
    %c0_i32_3 = arith.constant 0 : i32
    return %c0_i32, %c0_i32_0, %c0_i32_1, %c0_i32_2 : i32, i32, i32, i32
  }
  func.func @transform_2(%arg0: i32) -> (i32, i32) {
    %c0_i32 = arith.constant 0 : i32
    %c0_i32_0 = arith.constant 0 : i32
    %c0_i32_1 = arith.constant 0 : i32
    return %c0_i32, %c0_i32_0 : i32, i32
  }
  func.func @transform_3(%arg0: i32) -> (i32, i32) {
    %c0_i32 = arith.constant 0 : i32
    %c0_i32_0 = arith.constant 0 : i32
    %c0_i32_1 = arith.constant 0 : i32
    return %c0_i32, %c0_i32_0 : i32, i32
  }
  func.func @transform_4(%arg0: i32) -> (i32, i32) {
    %c0_i32 = arith.constant 0 : i32
    %c0_i32_0 = arith.constant 0 : i32
    %c0_i32_1 = arith.constant 0 : i32
    return %c0_i32, %c0_i32_0 : i32, i32
  }
  func.func @transform_5(%arg0: i32) -> (i32, i32, i32) {
    %c0_i32 = arith.constant 0 : i32
    %c0_i32_0 = arith.constant 0 : i32
    %c0_i32_1 = arith.constant 0 : i32
    return %arg0, %c0_i32, %c0_i32_0 : i32, i32, i32
  }
}

module attributes {stable_mosaic.version = 11 : i64} {
  func.func @_encoder_layer_kernel(%arg0: i32, %arg1: memref<1x31x128xf32, #tpu.memory_space<vmem>>, %arg2: memref<128x384xbf16, #tpu.memory_space<vmem>>, %arg3: memref<1x384xf32, #tpu.memory_space<vmem>>, %arg4: memref<128x128xbf16, #tpu.memory_space<vmem>>, %arg5: memref<1x128xf32, #tpu.memory_space<vmem>>, %arg6: memref<1x128xf32, #tpu.memory_space<vmem>>, %arg7: memref<1x128xf32, #tpu.memory_space<vmem>>, %arg8: memref<128x128xbf16, #tpu.memory_space<vmem>>, %arg9: memref<1x128xf32, #tpu.memory_space<vmem>>, %arg10: memref<128x128xbf16, #tpu.memory_space<vmem>>, %arg11: memref<1x128xf32, #tpu.memory_space<vmem>>, %arg12: memref<1x128xf32, #tpu.memory_space<vmem>>, %arg13: memref<1x128xf32, #tpu.memory_space<vmem>>, %arg14: memref<1x31x128xf32, #tpu.memory_space<vmem>>) attributes {dimension_semantics = [#tpu.dimension_semantics<parallel>], iteration_bounds = array<i64: 2>, scalar_prefetch = 0 : i64, scratch_operands = 0 : i64, tpu.core_type = #tpu.core_type<tc>, window_params = [{transform_indices = @transform_0, window_bounds = array<i64: 1, 31, 128>}, {pipeline_mode = #tpu.pipeline_mode<synchronous>, transform_indices = @transform_1, window_bounds = array<i64: 128, 384>}, {pipeline_mode = #tpu.pipeline_mode<synchronous>, transform_indices = @transform_2, window_bounds = array<i64: 1, 384>}, {pipeline_mode = #tpu.pipeline_mode<synchronous>, transform_indices = @transform_3, window_bounds = array<i64: 128, 128>}, {pipeline_mode = #tpu.pipeline_mode<synchronous>, transform_indices = @transform_4, window_bounds = array<i64: 1, 128>}, {pipeline_mode = #tpu.pipeline_mode<synchronous>, transform_indices = @transform_5, window_bounds = array<i64: 1, 128>}, {pipeline_mode = #tpu.pipeline_mode<synchronous>, transform_indices = @transform_6, window_bounds = array<i64: 1, 128>}, {pipeline_mode = #tpu.pipeline_mode<synchronous>, transform_indices = @transform_7, window_bounds = array<i64: 128, 128>}, {pipeline_mode = #tpu.pipeline_mode<synchronous>, transform_indices = @transform_8, window_bounds = array<i64: 1, 128>}, {pipeline_mode = #tpu.pipeline_mode<synchronous>, transform_indices = @transform_9, window_bounds = array<i64: 128, 128>}, {pipeline_mode = #tpu.pipeline_mode<synchronous>, transform_indices = @transform_10, window_bounds = array<i64: 1, 128>}, {pipeline_mode = #tpu.pipeline_mode<synchronous>, transform_indices = @transform_11, window_bounds = array<i64: 1, 128>}, {pipeline_mode = #tpu.pipeline_mode<synchronous>, transform_indices = @transform_12, window_bounds = array<i64: 1, 128>}, {transform_indices = @transform_13, window_bounds = array<i64: 1, 31, 128>}]} {
    %c0 = arith.constant 0 : index
    %c0_0 = arith.constant 0 : index
    %c0_1 = arith.constant 0 : index
    %0 = vector.load %arg1[%c0, %c0_0, %c0_1] : memref<1x31x128xf32, #tpu.memory_space<vmem>>, vector<1x31x128xf32>
    %1 = vector.shape_cast %0 : vector<1x31x128xf32> to vector<31x128xf32>
    %2 = tpu.iota {dimensions = array<i32: 1>} : vector<1x128xi32>
    %c32_i32 = arith.constant 32 : i32
    %3 = vector.broadcast %c32_i32 : i32 to vector<1x128xi32>
    %4 = arith.cmpi slt, %2, %3 : vector<1x128xi32>
    %5 = arith.extui %4 : vector<1x128xi1> to vector<1x128xi32>
    %6 = arith.sitofp %5 : vector<1x128xi32> to vector<1x128xf32>
    %7 = arith.truncf %1 : vector<31x128xf32> to vector<31x128xbf16>
    %c0_2 = arith.constant 0 : index
    %c0_3 = arith.constant 0 : index
    %8 = vector.load %arg2[%c0_2, %c0_3] : memref<128x384xbf16, #tpu.memory_space<vmem>>, vector<128x384xbf16>
    %cst = arith.constant dense<0.000000e+00> : vector<31x384xf32>
    %9 = tpu.matmul %7, %8, %cst {dimension_numbers = #tpu.dot_dimension_numbers<[1], [0], [0], [1], [0, 0, 1, 1], [], []>} : vector<31x128xbf16>, vector<128x384xbf16>, vector<31x384xf32> -> vector<31x384xf32>
    %c0_4 = arith.constant 0 : index
    %c0_5 = arith.constant 0 : index
    %10 = vector.load %arg3[%c0_4, %c0_5] : memref<1x384xf32, #tpu.memory_space<vmem>>, vector<1x384xf32>
    %11 = vector.broadcast %10 : vector<1x384xf32> to vector<31x384xf32>
    %12 = arith.addf %9, %11 : vector<31x384xf32>
    %13 = vector.extract_strided_slice %12 {offsets = [0, 0], sizes = [31, 128], strides = [1, 1]} : vector<31x384xf32> to vector<31x128xf32>
    %14 = vector.extract_strided_slice %12 {offsets = [0, 128], sizes = [31, 128], strides = [1, 1]} : vector<31x384xf32> to vector<31x128xf32>
    %15 = vector.extract_strided_slice %12 {offsets = [0, 256], sizes = [31, 128], strides = [1, 1]} : vector<31x384xf32> to vector<31x128xf32>
    %16 = arith.truncf %14 : vector<31x128xf32> to vector<31x128xbf16>
    %cst_6 = arith.constant 0.000000e+00 : f32
    %17 = vector.broadcast %cst_6 : f32 to vector<31x128xf32>
    %c0_i32 = arith.constant 0 : i32
    %18 = vector.broadcast %c0_i32 : i32 to vector<1x128xi32>
    %19 = arith.cmpi sge, %2, %18 : vector<1x128xi32>
    %c8_i32 = arith.constant 8 : i32
    %20 = vector.broadcast %c8_i32 : i32 to vector<1x128xi32>
    %21 = arith.cmpi slt, %2, %20 : vector<1x128xi32>
    %22 = arith.andi %19, %21 : vector<1x128xi1>
    %23 = arith.extui %22 : vector<1x128xi1> to vector<1x128xi32>
    %24 = arith.sitofp %23 : vector<1x128xi32> to vector<1x128xf32>
    %25 = vector.broadcast %24 : vector<1x128xf32> to vector<31x128xf32>
    %26 = arith.mulf %13, %25 : vector<31x128xf32>
    %27 = arith.truncf %26 : vector<31x128xf32> to vector<31x128xbf16>
    %cst_7 = arith.constant dense<0.000000e+00> : vector<31x31xf32>
    %28 = tpu.matmul %27, %16, %cst_7 {dimension_numbers = #tpu.dot_dimension_numbers<[1], [1], [0], [0], [0, 0, 1, 0], [], []>} : vector<31x128xbf16>, vector<31x128xbf16>, vector<31x31xf32> -> vector<31x31xf32>
    %cst_8 = arith.constant dense<0xFF800000> : vector<31xf32>
    %29 = vector.multi_reduction <maximumf>, %28, %cst_8 [1] : vector<31x31xf32> to vector<31xf32>
    %30 = vector.shape_cast %29 : vector<31xf32> to vector<31x1xf32>
    %31 = vector.broadcast %30 : vector<31x1xf32> to vector<31x31xf32>
    %32 = arith.subf %28, %31 : vector<31x31xf32>
    %33 = math.exp %32 : vector<31x31xf32>
    %cst_9 = arith.constant dense<0.000000e+00> : vector<31xf32>
    %34 = vector.multi_reduction <add>, %33, %cst_9 [1] : vector<31x31xf32> to vector<31xf32>
    %35 = vector.shape_cast %34 : vector<31xf32> to vector<31x1xf32>
    %36 = tpu.reciprocal %35 {approx = true} : vector<31x1xf32> -> vector<31x1xf32>
    %37 = vector.broadcast %36 : vector<31x1xf32> to vector<31x31xf32>
    %38 = arith.mulf %33, %37 : vector<31x31xf32>
    %39 = arith.truncf %38 : vector<31x31xf32> to vector<31x31xbf16>
    %40 = vector.broadcast %24 : vector<1x128xf32> to vector<31x128xf32>
    %41 = arith.mulf %15, %40 : vector<31x128xf32>
    %42 = arith.truncf %41 : vector<31x128xf32> to vector<31x128xbf16>
    %cst_10 = arith.constant dense<0.000000e+00> : vector<31x128xf32>
    %43 = tpu.matmul %39, %42, %cst_10 {dimension_numbers = #tpu.dot_dimension_numbers<[1], [0], [0], [1], [0, 0, 1, 1], [], []>} : vector<31x31xbf16>, vector<31x128xbf16>, vector<31x128xf32> -> vector<31x128xf32>
    %44 = arith.addf %17, %43 : vector<31x128xf32>
    %c8_i32_11 = arith.constant 8 : i32
    %45 = vector.broadcast %c8_i32_11 : i32 to vector<1x128xi32>
    %46 = arith.cmpi sge, %2, %45 : vector<1x128xi32>
    %c16_i32 = arith.constant 16 : i32
    %47 = vector.broadcast %c16_i32 : i32 to vector<1x128xi32>
    %48 = arith.cmpi slt, %2, %47 : vector<1x128xi32>
    %49 = arith.andi %46, %48 : vector<1x128xi1>
    %50 = arith.extui %49 : vector<1x128xi1> to vector<1x128xi32>
    %51 = arith.sitofp %50 : vector<1x128xi32> to vector<1x128xf32>
    %52 = vector.broadcast %51 : vector<1x128xf32> to vector<31x128xf32>
    %53 = arith.mulf %13, %52 : vector<31x128xf32>
    %54 = arith.truncf %53 : vector<31x128xf32> to vector<31x128xbf16>
    %cst_12 = arith.constant dense<0.000000e+00> : vector<31x31xf32>
    %55 = tpu.matmul %54, %16, %cst_12 {dimension_numbers = #tpu.dot_dimension_numbers<[1], [1], [0], [0], [0, 0, 1, 0], [], []>} : vector<31x128xbf16>, vector<31x128xbf16>, vector<31x31xf32> -> vector<31x31xf32>
    %cst_13 = arith.constant dense<0xFF800000> : vector<31xf32>
    %56 = vector.multi_reduction <maximumf>, %55, %cst_13 [1] : vector<31x31xf32> to vector<31xf32>
    %57 = vector.shape_cast %56 : vector<31xf32> to vector<31x1xf32>
    %58 = vector.broadcast %57 : vector<31x1xf32> to vector<31x31xf32>
    %59 = arith.subf %55, %58 : vector<31x31xf32>
    %60 = math.exp %59 : vector<31x31xf32>
    %cst_14 = arith.constant dense<0.000000e+00> : vector<31xf32>
    %61 = vector.multi_reduction <add>, %60, %cst_14 [1] : vector<31x31xf32> to vector<31xf32>
    %62 = vector.shape_cast %61 : vector<31xf32> to vector<31x1xf32>
    %63 = tpu.reciprocal %62 {approx = true} : vector<31x1xf32> -> vector<31x1xf32>
    %64 = vector.broadcast %63 : vector<31x1xf32> to vector<31x31xf32>
    %65 = arith.mulf %60, %64 : vector<31x31xf32>
    %66 = arith.truncf %65 : vector<31x31xf32> to vector<31x31xbf16>
    %67 = vector.broadcast %51 : vector<1x128xf32> to vector<31x128xf32>
    %68 = arith.mulf %15, %67 : vector<31x128xf32>
    %69 = arith.truncf %68 : vector<31x128xf32> to vector<31x128xbf16>
    %cst_15 = arith.constant dense<0.000000e+00> : vector<31x128xf32>
    %70 = tpu.matmul %66, %69, %cst_15 {dimension_numbers = #tpu.dot_dimension_numbers<[1], [0], [0], [1], [0, 0, 1, 1], [], []>} : vector<31x31xbf16>, vector<31x128xbf16>, vector<31x128xf32> -> vector<31x128xf32>
    %71 = arith.addf %44, %70 : vector<31x128xf32>
    %c16_i32_16 = arith.constant 16 : i32
    %72 = vector.broadcast %c16_i32_16 : i32 to vector<1x128xi32>
    %73 = arith.cmpi sge, %2, %72 : vector<1x128xi32>
    %c24_i32 = arith.constant 24 : i32
    %74 = vector.broadcast %c24_i32 : i32 to vector<1x128xi32>
    %75 = arith.cmpi slt, %2, %74 : vector<1x128xi32>
    %76 = arith.andi %73, %75 : vector<1x128xi1>
    %77 = arith.extui %76 : vector<1x128xi1> to vector<1x128xi32>
    %78 = arith.sitofp %77 : vector<1x128xi32> to vector<1x128xf32>
    %79 = vector.broadcast %78 : vector<1x128xf32> to vector<31x128xf32>
    %80 = arith.mulf %13, %79 : vector<31x128xf32>
    %81 = arith.truncf %80 : vector<31x128xf32> to vector<31x128xbf16>
    %cst_17 = arith.constant dense<0.000000e+00> : vector<31x31xf32>
    %82 = tpu.matmul %81, %16, %cst_17 {dimension_numbers = #tpu.dot_dimension_numbers<[1], [1], [0], [0], [0, 0, 1, 0], [], []>} : vector<31x128xbf16>, vector<31x128xbf16>, vector<31x31xf32> -> vector<31x31xf32>
    %cst_18 = arith.constant dense<0xFF800000> : vector<31xf32>
    %83 = vector.multi_reduction <maximumf>, %82, %cst_18 [1] : vector<31x31xf32> to vector<31xf32>
    %84 = vector.shape_cast %83 : vector<31xf32> to vector<31x1xf32>
    %85 = vector.broadcast %84 : vector<31x1xf32> to vector<31x31xf32>
    %86 = arith.subf %82, %85 : vector<31x31xf32>
    %87 = math.exp %86 : vector<31x31xf32>
    %cst_19 = arith.constant dense<0.000000e+00> : vector<31xf32>
    %88 = vector.multi_reduction <add>, %87, %cst_19 [1] : vector<31x31xf32> to vector<31xf32>
    %89 = vector.shape_cast %88 : vector<31xf32> to vector<31x1xf32>
    %90 = tpu.reciprocal %89 {approx = true} : vector<31x1xf32> -> vector<31x1xf32>
    %91 = vector.broadcast %90 : vector<31x1xf32> to vector<31x31xf32>
    %92 = arith.mulf %87, %91 : vector<31x31xf32>
    %93 = arith.truncf %92 : vector<31x31xf32> to vector<31x31xbf16>
    %94 = vector.broadcast %78 : vector<1x128xf32> to vector<31x128xf32>
    %95 = arith.mulf %15, %94 : vector<31x128xf32>
    %96 = arith.truncf %95 : vector<31x128xf32> to vector<31x128xbf16>
    %cst_20 = arith.constant dense<0.000000e+00> : vector<31x128xf32>
    %97 = tpu.matmul %93, %96, %cst_20 {dimension_numbers = #tpu.dot_dimension_numbers<[1], [0], [0], [1], [0, 0, 1, 1], [], []>} : vector<31x31xbf16>, vector<31x128xbf16>, vector<31x128xf32> -> vector<31x128xf32>
    %98 = arith.addf %71, %97 : vector<31x128xf32>
    %c24_i32_21 = arith.constant 24 : i32
    %99 = vector.broadcast %c24_i32_21 : i32 to vector<1x128xi32>
    %100 = arith.cmpi sge, %2, %99 : vector<1x128xi32>
    %c32_i32_22 = arith.constant 32 : i32
    %101 = vector.broadcast %c32_i32_22 : i32 to vector<1x128xi32>
    %102 = arith.cmpi slt, %2, %101 : vector<1x128xi32>
    %103 = arith.andi %100, %102 : vector<1x128xi1>
    %104 = arith.extui %103 : vector<1x128xi1> to vector<1x128xi32>
    %105 = arith.sitofp %104 : vector<1x128xi32> to vector<1x128xf32>
    %106 = vector.broadcast %105 : vector<1x128xf32> to vector<31x128xf32>
    %107 = arith.mulf %13, %106 : vector<31x128xf32>
    %108 = arith.truncf %107 : vector<31x128xf32> to vector<31x128xbf16>
    %cst_23 = arith.constant dense<0.000000e+00> : vector<31x31xf32>
    %109 = tpu.matmul %108, %16, %cst_23 {dimension_numbers = #tpu.dot_dimension_numbers<[1], [1], [0], [0], [0, 0, 1, 0], [], []>} : vector<31x128xbf16>, vector<31x128xbf16>, vector<31x31xf32> -> vector<31x31xf32>
    %cst_24 = arith.constant dense<0xFF800000> : vector<31xf32>
    %110 = vector.multi_reduction <maximumf>, %109, %cst_24 [1] : vector<31x31xf32> to vector<31xf32>
    %111 = vector.shape_cast %110 : vector<31xf32> to vector<31x1xf32>
    %112 = vector.broadcast %111 : vector<31x1xf32> to vector<31x31xf32>
    %113 = arith.subf %109, %112 : vector<31x31xf32>
    %114 = math.exp %113 : vector<31x31xf32>
    %cst_25 = arith.constant dense<0.000000e+00> : vector<31xf32>
    %115 = vector.multi_reduction <add>, %114, %cst_25 [1] : vector<31x31xf32> to vector<31xf32>
    %116 = vector.shape_cast %115 : vector<31xf32> to vector<31x1xf32>
    %117 = tpu.reciprocal %116 {approx = true} : vector<31x1xf32> -> vector<31x1xf32>
    %118 = vector.broadcast %117 : vector<31x1xf32> to vector<31x31xf32>
    %119 = arith.mulf %114, %118 : vector<31x31xf32>
    %120 = arith.truncf %119 : vector<31x31xf32> to vector<31x31xbf16>
    %121 = vector.broadcast %105 : vector<1x128xf32> to vector<31x128xf32>
    %122 = arith.mulf %15, %121 : vector<31x128xf32>
    %123 = arith.truncf %122 : vector<31x128xf32> to vector<31x128xbf16>
    %cst_26 = arith.constant dense<0.000000e+00> : vector<31x128xf32>
    %124 = tpu.matmul %120, %123, %cst_26 {dimension_numbers = #tpu.dot_dimension_numbers<[1], [0], [0], [1], [0, 0, 1, 1], [], []>} : vector<31x31xbf16>, vector<31x128xbf16>, vector<31x128xf32> -> vector<31x128xf32>
    %125 = arith.addf %98, %124 : vector<31x128xf32>
    %126 = arith.truncf %125 : vector<31x128xf32> to vector<31x128xbf16>
    %c0_27 = arith.constant 0 : index
    %c0_28 = arith.constant 0 : index
    %127 = vector.load %arg4[%c0_27, %c0_28] : memref<128x128xbf16, #tpu.memory_space<vmem>>, vector<128x128xbf16>
    %cst_29 = arith.constant dense<0.000000e+00> : vector<31x128xf32>
    %128 = tpu.matmul %126, %127, %cst_29 {dimension_numbers = #tpu.dot_dimension_numbers<[1], [0], [0], [1], [0, 0, 1, 1], [], []>} : vector<31x128xbf16>, vector<128x128xbf16>, vector<31x128xf32> -> vector<31x128xf32>
    %c0_30 = arith.constant 0 : index
    %c0_31 = arith.constant 0 : index
    %129 = vector.load %arg5[%c0_30, %c0_31] : memref<1x128xf32, #tpu.memory_space<vmem>>, vector<1x128xf32>
    %130 = vector.broadcast %129 : vector<1x128xf32> to vector<31x128xf32>
    %131 = arith.addf %128, %130 : vector<31x128xf32>
    %132 = arith.addf %1, %131 : vector<31x128xf32>
    %c0_32 = arith.constant 0 : index
    %c0_33 = arith.constant 0 : index
    %133 = vector.load %arg6[%c0_32, %c0_33] : memref<1x128xf32, #tpu.memory_space<vmem>>, vector<1x128xf32>
    %c0_34 = arith.constant 0 : index
    %c0_35 = arith.constant 0 : index
    %134 = vector.load %arg7[%c0_34, %c0_35] : memref<1x128xf32, #tpu.memory_space<vmem>>, vector<1x128xf32>
    %135 = vector.broadcast %6 : vector<1x128xf32> to vector<31x128xf32>
    %136 = arith.mulf %132, %135 : vector<31x128xf32>
    %cst_36 = arith.constant dense<0.000000e+00> : vector<31xf32>
    %137 = vector.multi_reduction <add>, %136, %cst_36 [1] : vector<31x128xf32> to vector<31xf32>
    %138 = vector.shape_cast %137 : vector<31xf32> to vector<31x1xf32>
    %cst_37 = arith.constant 3.125000e-02 : f32
    %139 = vector.broadcast %cst_37 : f32 to vector<31x1xf32>
    %140 = arith.mulf %138, %139 : vector<31x1xf32>
    %141 = vector.broadcast %140 : vector<31x1xf32> to vector<31x128xf32>
    %142 = arith.subf %132, %141 : vector<31x128xf32>
    %143 = vector.broadcast %6 : vector<1x128xf32> to vector<31x128xf32>
    %144 = arith.mulf %142, %143 : vector<31x128xf32>
    %145 = arith.mulf %144, %144 : vector<31x128xf32>
    %cst_38 = arith.constant dense<0.000000e+00> : vector<31xf32>
    %146 = vector.multi_reduction <add>, %145, %cst_38 [1] : vector<31x128xf32> to vector<31xf32>
    %147 = vector.shape_cast %146 : vector<31xf32> to vector<31x1xf32>
    %cst_39 = arith.constant 3.125000e-02 : f32
    %148 = vector.broadcast %cst_39 : f32 to vector<31x1xf32>
    %149 = arith.mulf %147, %148 : vector<31x1xf32>
    %cst_40 = arith.constant 9.99999974E-6 : f32
    %150 = vector.broadcast %cst_40 : f32 to vector<31x1xf32>
    %151 = arith.addf %149, %150 : vector<31x1xf32>
    %152 = math.rsqrt %151 : vector<31x1xf32>
    %153 = vector.broadcast %152 : vector<31x1xf32> to vector<31x128xf32>
    %154 = arith.mulf %144, %153 : vector<31x128xf32>
    %155 = vector.broadcast %133 : vector<1x128xf32> to vector<31x128xf32>
    %156 = arith.mulf %154, %155 : vector<31x128xf32>
    %157 = vector.broadcast %134 : vector<1x128xf32> to vector<31x128xf32>
    %158 = arith.addf %156, %157 : vector<31x128xf32>
    %159 = arith.truncf %158 : vector<31x128xf32> to vector<31x128xbf16>
    %c0_41 = arith.constant 0 : index
    %c0_42 = arith.constant 0 : index
    %160 = vector.load %arg8[%c0_41, %c0_42] : memref<128x128xbf16, #tpu.memory_space<vmem>>, vector<128x128xbf16>
    %cst_43 = arith.constant dense<0.000000e+00> : vector<31x128xf32>
    %161 = tpu.matmul %159, %160, %cst_43 {dimension_numbers = #tpu.dot_dimension_numbers<[1], [0], [0], [1], [0, 0, 1, 1], [], []>} : vector<31x128xbf16>, vector<128x128xbf16>, vector<31x128xf32> -> vector<31x128xf32>
    %c0_44 = arith.constant 0 : index
    %c0_45 = arith.constant 0 : index
    %162 = vector.load %arg9[%c0_44, %c0_45] : memref<1x128xf32, #tpu.memory_space<vmem>>, vector<1x128xf32>
    %163 = vector.broadcast %162 : vector<1x128xf32> to vector<31x128xf32>
    %164 = arith.addf %161, %163 : vector<31x128xf32>
    %cst_46 = arith.constant 5.000000e-01 : f32
    %165 = vector.broadcast %cst_46 : f32 to vector<31x128xf32>
    %166 = arith.mulf %165, %164 : vector<31x128xf32>
    %cst_47 = arith.constant 4.471500e-02 : f32
    %167 = vector.broadcast %cst_47 : f32 to vector<31x128xf32>
    %168 = arith.mulf %167, %164 : vector<31x128xf32>
    %169 = arith.mulf %168, %164 : vector<31x128xf32>
    %170 = arith.mulf %169, %164 : vector<31x128xf32>
    %171 = arith.addf %164, %170 : vector<31x128xf32>
    %cst_48 = arith.constant 0.797884583 : f32
    %172 = vector.broadcast %cst_48 : f32 to vector<31x128xf32>
    %173 = arith.mulf %172, %171 : vector<31x128xf32>
    %174 = math.tanh %173 : vector<31x128xf32>
    %cst_49 = arith.constant 1.000000e+00 : f32
    %175 = vector.broadcast %cst_49 : f32 to vector<31x128xf32>
    %176 = arith.addf %175, %174 : vector<31x128xf32>
    %177 = arith.mulf %166, %176 : vector<31x128xf32>
    %178 = arith.truncf %177 : vector<31x128xf32> to vector<31x128xbf16>
    %c0_50 = arith.constant 0 : index
    %c0_51 = arith.constant 0 : index
    %179 = vector.load %arg10[%c0_50, %c0_51] : memref<128x128xbf16, #tpu.memory_space<vmem>>, vector<128x128xbf16>
    %cst_52 = arith.constant dense<0.000000e+00> : vector<31x128xf32>
    %180 = tpu.matmul %178, %179, %cst_52 {dimension_numbers = #tpu.dot_dimension_numbers<[1], [0], [0], [1], [0, 0, 1, 1], [], []>} : vector<31x128xbf16>, vector<128x128xbf16>, vector<31x128xf32> -> vector<31x128xf32>
    %c0_53 = arith.constant 0 : index
    %c0_54 = arith.constant 0 : index
    %181 = vector.load %arg11[%c0_53, %c0_54] : memref<1x128xf32, #tpu.memory_space<vmem>>, vector<1x128xf32>
    %182 = vector.broadcast %181 : vector<1x128xf32> to vector<31x128xf32>
    %183 = arith.addf %180, %182 : vector<31x128xf32>
    %184 = arith.addf %158, %183 : vector<31x128xf32>
    %c0_55 = arith.constant 0 : index
    %c0_56 = arith.constant 0 : index
    %185 = vector.load %arg12[%c0_55, %c0_56] : memref<1x128xf32, #tpu.memory_space<vmem>>, vector<1x128xf32>
    %c0_57 = arith.constant 0 : index
    %c0_58 = arith.constant 0 : index
    %186 = vector.load %arg13[%c0_57, %c0_58] : memref<1x128xf32, #tpu.memory_space<vmem>>, vector<1x128xf32>
    %187 = vector.broadcast %6 : vector<1x128xf32> to vector<31x128xf32>
    %188 = arith.mulf %184, %187 : vector<31x128xf32>
    %cst_59 = arith.constant dense<0.000000e+00> : vector<31xf32>
    %189 = vector.multi_reduction <add>, %188, %cst_59 [1] : vector<31x128xf32> to vector<31xf32>
    %190 = vector.shape_cast %189 : vector<31xf32> to vector<31x1xf32>
    %cst_60 = arith.constant 3.125000e-02 : f32
    %191 = vector.broadcast %cst_60 : f32 to vector<31x1xf32>
    %192 = arith.mulf %190, %191 : vector<31x1xf32>
    %193 = vector.broadcast %192 : vector<31x1xf32> to vector<31x128xf32>
    %194 = arith.subf %184, %193 : vector<31x128xf32>
    %195 = vector.broadcast %6 : vector<1x128xf32> to vector<31x128xf32>
    %196 = arith.mulf %194, %195 : vector<31x128xf32>
    %197 = arith.mulf %196, %196 : vector<31x128xf32>
    %cst_61 = arith.constant dense<0.000000e+00> : vector<31xf32>
    %198 = vector.multi_reduction <add>, %197, %cst_61 [1] : vector<31x128xf32> to vector<31xf32>
    %199 = vector.shape_cast %198 : vector<31xf32> to vector<31x1xf32>
    %cst_62 = arith.constant 3.125000e-02 : f32
    %200 = vector.broadcast %cst_62 : f32 to vector<31x1xf32>
    %201 = arith.mulf %199, %200 : vector<31x1xf32>
    %cst_63 = arith.constant 9.99999974E-6 : f32
    %202 = vector.broadcast %cst_63 : f32 to vector<31x1xf32>
    %203 = arith.addf %201, %202 : vector<31x1xf32>
    %204 = math.rsqrt %203 : vector<31x1xf32>
    %205 = vector.broadcast %204 : vector<31x1xf32> to vector<31x128xf32>
    %206 = arith.mulf %196, %205 : vector<31x128xf32>
    %207 = vector.broadcast %185 : vector<1x128xf32> to vector<31x128xf32>
    %208 = arith.mulf %206, %207 : vector<31x128xf32>
    %209 = vector.broadcast %186 : vector<1x128xf32> to vector<31x128xf32>
    %210 = arith.addf %208, %209 : vector<31x128xf32>
    %c0_64 = arith.constant 0 : index
    %c0_65 = arith.constant 0 : index
    %c0_66 = arith.constant 0 : index
    %211 = vector.load %arg14[%c0_64, %c0_65, %c0_66] : memref<1x31x128xf32, #tpu.memory_space<vmem>>, vector<1x31x128xf32>
    %212 = vector.shape_cast %211 : vector<1x31x128xf32> to vector<31x128xf32>
    %213 = vector.shape_cast %210 : vector<31x128xf32> to vector<1x31x128xf32>
    tpu.vector_store %arg14[%c0_64, %c0_65, %c0_66], %213 {strides = array<i32>} : memref<1x31x128xf32, #tpu.memory_space<vmem>>, vector<1x31x128xf32>,
    return
  }
  func.func @transform_0(%arg0: i32) -> (i32, i32, i32) {
    %c0_i32 = arith.constant 0 : i32
    %c0_i32_0 = arith.constant 0 : i32
    %c0_i32_1 = arith.constant 0 : i32
    return %arg0, %c0_i32, %c0_i32_0 : i32, i32, i32
  }
  func.func @transform_1(%arg0: i32) -> (i32, i32) {
    %c0_i32 = arith.constant 0 : i32
    %c0_i32_0 = arith.constant 0 : i32
    %c0_i32_1 = arith.constant 0 : i32
    return %c0_i32, %c0_i32_0 : i32, i32
  }
  func.func @transform_2(%arg0: i32) -> (i32, i32) {
    %c0_i32 = arith.constant 0 : i32
    %c0_i32_0 = arith.constant 0 : i32
    %c0_i32_1 = arith.constant 0 : i32
    return %c0_i32, %c0_i32_0 : i32, i32
  }
  func.func @transform_3(%arg0: i32) -> (i32, i32) {
    %c0_i32 = arith.constant 0 : i32
    %c0_i32_0 = arith.constant 0 : i32
    %c0_i32_1 = arith.constant 0 : i32
    return %c0_i32, %c0_i32_0 : i32, i32
  }
  func.func @transform_4(%arg0: i32) -> (i32, i32) {
    %c0_i32 = arith.constant 0 : i32
    %c0_i32_0 = arith.constant 0 : i32
    %c0_i32_1 = arith.constant 0 : i32
    return %c0_i32, %c0_i32_0 : i32, i32
  }
  func.func @transform_5(%arg0: i32) -> (i32, i32) {
    %c0_i32 = arith.constant 0 : i32
    %c0_i32_0 = arith.constant 0 : i32
    %c0_i32_1 = arith.constant 0 : i32
    return %c0_i32, %c0_i32_0 : i32, i32
  }
  func.func @transform_6(%arg0: i32) -> (i32, i32) {
    %c0_i32 = arith.constant 0 : i32
    %c0_i32_0 = arith.constant 0 : i32
    %c0_i32_1 = arith.constant 0 : i32
    return %c0_i32, %c0_i32_0 : i32, i32
  }
  func.func @transform_7(%arg0: i32) -> (i32, i32) {
    %c0_i32 = arith.constant 0 : i32
    %c0_i32_0 = arith.constant 0 : i32
    %c0_i32_1 = arith.constant 0 : i32
    return %c0_i32, %c0_i32_0 : i32, i32
  }
  func.func @transform_8(%arg0: i32) -> (i32, i32) {
    %c0_i32 = arith.constant 0 : i32
    %c0_i32_0 = arith.constant 0 : i32
    %c0_i32_1 = arith.constant 0 : i32
    return %c0_i32, %c0_i32_0 : i32, i32
  }
  func.func @transform_9(%arg0: i32) -> (i32, i32) {
    %c0_i32 = arith.constant 0 : i32
    %c0_i32_0 = arith.constant 0 : i32
    %c0_i32_1 = arith.constant 0 : i32
    return %c0_i32, %c0_i32_0 : i32, i32
  }
  func.func @transform_10(%arg0: i32) -> (i32, i32) {
    %c0_i32 = arith.constant 0 : i32
    %c0_i32_0 = arith.constant 0 : i32
    %c0_i32_1 = arith.constant 0 : i32
    return %c0_i32, %c0_i32_0 : i32, i32
  }
  func.func @transform_11(%arg0: i32) -> (i32, i32) {
    %c0_i32 = arith.constant 0 : i32
    %c0_i32_0 = arith.constant 0 : i32
    %c0_i32_1 = arith.constant 0 : i32
    return %c0_i32, %c0_i32_0 : i32, i32
  }
  func.func @transform_12(%arg0: i32) -> (i32, i32) {
    %c0_i32 = arith.constant 0 : i32
    %c0_i32_0 = arith.constant 0 : i32
    %c0_i32_1 = arith.constant 0 : i32
    return %c0_i32, %c0_i32_0 : i32, i32
  }
  func.func @transform_13(%arg0: i32) -> (i32, i32, i32) {
    %c0_i32 = arith.constant 0 : i32
    %c0_i32_0 = arith.constant 0 : i32
    %c0_i32_1 = arith.constant 0 : i32
    return %arg0, %c0_i32, %c0_i32_0 : i32, i32, i32
  }
}

module attributes {stable_mosaic.version = 11 : i64} {
  func.func @_global_ln_kernel(%arg0: i32, %arg1: memref<62x128xf32, #tpu.memory_space<vmem>>, %arg2: memref<62x128xf32, #tpu.memory_space<vmem>>) attributes {dimension_semantics = [#tpu.dimension_semantics<arbitrary>], iteration_bounds = array<i64: 1>, scalar_prefetch = 0 : i64, scratch_operands = 0 : i64, tpu.core_type = #tpu.core_type<tc>, window_params = [{pipeline_mode = #tpu.pipeline_mode<synchronous>, transform_indices = @transform_0, window_bounds = array<i64: 62, 128>}, {pipeline_mode = #tpu.pipeline_mode<synchronous>, transform_indices = @transform_1, window_bounds = array<i64: 62, 128>}]} {
    %c0 = arith.constant 0 : index
    %c0_0 = arith.constant 0 : index
    %0 = vector.load %arg1[%c0, %c0_0] : memref<62x128xf32, #tpu.memory_space<vmem>>, vector<62x128xf32>
    %1 = tpu.iota {dimensions = array<i32: 1>} : vector<62x128xi32>
    %c32_i32 = arith.constant 32 : i32
    %2 = vector.broadcast %c32_i32 : i32 to vector<62x128xi32>
    %3 = arith.cmpi slt, %1, %2 : vector<62x128xi32>
    %4 = arith.extui %3 : vector<62x128xi1> to vector<62x128xi32>
    %5 = arith.sitofp %4 : vector<62x128xi32> to vector<62x128xf32>
    %6 = arith.mulf %0, %5 : vector<62x128xf32>
    %7 = vector.shape_cast %6 : vector<62x128xf32> to vector<1x62x128xf32>
    %cst = arith.constant dense<0.000000e+00> : vector<1xf32>
    %8 = vector.multi_reduction <add>, %7, %cst [1, 2] : vector<1x62x128xf32> to vector<1xf32>
    %9 = vector.shape_cast %8 : vector<1xf32> to vector<1x1x1xf32>
    %10 = vector.extract %9[0, 0, 0] : f32 from vector<1x1x1xf32>
    %11 = vector.broadcast %10 : f32 to vector<1x1xf32>
    %cst_1 = arith.constant 5.04032243E-4 : f32
    %12 = vector.broadcast %cst_1 : f32 to vector<1x1xf32>
    %13 = arith.mulf %11, %12 : vector<1x1xf32>
    %14 = vector.broadcast %13 : vector<1x1xf32> to vector<62x128xf32>
    %15 = arith.subf %0, %14 : vector<62x128xf32>
    %16 = arith.mulf %15, %5 : vector<62x128xf32>
    %17 = arith.mulf %16, %16 : vector<62x128xf32>
    %18 = vector.shape_cast %17 : vector<62x128xf32> to vector<1x62x128xf32>
    %cst_2 = arith.constant dense<0.000000e+00> : vector<1xf32>
    %19 = vector.multi_reduction <add>, %18, %cst_2 [1, 2] : vector<1x62x128xf32> to vector<1xf32>
    %20 = vector.shape_cast %19 : vector<1xf32> to vector<1x1x1xf32>
    %21 = vector.extract %20[0, 0, 0] : f32 from vector<1x1x1xf32>
    %22 = vector.broadcast %21 : f32 to vector<1x1xf32>
    %cst_3 = arith.constant 5.04032243E-4 : f32
    %23 = vector.broadcast %cst_3 : f32 to vector<1x1xf32>
    %24 = arith.mulf %22, %23 : vector<1x1xf32>
    %cst_4 = arith.constant 9.99999974E-6 : f32
    %25 = vector.broadcast %cst_4 : f32 to vector<1x1xf32>
    %26 = arith.addf %24, %25 : vector<1x1xf32>
    %27 = math.rsqrt %26 : vector<1x1xf32>
    %28 = vector.broadcast %27 : vector<1x1xf32> to vector<62x128xf32>
    %29 = arith.mulf %16, %28 : vector<62x128xf32>
    %c0_5 = arith.constant 0 : index
    %c0_6 = arith.constant 0 : index
    %30 = vector.load %arg2[%c0_5, %c0_6] : memref<62x128xf32, #tpu.memory_space<vmem>>, vector<62x128xf32>
    tpu.vector_store %arg2[%c0_5, %c0_6], %29 {strides = array<i32>} : memref<62x128xf32, #tpu.memory_space<vmem>>, vector<62x128xf32>,
    return
  }
  func.func @transform_0(%arg0: i32) -> (i32, i32) {
    %c0_i32 = arith.constant 0 : i32
    %c0_i32_0 = arith.constant 0 : i32
    %c0_i32_1 = arith.constant 0 : i32
    return %c0_i32, %c0_i32_0 : i32, i32
  }
  func.func @transform_1(%arg0: i32) -> (i32, i32) {
    %c0_i32 = arith.constant 0 : i32
    %c0_i32_0 = arith.constant 0 : i32
    %c0_i32_1 = arith.constant 0 : i32
    return %c0_i32, %c0_i32_0 : i32, i32
  }
}

</mosaic_0001>

<llo_original>
// kernel: _lambda_.7
$region0: #{_lambda_.7}
  #allocation0 [shape = 'u32[]', space=smem, size = 0x4, offset = 0x4, fixed_abs, tag = 'smem constant byte address 0x4 - core index']
  #allocation1 [shape = 'u32[144,128]{1,0:T(1,128)}', space=vmem, size = 0x12000, scoped, tag = 'internal scratch']
  %s0 = inlined_call_operand.hbm [shape: f32[2,320], index: 0, kind: input, shape index: {}]
  %s1 = inlined_call_operand.vmem [shape: f32[2,320], index: 1, kind: output, shape index: {}]
  %s2 = sld [smem:[#allocation0]]
  $region18: #{_lambda_.7} parent=0
    _
  %s4 = ssub.s32 1, %s2
  %s5 = scalar_select 0, %s4, %s2
  $region1: #{_lambda_.7} parent=0
    #allocation2 [shape = 'u8[3072]{0}', space=vmem, size = 0xc00, scoped, tag = 'input window, operand 0, single buffered']
    #allocation3 [shape = 's32[1]{0}', space=sflag, size = 0x4, scoped, tag = 'scoped memory for _lambda_.7']
    %6 = vsyncpa [#allocation3], 0
    // Predicated region
    $region2: #{_lambda_.7} parent=1 // pred_check
      _
    $region3: #{_lambda_.7} parent=1 // pred_check_branch
      %8 = sbr.rel (0) target = $region5
    $region4: #{_lambda_.7} parent=1 // pred_region
      %s10 = ssub.s32 96, 96
      %11 = vsyncadd [#allocation3], %s10
      %s13 = sshll.u32 [#allocation2], 4
      %s14 = int_to_ptr.vmem [resolvable:$true] %s13
      %16 = dma.hbm_to_vmem [thread:$0]  %s0, 96, %s14, [#allocation3]
    $region5: #{_lambda_.7} parent=1 // pred_fallthru
      _
    // Predicated region
    $region6: #{_lambda_.7} parent=1 // pred_check
      _
    $region7: #{_lambda_.7} parent=1 // pred_check_branch
      %18 = sbr.rel (0) target = $region9
    $region8: #{_lambda_.7} parent=1 // pred_region
      %19 = dma.done [#allocation3], 96
    $region9: #{_lambda_.7} parent=1 // pred_fallthru
      _
    %v20 = vld [vmem:[#allocation2] sm:$0x3f]
    %v22 = vcombine.high %v20, %v20
    %v24 = vunpack.c.l.s4 1983009808
    %v25 = vunpack.c.0.s8 %v24
    %v26 = vlaneseq
    %v27 = vshrl.u32 %v26, 7
    %v28 = vsub.s32 %v25, %v27
    %v29 = vrot.slane %v20, %v28
    %v31 = vunpack.c.l.s4 1983009808
    %v32 = vunpack.c.0.s8 %v31
    %v33 = vlaneseq
    %v34 = vshrl.u32 %v33, 7
    %v35 = vsub.s32 %v32, %v34
    %v36 = vrot.slane %v22, %v35
    %v37 = vcombine.high %v29, %v29
    %vm41 = vcmask 1041408
    %v42 = vsel %vm41, %v29, 0.0
    %v43 = vsel %vm41, %v37, 0.0
    %v44 = vadd.f32 %v42, %v43
    %vm45 = vcmask 517120
    %v46 = vsel %vm45, %v36, 0.0
    %v47 = vadd.f32 %v44, %v46
    %48 = vadd.xlane.f32.xlu0 %v47
    %v49 = vpop.xlane.xlu0 %48
    %v50 = vrot.slane %v49, 4
    %v51 = vadd.f32 %v49, %v50
    %v52 = vrot.slane %v51, 2
    %v53 = vadd.f32 %v51, %v52
    %v54 = vrot.slane %v53, 1
    %v55 = vadd.f32 %v53, %v54
    %s56 = vtos %v55
    %v57 = vstv %s56
    %v58 = vmul.f32 %v57, 0.0015625
    %v59 = vsub.f32 %v20, %v58
    %v60 = vmul.f32 %v59, %v59
    %v62 = vcombine.high %v60, %v60
    %v64 = vunpack.c.l.s4 1983009808
    %v65 = vunpack.c.0.s8 %v64
    %v66 = vlaneseq
    %v67 = vshrl.u32 %v66, 7
    %v68 = vsub.s32 %v65, %v67
    %v69 = vrot.slane %v60, %v68
    %v71 = vunpack.c.l.s4 1983009808
    %v72 = vunpack.c.0.s8 %v71
    %v73 = vlaneseq
    %v74 = vshrl.u32 %v73, 7
    %v75 = vsub.s32 %v72, %v74
    %v76 = vrot.slane %v62, %v75
    %v77 = vcombine.high %v69, %v69
    %v81 = vsel %vm41, %v69, 0.0
    %v82 = vsel %vm41, %v77, 0.0
    %v83 = vadd.f32 %v81, %v82
    %v84 = vsel %vm45, %v76, 0.0
    %v85 = vadd.f32 %v83, %v84
    %86 = vadd.xlane.f32.xlu0 %v85
    %v87 = vpop.xlane.xlu0 %86
    %v88 = vrot.slane %v87, 4
    %v89 = vadd.f32 %v87, %v88
    %v90 = vrot.slane %v89, 2
    %v91 = vadd.f32 %v89, %v90
    %v92 = vrot.slane %v91, 1
    %v93 = vadd.f32 %v91, %v92
    %s94 = vtos %v93
    %v95 = vstv %s94
    %v96 = vmul.f32 %v95, 0.0015625
    %v97 = vadd.f32 %v96, 1e-05
    %v98 = vrsqrt.pop %v97
    %v99 = vmul.f32 %v59, %v98
    %vm100 = vcmask 1043458
    %vm101 = vmor %vm100, %vm41
    %vm102 = vcmask 521220
    %vm103 = vmor %vm102, %vm101
    %104 = vst.msk [vmem:[%s1] sm:$0x3f] %vm103, %v99
    // Predicated region
    $region10: #{_lambda_.7} parent=1 // pred_check
      _
    $region11: #{_lambda_.7} parent=1 // pred_check_branch
      %106 = sbr.rel (0) target = $region13
    $region12: #{_lambda_.7} parent=1 // pred_region
      _
    $region13: #{_lambda_.7} parent=1 // pred_fallthru
      _
    // Predicated region
    $region14: #{_lambda_.7} parent=1 // pred_check
      _
    $region15: #{_lambda_.7} parent=1 // pred_check_branch
      %108 = sbr.rel (0) target = $region17
    $region16: #{_lambda_.7} parent=1 // pred_region
      _
    $region17: #{_lambda_.7} parent=1 // pred_fallthru
      _
    %109 = vsyncpa [#allocation3], 1

// kernel: _lambda_.8
$region0: #{_lambda_.8}
  #allocation0 [shape = 'u32[]', space=smem, size = 0x4, offset = 0x4, fixed_abs, tag = 'smem constant byte address 0x4 - core index']
  #allocation1 [shape = 'u32[144,128]{1,0:T(1,128)}', space=vmem, size = 0x12000, scoped, tag = 'internal scratch']
  %s0 = inlined_call_operand.vmem [shape: f32[2,63,10], index: 0, kind: input, shape index: {}]
  %s1 = inlined_call_operand.vmem [shape: f32[10,128], index: 1, kind: input, shape index: {}]
  %s2 = inlined_call_operand.vmem [shape: f32[1,128], index: 2, kind: input, shape index: {}]
  %s3 = inlined_call_operand.vmem [shape: f32[1,128], index: 3, kind: input, shape index: {}]
  %s4 = inlined_call_operand.vmem [shape: f32[2,63,128], index: 4, kind: output, shape index: {}]
  %s5 = sld [smem:[#allocation0]]
  $region49: #{_lambda_.8} parent=0
    _
  %s7 = ssub.s32 1, %s5
  %s8 = scalar_select 0, %s7, %s5
  loop: start=0, step=1, limit=4
  $region2: #{_lambda_.8} parent=0 // loop_pre_header
    _
  $region3: #{_lambda_.8} parent=0 // loop_header
    %s10 = sphi 0, %s14
    %p11 = scmp.ge.s32.totalorder %s10, 4
    %s20 = sphi 0, %s22
    %s23 = sphi 0, %s20
    %s24 = sphi 0, %s23
    %s40 = sphi 0, %s24
    %s44 = sphi 0, %s44
    %s46 = sphi 0, %s44
    %s47 = sphi 0, %s46
    %s61 = sphi 0, %s47
    %s65 = sphi 0, %s65
    %s67 = sphi 0, %s65
    %s68 = sphi 0, %s67
    %s82 = sphi 0, %s68
    %s86 = sphi 0, %s86
    %s88 = sphi 0, %s86
    %s89 = sphi 0, %s88
    %s103 = sphi 0, %s89
    %s109 = sphi 0, %s111
    %s112 = sphi 0, %s109
    %s113 = sphi 0, %s112
    %s129 = sphi 0, %s113
  $region4: #{_lambda_.8} parent=0 // loop_header_branch
    %13 = sbr.rel (%p11) target = $region8
  $region5: #{_lambda_.8} parent=0 // loop_body
    %s15 = ssub.s32 %s10, 1
    %s16 = ssub.s32 %s10, 2
    %s17 = sadd.s32 %s10, 1
    %s18 = ssub.s32 %s10, %s17
    %p19 = scmp.eq.s32.totalorder %s18, 0
    %s21 = sadd.s32 %s20, 1
    %s22 = scalar_select %p19, %s20, %s21
    %p25 = pneg %p19
    %p26 = scmp.eq.s32.totalorder %s10, 1
    %p27 = por %p25, %p26
    %p28 = scmp.ne.s32.totalorder %s20, %s23
    %p29 = scmp.eq.s32.totalorder %s10, 0
    %p30 = por %p28, %p29
    %p31 = scmp.ne.s32.totalorder %s20, %s23
    %p32 = scmp.eq.s32.totalorder %s15, 1
    %p33 = por %p31, %p32
    %p34 = scmp.ne.s32.totalorder %s23, %s24
    %p35 = scmp.eq.s32.totalorder %s15, 0
    %p36 = por %p34, %p35
    %p37 = scmp.ne.s32.totalorder %s23, %s24
    %p38 = scmp.eq.s32.totalorder %s16, 1
    %p39 = por %p37, %p38
    %p41 = scmp.ne.s32.totalorder %s24, %s40
    %p42 = scmp.eq.s32.totalorder %s16, 0
    %p43 = por %p41, %p42
    %s45 = sadd.s32 %s44, 1
    %p48 = scmp.eq.s32.totalorder %s10, 1
    %p49 = scmp.ne.s32.totalorder %s44, %s46
    %p50 = scmp.eq.s32.totalorder %s10, 0
    %p51 = por %p49, %p50
    %p52 = scmp.ne.s32.totalorder %s44, %s46
    %p53 = scmp.eq.s32.totalorder %s15, 1
    %p54 = por %p52, %p53
    %p55 = scmp.ne.s32.totalorder %s46, %s47
    %p56 = scmp.eq.s32.totalorder %s15, 0
    %p57 = por %p55, %p56
    %p58 = scmp.ne.s32.totalorder %s46, %s47
    %p59 = scmp.eq.s32.totalorder %s16, 1
    %p60 = por %p58, %p59
    %p62 = scmp.ne.s32.totalorder %s47, %s61
    %p63 = scmp.eq.s32.totalorder %s16, 0
    %p64 = por %p62, %p63
    %s66 = sadd.s32 %s65, 1
    %p69 = scmp.eq.s32.totalorder %s10, 1
    %p70 = scmp.ne.s32.totalorder %s65, %s67
    %p71 = scmp.eq.s32.totalorder %s10, 0
    %p72 = por %p70, %p71
    %p73 = scmp.ne.s32.totalorder %s65, %s67
    %p74 = scmp.eq.s32.totalorder %s15, 1
    %p75 = por %p73, %p74
    %p76 = scmp.ne.s32.totalorder %s67, %s68
    %p77 = scmp.eq.s32.totalorder %s15, 0
    %p78 = por %p76, %p77
    %p79 = scmp.ne.s32.totalorder %s67, %s68
    %p80 = scmp.eq.s32.totalorder %s16, 1
    %p81 = por %p79, %p80
    %p83 = scmp.ne.s32.totalorder %s68, %s82
    %p84 = scmp.eq.s32.totalorder %s16, 0
    %p85 = por %p83, %p84
    %s87 = sadd.s32 %s86, 1
    %p90 = scmp.eq.s32.totalorder %s10, 1
    %p91 = scmp.ne.s32.totalorder %s86, %s88
    %p92 = scmp.eq.s32.totalorder %s10, 0
    %p93 = por %p91, %p92
    %p94 = scmp.ne.s32.totalorder %s86, %s88
    %p95 = scmp.eq.s32.totalorder %s15, 1
    %p96 = por %p94, %p95
    %p97 = scmp.ne.s32.totalorder %s88, %s89
    %p98 = scmp.eq.s32.totalorder %s15, 0
    %p99 = por %p97, %p98
    %p100 = scmp.ne.s32.totalorder %s88, %s89
    %p101 = scmp.eq.s32.totalorder %s16, 1
    %p102 = por %p100, %p101
    %p104 = scmp.ne.s32.totalorder %s89, %s103
    %p105 = scmp.eq.s32.totalorder %s16, 0
    %p106 = por %p104, %p105
    %s107 = ssub.s32 %s10, %s17
    %p108 = scmp.eq.s32.totalorder %s107, 0
    %s110 = sadd.s32 %s109, 1
    %s111 = scalar_select %p108, %s109, %s110
    %p114 = pneg %p108
    %p115 = scmp.eq.s32.totalorder %s10, 1
    %p116 = por %p114, %p115
    %p117 = scmp.ne.s32.totalorder %s109, %s112
    %p118 = scmp.eq.s32.totalorder %s10, 0
    %p119 = por %p117, %p118
    %p120 = scmp.ne.s32.totalorder %s109, %s112
    %p121 = scmp.eq.s32.totalorder %s15, 1
    %p122 = por %p120, %p121
    %p123 = scmp.ne.s32.totalorder %s112, %s113
    %p124 = scmp.eq.s32.totalorder %s15, 0
    %p125 = por %p123, %p124
    %p126 = scmp.ne.s32.totalorder %s112, %s113
    %p127 = scmp.eq.s32.totalorder %s16, 1
    %p128 = por %p126, %p127
    %p130 = scmp.ne.s32.totalorder %s113, %s129
    %p131 = scmp.eq.s32.totalorder %s16, 0
    %p132 = por %p130, %p131
    %p133 = scmp.le.s32.totalorder 1, %s10
    %p134 = scmp.lt.s32.totalorder %s10, 3
    %p135 = pnand %p133, %p134
    %p136 = pneg %p135
    // Predicated region
    $region9: #{_lambda_.8} parent=5 // pred_check
      _
    $region10: #{_lambda_.8} parent=5 // pred_check_branch
      %138 = sbr.rel (%p135) target = $region12
    $region11: #{_lambda_.8} parent=5 // pred_region
      %s139 = ssub.s32 %s10, 1
      // Predicated region
      $region13: #{_lambda_.8} parent=11 // pred_check
        %p140 = pneg %p57
      $region14: #{_lambda_.8} parent=11 // pred_check_branch
        %142 = sbr.rel (%p140) target = $region16
      $region15: #{_lambda_.8} parent=11 // pred_region
        _
      $region16: #{_lambda_.8} parent=11 // pred_fallthru
        _
      // Predicated region
      $region17: #{_lambda_.8} parent=11 // pred_check
        %p143 = pneg %p78
      $region18: #{_lambda_.8} parent=11 // pred_check_branch
        %145 = sbr.rel (%p143) target = $region20
      $region19: #{_lambda_.8} parent=11 // pred_region
        _
      $region20: #{_lambda_.8} parent=11 // pred_fallthru
        _
      // Predicated region
      $region21: #{_lambda_.8} parent=11 // pred_check
        %p146 = pneg %p99
      $region22: #{_lambda_.8} parent=11 // pred_check_branch
        %148 = sbr.rel (%p146) target = $region24
      $region23: #{_lambda_.8} parent=11 // pred_region
        _
      $region24: #{_lambda_.8} parent=11 // pred_fallthru
        _
    $region12: #{_lambda_.8} parent=5 // pred_fallthru
      _
    %p149 = scmp.lt.s32.totalorder %s10, 2
    // Predicated region
    $region25: #{_lambda_.8} parent=5 // pred_check
      %p150 = pneg %p149
    $region26: #{_lambda_.8} parent=5 // pred_check_branch
      %152 = sbr.rel (%p150) target = $region28
    $region27: #{_lambda_.8} parent=5 // pred_region
      // Predicated region
      $region29: #{_lambda_.8} parent=27 // pred_check
        %p153 = pneg %p30
      $region30: #{_lambda_.8} parent=27 // pred_check_branch
        %155 = sbr.rel (%p153) target = $region32
      $region31: #{_lambda_.8} parent=27 // pred_region
        %p156 = scmp.lt.s32.totalorder %s10, 1
        %s157 = scalar_select %p156, %s10, 1
        %s158 = smul.addr %s157, 8
        %s159 = smul.addr %s158, 8
        %s160 = scalar_lea.vmem %s0, %s159
      $region32: #{_lambda_.8} parent=27 // pred_fallthru
        _
    $region28: #{_lambda_.8} parent=5 // pred_fallthru
      _
    %p161 = scmp.le.s32.totalorder 1, %s10
    %p162 = scmp.lt.s32.totalorder %s10, 3
    %p163 = pnand %p161, %p162
    %p164 = pneg %p163
    // Predicated region
    $region33: #{_lambda_.8} parent=5 // pred_check
      _
    $region34: #{_lambda_.8} parent=5 // pred_check_branch
      %166 = sbr.rel (%p163) target = $region36
    $region35: #{_lambda_.8} parent=5 // pred_region
      %s167 = ssub.s32 %s10, 1
      %p168 = scmp.lt.s32.totalorder %s15, 1
      %s169 = scalar_select %p168, %s15, 1
      %s170 = smul.addr %s169, 8
      %s171 = smul.addr %s170, 8
      %s172 = scalar_lea.vmem %s0, %s171
      %p173 = pneg %p36
      %p174 = pneg %p33
      %p175 = pneg %p57
      %p176 = pneg %p54
      %p177 = pneg %p78
      %p178 = pneg %p75
      %p179 = pneg %p99
      %p180 = pneg %p96
      %p181 = pneg %p125
      %p182 = pneg %p122
      %p183 = scmp.lt.s32.totalorder %s15, 1
      %s184 = scalar_select %p183, %s15, 1
      %s185 = smul.addr %s184, 8
      %s186 = smul.addr %s185, 8
      %s187 = scalar_lea.vmem %s4, %s186
      %p188 = scmp.lt.s32.totalorder %s15, 1
      %s189 = scalar_select %p188, %s15, 1
      %s190 = smul.addr %s189, 8
      %s191 = smul.addr %s190, 8
      %s192 = scalar_lea.vmem %s0, %s191
      %p193 = scmp.lt.s32.totalorder %s15, 1
      %s194 = scalar_select %p193, %s15, 1
      %s195 = smul.addr %s194, 8
      %s196 = smul.addr %s195, 8
      %s197 = scalar_lea.vmem %s4, %s196
      %v198 = vld [vmem:[%s192] sm:$0xff]
      %v199 = vld [vmem:[%s192 + $0x8] sm:$0xff]
      %v200 = vld [vmem:[%s192 + $0x10] sm:$0xff]
      %v201 = vld [vmem:[%s192 + $0x18] sm:$0xff]
      %v202 = vld [vmem:[%s192 + $0x20] sm:$0xff]
      %v203 = vld [vmem:[%s192 + $0x28] sm:$0xff]
      %v204 = vld [vmem:[%s192 + $0x30] sm:$0xff]
      %v205 = vld [vmem:[%s192 + $0x38] sm:$0x7f]
      %v206 = vld [vmem:[%s1] sm:$0xff]
      %v207 = vld [vmem:[%s1 + $0x8] sm:$0x3]
      %vm208 = vcmask 80896
      %v210 = vsel %vm208, %v198, 0
      %v213 = vsel %vm208, %v199, 0
      %v216 = vsel %vm208, %v200, 0
      %v219 = vsel %vm208, %v201, 0
      %v222 = vsel %vm208, %v202, 0
      %v225 = vsel %vm208, %v203, 0
      %v228 = vsel %vm208, %v204, 0
      %v231 = vsel %vm208, %v205, 0
      %vm233 = vcmask 1041408
      %v235 = vsel %vm233, %v207, 0
      %237 = vmatprep.subr.mxu0 0.0
      %238 = vmatpush1.msra.mxu0 %v206
      %239 = vmatprep.subr.mxu0 0.0
      %240 = vmatpush1.msra.mxu0 %v235
      %241 = vmatprep.subr.mxu0 0.0
      %242 = vmatpush1.msra.mxu0 0.0
      %243 = vmatprep.subr.mxu0 0.0
      %244 = vmatpush1.msra.mxu0 0.0
      %245 = vmatprep.subr.mxu0 0.0
      %246 = vmatpush1.msra.mxu0 0.0
      %247 = vmatprep.subr.mxu0 0.0
      %248 = vmatpush1.msra.mxu0 0.0
      %249 = vmatprep.subr.mxu0 0.0
      %250 = vmatpush1.msra.mxu0 0.0
      %251 = vmatprep.subr.mxu0 0.0
      %252 = vmatpush1.msra.mxu0 0.0
      %253 = vmatprep.subr.mxu0 0.0
      %254 = vmatpush1.msra.mxu0 0.0
      %255 = vmatprep.subr.mxu0 0.0
      %256 = vmatpush1.msra.mxu0 0.0
      %257 = vmatprep.subr.mxu0 0.0
      %258 = vmatpush1.msra.mxu0 0.0
      %259 = vmatprep.subr.mxu0 0.0
      %260 = vmatpush1.msra.mxu0 0.0
      %261 = vmatprep.subr.mxu0 0.0
      %262 = vmatpush1.msra.mxu0 0.0
      %263 = vmatprep.subr.mxu0 0.0
      %264 = vmatpush1.msra.mxu0 0.0
      %265 = vmatprep.subr.mxu0 0.0
      %266 = vmatpush1.msra.mxu0 0.0
      %267 = vmatprep.subr.mxu0 0.0
      %268 = vmatpush1.msra.mxu0 0.0
      %269 = vmatprep.subr.mxu0 0.0
      %270 = vmatpush1.msra.mxu0 0.0
      %271 = vmatprep.subr.mxu0 0.0
      %272 = vmatpush1.msra.mxu0 0.0
      %273 = vmatprep.subr.mxu0 0.0
      %274 = vmatpush1.msra.mxu0 0.0
      %275 = vmatprep.subr.mxu0 0.0
      %276 = vmatpush1.msra.mxu0 0.0
      %277 = vmatprep.subr.mxu0 0.0
      %278 = vmatpush1.msra.mxu0 0.0
      %279 = vmatprep.subr.mxu0 0.0
      %280 = vmatpush1.msra.mxu0 0.0
      %281 = vmatprep.subr.mxu0 0.0
      %282 = vmatpush1.msra.mxu0 0.0
      %283 = vmatprep.subr.mxu0 0.0
      %284 = vmatpush1.msra.mxu0 0.0
      %285 = vmatprep.subr.mxu0 0.0
      %286 = vmatpush1.msra.mxu0 0.0
      %287 = vmatprep.subr.mxu0 0.0
      %288 = vmatpush1.msra.mxu0 0.0
      %289 = vmatprep.subr.mxu0 0.0
      %290 = vmatpush1.msra.mxu0 0.0
      %291 = vmatprep.subr.mxu0 0.0
      %292 = vmatpush1.msra.mxu0 0.0
      %293 = vmatprep.subr.mxu0 0.0
      %294 = vmatpush1.msra.mxu0 0.0
      %295 = vmatprep.subr.mxu0 0.0
      %296 = vmatpush1.msra.mxu0 0.0
      %297 = vmatprep.subr.mxu0 0.0
      %298 = vmatpush1.msra.mxu0 0.0
      %299 = vmatprep.subr.mxu0 0.0
      %300 = vmatpush1.msra.mxu0 0.0
      %301 = vmatprep.mubr.f32.mxu0 0.0
      %302 = vmatmul.mubr.f32.gmra.mrb[0].mxu0 %v210
      %v303 = vpop.f32.mrb[0].mxu0
      %v304 = vadd.f32 0.0, %v303
      %v305 = vpop.f32.mrb[0].mxu0
      %306 = vmatprep.mubr.f32.mxu0 0.0
      %307 = vmatmul.mubr.f32.gmra.mrb[0].mxu0 %v213
      %v308 = vpop.f32.mrb[0].mxu0
      %v309 = vadd.f32 0.0, %v308
      %v310 = vpop.f32.mrb[0].mxu0
      %311 = vmatprep.mubr.f32.mxu0 0.0
      %312 = vmatmul.mubr.f32.gmra.mrb[0].mxu0 %v216
      %v313 = vpop.f32.mrb[0].mxu0
      %v314 = vadd.f32 0.0, %v313
      %v315 = vpop.f32.mrb[0].mxu0
      %316 = vmatprep.mubr.f32.mxu0 0.0
      %317 = vmatmul.mubr.f32.gmra.mrb[0].mxu0 %v219
      %v318 = vpop.f32.mrb[0].mxu0
      %v319 = vadd.f32 0.0, %v318
      %v320 = vpop.f32.mrb[0].mxu0
      %321 = vmatprep.mubr.f32.mxu0 0.0
      %322 = vmatmul.mubr.f32.gmra.mrb[0].mxu0 %v222
      %v323 = vpop.f32.mrb[0].mxu0
      %v324 = vadd.f32 0.0, %v323
      %v325 = vpop.f32.mrb[0].mxu0
      %326 = vmatprep.mubr.f32.mxu0 0.0
      %327 = vmatmul.mubr.f32.gmra.mrb[0].mxu0 %v225
      %v328 = vpop.f32.mrb[0].mxu0
      %v329 = vadd.f32 0.0, %v328
      %v330 = vpop.f32.mrb[0].mxu0
      %331 = vmatprep.mubr.f32.mxu0 0.0
      %332 = vmatmul.mubr.f32.gmra.mrb[0].mxu0 %v228
      %v333 = vpop.f32.mrb[0].mxu0
      %v334 = vadd.f32 0.0, %v333
      %v335 = vpop.f32.mrb[0].mxu0
      %336 = vmatprep.mubr.f32.mxu0 0.0
      %337 = vmatmul.mubr.f32.gmra.mrb[0].mxu0 %v231
      %v338 = vpop.f32.mrb[0].mxu0
      %v339 = vadd.f32 0.0, %v338
      %v340 = vpop.f32.mrb[0].mxu0
      %341 = vdwg.mxu0
      %v342 = vadd.f32 %v304, %v309
      %v343 = vadd.f32 %v342, %v314
      %v344 = vadd.f32 %v343, %v319
      %v345 = vadd.f32 %v344, %v324
      %v346 = vadd.f32 %v345, %v329
      %v347 = vadd.f32 %v346, %v334
      %vm348 = vcmask 1046528
      %v349 = vsel %vm348, %v339, 0.0
      %v350 = vadd.f32 %v347, %v349
      %v351 = vrot.slane %v350, 4
      %v352 = vadd.f32 %v350, %v351
      %v353 = vrot.slane %v352, 2
      %v354 = vadd.f32 %v352, %v353
      %v355 = vrot.slane %v354, 1
      %v356 = vadd.f32 %v354, %v355
      %v357 = vmul.f32 %v356, 0.015873017
      %v358 = vsub.f32 %v304, %v357
      %v359 = vsub.f32 %v309, %v357
      %v360 = vsub.f32 %v314, %v357
      %v361 = vsub.f32 %v319, %v357
      %v362 = vsub.f32 %v324, %v357
      %v363 = vsub.f32 %v329, %v357
      %v364 = vsub.f32 %v334, %v357
      %v365 = vsub.f32 %v339, %v357
      %v366 = vmul.f32 %v358, %v358
      %v367 = vmul.f32 %v359, %v359
      %v368 = vmul.f32 %v360, %v360
      %v369 = vmul.f32 %v361, %v361
      %v370 = vmul.f32 %v362, %v362
      %v371 = vmul.f32 %v363, %v363
      %v372 = vmul.f32 %v364, %v364
      %v373 = vmul.f32 %v365, %v365
      %v374 = vadd.f32 %v366, %v367
      %v375 = vadd.f32 %v374, %v368
      %v376 = vadd.f32 %v375, %v369
      %v377 = vadd.f32 %v376, %v370
      %v378 = vadd.f32 %v377, %v371
      %v379 = vadd.f32 %v378, %v372
      %v380 = vsel %vm348, %v373, 0.0
      %v381 = vadd.f32 %v379, %v380
      %v382 = vrot.slane %v381, 4
      %v383 = vadd.f32 %v381, %v382
      %v384 = vrot.slane %v383, 2
      %v385 = vadd.f32 %v383, %v384
      %v386 = vrot.slane %v385, 1
      %v387 = vadd.f32 %v385, %v386
      %v388 = vmul.f32 %v387, 0.015873017
      %v389 = vadd.f32 %v388, 1e-05
      %v390 = vrsqrt.pop %v389
      %v391 = vmul.f32 %v358, %v390
      %v392 = vmul.f32 %v359, %v390
      %v393 = vmul.f32 %v360, %v390
      %v394 = vmul.f32 %v361, %v390
      %v395 = vmul.f32 %v362, %v390
      %v396 = vmul.f32 %v363, %v390
      %v397 = vmul.f32 %v364, %v390
      %v398 = vmul.f32 %v365, %v390
      %v399 = vld [vmem:[%s2] sm:$0x1]
      %v401 = vlaneseq
      %v402 = vshrl.u32 %v401, 7
      %v403 = vsub.s32 0, %v402
      %v404 = vrot.slane %v399, %v403
      %v406 = vmul.f32 %v391, %v404
      %v407 = vmul.f32 %v392, %v404
      %v408 = vmul.f32 %v393, %v404
      %v409 = vmul.f32 %v394, %v404
      %v410 = vmul.f32 %v395, %v404
      %v411 = vmul.f32 %v396, %v404
      %v412 = vmul.f32 %v397, %v404
      %v413 = vmul.f32 %v398, %v404
      %v414 = vld [vmem:[%s3] sm:$0x1]
      %v416 = vlaneseq
      %v417 = vshrl.u32 %v416, 7
      %v418 = vsub.s32 0, %v417
      %v419 = vrot.slane %v414, %v418
      %v421 = vadd.f32 %v406, %v419
      %v422 = vadd.f32 %v407, %v419
      %v423 = vadd.f32 %v408, %v419
      %v424 = vadd.f32 %v409, %v419
      %v425 = vadd.f32 %v410, %v419
      %v426 = vadd.f32 %v411, %v419
      %v427 = vadd.f32 %v412, %v419
      %v428 = vadd.f32 %v413, %v419
      %v429 = vmul.f32 %v421, 0.5
      %v430 = vmul.f32 %v422, 0.5
      %v431 = vmul.f32 %v423, 0.5
      %v432 = vmul.f32 %v424, 0.5
      %v433 = vmul.f32 %v425, 0.5
      %v434 = vmul.f32 %v426, 0.5
      %v435 = vmul.f32 %v427, 0.5
      %v436 = vmul.f32 %v428, 0.5
      %v437 = vmul.f32 %v421, 0.044715
      %v438 = vmul.f32 %v422, 0.044715
      %v439 = vmul.f32 %v423, 0.044715
      %v440 = vmul.f32 %v424, 0.044715
      %v441 = vmul.f32 %v425, 0.044715
      %v442 = vmul.f32 %v426, 0.044715
      %v443 = vmul.f32 %v427, 0.044715
      %v444 = vmul.f32 %v428, 0.044715
      %v445 = vmul.f32 %v437, %v421
      %v446 = vmul.f32 %v438, %v422
      %v447 = vmul.f32 %v439, %v423
      %v448 = vmul.f32 %v440, %v424
      %v449 = vmul.f32 %v441, %v425
      %v450 = vmul.f32 %v442, %v426
      %v451 = vmul.f32 %v443, %v427
      %v452 = vmul.f32 %v444, %v428
      %v453 = vmul.f32 %v445, %v421
      %v454 = vmul.f32 %v446, %v422
      %v455 = vmul.f32 %v447, %v423
      %v456 = vmul.f32 %v448, %v424
      %v457 = vmul.f32 %v449, %v425
      %v458 = vmul.f32 %v450, %v426
      %v459 = vmul.f32 %v451, %v427
      %v460 = vmul.f32 %v452, %v428
      %v461 = vadd.f32 %v421, %v453
      %v462 = vadd.f32 %v422, %v454
      %v463 = vadd.f32 %v423, %v455
      %v464 = vadd.f32 %v424, %v456
      %v465 = vadd.f32 %v425, %v457
      %v466 = vadd.f32 %v426, %v458
      %v467 = vadd.f32 %v427, %v459
      %v468 = vadd.f32 %v428, %v460
      %v469 = vmul.f32 %v461, 0.7978846
      %v470 = vmul.f32 %v462, 0.7978846
      %v471 = vmul.f32 %v463, 0.7978846
      %v472 = vmul.f32 %v464, 0.7978846
      %v473 = vmul.f32 %v465, 0.7978846
      %v474 = vmul.f32 %v466, 0.7978846
      %v475 = vmul.f32 %v467, 0.7978846
      %v476 = vmul.f32 %v468, 0.7978846
      %v477 = vtanh.pop %v469
      %v478 = vtanh.pop %v470
      %v479 = vtanh.pop %v471
      %v480 = vtanh.pop %v472
      %v481 = vtanh.pop %v473
      %v482 = vtanh.pop %v474
      %v483 = vtanh.pop %v475
      %v484 = vtanh.pop %v476
      %v485 = vadd.f32 %v477, 1.0
      %v486 = vadd.f32 %v478, 1.0
      %v487 = vadd.f32 %v479, 1.0
      %v488 = vadd.f32 %v480, 1.0
      %v489 = vadd.f32 %v481, 1.0
      %v490 = vadd.f32 %v482, 1.0
      %v491 = vadd.f32 %v483, 1.0
      %v492 = vadd.f32 %v484, 1.0
      %v493 = vmul.f32 %v429, %v485
      %v494 = vmul.f32 %v430, %v486
      %v495 = vmul.f32 %v431, %v487
      %v496 = vmul.f32 %v432, %v488
      %v497 = vmul.f32 %v433, %v489
      %v498 = vmul.f32 %v434, %v490
      %v499 = vmul.f32 %v435, %v491
      %v500 = vmul.f32 %v436, %v492
      %501 = vst [vmem:[%s197] sm:$0xff] %v493
      %502 = vst [vmem:[%s197 + $0x8] sm:$0xff] %v494
      %503 = vst [vmem:[%s197 + $0x10] sm:$0xff] %v495
      %504 = vst [vmem:[%s197 + $0x18] sm:$0xff] %v496
      %505 = vst [vmem:[%s197 + $0x20] sm:$0xff] %v497
      %506 = vst [vmem:[%s197 + $0x28] sm:$0xff] %v498
      %507 = vst [vmem:[%s197 + $0x30] sm:$0xff] %v499
      %508 = vst [vmem:[%s197 + $0x38] sm:$0x7f] %v500
      %p509 = scmp.lt.s32.totalorder %s15, 1
      %s510 = scalar_select %p509, %s15, 1
      %s511 = smul.addr %s510, 8
      %s512 = smul.addr %s511, 8
      %s513 = scalar_lea.vmem %s4, %s512
      // Predicated region
      $region37: #{_lambda_.8} parent=35 // pred_check
        %p514 = pneg %p122
      $region38: #{_lambda_.8} parent=35 // pred_check_branch
        %516 = sbr.rel (%p514) target = $region40
      $region39: #{_lambda_.8} parent=35 // pred_region
        _
      $region40: #{_lambda_.8} parent=35 // pred_fallthru
        _
    $region36: #{_lambda_.8} parent=5 // pred_fallthru
      _
    %p517 = scmp.le.s32.totalorder 2, %s10
    // Predicated region
    $region41: #{_lambda_.8} parent=5 // pred_check
      %p518 = pneg %p517
    $region42: #{_lambda_.8} parent=5 // pred_check_branch
      %520 = sbr.rel (%p518) target = $region44
    $region43: #{_lambda_.8} parent=5 // pred_region
      %s521 = ssub.s32 %s10, 2
      // Predicated region
      $region45: #{_lambda_.8} parent=43 // pred_check
        %p522 = pneg %p128
      $region46: #{_lambda_.8} parent=43 // pred_check_branch
        %524 = sbr.rel (%p522) target = $region48
      $region47: #{_lambda_.8} parent=43 // pred_region
        %p525 = scmp.lt.s32.totalorder %s16, 1
        %s526 = scalar_select %p525, %s16, 1
        %s527 = smul.addr %s526, 8
        %s528 = smul.addr %s527, 8
        %s529 = scalar_lea.vmem %s4, %s528
      $region48: #{_lambda_.8} parent=43 // pred_fallthru
        _
    $region44: #{_lambda_.8} parent=5 // pred_fallthru
      _
  $region6: #{_lambda_.8} parent=0 // loop_footer
    %s14 = sadd.s32 1, %s10
  $region7: #{_lambda_.8} parent=0 // loop_footer_branch
    %9 = sbr.rel target = $region3
  $region8: #{_lambda_.8} parent=0 // loop_exit
    _

// kernel: _lambda_.9
$region0: #{_lambda_.9}
  #allocation0 [shape = 'u32[]', space=smem, size = 0x4, offset = 0x4, fixed_abs, tag = 'smem constant byte address 0x4 - core index']
  #allocation1 [shape = 'u32[144,128]{1,0:T(1,128)}', space=vmem, size = 0x12000, scoped, tag = 'internal scratch']
  %s0 = inlined_call_operand.vmem [shape: f32[2,31,384], index: 0, kind: input, shape index: {}]
  %s1 = inlined_call_operand.vmem [shape: f32[384,128], index: 1, kind: input, shape index: {}]
  %s2 = inlined_call_operand.vmem [shape: f32[1,128], index: 2, kind: input, shape index: {}]
  %s3 = inlined_call_operand.vmem [shape: f32[1,128], index: 3, kind: input, shape index: {}, may-alias: {3,5}]
  %s4 = inlined_call_operand.vmem [shape: f32[128,128], index: 4, kind: input, shape index: {}]
  %s5 = inlined_call_operand.vmem [shape: f32[1,128], index: 5, kind: input, shape index: {}, may-alias: {3,5}]
  %s6 = inlined_call_operand.vmem [shape: f32[2,31,128], index: 6, kind: output, shape index: {}]
  %s7 = sld [smem:[#allocation0]]
  $region57: #{_lambda_.9} parent=0
    _
  %s9 = ssub.s32 1, %s7
  %s10 = scalar_select 0, %s9, %s7
  loop: start=0, step=1, limit=4
  $region2: #{_lambda_.9} parent=0 // loop_pre_header
    _
  $region3: #{_lambda_.9} parent=0 // loop_header
    %s12 = sphi 0, %s16
    %p13 = scmp.ge.s32.totalorder %s12, 4
    %s22 = sphi 0, %s24
    %s25 = sphi 0, %s22
    %s26 = sphi 0, %s25
    %s42 = sphi 0, %s26
    %s46 = sphi 0, %s46
    %s48 = sphi 0, %s46
    %s49 = sphi 0, %s48
    %s63 = sphi 0, %s49
    %s67 = sphi 0, %s67
    %s69 = sphi 0, %s67
    %s70 = sphi 0, %s69
    %s84 = sphi 0, %s70
    %s88 = sphi 0, %s88
    %s90 = sphi 0, %s88
    %s91 = sphi 0, %s90
    %s105 = sphi 0, %s91
    %s109 = sphi 0, %s109
    %s111 = sphi 0, %s109
    %s112 = sphi 0, %s111
    %s126 = sphi 0, %s112
    %s130 = sphi 0, %s130
    %s132 = sphi 0, %s130
    %s133 = sphi 0, %s132
    %s147 = sphi 0, %s133
    %s153 = sphi 0, %s155
    %s156 = sphi 0, %s153
    %s157 = sphi 0, %s156
    %s173 = sphi 0, %s157
  $region4: #{_lambda_.9} parent=0 // loop_header_branch
    %15 = sbr.rel (%p13) target = $region8
  $region5: #{_lambda_.9} parent=0 // loop_body
    %s17 = ssub.s32 %s12, 1
    %s18 = ssub.s32 %s12, 2
    %s19 = sadd.s32 %s12, 1
    %s20 = ssub.s32 %s12, %s19
    %p21 = scmp.eq.s32.totalorder %s20, 0
    %s23 = sadd.s32 %s22, 1
    %s24 = scalar_select %p21, %s22, %s23
    %p27 = pneg %p21
    %p28 = scmp.eq.s32.totalorder %s12, 1
    %p29 = por %p27, %p28
    %p30 = scmp.ne.s32.totalorder %s22, %s25
    %p31 = scmp.eq.s32.totalorder %s12, 0
    %p32 = por %p30, %p31
    %p33 = scmp.ne.s32.totalorder %s22, %s25
    %p34 = scmp.eq.s32.totalorder %s17, 1
    %p35 = por %p33, %p34
    %p36 = scmp.ne.s32.totalorder %s25, %s26
    %p37 = scmp.eq.s32.totalorder %s17, 0
    %p38 = por %p36, %p37
    %p39 = scmp.ne.s32.totalorder %s25, %s26
    %p40 = scmp.eq.s32.totalorder %s18, 1
    %p41 = por %p39, %p40
    %p43 = scmp.ne.s32.totalorder %s26, %s42
    %p44 = scmp.eq.s32.totalorder %s18, 0
    %p45 = por %p43, %p44
    %s47 = sadd.s32 %s46, 1
    %p50 = scmp.eq.s32.totalorder %s12, 1
    %p51 = scmp.ne.s32.totalorder %s46, %s48
    %p52 = scmp.eq.s32.totalorder %s12, 0
    %p53 = por %p51, %p52
    %p54 = scmp.ne.s32.totalorder %s46, %s48
    %p55 = scmp.eq.s32.totalorder %s17, 1
    %p56 = por %p54, %p55
    %p57 = scmp.ne.s32.totalorder %s48, %s49
    %p58 = scmp.eq.s32.totalorder %s17, 0
    %p59 = por %p57, %p58
    %p60 = scmp.ne.s32.totalorder %s48, %s49
    %p61 = scmp.eq.s32.totalorder %s18, 1
    %p62 = por %p60, %p61
    %p64 = scmp.ne.s32.totalorder %s49, %s63
    %p65 = scmp.eq.s32.totalorder %s18, 0
    %p66 = por %p64, %p65
    %s68 = sadd.s32 %s67, 1
    %p71 = scmp.eq.s32.totalorder %s12, 1
    %p72 = scmp.ne.s32.totalorder %s67, %s69
    %p73 = scmp.eq.s32.totalorder %s12, 0
    %p74 = por %p72, %p73
    %p75 = scmp.ne.s32.totalorder %s67, %s69
    %p76 = scmp.eq.s32.totalorder %s17, 1
    %p77 = por %p75, %p76
    %p78 = scmp.ne.s32.totalorder %s69, %s70
    %p79 = scmp.eq.s32.totalorder %s17, 0
    %p80 = por %p78, %p79
    %p81 = scmp.ne.s32.totalorder %s69, %s70
    %p82 = scmp.eq.s32.totalorder %s18, 1
    %p83 = por %p81, %p82
    %p85 = scmp.ne.s32.totalorder %s70, %s84
    %p86 = scmp.eq.s32.totalorder %s18, 0
    %p87 = por %p85, %p86
    %s89 = sadd.s32 %s88, 1
    %p92 = scmp.eq.s32.totalorder %s12, 1
    %p93 = scmp.ne.s32.totalorder %s88, %s90
    %p94 = scmp.eq.s32.totalorder %s12, 0
    %p95 = por %p93, %p94
    %p96 = scmp.ne.s32.totalorder %s88, %s90
    %p97 = scmp.eq.s32.totalorder %s17, 1
    %p98 = por %p96, %p97
    %p99 = scmp.ne.s32.totalorder %s90, %s91
    %p100 = scmp.eq.s32.totalorder %s17, 0
    %p101 = por %p99, %p100
    %p102 = scmp.ne.s32.totalorder %s90, %s91
    %p103 = scmp.eq.s32.totalorder %s18, 1
    %p104 = por %p102, %p103
    %p106 = scmp.ne.s32.totalorder %s91, %s105
    %p107 = scmp.eq.s32.totalorder %s18, 0
    %p108 = por %p106, %p107
    %s110 = sadd.s32 %s109, 1
    %p113 = scmp.eq.s32.totalorder %s12, 1
    %p114 = scmp.ne.s32.totalorder %s109, %s111
    %p115 = scmp.eq.s32.totalorder %s12, 0
    %p116 = por %p114, %p115
    %p117 = scmp.ne.s32.totalorder %s109, %s111
    %p118 = scmp.eq.s32.totalorder %s17, 1
    %p119 = por %p117, %p118
    %p120 = scmp.ne.s32.totalorder %s111, %s112
    %p121 = scmp.eq.s32.totalorder %s17, 0
    %p122 = por %p120, %p121
    %p123 = scmp.ne.s32.totalorder %s111, %s112
    %p124 = scmp.eq.s32.totalorder %s18, 1
    %p125 = por %p123, %p124
    %p127 = scmp.ne.s32.totalorder %s112, %s126
    %p128 = scmp.eq.s32.totalorder %s18, 0
    %p129 = por %p127, %p128
    %s131 = sadd.s32 %s130, 1
    %p134 = scmp.eq.s32.totalorder %s12, 1
    %p135 = scmp.ne.s32.totalorder %s130, %s132
    %p136 = scmp.eq.s32.totalorder %s12, 0
    %p137 = por %p135, %p136
    %p138 = scmp.ne.s32.totalorder %s130, %s132
    %p139 = scmp.eq.s32.totalorder %s17, 1
    %p140 = por %p138, %p139
    %p141 = scmp.ne.s32.totalorder %s132, %s133
    %p142 = scmp.eq.s32.totalorder %s17, 0
    %p143 = por %p141, %p142
    %p144 = scmp.ne.s32.totalorder %s132, %s133
    %p145 = scmp.eq.s32.totalorder %s18, 1
    %p146 = por %p144, %p145
    %p148 = scmp.ne.s32.totalorder %s133, %s147
    %p149 = scmp.eq.s32.totalorder %s18, 0
    %p150 = por %p148, %p149
    %s151 = ssub.s32 %s12, %s19
    %p152 = scmp.eq.s32.totalorder %s151, 0
    %s154 = sadd.s32 %s153, 1
    %s155 = scalar_select %p152, %s153, %s154
    %p158 = pneg %p152
    %p159 = scmp.eq.s32.totalorder %s12, 1
    %p160 = por %p158, %p159
    %p161 = scmp.ne.s32.totalorder %s153, %s156
    %p162 = scmp.eq.s32.totalorder %s12, 0
    %p163 = por %p161, %p162
    %p164 = scmp.ne.s32.totalorder %s153, %s156
    %p165 = scmp.eq.s32.totalorder %s17, 1
    %p166 = por %p164, %p165
    %p167 = scmp.ne.s32.totalorder %s156, %s157
    %p168 = scmp.eq.s32.totalorder %s17, 0
    %p169 = por %p167, %p168
    %p170 = scmp.ne.s32.totalorder %s156, %s157
    %p171 = scmp.eq.s32.totalorder %s18, 1
    %p172 = por %p170, %p171
    %p174 = scmp.ne.s32.totalorder %s157, %s173
    %p175 = scmp.eq.s32.totalorder %s18, 0
    %p176 = por %p174, %p175
    %p177 = scmp.le.s32.totalorder 1, %s12
    %p178 = scmp.lt.s32.totalorder %s12, 3
    %p179 = pnand %p177, %p178
    %p180 = pneg %p179
    // Predicated region
    $region9: #{_lambda_.9} parent=5 // pred_check
      _
    $region10: #{_lambda_.9} parent=5 // pred_check_branch
      %182 = sbr.rel (%p179) target = $region12
    $region11: #{_lambda_.9} parent=5 // pred_region
      %s183 = ssub.s32 %s12, 1
      // Predicated region
      $region13: #{_lambda_.9} parent=11 // pred_check
        %p184 = pneg %p59
      $region14: #{_lambda_.9} parent=11 // pred_check_branch
        %186 = sbr.rel (%p184) target = $region16
      $region15: #{_lambda_.9} parent=11 // pred_region
        _
      $region16: #{_lambda_.9} parent=11 // pred_fallthru
        _
      // Predicated region
      $region17: #{_lambda_.9} parent=11 // pred_check
        %p187 = pneg %p80
      $region18: #{_lambda_.9} parent=11 // pred_check_branch
        %189 = sbr.rel (%p187) target = $region20
      $region19: #{_lambda_.9} parent=11 // pred_region
        _
      $region20: #{_lambda_.9} parent=11 // pred_fallthru
        _
      // Predicated region
      $region21: #{_lambda_.9} parent=11 // pred_check
        %p190 = pneg %p101
      $region22: #{_lambda_.9} parent=11 // pred_check_branch
        %192 = sbr.rel (%p190) target = $region24
      $region23: #{_lambda_.9} parent=11 // pred_region
        _
      $region24: #{_lambda_.9} parent=11 // pred_fallthru
        _
      // Predicated region
      $region25: #{_lambda_.9} parent=11 // pred_check
        %p193 = pneg %p122
      $region26: #{_lambda_.9} parent=11 // pred_check_branch
        %195 = sbr.rel (%p193) target = $region28
      $region27: #{_lambda_.9} parent=11 // pred_region
        _
      $region28: #{_lambda_.9} parent=11 // pred_fallthru
        _
      // Predicated region
      $region29: #{_lambda_.9} parent=11 // pred_check
        %p196 = pneg %p143
      $region30: #{_lambda_.9} parent=11 // pred_check_branch
        %198 = sbr.rel (%p196) target = $region32
      $region31: #{_lambda_.9} parent=11 // pred_region
        _
      $region32: #{_lambda_.9} parent=11 // pred_fallthru
        _
    $region12: #{_lambda_.9} parent=5 // pred_fallthru
      _
    %p199 = scmp.lt.s32.totalorder %s12, 2
    // Predicated region
    $region33: #{_lambda_.9} parent=5 // pred_check
      %p200 = pneg %p199
    $region34: #{_lambda_.9} parent=5 // pred_check_branch
      %202 = sbr.rel (%p200) target = $region36
    $region35: #{_lambda_.9} parent=5 // pred_region
      // Predicated region
      $region37: #{_lambda_.9} parent=35 // pred_check
        %p203 = pneg %p32
      $region38: #{_lambda_.9} parent=35 // pred_check_branch
        %205 = sbr.rel (%p203) target = $region40
      $region39: #{_lambda_.9} parent=35 // pred_region
        %p206 = scmp.lt.s32.totalorder %s12, 1
        %s207 = scalar_select %p206, %s12, 1
        %s208 = smul.addr %s207, 12
        %s209 = smul.addr %s208, 8
        %s210 = scalar_lea.vmem %s0, %s209
      $region40: #{_lambda_.9} parent=35 // pred_fallthru
        _
    $region36: #{_lambda_.9} parent=5 // pred_fallthru
      _
    %p211 = scmp.le.s32.totalorder 1, %s12
    %p212 = scmp.lt.s32.totalorder %s12, 3
    %p213 = pnand %p211, %p212
    %p214 = pneg %p213
    // Predicated region
    $region41: #{_lambda_.9} parent=5 // pred_check
      _
    $region42: #{_lambda_.9} parent=5 // pred_check_branch
      %216 = sbr.rel (%p213) target = $region44
    $region43: #{_lambda_.9} parent=5 // pred_region
      %s217 = ssub.s32 %s12, 1
      %p218 = scmp.lt.s32.totalorder %s17, 1
      %s219 = scalar_select %p218, %s17, 1
      %s220 = smul.addr %s219, 12
      %s221 = smul.addr %s220, 8
      %s222 = scalar_lea.vmem %s0, %s221
      %p223 = pneg %p38
      %p224 = pneg %p35
      %p225 = pneg %p59
      %p226 = pneg %p56
      %p227 = pneg %p80
      %p228 = pneg %p77
      %p229 = pneg %p101
      %p230 = pneg %p98
      %p231 = pneg %p122
      %p232 = pneg %p119
      %p233 = pneg %p143
      %p234 = pneg %p140
      %p235 = pneg %p169
      %p236 = pneg %p166
      %p237 = scmp.lt.s32.totalorder %s17, 1
      %s238 = scalar_select %p237, %s17, 1
      %s239 = smul.addr %s238, 4
      %s240 = smul.addr %s239, 8
      %s241 = scalar_lea.vmem %s6, %s240
      %p242 = scmp.lt.s32.totalorder %s17, 1
      %s243 = scalar_select %p242, %s17, 1
      %s244 = smul.addr %s243, 12
      %s245 = smul.addr %s244, 8
      %s246 = scalar_lea.vmem %s0, %s245
      %p247 = scmp.lt.s32.totalorder %s17, 1
      %s248 = scalar_select %p247, %s17, 1
      %s249 = smul.addr %s248, 4
      %s250 = smul.addr %s249, 8
      %s251 = scalar_lea.vmem %s6, %s250
      %v252 = vld [vmem:[%s246] sm:$0xff]
      %v253 = vld [vmem:[%s246 + $0x8] sm:$0xff]
      %v254 = vld [vmem:[%s246 + $0x10] sm:$0xff]
      %v255 = vld [vmem:[%s246 + $0x18] sm:$0xff]
      %v256 = vld [vmem:[%s246 + $0x20] sm:$0xff]
      %v257 = vld [vmem:[%s246 + $0x28] sm:$0xff]
      %v258 = vld [vmem:[%s246 + $0x30] sm:$0xff]
      %v259 = vld [vmem:[%s246 + $0x38] sm:$0xff]
      %v260 = vld [vmem:[%s246 + $0x40] sm:$0xff]
      %v261 = vld [vmem:[%s246 + $0x48] sm:$0x7f]
      %v262 = vld [vmem:[%s246 + $0x50] sm:$0x7f]
      %v263 = vld [vmem:[%s246 + $0x58] sm:$0x7f]
      %v264 = vld [vmem:[%s1] sm:$0xff]
      %v265 = vld [vmem:[%s1 + $0x8] sm:$0xff]
      %v266 = vld [vmem:[%s1 + $0x10] sm:$0xff]
      %v267 = vld [vmem:[%s1 + $0x18] sm:$0xff]
      %v268 = vld [vmem:[%s1 + $0x20] sm:$0xff]
      %v269 = vld [vmem:[%s1 + $0x28] sm:$0xff]
      %v270 = vld [vmem:[%s1 + $0x30] sm:$0xff]
      %v271 = vld [vmem:[%s1 + $0x38] sm:$0xff]
      %v272 = vld [vmem:[%s1 + $0x40] sm:$0xff]
      %v273 = vld [vmem:[%s1 + $0x48] sm:$0xff]
      %v274 = vld [vmem:[%s1 + $0x50] sm:$0xff]
      %v275 = vld [vmem:[%s1 + $0x58] sm:$0xff]
      %v276 = vld [vmem:[%s1 + $0x60] sm:$0xff]
      %v277 = vld [vmem:[%s1 + $0x68] sm:$0xff]
      %v278 = vld [vmem:[%s1 + $0x70] sm:$0xff]
      %v279 = vld [vmem:[%s1 + $0x78] sm:$0xff]
      %v280 = vld [vmem:[%s1 + $0x80] sm:$0xff]
      %v281 = vld [vmem:[%s1 + $0x88] sm:$0xff]
      %v282 = vld [vmem:[%s1 + $0x90] sm:$0xff]
      %v283 = vld [vmem:[%s1 + $0x98] sm:$0xff]
      %v284 = vld [vmem:[%s1 + $0xa0] sm:$0xff]
      %v285 = vld [vmem:[%s1 + $0xa8] sm:$0xff]
      %v286 = vld [vmem:[%s1 + $0xb0] sm:$0xff]
      %v287 = vld [vmem:[%s1 + $0xb8] sm:$0xff]
      %v288 = vld [vmem:[%s1 + $0xc0] sm:$0xff]
      %v289 = vld [vmem:[%s1 + $0xc8] sm:$0xff]
      %v290 = vld [vmem:[%s1 + $0xd0] sm:$0xff]
      %v291 = vld [vmem:[%s1 + $0xd8] sm:$0xff]
      %v292 = vld [vmem:[%s1 + $0xe0] sm:$0xff]
      %v293 = vld [vmem:[%s1 + $0xe8] sm:$0xff]
      %v294 = vld [vmem:[%s1 + $0xf0] sm:$0xff]
      %v295 = vld [vmem:[%s1 + $0xf8] sm:$0xff]
      %v296 = vld [vmem:[%s1 + $0x100] sm:$0xff]
      %v297 = vld [vmem:[%s1 + $0x108] sm:$0xff]
      %v298 = vld [vmem:[%s1 + $0x110] sm:$0xff]
      %v299 = vld [vmem:[%s1 + $0x118] sm:$0xff]
      %v300 = vld [vmem:[%s1 + $0x120] sm:$0xff]
      %v301 = vld [vmem:[%s1 + $0x128] sm:$0xff]
      %v302 = vld [vmem:[%s1 + $0x130] sm:$0xff]
      %v303 = vld [vmem:[%s1 + $0x138] sm:$0xff]
      %v304 = vld [vmem:[%s1 + $0x140] sm:$0xff]
      %v305 = vld [vmem:[%s1 + $0x148] sm:$0xff]
      %v306 = vld [vmem:[%s1 + $0x150] sm:$0xff]
      %v307 = vld [vmem:[%s1 + $0x158] sm:$0xff]
      %v308 = vld [vmem:[%s1 + $0x160] sm:$0xff]
      %v309 = vld [vmem:[%s1 + $0x168] sm:$0xff]
      %v310 = vld [vmem:[%s1 + $0x170] sm:$0xff]
      %v311 = vld [vmem:[%s1 + $0x178] sm:$0xff]
      %312 = vmatprep.subr.mxu0 0.0
      %313 = vmatpush1.msra.mxu0 %v264
      %314 = vmatprep.subr.mxu0 0.0
      %315 = vmatpush1.msra.mxu0 %v265
      %316 = vmatprep.subr.mxu0 0.0
      %317 = vmatpush1.msra.mxu0 %v266
      %318 = vmatprep.subr.mxu0 0.0
      %319 = vmatpush1.msra.mxu0 %v267
      %320 = vmatprep.subr.mxu0 0.0
      %321 = vmatpush1.msra.mxu0 %v268
      %322 = vmatprep.subr.mxu0 0.0
      %323 = vmatpush1.msra.mxu0 %v269
      %324 = vmatprep.subr.mxu0 0.0
      %325 = vmatpush1.msra.mxu0 %v270
      %326 = vmatprep.subr.mxu0 0.0
      %327 = vmatpush1.msra.mxu0 %v271
      %328 = vmatprep.subr.mxu0 0.0
      %329 = vmatpush1.msra.mxu0 %v272
      %330 = vmatprep.subr.mxu0 0.0
      %331 = vmatpush1.msra.mxu0 %v273
      %332 = vmatprep.subr.mxu0 0.0
      %333 = vmatpush1.msra.mxu0 %v274
      %334 = vmatprep.subr.mxu0 0.0
      %335 = vmatpush1.msra.mxu0 %v275
      %336 = vmatprep.subr.mxu0 0.0
      %337 = vmatpush1.msra.mxu0 %v276
      %338 = vmatprep.subr.mxu0 0.0
      %339 = vmatpush1.msra.mxu0 %v277
      %340 = vmatprep.subr.mxu0 0.0
      %341 = vmatpush1.msra.mxu0 %v278
      %342 = vmatprep.subr.mxu0 0.0
      %343 = vmatpush1.msra.mxu0 %v279
      %344 = vmatprep.subr.mxu0 0.0
      %345 = vmatpush1.msra.mxu0 %v280
      %346 = vmatprep.subr.mxu0 0.0
      %347 = vmatpush1.msra.mxu0 %v281
      %348 = vmatprep.subr.mxu0 0.0
      %349 = vmatpush1.msra.mxu0 %v282
      %350 = vmatprep.subr.mxu0 0.0
      %351 = vmatpush1.msra.mxu0 %v283
      %352 = vmatprep.subr.mxu0 0.0
      %353 = vmatpush1.msra.mxu0 %v284
      %354 = vmatprep.subr.mxu0 0.0
      %355 = vmatpush1.msra.mxu0 %v285
      %356 = vmatprep.subr.mxu0 0.0
      %357 = vmatpush1.msra.mxu0 %v286
      %358 = vmatprep.subr.mxu0 0.0
      %359 = vmatpush1.msra.mxu0 %v287
      %360 = vmatprep.subr.mxu0 0.0
      %361 = vmatpush1.msra.mxu0 %v288
      %362 = vmatprep.subr.mxu0 0.0
      %363 = vmatpush1.msra.mxu0 %v289
      %364 = vmatprep.subr.mxu0 0.0
      %365 = vmatpush1.msra.mxu0 %v290
      %366 = vmatprep.subr.mxu0 0.0
      %367 = vmatpush1.msra.mxu0 %v291
      %368 = vmatprep.subr.mxu0 0.0
      %369 = vmatpush1.msra.mxu0 %v292
      %370 = vmatprep.subr.mxu0 0.0
      %371 = vmatpush1.msra.mxu0 %v293
      %372 = vmatprep.subr.mxu0 0.0
      %373 = vmatpush1.msra.mxu0 %v294
      %374 = vmatprep.subr.mxu0 0.0
      %375 = vmatpush1.msra.mxu0 %v295
      %376 = vmatprep.mubr.f32.mxu0 %v253
      %377 = vmatmul.mubr.f32.gmra.mrb[0].mxu0 %v252
      %v378 = vpop.f32.mrb[0].mxu0
      %v379 = vadd.f32 0.0, %v378
      %v380 = vpop.f32.mrb[0].mxu0
      %381 = vmatprep.mubr.f32.mxu0 %v256
      %382 = vmatmul.mubr.f32.gmra.mrb[0].mxu0 %v255
      %v383 = vpop.f32.mrb[0].mxu0
      %v384 = vadd.f32 0.0, %v383
      %v385 = vpop.f32.mrb[0].mxu0
      %386 = vmatprep.mubr.f32.mxu0 %v259
      %387 = vmatmul.mubr.f32.gmra.mrb[0].mxu0 %v258
      %v388 = vpop.f32.mrb[0].mxu0
      %v389 = vadd.f32 0.0, %v388
      %v390 = vpop.f32.mrb[0].mxu0
      %391 = vmatprep.mubr.f32.mxu0 %v262
      %392 = vmatmul.mubr.f32.gmra.mrb[0].mxu0 %v261
      %v393 = vpop.f32.mrb[0].mxu0
      %v394 = vadd.f32 0.0, %v393
      %v395 = vpop.f32.mrb[0].mxu0
      %396 = vdwg.mxu0
      %397 = vmatprep.subr.mxu0 0.0
      %398 = vmatpush1.msra.mxu0 %v296
      %399 = vmatprep.subr.mxu0 0.0
      %400 = vmatpush1.msra.mxu0 %v297
      %401 = vmatprep.subr.mxu0 0.0
      %402 = vmatpush1.msra.mxu0 %v298
      %403 = vmatprep.subr.mxu0 0.0
      %404 = vmatpush1.msra.mxu0 %v299
      %405 = vmatprep.subr.mxu0 0.0
      %406 = vmatpush1.msra.mxu0 %v300
      %407 = vmatprep.subr.mxu0 0.0
      %408 = vmatpush1.msra.mxu0 %v301
      %409 = vmatprep.subr.mxu0 0.0
      %410 = vmatpush1.msra.mxu0 %v302
      %411 = vmatprep.subr.mxu0 0.0
      %412 = vmatpush1.msra.mxu0 %v303
      %413 = vmatprep.subr.mxu0 0.0
      %414 = vmatpush1.msra.mxu0 %v304
      %415 = vmatprep.subr.mxu0 0.0
      %416 = vmatpush1.msra.mxu0 %v305
      %417 = vmatprep.subr.mxu0 0.0
      %418 = vmatpush1.msra.mxu0 %v306
      %419 = vmatprep.subr.mxu0 0.0
      %420 = vmatpush1.msra.mxu0 %v307
      %421 = vmatprep.subr.mxu0 0.0
      %422 = vmatpush1.msra.mxu0 %v308
      %423 = vmatprep.subr.mxu0 0.0
      %424 = vmatpush1.msra.mxu0 %v309
      %425 = vmatprep.subr.mxu0 0.0
      %426 = vmatpush1.msra.mxu0 %v310
      %427 = vmatprep.subr.mxu0 0.0
      %428 = vmatpush1.msra.mxu0 %v311
      %429 = vmatprep.subr.mxu0 0.0
      %430 = vmatpush1.msra.mxu0 0.0
      %431 = vmatprep.subr.mxu0 0.0
      %432 = vmatpush1.msra.mxu0 0.0
      %433 = vmatprep.subr.mxu0 0.0
      %434 = vmatpush1.msra.mxu0 0.0
      %435 = vmatprep.subr.mxu0 0.0
      %436 = vmatpush1.msra.mxu0 0.0
      %437 = vmatprep.subr.mxu0 0.0
      %438 = vmatpush1.msra.mxu0 0.0
      %439 = vmatprep.subr.mxu0 0.0
      %440 = vmatpush1.msra.mxu0 0.0
      %441 = vmatprep.subr.mxu0 0.0
      %442 = vmatpush1.msra.mxu0 0.0
      %443 = vmatprep.subr.mxu0 0.0
      %444 = vmatpush1.msra.mxu0 0.0
      %445 = vmatprep.subr.mxu0 0.0
      %446 = vmatpush1.msra.mxu0 0.0
      %447 = vmatprep.subr.mxu0 0.0
      %448 = vmatpush1.msra.mxu0 0.0
      %449 = vmatprep.subr.mxu0 0.0
      %450 = vmatpush1.msra.mxu0 0.0
      %451 = vmatprep.subr.mxu0 0.0
      %452 = vmatpush1.msra.mxu0 0.0
      %453 = vmatprep.subr.mxu0 0.0
      %454 = vmatpush1.msra.mxu0 0.0
      %455 = vmatprep.subr.mxu0 0.0
      %456 = vmatpush1.msra.mxu0 0.0
      %457 = vmatprep.subr.mxu0 0.0
      %458 = vmatpush1.msra.mxu0 0.0
      %459 = vmatprep.subr.mxu0 0.0
      %460 = vmatpush1.msra.mxu0 0.0
      %461 = vmatprep.mubr.f32.mxu0 0.0
      %462 = vmatmul.mubr.f32.gmra.mrb[0].mxu0 %v254
      %v463 = vpop.f32.mrb[0].mxu0
      %v464 = vadd.f32 %v379, %v463
      %v465 = vpop.f32.mrb[0].mxu0
      %466 = vmatprep.mubr.f32.mxu0 0.0
      %467 = vmatmul.mubr.f32.gmra.mrb[0].mxu0 %v257
      %v468 = vpop.f32.mrb[0].mxu0
      %v469 = vadd.f32 %v384, %v468
      %v470 = vpop.f32.mrb[0].mxu0
      %471 = vmatprep.mubr.f32.mxu0 0.0
      %472 = vmatmul.mubr.f32.gmra.mrb[0].mxu0 %v260
      %v473 = vpop.f32.mrb[0].mxu0
      %v474 = vadd.f32 %v389, %v473
      %v475 = vpop.f32.mrb[0].mxu0
      %476 = vmatprep.mubr.f32.mxu0 0.0
      %477 = vmatmul.mubr.f32.gmra.mrb[0].mxu0 %v263
      %v478 = vpop.f32.mrb[0].mxu0
      %v479 = vadd.f32 %v394, %v478
      %v480 = vpop.f32.mrb[0].mxu0
      %481 = vdwg.mxu0
      %v482 = vmul.f32 %v464, 0.5
      %v483 = vmul.f32 %v469, 0.5
      %v484 = vmul.f32 %v474, 0.5
      %v485 = vmul.f32 %v479, 0.5
      %v486 = vmul.f32 %v464, 0.044715
      %v487 = vmul.f32 %v469, 0.044715
      %v488 = vmul.f32 %v474, 0.044715
      %v489 = vmul.f32 %v479, 0.044715
      %v490 = vmul.f32 %v486, %v464
      %v491 = vmul.f32 %v487, %v469
      %v492 = vmul.f32 %v488, %v474
      %v493 = vmul.f32 %v489, %v479
      %v494 = vmul.f32 %v490, %v464
      %v495 = vmul.f32 %v491, %v469
      %v496 = vmul.f32 %v492, %v474
      %v497 = vmul.f32 %v493, %v479
      %v498 = vadd.f32 %v464, %v494
      %v499 = vadd.f32 %v469, %v495
      %v500 = vadd.f32 %v474, %v496
      %v501 = vadd.f32 %v479, %v497
      %v502 = vmul.f32 %v498, 0.7978846
      %v503 = vmul.f32 %v499, 0.7978846
      %v504 = vmul.f32 %v500, 0.7978846
      %v505 = vmul.f32 %v501, 0.7978846
      %v506 = vtanh.pop %v502
      %v507 = vtanh.pop %v503
      %v508 = vtanh.pop %v504
      %v509 = vtanh.pop %v505
      %v510 = vadd.f32 %v506, 1.0
      %v511 = vadd.f32 %v507, 1.0
      %v512 = vadd.f32 %v508, 1.0
      %v513 = vadd.f32 %v509, 1.0
      %v514 = vmul.f32 %v482, %v510
      %v515 = vmul.f32 %v483, %v511
      %v516 = vmul.f32 %v484, %v512
      %v517 = vmul.f32 %v485, %v513
      %v518 = vlaneseq
      %v519 = vand.u32 %v518, 127
      %vm520 = vcmp.lt.s32.totalorder %v519, 32
      %v521 = vsel %vm520, 1, 0
      %v522 = vcvt.s32.f32 %v521
      %v523 = vld [vmem:[%s2] sm:$0x1]
      %v524 = vld [vmem:[%s3] sm:$0x1]
      %v525 = vmul.f32 %v514, %v522
      %v526 = vmul.f32 %v515, %v522
      %v527 = vmul.f32 %v516, %v522
      %v528 = vmul.f32 %v517, %v522
      %529 = vadd.xlane.f32.xlu0 %v525
      %v530 = vpop.xlane.xlu0 %529
      %531 = vadd.xlane.f32.xlu0 %v526
      %v532 = vpop.xlane.xlu0 %531
      %533 = vadd.xlane.f32.xlu0 %v527
      %v534 = vpop.xlane.xlu0 %533
      %vm535 = vcmask 1046528
      %v536 = vsel %vm535, %v528, 0.0
      %537 = vadd.xlane.f32.xlu0 %v536
      %v538 = vpop.xlane.xlu0 %537
      %v539 = vmul.f32 %v530, 0.03125
      %v540 = vmul.f32 %v532, 0.03125
      %v541 = vmul.f32 %v534, 0.03125
      %v542 = vmul.f32 %v538, 0.03125
      %v543 = vsub.f32 %v514, %v539
      %v544 = vsub.f32 %v515, %v540
      %v545 = vsub.f32 %v516, %v541
      %v546 = vsub.f32 %v517, %v542
      %v547 = vmul.f32 %v543, %v522
      %v548 = vmul.f32 %v544, %v522
      %v549 = vmul.f32 %v545, %v522
      %v550 = vmul.f32 %v546, %v522
      %v551 = vmul.f32 %v547, %v547
      %v552 = vmul.f32 %v548, %v548
      %v553 = vmul.f32 %v549, %v549
      %v554 = vmul.f32 %v550, %v550
      %555 = vadd.xlane.f32.xlu0 %v551
      %v556 = vpop.xlane.xlu0 %555
      %557 = vadd.xlane.f32.xlu0 %v552
      %v558 = vpop.xlane.xlu0 %557
      %559 = vadd.xlane.f32.xlu0 %v553
      %v560 = vpop.xlane.xlu0 %559
      %v561 = vsel %vm535, %v554, 0.0
      %562 = vadd.xlane.f32.xlu0 %v561
      %v563 = vpop.xlane.xlu0 %562
      %v564 = vmul.f32 %v556, 0.03125
      %v565 = vmul.f32 %v558, 0.03125
      %v566 = vmul.f32 %v560, 0.03125
      %v567 = vmul.f32 %v563, 0.03125
      %v568 = vadd.f32 %v564, 1e-05
      %v569 = vadd.f32 %v565, 1e-05
      %v570 = vadd.f32 %v566, 1e-05
      %v571 = vadd.f32 %v567, 1e-05
      %v572 = vrsqrt.pop %v568
      %v573 = vrsqrt.pop %v569
      %v574 = vrsqrt.pop %v570
      %v575 = vrsqrt.pop %v571
      %v576 = vmul.f32 %v547, %v572
      %v577 = vmul.f32 %v548, %v573
      %v578 = vmul.f32 %v549, %v574
      %v579 = vmul.f32 %v550, %v575
      %v581 = vlaneseq
      %v582 = vshrl.u32 %v581, 7
      %v583 = vsub.s32 0, %v582
      %v584 = vrot.slane %v523, %v583
      %v586 = vmul.f32 %v576, %v584
      %v587 = vmul.f32 %v577, %v584
      %v588 = vmul.f32 %v578, %v584
      %v589 = vmul.f32 %v579, %v584
      %v591 = vlaneseq
      %v592 = vshrl.u32 %v591, 7
      %v593 = vsub.s32 0, %v592
      %v594 = vrot.slane %v524, %v593
      %v596 = vadd.f32 %v586, %v594
      %v597 = vadd.f32 %v587, %v594
      %v598 = vadd.f32 %v588, %v594
      %v599 = vadd.f32 %v589, %v594
      %v600 = vld [vmem:[%s4] sm:$0xff]
      %v601 = vld [vmem:[%s4 + $0x8] sm:$0xff]
      %v602 = vld [vmem:[%s4 + $0x10] sm:$0xff]
      %v603 = vld [vmem:[%s4 + $0x18] sm:$0xff]
      %v604 = vld [vmem:[%s4 + $0x20] sm:$0xff]
      %v605 = vld [vmem:[%s4 + $0x28] sm:$0xff]
      %v606 = vld [vmem:[%s4 + $0x30] sm:$0xff]
      %v607 = vld [vmem:[%s4 + $0x38] sm:$0xff]
      %v608 = vld [vmem:[%s4 + $0x40] sm:$0xff]
      %v609 = vld [vmem:[%s4 + $0x48] sm:$0xff]
      %v610 = vld [vmem:[%s4 + $0x50] sm:$0xff]
      %v611 = vld [vmem:[%s4 + $0x58] sm:$0xff]
      %v612 = vld [vmem:[%s4 + $0x60] sm:$0xff]
      %v613 = vld [vmem:[%s4 + $0x68] sm:$0xff]
      %v614 = vld [vmem:[%s4 + $0x70] sm:$0xff]
      %v615 = vld [vmem:[%s4 + $0x78] sm:$0xff]
      %v616 = vld [vmem:[%s5] sm:$0x1]
      %v618 = vlaneseq
      %v619 = vshrl.u32 %v618, 7
      %v620 = vsub.s32 0, %v619
      %v621 = vrot.slane %v616, %v620
      %623 = vmatprep.subr.mxu0 0.0
      %624 = vmatpush1.msra.mxu0 %v600
      %625 = vmatprep.subr.mxu0 0.0
      %626 = vmatpush1.msra.mxu0 %v601
      %627 = vmatprep.subr.mxu0 0.0
      %628 = vmatpush1.msra.mxu0 %v602
      %629 = vmatprep.subr.mxu0 0.0
      %630 = vmatpush1.msra.mxu0 %v603
      %631 = vmatprep.subr.mxu0 0.0
      %632 = vmatpush1.msra.mxu0 %v604
      %633 = vmatprep.subr.mxu0 0.0
      %634 = vmatpush1.msra.mxu0 %v605
      %635 = vmatprep.subr.mxu0 0.0
      %636 = vmatpush1.msra.mxu0 %v606
      %637 = vmatprep.subr.mxu0 0.0
      %638 = vmatpush1.msra.mxu0 %v607
      %639 = vmatprep.subr.mxu0 0.0
      %640 = vmatpush1.msra.mxu0 %v608
      %641 = vmatprep.subr.mxu0 0.0
      %642 = vmatpush1.msra.mxu0 %v609
      %643 = vmatprep.subr.mxu0 0.0
      %644 = vmatpush1.msra.mxu0 %v610
      %645 = vmatprep.subr.mxu0 0.0
      %646 = vmatpush1.msra.mxu0 %v611
      %647 = vmatprep.subr.mxu0 0.0
      %648 = vmatpush1.msra.mxu0 %v612
      %649 = vmatprep.subr.mxu0 0.0
      %650 = vmatpush1.msra.mxu0 %v613
      %651 = vmatprep.subr.mxu0 0.0
      %652 = vmatpush1.msra.mxu0 %v614
      %653 = vmatprep.subr.mxu0 0.0
      %654 = vmatpush1.msra.mxu0 %v615
      %655 = vmatprep.subr.mxu0 0.0
      %656 = vmatpush1.msra.mxu0 0.0
      %657 = vmatprep.subr.mxu0 0.0
      %658 = vmatpush1.msra.mxu0 0.0
      %659 = vmatprep.subr.mxu0 0.0
      %660 = vmatpush1.msra.mxu0 0.0
      %661 = vmatprep.subr.mxu0 0.0
      %662 = vmatpush1.msra.mxu0 0.0
      %663 = vmatprep.subr.mxu0 0.0
      %664 = vmatpush1.msra.mxu0 0.0
      %665 = vmatprep.subr.mxu0 0.0
      %666 = vmatpush1.msra.mxu0 0.0
      %667 = vmatprep.subr.mxu0 0.0
      %668 = vmatpush1.msra.mxu0 0.0
      %669 = vmatprep.subr.mxu0 0.0
      %670 = vmatpush1.msra.mxu0 0.0
      %671 = vmatprep.subr.mxu0 0.0
      %672 = vmatpush1.msra.mxu0 0.0
      %673 = vmatprep.subr.mxu0 0.0
      %674 = vmatpush1.msra.mxu0 0.0
      %675 = vmatprep.subr.mxu0 0.0
      %676 = vmatpush1.msra.mxu0 0.0
      %677 = vmatprep.subr.mxu0 0.0
      %678 = vmatpush1.msra.mxu0 0.0
      %679 = vmatprep.subr.mxu0 0.0
      %680 = vmatpush1.msra.mxu0 0.0
      %681 = vmatprep.subr.mxu0 0.0
      %682 = vmatpush1.msra.mxu0 0.0
      %683 = vmatprep.subr.mxu0 0.0
      %684 = vmatpush1.msra.mxu0 0.0
      %685 = vmatprep.subr.mxu0 0.0
      %686 = vmatpush1.msra.mxu0 0.0
      %687 = vmatprep.mubr.f32.mxu0 0.0
      %688 = vmatmul.mubr.f32.gmra.mrb[0].mxu0 %v596
      %v689 = vpop.f32.mrb[0].mxu0
      %v690 = vadd.f32 %v621, %v689
      %v691 = vpop.f32.mrb[0].mxu0
      %692 = vmatprep.mubr.f32.mxu0 0.0
      %693 = vmatmul.mubr.f32.gmra.mrb[0].mxu0 %v597
      %v694 = vpop.f32.mrb[0].mxu0
      %v695 = vadd.f32 %v621, %v694
      %v696 = vpop.f32.mrb[0].mxu0
      %697 = vmatprep.mubr.f32.mxu0 0.0
      %698 = vmatmul.mubr.f32.gmra.mrb[0].mxu0 %v598
      %v699 = vpop.f32.mrb[0].mxu0
      %v700 = vadd.f32 %v621, %v699
      %v701 = vpop.f32.mrb[0].mxu0
      %702 = vmatprep.mubr.f32.mxu0 0.0
      %703 = vmatmul.mubr.f32.gmra.mrb[0].mxu0 %v599
      %v704 = vpop.f32.mrb[0].mxu0
      %v705 = vadd.f32 %v621, %v704
      %v706 = vpop.f32.mrb[0].mxu0
      %707 = vdwg.mxu0
      %708 = vst [vmem:[%s251] sm:$0xff] %v690
      %709 = vst [vmem:[%s251 + $0x8] sm:$0xff] %v695
      %710 = vst [vmem:[%s251 + $0x10] sm:$0xff] %v700
      %711 = vst [vmem:[%s251 + $0x18] sm:$0x7f] %v705
      %p712 = scmp.lt.s32.totalorder %s17, 1
      %s713 = scalar_select %p712, %s17, 1
      %s714 = smul.addr %s713, 4
      %s715 = smul.addr %s714, 8
      %s716 = scalar_lea.vmem %s6, %s715
      // Predicated region
      $region45: #{_lambda_.9} parent=43 // pred_check
        %p717 = pneg %p166
      $region46: #{_lambda_.9} parent=43 // pred_check_branch
        %719 = sbr.rel (%p717) target = $region48
      $region47: #{_lambda_.9} parent=43 // pred_region
        _
      $region48: #{_lambda_.9} parent=43 // pred_fallthru
        _
    $region44: #{_lambda_.9} parent=5 // pred_fallthru
      _
    %p720 = scmp.le.s32.totalorder 2, %s12
    // Predicated region
    $region49: #{_lambda_.9} parent=5 // pred_check
      %p721 = pneg %p720
    $region50: #{_lambda_.9} parent=5 // pred_check_branch
      %723 = sbr.rel (%p721) target = $region52
    $region51: #{_lambda_.9} parent=5 // pred_region
      %s724 = ssub.s32 %s12, 2
      // Predicated region
      $region53: #{_lambda_.9} parent=51 // pred_check
        %p725 = pneg %p172
      $region54: #{_lambda_.9} parent=51 // pred_check_branch
        %727 = sbr.rel (%p725) target = $region56
      $region55: #{_lambda_.9} parent=51 // pred_region
        %p728 = scmp.lt.s32.totalorder %s18, 1
        %s729 = scalar_select %p728, %s18, 1
        %s730 = smul.addr %s729, 4
        %s731 = smul.addr %s730, 8
        %s732 = scalar_lea.vmem %s6, %s731
      $region56: #{_lambda_.9} parent=51 // pred_fallthru
        _
    $region52: #{_lambda_.9} parent=5 // pred_fallthru
      _
  $region6: #{_lambda_.9} parent=0 // loop_footer
    %s16 = sadd.s32 1, %s12
  $region7: #{_lambda_.9} parent=0 // loop_footer_branch
    %11 = sbr.rel target = $region3
  $region8: #{_lambda_.9} parent=0 // loop_exit
    _

// kernel: _lambda_.10
$region0: #{_lambda_.10}
  #allocation0 [shape = 'u32[]', space=smem, size = 0x4, offset = 0x4, fixed_abs, tag = 'smem constant byte address 0x4 - core index']
  #allocation1 [shape = 'u32[144,128]{1,0:T(1,128)}', space=vmem, size = 0x12000, scoped, tag = 'internal scratch']
  %s0 = inlined_call_operand.vmem [shape: f32[2,31,128], index: 0, kind: input, shape index: {}]
  %s1 = inlined_call_operand.vmem [shape: f32[4,4,8,8], index: 1, kind: input, shape index: {}]
  %s2 = inlined_call_operand.vmem [shape: f32[1,128], index: 2, kind: input, shape index: {}, may-alias: {2,4}]
  %s3 = inlined_call_operand.vmem [shape: f32[1,128], index: 3, kind: input, shape index: {}]
  %s4 = inlined_call_operand.vmem [shape: f32[1,128], index: 4, kind: input, shape index: {}, may-alias: {2,4}]
  %s5 = inlined_call_operand.vmem [shape: f32[2,31,128], index: 5, kind: output, shape index: {}]
  %s6 = sld [smem:[#allocation0]]
  $region53: #{_lambda_.10} parent=0
    _
  %s8 = ssub.s32 1, %s6
  %s9 = scalar_select 0, %s8, %s6
  loop: start=0, step=1, limit=4
  $region2: #{_lambda_.10} parent=0 // loop_pre_header
    _
  $region3: #{_lambda_.10} parent=0 // loop_header
    %s11 = sphi 0, %s15
    %p12 = scmp.ge.s32.totalorder %s11, 4
    %s21 = sphi 0, %s23
    %s24 = sphi 0, %s21
    %s25 = sphi 0, %s24
    %s41 = sphi 0, %s25
    %s45 = sphi 0, %s45
    %s47 = sphi 0, %s45
    %s48 = sphi 0, %s47
    %s62 = sphi 0, %s48
    %s66 = sphi 0, %s66
    %s68 = sphi 0, %s66
    %s69 = sphi 0, %s68
    %s83 = sphi 0, %s69
    %s87 = sphi 0, %s87
    %s89 = sphi 0, %s87
    %s90 = sphi 0, %s89
    %s104 = sphi 0, %s90
    %s108 = sphi 0, %s108
    %s110 = sphi 0, %s108
    %s111 = sphi 0, %s110
    %s125 = sphi 0, %s111
    %s131 = sphi 0, %s133
    %s134 = sphi 0, %s131
    %s135 = sphi 0, %s134
    %s151 = sphi 0, %s135
  $region4: #{_lambda_.10} parent=0 // loop_header_branch
    %14 = sbr.rel (%p12) target = $region8
  $region5: #{_lambda_.10} parent=0 // loop_body
    %s16 = ssub.s32 %s11, 1
    %s17 = ssub.s32 %s11, 2
    %s18 = sadd.s32 %s11, 1
    %s19 = ssub.s32 %s11, %s18
    %p20 = scmp.eq.s32.totalorder %s19, 0
    %s22 = sadd.s32 %s21, 1
    %s23 = scalar_select %p20, %s21, %s22
    %p26 = pneg %p20
    %p27 = scmp.eq.s32.totalorder %s11, 1
    %p28 = por %p26, %p27
    %p29 = scmp.ne.s32.totalorder %s21, %s24
    %p30 = scmp.eq.s32.totalorder %s11, 0
    %p31 = por %p29, %p30
    %p32 = scmp.ne.s32.totalorder %s21, %s24
    %p33 = scmp.eq.s32.totalorder %s16, 1
    %p34 = por %p32, %p33
    %p35 = scmp.ne.s32.totalorder %s24, %s25
    %p36 = scmp.eq.s32.totalorder %s16, 0
    %p37 = por %p35, %p36
    %p38 = scmp.ne.s32.totalorder %s24, %s25
    %p39 = scmp.eq.s32.totalorder %s17, 1
    %p40 = por %p38, %p39
    %p42 = scmp.ne.s32.totalorder %s25, %s41
    %p43 = scmp.eq.s32.totalorder %s17, 0
    %p44 = por %p42, %p43
    %s46 = sadd.s32 %s45, 1
    %p49 = scmp.eq.s32.totalorder %s11, 1
    %p50 = scmp.ne.s32.totalorder %s45, %s47
    %p51 = scmp.eq.s32.totalorder %s11, 0
    %p52 = por %p50, %p51
    %p53 = scmp.ne.s32.totalorder %s45, %s47
    %p54 = scmp.eq.s32.totalorder %s16, 1
    %p55 = por %p53, %p54
    %p56 = scmp.ne.s32.totalorder %s47, %s48
    %p57 = scmp.eq.s32.totalorder %s16, 0
    %p58 = por %p56, %p57
    %p59 = scmp.ne.s32.totalorder %s47, %s48
    %p60 = scmp.eq.s32.totalorder %s17, 1
    %p61 = por %p59, %p60
    %p63 = scmp.ne.s32.totalorder %s48, %s62
    %p64 = scmp.eq.s32.totalorder %s17, 0
    %p65 = por %p63, %p64
    %s67 = sadd.s32 %s66, 1
    %p70 = scmp.eq.s32.totalorder %s11, 1
    %p71 = scmp.ne.s32.totalorder %s66, %s68
    %p72 = scmp.eq.s32.totalorder %s11, 0
    %p73 = por %p71, %p72
    %p74 = scmp.ne.s32.totalorder %s66, %s68
    %p75 = scmp.eq.s32.totalorder %s16, 1
    %p76 = por %p74, %p75
    %p77 = scmp.ne.s32.totalorder %s68, %s69
    %p78 = scmp.eq.s32.totalorder %s16, 0
    %p79 = por %p77, %p78
    %p80 = scmp.ne.s32.totalorder %s68, %s69
    %p81 = scmp.eq.s32.totalorder %s17, 1
    %p82 = por %p80, %p81
    %p84 = scmp.ne.s32.totalorder %s69, %s83
    %p85 = scmp.eq.s32.totalorder %s17, 0
    %p86 = por %p84, %p85
    %s88 = sadd.s32 %s87, 1
    %p91 = scmp.eq.s32.totalorder %s11, 1
    %p92 = scmp.ne.s32.totalorder %s87, %s89
    %p93 = scmp.eq.s32.totalorder %s11, 0
    %p94 = por %p92, %p93
    %p95 = scmp.ne.s32.totalorder %s87, %s89
    %p96 = scmp.eq.s32.totalorder %s16, 1
    %p97 = por %p95, %p96
    %p98 = scmp.ne.s32.totalorder %s89, %s90
    %p99 = scmp.eq.s32.totalorder %s16, 0
    %p100 = por %p98, %p99
    %p101 = scmp.ne.s32.totalorder %s89, %s90
    %p102 = scmp.eq.s32.totalorder %s17, 1
    %p103 = por %p101, %p102
    %p105 = scmp.ne.s32.totalorder %s90, %s104
    %p106 = scmp.eq.s32.totalorder %s17, 0
    %p107 = por %p105, %p106
    %s109 = sadd.s32 %s108, 1
    %p112 = scmp.eq.s32.totalorder %s11, 1
    %p113 = scmp.ne.s32.totalorder %s108, %s110
    %p114 = scmp.eq.s32.totalorder %s11, 0
    %p115 = por %p113, %p114
    %p116 = scmp.ne.s32.totalorder %s108, %s110
    %p117 = scmp.eq.s32.totalorder %s16, 1
    %p118 = por %p116, %p117
    %p119 = scmp.ne.s32.totalorder %s110, %s111
    %p120 = scmp.eq.s32.totalorder %s16, 0
    %p121 = por %p119, %p120
    %p122 = scmp.ne.s32.totalorder %s110, %s111
    %p123 = scmp.eq.s32.totalorder %s17, 1
    %p124 = por %p122, %p123
    %p126 = scmp.ne.s32.totalorder %s111, %s125
    %p127 = scmp.eq.s32.totalorder %s17, 0
    %p128 = por %p126, %p127
    %s129 = ssub.s32 %s11, %s18
    %p130 = scmp.eq.s32.totalorder %s129, 0
    %s132 = sadd.s32 %s131, 1
    %s133 = scalar_select %p130, %s131, %s132
    %p136 = pneg %p130
    %p137 = scmp.eq.s32.totalorder %s11, 1
    %p138 = por %p136, %p137
    %p139 = scmp.ne.s32.totalorder %s131, %s134
    %p140 = scmp.eq.s32.totalorder %s11, 0
    %p141 = por %p139, %p140
    %p142 = scmp.ne.s32.totalorder %s131, %s134
    %p143 = scmp.eq.s32.totalorder %s16, 1
    %p144 = por %p142, %p143
    %p145 = scmp.ne.s32.totalorder %s134, %s135
    %p146 = scmp.eq.s32.totalorder %s16, 0
    %p147 = por %p145, %p146
    %p148 = scmp.ne.s32.totalorder %s134, %s135
    %p149 = scmp.eq.s32.totalorder %s17, 1
    %p150 = por %p148, %p149
    %p152 = scmp.ne.s32.totalorder %s135, %s151
    %p153 = scmp.eq.s32.totalorder %s17, 0
    %p154 = por %p152, %p153
    %p155 = scmp.le.s32.totalorder 1, %s11
    %p156 = scmp.lt.s32.totalorder %s11, 3
    %p157 = pnand %p155, %p156
    %p158 = pneg %p157
    // Predicated region
    $region9: #{_lambda_.10} parent=5 // pred_check
      _
    $region10: #{_lambda_.10} parent=5 // pred_check_branch
      %160 = sbr.rel (%p157) target = $region12
    $region11: #{_lambda_.10} parent=5 // pred_region
      %s161 = ssub.s32 %s11, 1
      // Predicated region
      $region13: #{_lambda_.10} parent=11 // pred_check
        %p162 = pneg %p58
      $region14: #{_lambda_.10} parent=11 // pred_check_branch
        %164 = sbr.rel (%p162) target = $region16
      $region15: #{_lambda_.10} parent=11 // pred_region
        _
      $region16: #{_lambda_.10} parent=11 // pred_fallthru
        _
      // Predicated region
      $region17: #{_lambda_.10} parent=11 // pred_check
        %p165 = pneg %p79
      $region18: #{_lambda_.10} parent=11 // pred_check_branch
        %167 = sbr.rel (%p165) target = $region20
      $region19: #{_lambda_.10} parent=11 // pred_region
        _
      $region20: #{_lambda_.10} parent=11 // pred_fallthru
        _
      // Predicated region
      $region21: #{_lambda_.10} parent=11 // pred_check
        %p168 = pneg %p100
      $region22: #{_lambda_.10} parent=11 // pred_check_branch
        %170 = sbr.rel (%p168) target = $region24
      $region23: #{_lambda_.10} parent=11 // pred_region
        _
      $region24: #{_lambda_.10} parent=11 // pred_fallthru
        _
      // Predicated region
      $region25: #{_lambda_.10} parent=11 // pred_check
        %p171 = pneg %p121
      $region26: #{_lambda_.10} parent=11 // pred_check_branch
        %173 = sbr.rel (%p171) target = $region28
      $region27: #{_lambda_.10} parent=11 // pred_region
        _
      $region28: #{_lambda_.10} parent=11 // pred_fallthru
        _
    $region12: #{_lambda_.10} parent=5 // pred_fallthru
      _
    %p174 = scmp.lt.s32.totalorder %s11, 2
    // Predicated region
    $region29: #{_lambda_.10} parent=5 // pred_check
      %p175 = pneg %p174
    $region30: #{_lambda_.10} parent=5 // pred_check_branch
      %177 = sbr.rel (%p175) target = $region32
    $region31: #{_lambda_.10} parent=5 // pred_region
      // Predicated region
      $region33: #{_lambda_.10} parent=31 // pred_check
        %p178 = pneg %p31
      $region34: #{_lambda_.10} parent=31 // pred_check_branch
        %180 = sbr.rel (%p178) target = $region36
      $region35: #{_lambda_.10} parent=31 // pred_region
        %p181 = scmp.lt.s32.totalorder %s11, 1
        %s182 = scalar_select %p181, %s11, 1
        %s183 = smul.addr %s182, 4
        %s184 = smul.addr %s183, 8
        %s185 = scalar_lea.vmem %s0, %s184
      $region36: #{_lambda_.10} parent=31 // pred_fallthru
        _
    $region32: #{_lambda_.10} parent=5 // pred_fallthru
      _
    %p186 = scmp.le.s32.totalorder 1, %s11
    %p187 = scmp.lt.s32.totalorder %s11, 3
    %p188 = pnand %p186, %p187
    %p189 = pneg %p188
    // Predicated region
    $region37: #{_lambda_.10} parent=5 // pred_check
      _
    $region38: #{_lambda_.10} parent=5 // pred_check_branch
      %191 = sbr.rel (%p188) target = $region40
    $region39: #{_lambda_.10} parent=5 // pred_region
      %s192 = ssub.s32 %s11, 1
      %p193 = scmp.lt.s32.totalorder %s16, 1
      %s194 = scalar_select %p193, %s16, 1
      %s195 = smul.addr %s194, 4
      %s196 = smul.addr %s195, 8
      %s197 = scalar_lea.vmem %s0, %s196
      %p198 = pneg %p37
      %p199 = pneg %p34
      %p200 = pneg %p58
      %p201 = pneg %p55
      %p202 = pneg %p79
      %p203 = pneg %p76
      %p204 = pneg %p100
      %p205 = pneg %p97
      %p206 = pneg %p121
      %p207 = pneg %p118
      %p208 = pneg %p147
      %p209 = pneg %p144
      %p210 = scmp.lt.s32.totalorder %s16, 1
      %s211 = scalar_select %p210, %s16, 1
      %s212 = smul.addr %s211, 4
      %s213 = smul.addr %s212, 8
      %s214 = scalar_lea.vmem %s5, %s213
      %p215 = scmp.lt.s32.totalorder %s16, 1
      %s216 = scalar_select %p215, %s16, 1
      %s217 = smul.addr %s216, 4
      %s218 = smul.addr %s217, 8
      %s219 = scalar_lea.vmem %s0, %s218
      %p220 = scmp.lt.s32.totalorder %s16, 1
      %s221 = scalar_select %p220, %s16, 1
      %s222 = smul.addr %s221, 4
      %s223 = smul.addr %s222, 8
      %s224 = scalar_lea.vmem %s5, %s223
      %v225 = vld [vmem:[%s219] sm:$0xff]
      %v226 = vld [vmem:[%s219 + $0x8] sm:$0xff]
      %v227 = vld [vmem:[%s219 + $0x10] sm:$0xff]
      %v228 = vld [vmem:[%s219 + $0x18] sm:$0x7f]
      %v229 = vld [vmem:[%s1] sm:$0xff]
      %v230 = vld [vmem:[%s1 + $0x8] sm:$0xff]
      %v231 = vld [vmem:[%s1 + $0x10] sm:$0xff]
      %v232 = vld [vmem:[%s1 + $0x18] sm:$0xff]
      %v233 = vld [vmem:[%s1 + $0x20] sm:$0xff]
      %v234 = vld [vmem:[%s1 + $0x28] sm:$0xff]
      %v235 = vld [vmem:[%s1 + $0x30] sm:$0xff]
      %v236 = vld [vmem:[%s1 + $0x38] sm:$0xff]
      %v237 = vld [vmem:[%s1 + $0x40] sm:$0xff]
      %v238 = vld [vmem:[%s1 + $0x48] sm:$0xff]
      %v239 = vld [vmem:[%s1 + $0x50] sm:$0xff]
      %v240 = vld [vmem:[%s1 + $0x58] sm:$0xff]
      %v241 = vld [vmem:[%s1 + $0x60] sm:$0xff]
      %v242 = vld [vmem:[%s1 + $0x68] sm:$0xff]
      %v243 = vld [vmem:[%s1 + $0x70] sm:$0xff]
      %v244 = vld [vmem:[%s1 + $0x78] sm:$0xff]
      %vm249 = vcmask 1041408
      %v250 = vrot.slane %v225, 6
      %v251 = vrot.slane %v226, 6
      %v252 = vsel %vm249, %v250, %v251
      %v253 = vrot.slane %v227, 6
      %v254 = vsel %vm249, %v251, %v253
      %v255 = vrot.slane %v228, 6
      %v256 = vsel %vm249, %v253, %v255
      %v259 = vsel %vm249, 0.0, %v250
      %vm260 = vcmask 1040384
      %v261 = vsel %vm260, %v255, 0.0
      %vm263 = vcmask 1046528
      %v264 = vrot.slane %v259, 1
      %v265 = vrot.slane %v252, 1
      %v266 = vsel %vm263, %v264, %v265
      %v267 = vrot.slane %v254, 1
      %v268 = vsel %vm263, %v265, %v267
      %v269 = vrot.slane %v256, 1
      %v270 = vsel %vm263, %v267, %v269
      %vm271 = vcmask 64512
      %v272 = vsel %vm271, %v266, 0
      %v274 = vsel %vm271, %v268, 0
      %v276 = vsel %vm271, %v270, 0
      %v278 = vsel %vm271, %v269, 0
      %280 = vmatprep.subr.mxu0 0.0
      %281 = vmatpush1.msra.mxu0 %v230
      %282 = vmatprep.subr.mxu0 0.0
      %283 = vmatpush1.msra.mxu0 0.0
      %284 = vmatprep.subr.mxu0 0.0
      %285 = vmatpush1.msra.mxu0 0.0
      %286 = vmatprep.subr.mxu0 0.0
      %287 = vmatpush1.msra.mxu0 0.0
      %288 = vmatprep.subr.mxu0 0.0
      %289 = vmatpush1.msra.mxu0 0.0
      %290 = vmatprep.subr.mxu0 0.0
      %291 = vmatpush1.msra.mxu0 0.0
      %292 = vmatprep.subr.mxu0 0.0
      %293 = vmatpush1.msra.mxu0 0.0
      %294 = vmatprep.subr.mxu0 0.0
      %295 = vmatpush1.msra.mxu0 0.0
      %296 = vmatprep.subr.mxu0 0.0
      %297 = vmatpush1.msra.mxu0 0.0
      %298 = vmatprep.subr.mxu0 0.0
      %299 = vmatpush1.msra.mxu0 0.0
      %300 = vmatprep.subr.mxu0 0.0
      %301 = vmatpush1.msra.mxu0 0.0
      %302 = vmatprep.subr.mxu0 0.0
      %303 = vmatpush1.msra.mxu0 0.0
      %304 = vmatprep.subr.mxu0 0.0
      %305 = vmatpush1.msra.mxu0 0.0
      %306 = vmatprep.subr.mxu0 0.0
      %307 = vmatpush1.msra.mxu0 0.0
      %308 = vmatprep.subr.mxu0 0.0
      %309 = vmatpush1.msra.mxu0 0.0
      %310 = vmatprep.subr.mxu0 0.0
      %311 = vmatpush1.msra.mxu0 0.0
      %312 = vmatprep.subr.mxu0 0.0
      %313 = vmatpush1.msra.mxu0 0.0
      %314 = vmatprep.subr.mxu0 0.0
      %315 = vmatpush1.msra.mxu0 0.0
      %316 = vmatprep.subr.mxu0 0.0
      %317 = vmatpush1.msra.mxu0 0.0
      %318 = vmatprep.subr.mxu0 0.0
      %319 = vmatpush1.msra.mxu0 0.0
      %320 = vmatprep.subr.mxu0 0.0
      %321 = vmatpush1.msra.mxu0 0.0
      %322 = vmatprep.subr.mxu0 0.0
      %323 = vmatpush1.msra.mxu0 0.0
      %324 = vmatprep.subr.mxu0 0.0
      %325 = vmatpush1.msra.mxu0 0.0
      %326 = vmatprep.subr.mxu0 0.0
      %327 = vmatpush1.msra.mxu0 0.0
      %328 = vmatprep.subr.mxu0 0.0
      %329 = vmatpush1.msra.mxu0 0.0
      %330 = vmatprep.subr.mxu0 0.0
      %331 = vmatpush1.msra.mxu0 0.0
      %332 = vmatprep.subr.mxu0 0.0
      %333 = vmatpush1.msra.mxu0 0.0
      %334 = vmatprep.subr.mxu0 0.0
      %335 = vmatpush1.msra.mxu0 0.0
      %336 = vmatprep.subr.mxu0 0.0
      %337 = vmatpush1.msra.mxu0 0.0
      %338 = vmatprep.subr.mxu0 0.0
      %339 = vmatpush1.msra.mxu0 0.0
      %340 = vmatprep.subr.mxu0 0.0
      %341 = vmatpush1.msra.mxu0 0.0
      %342 = vmatprep.subr.mxu0 0.0
      %343 = vmatpush1.msra.mxu0 0.0
      %344 = vmatprep.mubr.f32.mxu0 0.0
      %345 = vmatmul.mubr.f32.gmra.mrb[0].mxu0 %v272
      %v346 = vpop.f32.mrb[0].mxu0
      %v347 = vadd.f32 0.0, %v346
      %v348 = vpop.f32.mrb[0].mxu0
      %349 = vmatprep.mubr.f32.mxu0 0.0
      %350 = vmatmul.mubr.f32.gmra.mrb[0].mxu0 %v274
      %v351 = vpop.f32.mrb[0].mxu0
      %v352 = vadd.f32 0.0, %v351
      %v353 = vpop.f32.mrb[0].mxu0
      %354 = vmatprep.mubr.f32.mxu0 0.0
      %355 = vmatmul.mubr.f32.gmra.mrb[0].mxu0 %v276
      %v356 = vpop.f32.mrb[0].mxu0
      %v357 = vadd.f32 0.0, %v356
      %v358 = vpop.f32.mrb[0].mxu0
      %359 = vmatprep.mubr.f32.mxu0 0.0
      %360 = vmatmul.mubr.f32.gmra.mrb[0].mxu0 %v278
      %v361 = vpop.f32.mrb[0].mxu0
      %v362 = vadd.f32 0.0, %v361
      %v363 = vpop.f32.mrb[0].mxu0
      %364 = vdwg.mxu0
      %v365 = vsel %vm271, %v259, 0
      %v367 = vsel %vm271, %v252, 0
      %v369 = vsel %vm271, %v254, 0
      %v371 = vsel %vm271, %v256, 0
      %373 = vmatprep.subr.mxu0 0.0
      %374 = vmatpush1.msra.mxu0 %v229
      %375 = vmatprep.subr.mxu0 0.0
      %376 = vmatpush1.msra.mxu0 0.0
      %377 = vmatprep.subr.mxu0 0.0
      %378 = vmatpush1.msra.mxu0 0.0
      %379 = vmatprep.subr.mxu0 0.0
      %380 = vmatpush1.msra.mxu0 0.0
      %381 = vmatprep.subr.mxu0 0.0
      %382 = vmatpush1.msra.mxu0 0.0
      %383 = vmatprep.subr.mxu0 0.0
      %384 = vmatpush1.msra.mxu0 0.0
      %385 = vmatprep.subr.mxu0 0.0
      %386 = vmatpush1.msra.mxu0 0.0
      %387 = vmatprep.subr.mxu0 0.0
      %388 = vmatpush1.msra.mxu0 0.0
      %389 = vmatprep.subr.mxu0 0.0
      %390 = vmatpush1.msra.mxu0 0.0
      %391 = vmatprep.subr.mxu0 0.0
      %392 = vmatpush1.msra.mxu0 0.0
      %393 = vmatprep.subr.mxu0 0.0
      %394 = vmatpush1.msra.mxu0 0.0
      %395 = vmatprep.subr.mxu0 0.0
      %396 = vmatpush1.msra.mxu0 0.0
      %397 = vmatprep.subr.mxu0 0.0
      %398 = vmatpush1.msra.mxu0 0.0
      %399 = vmatprep.subr.mxu0 0.0
      %400 = vmatpush1.msra.mxu0 0.0
      %401 = vmatprep.subr.mxu0 0.0
      %402 = vmatpush1.msra.mxu0 0.0
      %403 = vmatprep.subr.mxu0 0.0
      %404 = vmatpush1.msra.mxu0 0.0
      %405 = vmatprep.subr.mxu0 0.0
      %406 = vmatpush1.msra.mxu0 0.0
      %407 = vmatprep.subr.mxu0 0.0
      %408 = vmatpush1.msra.mxu0 0.0
      %409 = vmatprep.subr.mxu0 0.0
      %410 = vmatpush1.msra.mxu0 0.0
      %411 = vmatprep.subr.mxu0 0.0
      %412 = vmatpush1.msra.mxu0 0.0
      %413 = vmatprep.subr.mxu0 0.0
      %414 = vmatpush1.msra.mxu0 0.0
      %415 = vmatprep.subr.mxu0 0.0
      %416 = vmatpush1.msra.mxu0 0.0
      %417 = vmatprep.subr.mxu0 0.0
      %418 = vmatpush1.msra.mxu0 0.0
      %419 = vmatprep.subr.mxu0 0.0
      %420 = vmatpush1.msra.mxu0 0.0
      %421 = vmatprep.subr.mxu0 0.0
      %422 = vmatpush1.msra.mxu0 0.0
      %423 = vmatprep.subr.mxu0 0.0
      %424 = vmatpush1.msra.mxu0 0.0
      %425 = vmatprep.subr.mxu0 0.0
      %426 = vmatpush1.msra.mxu0 0.0
      %427 = vmatprep.subr.mxu0 0.0
      %428 = vmatpush1.msra.mxu0 0.0
      %429 = vmatprep.subr.mxu0 0.0
      %430 = vmatpush1.msra.mxu0 0.0
      %431 = vmatprep.subr.mxu0 0.0
      %432 = vmatpush1.msra.mxu0 0.0
      %433 = vmatprep.subr.mxu0 0.0
      %434 = vmatpush1.msra.mxu0 0.0
      %435 = vmatprep.subr.mxu0 0.0
      %436 = vmatpush1.msra.mxu0 0.0
      %437 = vmatprep.mubr.f32.mxu0 0.0
      %438 = vmatmul.mubr.f32.gmra.mrb[0].mxu0 %v365
      %v439 = vpop.f32.mrb[0].mxu0
      %v440 = vadd.f32 %v347, %v439
      %v441 = vpop.f32.mrb[0].mxu0
      %442 = vmatprep.mubr.f32.mxu0 0.0
      %443 = vmatmul.mubr.f32.gmra.mrb[0].mxu0 %v367
      %v444 = vpop.f32.mrb[0].mxu0
      %v445 = vadd.f32 %v352, %v444
      %v446 = vpop.f32.mrb[0].mxu0
      %447 = vmatprep.mubr.f32.mxu0 0.0
      %448 = vmatmul.mubr.f32.gmra.mrb[0].mxu0 %v369
      %v449 = vpop.f32.mrb[0].mxu0
      %v450 = vadd.f32 %v357, %v449
      %v451 = vpop.f32.mrb[0].mxu0
      %452 = vmatprep.mubr.f32.mxu0 0.0
      %453 = vmatmul.mubr.f32.gmra.mrb[0].mxu0 %v371
      %v454 = vpop.f32.mrb[0].mxu0
      %v455 = vadd.f32 %v362, %v454
      %v456 = vpop.f32.mrb[0].mxu0
      %457 = vdwg.mxu0
      %vm459 = vcmask 1045504
      %v460 = vrot.slane %v259, 2
      %v461 = vrot.slane %v252, 2
      %v462 = vsel %vm459, %v460, %v461
      %v463 = vrot.slane %v254, 2
      %v464 = vsel %vm459, %v461, %v463
      %v465 = vrot.slane %v256, 2
      %v466 = vsel %vm459, %v463, %v465
      %v467 = vrot.slane %v261, 2
      %v468 = vsel %vm459, %v465, %v467
      %v469 = vsel %vm271, %v462, 0
      %v471 = vsel %vm271, %v464, 0
      %v473 = vsel %vm271, %v466, 0
      %v475 = vsel %vm271, %v468, 0
      %477 = vmatprep.subr.mxu0 0.0
      %478 = vmatpush1.msra.mxu0 %v231
      %479 = vmatprep.subr.mxu0 0.0
      %480 = vmatpush1.msra.mxu0 0.0
      %481 = vmatprep.subr.mxu0 0.0
      %482 = vmatpush1.msra.mxu0 0.0
      %483 = vmatprep.subr.mxu0 0.0
      %484 = vmatpush1.msra.mxu0 0.0
      %485 = vmatprep.subr.mxu0 0.0
      %486 = vmatpush1.msra.mxu0 0.0
      %487 = vmatprep.subr.mxu0 0.0
      %488 = vmatpush1.msra.mxu0 0.0
      %489 = vmatprep.subr.mxu0 0.0
      %490 = vmatpush1.msra.mxu0 0.0
      %491 = vmatprep.subr.mxu0 0.0
      %492 = vmatpush1.msra.mxu0 0.0
      %493 = vmatprep.subr.mxu0 0.0
      %494 = vmatpush1.msra.mxu0 0.0
      %495 = vmatprep.subr.mxu0 0.0
      %496 = vmatpush1.msra.mxu0 0.0
      %497 = vmatprep.subr.mxu0 0.0
      %498 = vmatpush1.msra.mxu0 0.0
      %499 = vmatprep.subr.mxu0 0.0
      %500 = vmatpush1.msra.mxu0 0.0
      %501 = vmatprep.subr.mxu0 0.0
      %502 = vmatpush1.msra.mxu0 0.0
      %503 = vmatprep.subr.mxu0 0.0
      %504 = vmatpush1.msra.mxu0 0.0
      %505 = vmatprep.subr.mxu0 0.0
      %506 = vmatpush1.msra.mxu0 0.0
      %507 = vmatprep.subr.mxu0 0.0
      %508 = vmatpush1.msra.mxu0 0.0
      %509 = vmatprep.subr.mxu0 0.0
      %510 = vmatpush1.msra.mxu0 0.0
      %511 = vmatprep.subr.mxu0 0.0
      %512 = vmatpush1.msra.mxu0 0.0
      %513 = vmatprep.subr.mxu0 0.0
      %514 = vmatpush1.msra.mxu0 0.0
      %515 = vmatprep.subr.mxu0 0.0
      %516 = vmatpush1.msra.mxu0 0.0
      %517 = vmatprep.subr.mxu0 0.0
      %518 = vmatpush1.msra.mxu0 0.0
      %519 = vmatprep.subr.mxu0 0.0
      %520 = vmatpush1.msra.mxu0 0.0
      %521 = vmatprep.subr.mxu0 0.0
      %522 = vmatpush1.msra.mxu0 0.0
      %523 = vmatprep.subr.mxu0 0.0
      %524 = vmatpush1.msra.mxu0 0.0
      %525 = vmatprep.subr.mxu0 0.0
      %526 = vmatpush1.msra.mxu0 0.0
      %527 = vmatprep.subr.mxu0 0.0
      %528 = vmatpush1.msra.mxu0 0.0
      %529 = vmatprep.subr.mxu0 0.0
      %530 = vmatpush1.msra.mxu0 0.0
      %531 = vmatprep.subr.mxu0 0.0
      %532 = vmatpush1.msra.mxu0 0.0
      %533 = vmatprep.subr.mxu0 0.0
      %534 = vmatpush1.msra.mxu0 0.0
      %535 = vmatprep.subr.mxu0 0.0
      %536 = vmatpush1.msra.mxu0 0.0
      %537 = vmatprep.subr.mxu0 0.0
      %538 = vmatpush1.msra.mxu0 0.0
      %539 = vmatprep.subr.mxu0 0.0
      %540 = vmatpush1.msra.mxu0 0.0
      %541 = vmatprep.mubr.f32.mxu0 0.0
      %542 = vmatmul.mubr.f32.gmra.mrb[0].mxu0 %v469
      %v543 = vpop.f32.mrb[0].mxu0
      %v544 = vadd.f32 0.0, %v543
      %v545 = vpop.f32.mrb[0].mxu0
      %546 = vmatprep.mubr.f32.mxu0 0.0
      %547 = vmatmul.mubr.f32.gmra.mrb[0].mxu0 %v471
      %v548 = vpop.f32.mrb[0].mxu0
      %v549 = vadd.f32 0.0, %v548
      %v550 = vpop.f32.mrb[0].mxu0
      %551 = vmatprep.mubr.f32.mxu0 0.0
      %552 = vmatmul.mubr.f32.gmra.mrb[0].mxu0 %v473
      %v553 = vpop.f32.mrb[0].mxu0
      %v554 = vadd.f32 0.0, %v553
      %v555 = vpop.f32.mrb[0].mxu0
      %556 = vmatprep.mubr.f32.mxu0 0.0
      %557 = vmatmul.mubr.f32.gmra.mrb[0].mxu0 %v475
      %v558 = vpop.f32.mrb[0].mxu0
      %v559 = vadd.f32 0.0, %v558
      %v560 = vpop.f32.mrb[0].mxu0
      %561 = vdwg.mxu0
      %v562 = vadd.f32 %v440, %v544
      %v563 = vadd.f32 %v445, %v549
      %v564 = vadd.f32 %v450, %v554
      %v565 = vadd.f32 %v455, %v559
      %vm566 = vcmask 1044480
      %v567 = vrot.slane %v259, 3
      %v568 = vrot.slane %v252, 3
      %v569 = vsel %vm566, %v567, %v568
      %v570 = vrot.slane %v254, 3
      %v571 = vsel %vm566, %v568, %v570
      %v572 = vrot.slane %v256, 3
      %v573 = vsel %vm566, %v570, %v572
      %v574 = vrot.slane %v261, 3
      %v575 = vsel %vm566, %v572, %v574
      %v576 = vsel %vm271, %v569, 0
      %v578 = vsel %vm271, %v571, 0
      %v580 = vsel %vm271, %v573, 0
      %v582 = vsel %vm271, %v575, 0
      %584 = vmatprep.subr.mxu0 0.0
      %585 = vmatpush1.msra.mxu0 %v232
      %586 = vmatprep.subr.mxu0 0.0
      %587 = vmatpush1.msra.mxu0 0.0
      %588 = vmatprep.subr.mxu0 0.0
      %589 = vmatpush1.msra.mxu0 0.0
      %590 = vmatprep.subr.mxu0 0.0
      %591 = vmatpush1.msra.mxu0 0.0
      %592 = vmatprep.subr.mxu0 0.0
      %593 = vmatpush1.msra.mxu0 0.0
      %594 = vmatprep.subr.mxu0 0.0
      %595 = vmatpush1.msra.mxu0 0.0
      %596 = vmatprep.subr.mxu0 0.0
      %597 = vmatpush1.msra.mxu0 0.0
      %598 = vmatprep.subr.mxu0 0.0
      %599 = vmatpush1.msra.mxu0 0.0
      %600 = vmatprep.subr.mxu0 0.0
      %601 = vmatpush1.msra.mxu0 0.0
      %602 = vmatprep.subr.mxu0 0.0
      %603 = vmatpush1.msra.mxu0 0.0
      %604 = vmatprep.subr.mxu0 0.0
      %605 = vmatpush1.msra.mxu0 0.0
      %606 = vmatprep.subr.mxu0 0.0
      %607 = vmatpush1.msra.mxu0 0.0
      %608 = vmatprep.subr.mxu0 0.0
      %609 = vmatpush1.msra.mxu0 0.0
      %610 = vmatprep.subr.mxu0 0.0
      %611 = vmatpush1.msra.mxu0 0.0
      %612 = vmatprep.subr.mxu0 0.0
      %613 = vmatpush1.msra.mxu0 0.0
      %614 = vmatprep.subr.mxu0 0.0
      %615 = vmatpush1.msra.mxu0 0.0
      %616 = vmatprep.subr.mxu0 0.0
      %617 = vmatpush1.msra.mxu0 0.0
      %618 = vmatprep.subr.mxu0 0.0
      %619 = vmatpush1.msra.mxu0 0.0
      %620 = vmatprep.subr.mxu0 0.0
      %621 = vmatpush1.msra.mxu0 0.0
      %622 = vmatprep.subr.mxu0 0.0
      %623 = vmatpush1.msra.mxu0 0.0
      %624 = vmatprep.subr.mxu0 0.0
      %625 = vmatpush1.msra.mxu0 0.0
      %626 = vmatprep.subr.mxu0 0.0
      %627 = vmatpush1.msra.mxu0 0.0
      %628 = vmatprep.subr.mxu0 0.0
      %629 = vmatpush1.msra.mxu0 0.0
      %630 = vmatprep.subr.mxu0 0.0
      %631 = vmatpush1.msra.mxu0 0.0
      %632 = vmatprep.subr.mxu0 0.0
      %633 = vmatpush1.msra.mxu0 0.0
      %634 = vmatprep.subr.mxu0 0.0
      %635 = vmatpush1.msra.mxu0 0.0
      %636 = vmatprep.subr.mxu0 0.0
      %637 = vmatpush1.msra.mxu0 0.0
      %638 = vmatprep.subr.mxu0 0.0
      %639 = vmatpush1.msra.mxu0 0.0
      %640 = vmatprep.subr.mxu0 0.0
      %641 = vmatpush1.msra.mxu0 0.0
      %642 = vmatprep.subr.mxu0 0.0
      %643 = vmatpush1.msra.mxu0 0.0
      %644 = vmatprep.subr.mxu0 0.0
      %645 = vmatpush1.msra.mxu0 0.0
      %646 = vmatprep.subr.mxu0 0.0
      %647 = vmatpush1.msra.mxu0 0.0
      %648 = vmatprep.mubr.f32.mxu0 0.0
      %649 = vmatmul.mubr.f32.gmra.mrb[0].mxu0 %v576
      %v650 = vpop.f32.mrb[0].mxu0
      %v651 = vadd.f32 0.0, %v650
      %v652 = vpop.f32.mrb[0].mxu0
      %653 = vmatprep.mubr.f32.mxu0 0.0
      %654 = vmatmul.mubr.f32.gmra.mrb[0].mxu0 %v578
      %v655 = vpop.f32.mrb[0].mxu0
      %v656 = vadd.f32 0.0, %v655
      %v657 = vpop.f32.mrb[0].mxu0
      %658 = vmatprep.mubr.f32.mxu0 0.0
      %659 = vmatmul.mubr.f32.gmra.mrb[0].mxu0 %v580
      %v660 = vpop.f32.mrb[0].mxu0
      %v661 = vadd.f32 0.0, %v660
      %v662 = vpop.f32.mrb[0].mxu0
      %663 = vmatprep.mubr.f32.mxu0 0.0
      %664 = vmatmul.mubr.f32.gmra.mrb[0].mxu0 %v582
      %v665 = vpop.f32.mrb[0].mxu0
      %v666 = vadd.f32 0.0, %v665
      %v667 = vpop.f32.mrb[0].mxu0
      %668 = vdwg.mxu0
      %v669 = vadd.f32 %v562, %v651
      %v670 = vadd.f32 %v563, %v656
      %v671 = vadd.f32 %v564, %v661
      %v672 = vadd.f32 %v565, %v666
      %673 = vrot.lane.b32.xlu0 %v266, 120
      %v674 = vpop.permute.xlu0 %673
      %675 = vrot.lane.b32.xlu0 %v268, 120
      %v676 = vpop.permute.xlu0 %675
      %677 = vrot.lane.b32.xlu0 %v270, 120
      %v678 = vpop.permute.xlu0 %677
      %679 = vrot.lane.b32.xlu0 %v269, 120
      %v680 = vpop.permute.xlu0 %679
      %v681 = vsel %vm271, %v674, 0
      %v683 = vsel %vm271, %v676, 0
      %v685 = vsel %vm271, %v678, 0
      %v687 = vsel %vm271, %v680, 0
      %689 = vmatprep.subr.mxu0 0.0
      %690 = vmatpush1.msra.mxu0 %v234
      %691 = vmatprep.subr.mxu0 0.0
      %692 = vmatpush1.msra.mxu0 0.0
      %693 = vmatprep.subr.mxu0 0.0
      %694 = vmatpush1.msra.mxu0 0.0
      %695 = vmatprep.subr.mxu0 0.0
      %696 = vmatpush1.msra.mxu0 0.0
      %697 = vmatprep.subr.mxu0 0.0
      %698 = vmatpush1.msra.mxu0 0.0
      %699 = vmatprep.subr.mxu0 0.0
      %700 = vmatpush1.msra.mxu0 0.0
      %701 = vmatprep.subr.mxu0 0.0
      %702 = vmatpush1.msra.mxu0 0.0
      %703 = vmatprep.subr.mxu0 0.0
      %704 = vmatpush1.msra.mxu0 0.0
      %705 = vmatprep.subr.mxu0 0.0
      %706 = vmatpush1.msra.mxu0 0.0
      %707 = vmatprep.subr.mxu0 0.0
      %708 = vmatpush1.msra.mxu0 0.0
      %709 = vmatprep.subr.mxu0 0.0
      %710 = vmatpush1.msra.mxu0 0.0
      %711 = vmatprep.subr.mxu0 0.0
      %712 = vmatpush1.msra.mxu0 0.0
      %713 = vmatprep.subr.mxu0 0.0
      %714 = vmatpush1.msra.mxu0 0.0
      %715 = vmatprep.subr.mxu0 0.0
      %716 = vmatpush1.msra.mxu0 0.0
      %717 = vmatprep.subr.mxu0 0.0
      %718 = vmatpush1.msra.mxu0 0.0
      %719 = vmatprep.subr.mxu0 0.0
      %720 = vmatpush1.msra.mxu0 0.0
      %721 = vmatprep.subr.mxu0 0.0
      %722 = vmatpush1.msra.mxu0 0.0
      %723 = vmatprep.subr.mxu0 0.0
      %724 = vmatpush1.msra.mxu0 0.0
      %725 = vmatprep.subr.mxu0 0.0
      %726 = vmatpush1.msra.mxu0 0.0
      %727 = vmatprep.subr.mxu0 0.0
      %728 = vmatpush1.msra.mxu0 0.0
      %729 = vmatprep.subr.mxu0 0.0
      %730 = vmatpush1.msra.mxu0 0.0
      %731 = vmatprep.subr.mxu0 0.0
      %732 = vmatpush1.msra.mxu0 0.0
      %733 = vmatprep.subr.mxu0 0.0
      %734 = vmatpush1.msra.mxu0 0.0
      %735 = vmatprep.subr.mxu0 0.0
      %736 = vmatpush1.msra.mxu0 0.0
      %737 = vmatprep.subr.mxu0 0.0
      %738 = vmatpush1.msra.mxu0 0.0
      %739 = vmatprep.subr.mxu0 0.0
      %740 = vmatpush1.msra.mxu0 0.0
      %741 = vmatprep.subr.mxu0 0.0
      %742 = vmatpush1.msra.mxu0 0.0
      %743 = vmatprep.subr.mxu0 0.0
      %744 = vmatpush1.msra.mxu0 0.0
      %745 = vmatprep.subr.mxu0 0.0
      %746 = vmatpush1.msra.mxu0 0.0
      %747 = vmatprep.subr.mxu0 0.0
      %748 = vmatpush1.msra.mxu0 0.0
      %749 = vmatprep.subr.mxu0 0.0
      %750 = vmatpush1.msra.mxu0 0.0
      %751 = vmatprep.subr.mxu0 0.0
      %752 = vmatpush1.msra.mxu0 0.0
      %753 = vmatprep.mubr.f32.mxu0 0.0
      %754 = vmatmul.mubr.f32.gmra.mrb[0].mxu0 %v681
      %v755 = vpop.f32.mrb[0].mxu0
      %v756 = vadd.f32 0.0, %v755
      %v757 = vpop.f32.mrb[0].mxu0
      %758 = vmatprep.mubr.f32.mxu0 0.0
      %759 = vmatmul.mubr.f32.gmra.mrb[0].mxu0 %v683
      %v760 = vpop.f32.mrb[0].mxu0
      %v761 = vadd.f32 0.0, %v760
      %v762 = vpop.f32.mrb[0].mxu0
      %763 = vmatprep.mubr.f32.mxu0 0.0
      %764 = vmatmul.mubr.f32.gmra.mrb[0].mxu0 %v685
      %v765 = vpop.f32.mrb[0].mxu0
      %v766 = vadd.f32 0.0, %v765
      %v767 = vpop.f32.mrb[0].mxu0
      %768 = vmatprep.mubr.f32.mxu0 0.0
      %769 = vmatmul.mubr.f32.gmra.mrb[0].mxu0 %v687
      %v770 = vpop.f32.mrb[0].mxu0
      %v771 = vadd.f32 0.0, %v770
      %v772 = vpop.f32.mrb[0].mxu0
      %773 = vdwg.mxu0
      %774 = vrot.lane.b32.xlu0 %v259, 120
      %v775 = vpop.permute.xlu0 %774
      %776 = vrot.lane.b32.xlu0 %v252, 120
      %v777 = vpop.permute.xlu0 %776
      %778 = vrot.lane.b32.xlu0 %v254, 120
      %v779 = vpop.permute.xlu0 %778
      %780 = vrot.lane.b32.xlu0 %v256, 120
      %v781 = vpop.permute.xlu0 %780
      %v782 = vsel %vm271, %v775, 0
      %v784 = vsel %vm271, %v777, 0
      %v786 = vsel %vm271, %v779, 0
      %v788 = vsel %vm271, %v781, 0
      %790 = vmatprep.subr.mxu0 0.0
      %791 = vmatpush1.msra.mxu0 %v233
      %792 = vmatprep.subr.mxu0 0.0
      %793 = vmatpush1.msra.mxu0 0.0
      %794 = vmatprep.subr.mxu0 0.0
      %795 = vmatpush1.msra.mxu0 0.0
      %796 = vmatprep.subr.mxu0 0.0
      %797 = vmatpush1.msra.mxu0 0.0
      %798 = vmatprep.subr.mxu0 0.0
      %799 = vmatpush1.msra.mxu0 0.0
      %800 = vmatprep.subr.mxu0 0.0
      %801 = vmatpush1.msra.mxu0 0.0
      %802 = vmatprep.subr.mxu0 0.0
      %803 = vmatpush1.msra.mxu0 0.0
      %804 = vmatprep.subr.mxu0 0.0
      %805 = vmatpush1.msra.mxu0 0.0
      %806 = vmatprep.subr.mxu0 0.0
      %807 = vmatpush1.msra.mxu0 0.0
      %808 = vmatprep.subr.mxu0 0.0
      %809 = vmatpush1.msra.mxu0 0.0
      %810 = vmatprep.subr.mxu0 0.0
      %811 = vmatpush1.msra.mxu0 0.0
      %812 = vmatprep.subr.mxu0 0.0
      %813 = vmatpush1.msra.mxu0 0.0
      %814 = vmatprep.subr.mxu0 0.0
      %815 = vmatpush1.msra.mxu0 0.0
      %816 = vmatprep.subr.mxu0 0.0
      %817 = vmatpush1.msra.mxu0 0.0
      %818 = vmatprep.subr.mxu0 0.0
      %819 = vmatpush1.msra.mxu0 0.0
      %820 = vmatprep.subr.mxu0 0.0
      %821 = vmatpush1.msra.mxu0 0.0
      %822 = vmatprep.subr.mxu0 0.0
      %823 = vmatpush1.msra.mxu0 0.0
      %824 = vmatprep.subr.mxu0 0.0
      %825 = vmatpush1.msra.mxu0 0.0
      %826 = vmatprep.subr.mxu0 0.0
      %827 = vmatpush1.msra.mxu0 0.0
      %828 = vmatprep.subr.mxu0 0.0
      %829 = vmatpush1.msra.mxu0 0.0
      %830 = vmatprep.subr.mxu0 0.0
      %831 = vmatpush1.msra.mxu0 0.0
      %832 = vmatprep.subr.mxu0 0.0
      %833 = vmatpush1.msra.mxu0 0.0
      %834 = vmatprep.subr.mxu0 0.0
      %835 = vmatpush1.msra.mxu0 0.0
      %836 = vmatprep.subr.mxu0 0.0
      %837 = vmatpush1.msra.mxu0 0.0
      %838 = vmatprep.subr.mxu0 0.0
      %839 = vmatpush1.msra.mxu0 0.0
      %840 = vmatprep.subr.mxu0 0.0
      %841 = vmatpush1.msra.mxu0 0.0
      %842 = vmatprep.subr.mxu0 0.0
      %843 = vmatpush1.msra.mxu0 0.0
      %844 = vmatprep.subr.mxu0 0.0
      %845 = vmatpush1.msra.mxu0 0.0
      %846 = vmatprep.subr.mxu0 0.0
      %847 = vmatpush1.msra.mxu0 0.0
      %848 = vmatprep.subr.mxu0 0.0
      %849 = vmatpush1.msra.mxu0 0.0
      %850 = vmatprep.subr.mxu0 0.0
      %851 = vmatpush1.msra.mxu0 0.0
      %852 = vmatprep.subr.mxu0 0.0
      %853 = vmatpush1.msra.mxu0 0.0
      %854 = vmatprep.mubr.f32.mxu0 0.0
      %855 = vmatmul.mubr.f32.gmra.mrb[0].mxu0 %v782
      %v856 = vpop.f32.mrb[0].mxu0
      %v857 = vadd.f32 %v756, %v856
      %v858 = vpop.f32.mrb[0].mxu0
      %859 = vmatprep.mubr.f32.mxu0 0.0
      %860 = vmatmul.mubr.f32.gmra.mrb[0].mxu0 %v784
      %v861 = vpop.f32.mrb[0].mxu0
      %v862 = vadd.f32 %v761, %v861
      %v863 = vpop.f32.mrb[0].mxu0
      %864 = vmatprep.mubr.f32.mxu0 0.0
      %865 = vmatmul.mubr.f32.gmra.mrb[0].mxu0 %v786
      %v866 = vpop.f32.mrb[0].mxu0
      %v867 = vadd.f32 %v766, %v866
      %v868 = vpop.f32.mrb[0].mxu0
      %869 = vmatprep.mubr.f32.mxu0 0.0
      %870 = vmatmul.mubr.f32.gmra.mrb[0].mxu0 %v788
      %v871 = vpop.f32.mrb[0].mxu0
      %v872 = vadd.f32 %v771, %v871
      %v873 = vpop.f32.mrb[0].mxu0
      %874 = vdwg.mxu0
      %875 = vrot.lane.b32.xlu0 %v462, 120
      %v876 = vpop.permute.xlu0 %875
      %877 = vrot.lane.b32.xlu0 %v464, 120
      %v878 = vpop.permute.xlu0 %877
      %879 = vrot.lane.b32.xlu0 %v466, 120
      %v880 = vpop.permute.xlu0 %879
      %881 = vrot.lane.b32.xlu0 %v468, 120
      %v882 = vpop.permute.xlu0 %881
      %v883 = vsel %vm271, %v876, 0
      %v885 = vsel %vm271, %v878, 0
      %v887 = vsel %vm271, %v880, 0
      %v889 = vsel %vm271, %v882, 0
      %891 = vmatprep.subr.mxu0 0.0
      %892 = vmatpush1.msra.mxu0 %v235
      %893 = vmatprep.subr.mxu0 0.0
      %894 = vmatpush1.msra.mxu0 0.0
      %895 = vmatprep.subr.mxu0 0.0
      %896 = vmatpush1.msra.mxu0 0.0
      %897 = vmatprep.subr.mxu0 0.0
      %898 = vmatpush1.msra.mxu0 0.0
      %899 = vmatprep.subr.mxu0 0.0
      %900 = vmatpush1.msra.mxu0 0.0
      %901 = vmatprep.subr.mxu0 0.0
      %902 = vmatpush1.msra.mxu0 0.0
      %903 = vmatprep.subr.mxu0 0.0
      %904 = vmatpush1.msra.mxu0 0.0
      %905 = vmatprep.subr.mxu0 0.0
      %906 = vmatpush1.msra.mxu0 0.0
      %907 = vmatprep.subr.mxu0 0.0
      %908 = vmatpush1.msra.mxu0 0.0
      %909 = vmatprep.subr.mxu0 0.0
      %910 = vmatpush1.msra.mxu0 0.0
      %911 = vmatprep.subr.mxu0 0.0
      %912 = vmatpush1.msra.mxu0 0.0
      %913 = vmatprep.subr.mxu0 0.0
      %914 = vmatpush1.msra.mxu0 0.0
      %915 = vmatprep.subr.mxu0 0.0
      %916 = vmatpush1.msra.mxu0 0.0
      %917 = vmatprep.subr.mxu0 0.0
      %918 = vmatpush1.msra.mxu0 0.0
      %919 = vmatprep.subr.mxu0 0.0
      %920 = vmatpush1.msra.mxu0 0.0
      %921 = vmatprep.subr.mxu0 0.0
      %922 = vmatpush1.msra.mxu0 0.0
      %923 = vmatprep.subr.mxu0 0.0
      %924 = vmatpush1.msra.mxu0 0.0
      %925 = vmatprep.subr.mxu0 0.0
      %926 = vmatpush1.msra.mxu0 0.0
      %927 = vmatprep.subr.mxu0 0.0
      %928 = vmatpush1.msra.mxu0 0.0
      %929 = vmatprep.subr.mxu0 0.0
      %930 = vmatpush1.msra.mxu0 0.0
      %931 = vmatprep.subr.mxu0 0.0
      %932 = vmatpush1.msra.mxu0 0.0
      %933 = vmatprep.subr.mxu0 0.0
      %934 = vmatpush1.msra.mxu0 0.0
      %935 = vmatprep.subr.mxu0 0.0
      %936 = vmatpush1.msra.mxu0 0.0
      %937 = vmatprep.subr.mxu0 0.0
      %938 = vmatpush1.msra.mxu0 0.0
      %939 = vmatprep.subr.mxu0 0.0
      %940 = vmatpush1.msra.mxu0 0.0
      %941 = vmatprep.subr.mxu0 0.0
      %942 = vmatpush1.msra.mxu0 0.0
      %943 = vmatprep.subr.mxu0 0.0
      %944 = vmatpush1.msra.mxu0 0.0
      %945 = vmatprep.subr.mxu0 0.0
      %946 = vmatpush1.msra.mxu0 0.0
      %947 = vmatprep.subr.mxu0 0.0
      %948 = vmatpush1.msra.mxu0 0.0
      %949 = vmatprep.subr.mxu0 0.0
      %950 = vmatpush1.msra.mxu0 0.0
      %951 = vmatprep.subr.mxu0 0.0
      %952 = vmatpush1.msra.mxu0 0.0
      %953 = vmatprep.subr.mxu0 0.0
      %954 = vmatpush1.msra.mxu0 0.0
      %955 = vmatprep.mubr.f32.mxu0 0.0
      %956 = vmatmul.mubr.f32.gmra.mrb[0].mxu0 %v883
      %v957 = vpop.f32.mrb[0].mxu0
      %v958 = vadd.f32 0.0, %v957
      %v959 = vpop.f32.mrb[0].mxu0
      %960 = vmatprep.mubr.f32.mxu0 0.0
      %961 = vmatmul.mubr.f32.gmra.mrb[0].mxu0 %v885
      %v962 = vpop.f32.mrb[0].mxu0
      %v963 = vadd.f32 0.0, %v962
      %v964 = vpop.f32.mrb[0].mxu0
      %965 = vmatprep.mubr.f32.mxu0 0.0
      %966 = vmatmul.mubr.f32.gmra.mrb[0].mxu0 %v887
      %v967 = vpop.f32.mrb[0].mxu0
      %v968 = vadd.f32 0.0, %v967
      %v969 = vpop.f32.mrb[0].mxu0
      %970 = vmatprep.mubr.f32.mxu0 0.0
      %971 = vmatmul.mubr.f32.gmra.mrb[0].mxu0 %v889
      %v972 = vpop.f32.mrb[0].mxu0
      %v973 = vadd.f32 0.0, %v972
      %v974 = vpop.f32.mrb[0].mxu0
      %975 = vdwg.mxu0
      %v976 = vadd.f32 %v857, %v958
      %v977 = vadd.f32 %v862, %v963
      %v978 = vadd.f32 %v867, %v968
      %v979 = vadd.f32 %v872, %v973
      %980 = vrot.lane.b32.xlu0 %v569, 120
      %v981 = vpop.permute.xlu0 %980
      %982 = vrot.lane.b32.xlu0 %v571, 120
      %v983 = vpop.permute.xlu0 %982
      %984 = vrot.lane.b32.xlu0 %v573, 120
      %v985 = vpop.permute.xlu0 %984
      %986 = vrot.lane.b32.xlu0 %v575, 120
      %v987 = vpop.permute.xlu0 %986
      %v988 = vsel %vm271, %v981, 0
      %v990 = vsel %vm271, %v983, 0
      %v992 = vsel %vm271, %v985, 0
      %v994 = vsel %vm271, %v987, 0
      %996 = vmatprep.subr.mxu0 0.0
      %997 = vmatpush1.msra.mxu0 %v236
      %998 = vmatprep.subr.mxu0 0.0
      %999 = vmatpush1.msra.mxu0 0.0
      %1000 = vmatprep.subr.mxu0 0.0
      %1001 = vmatpush1.msra.mxu0 0.0
      %1002 = vmatprep.subr.mxu0 0.0
      %1003 = vmatpush1.msra.mxu0 0.0
      %1004 = vmatprep.subr.mxu0 0.0
      %1005 = vmatpush1.msra.mxu0 0.0
      %1006 = vmatprep.subr.mxu0 0.0
      %1007 = vmatpush1.msra.mxu0 0.0
      %1008 = vmatprep.subr.mxu0 0.0
      %1009 = vmatpush1.msra.mxu0 0.0
      %1010 = vmatprep.subr.mxu0 0.0
      %1011 = vmatpush1.msra.mxu0 0.0
      %1012 = vmatprep.subr.mxu0 0.0
      %1013 = vmatpush1.msra.mxu0 0.0
      %1014 = vmatprep.subr.mxu0 0.0
      %1015 = vmatpush1.msra.mxu0 0.0
      %1016 = vmatprep.subr.mxu0 0.0
      %1017 = vmatpush1.msra.mxu0 0.0
      %1018 = vmatprep.subr.mxu0 0.0
      %1019 = vmatpush1.msra.mxu0 0.0
      %1020 = vmatprep.subr.mxu0 0.0
      %1021 = vmatpush1.msra.mxu0 0.0
      %1022 = vmatprep.subr.mxu0 0.0
      %1023 = vmatpush1.msra.mxu0 0.0
      %1024 = vmatprep.subr.mxu0 0.0
      %1025 = vmatpush1.msra.mxu0 0.0
      %1026 = vmatprep.subr.mxu0 0.0
      %1027 = vmatpush1.msra.mxu0 0.0
      %1028 = vmatprep.subr.mxu0 0.0
      %1029 = vmatpush1.msra.mxu0 0.0
      %1030 = vmatprep.subr.mxu0 0.0
      %1031 = vmatpush1.msra.mxu0 0.0
      %1032 = vmatprep.subr.mxu0 0.0
      %1033 = vmatpush1.msra.mxu0 0.0
      %1034 = vmatprep.subr.mxu0 0.0
      %1035 = vmatpush1.msra.mxu0 0.0
      %1036 = vmatprep.subr.mxu0 0.0
      %1037 = vmatpush1.msra.mxu0 0.0
      %1038 = vmatprep.subr.mxu0 0.0
      %1039 = vmatpush1.msra.mxu0 0.0
      %1040 = vmatprep.subr.mxu0 0.0
      %1041 = vmatpush1.msra.mxu0 0.0
      %1042 = vmatprep.subr.mxu0 0.0
      %1043 = vmatpush1.msra.mxu0 0.0
      %1044 = vmatprep.subr.mxu0 0.0
      %1045 = vmatpush1.msra.mxu0 0.0
      %1046 = vmatprep.subr.mxu0 0.0
      %1047 = vmatpush1.msra.mxu0 0.0
      %1048 = vmatprep.subr.mxu0 0.0
      %1049 = vmatpush1.msra.mxu0 0.0
      %1050 = vmatprep.subr.mxu0 0.0
      %1051 = vmatpush1.msra.mxu0 0.0
      %1052 = vmatprep.subr.mxu0 0.0
      %1053 = vmatpush1.msra.mxu0 0.0
      %1054 = vmatprep.subr.mxu0 0.0
      %1055 = vmatpush1.msra.mxu0 0.0
      %1056 = vmatprep.subr.mxu0 0.0
      %1057 = vmatpush1.msra.mxu0 0.0
      %1058 = vmatprep.subr.mxu0 0.0
      %1059 = vmatpush1.msra.mxu0 0.0
      %1060 = vmatprep.mubr.f32.mxu0 0.0
      %1061 = vmatmul.mubr.f32.gmra.mrb[0].mxu0 %v988
      %v1062 = vpop.f32.mrb[0].mxu0
      %v1063 = vadd.f32 0.0, %v1062
      %v1064 = vpop.f32.mrb[0].mxu0
      %1065 = vmatprep.mubr.f32.mxu0 0.0
      %1066 = vmatmul.mubr.f32.gmra.mrb[0].mxu0 %v990
      %v1067 = vpop.f32.mrb[0].mxu0
      %v1068 = vadd.f32 0.0, %v1067
      %v1069 = vpop.f32.mrb[0].mxu0
      %1070 = vmatprep.mubr.f32.mxu0 0.0
      %1071 = vmatmul.mubr.f32.gmra.mrb[0].mxu0 %v992
      %v1072 = vpop.f32.mrb[0].mxu0
      %v1073 = vadd.f32 0.0, %v1072
      %v1074 = vpop.f32.mrb[0].mxu0
      %1075 = vmatprep.mubr.f32.mxu0 0.0
      %1076 = vmatmul.mubr.f32.gmra.mrb[0].mxu0 %v994
      %v1077 = vpop.f32.mrb[0].mxu0
      %v1078 = vadd.f32 0.0, %v1077
      %v1079 = vpop.f32.mrb[0].mxu0
      %1080 = vdwg.mxu0
      %v1081 = vadd.f32 %v976, %v1063
      %v1082 = vadd.f32 %v977, %v1068
      %v1083 = vadd.f32 %v978, %v1073
      %v1084 = vadd.f32 %v979, %v1078
      %1085 = vrot.lane.b32.xlu0 %v266, 112
      %v1086 = vpop.permute.xlu0 %1085
      %1087 = vrot.lane.b32.xlu0 %v268, 112
      %v1088 = vpop.permute.xlu0 %1087
      %1089 = vrot.lane.b32.xlu0 %v270, 112
      %v1090 = vpop.permute.xlu0 %1089
      %1091 = vrot.lane.b32.xlu0 %v269, 112
      %v1092 = vpop.permute.xlu0 %1091
      %v1093 = vsel %vm271, %v1086, 0
      %v1095 = vsel %vm271, %v1088, 0
      %v1097 = vsel %vm271, %v1090, 0
      %v1099 = vsel %vm271, %v1092, 0
      %1101 = vmatprep.subr.mxu0 0.0
      %1102 = vmatpush1.msra.mxu0 %v238
      %1103 = vmatprep.subr.mxu0 0.0
      %1104 = vmatpush1.msra.mxu0 0.0
      %1105 = vmatprep.subr.mxu0 0.0
      %1106 = vmatpush1.msra.mxu0 0.0
      %1107 = vmatprep.subr.mxu0 0.0
      %1108 = vmatpush1.msra.mxu0 0.0
      %1109 = vmatprep.subr.mxu0 0.0
      %1110 = vmatpush1.msra.mxu0 0.0
      %1111 = vmatprep.subr.mxu0 0.0
      %1112 = vmatpush1.msra.mxu0 0.0
      %1113 = vmatprep.subr.mxu0 0.0
      %1114 = vmatpush1.msra.mxu0 0.0
      %1115 = vmatprep.subr.mxu0 0.0
      %1116 = vmatpush1.msra.mxu0 0.0
      %1117 = vmatprep.subr.mxu0 0.0
      %1118 = vmatpush1.msra.mxu0 0.0
      %1119 = vmatprep.subr.mxu0 0.0
      %1120 = vmatpush1.msra.mxu0 0.0
      %1121 = vmatprep.subr.mxu0 0.0
      %1122 = vmatpush1.msra.mxu0 0.0
      %1123 = vmatprep.subr.mxu0 0.0
      %1124 = vmatpush1.msra.mxu0 0.0
      %1125 = vmatprep.subr.mxu0 0.0
      %1126 = vmatpush1.msra.mxu0 0.0
      %1127 = vmatprep.subr.mxu0 0.0
      %1128 = vmatpush1.msra.mxu0 0.0
      %1129 = vmatprep.subr.mxu0 0.0
      %1130 = vmatpush1.msra.mxu0 0.0
      %1131 = vmatprep.subr.mxu0 0.0
      %1132 = vmatpush1.msra.mxu0 0.0
      %1133 = vmatprep.subr.mxu0 0.0
      %1134 = vmatpush1.msra.mxu0 0.0
      %1135 = vmatprep.subr.mxu0 0.0
      %1136 = vmatpush1.msra.mxu0 0.0
      %1137 = vmatprep.subr.mxu0 0.0
      %1138 = vmatpush1.msra.mxu0 0.0
      %1139 = vmatprep.subr.mxu0 0.0
      %1140 = vmatpush1.msra.mxu0 0.0
      %1141 = vmatprep.subr.mxu0 0.0
      %1142 = vmatpush1.msra.mxu0 0.0
      %1143 = vmatprep.subr.mxu0 0.0
      %1144 = vmatpush1.msra.mxu0 0.0
      %1145 = vmatprep.subr.mxu0 0.0
      %1146 = vmatpush1.msra.mxu0 0.0
      %1147 = vmatprep.subr.mxu0 0.0
      %1148 = vmatpush1.msra.mxu0 0.0
      %1149 = vmatprep.subr.mxu0 0.0
      %1150 = vmatpush1.msra.mxu0 0.0
      %1151 = vmatprep.subr.mxu0 0.0
      %1152 = vmatpush1.msra.mxu0 0.0
      %1153 = vmatprep.subr.mxu0 0.0
      %1154 = vmatpush1.msra.mxu0 0.0
      %1155 = vmatprep.subr.mxu0 0.0
      %1156 = vmatpush1.msra.mxu0 0.0
      %1157 = vmatprep.subr.mxu0 0.0
      %1158 = vmatpush1.msra.mxu0 0.0
      %1159 = vmatprep.subr.mxu0 0.0
      %1160 = vmatpush1.msra.mxu0 0.0
      %1161 = vmatprep.subr.mxu0 0.0
      %1162 = vmatpush1.msra.mxu0 0.0
      %1163 = vmatprep.subr.mxu0 0.0
      %1164 = vmatpush1.msra.mxu0 0.0
      %1165 = vmatprep.mubr.f32.mxu0 0.0
      %1166 = vmatmul.mubr.f32.gmra.mrb[0].mxu0 %v1093
      %v1167 = vpop.f32.mrb[0].mxu0
      %v1168 = vadd.f32 0.0, %v1167
      %v1169 = vpop.f32.mrb[0].mxu0
      %1170 = vmatprep.mubr.f32.mxu0 0.0
      %1171 = vmatmul.mubr.f32.gmra.mrb[0].mxu0 %v1095
      %v1172 = vpop.f32.mrb[0].mxu0
      %v1173 = vadd.f32 0.0, %v1172
      %v1174 = vpop.f32.mrb[0].mxu0
      %1175 = vmatprep.mubr.f32.mxu0 0.0
      %1176 = vmatmul.mubr.f32.gmra.mrb[0].mxu0 %v1097
      %v1177 = vpop.f32.mrb[0].mxu0
      %v1178 = vadd.f32 0.0, %v1177
      %v1179 = vpop.f32.mrb[0].mxu0
      %1180 = vmatprep.mubr.f32.mxu0 0.0
      %1181 = vmatmul.mubr.f32.gmra.mrb[0].mxu0 %v1099
      %v1182 = vpop.f32.mrb[0].mxu0
      %v1183 = vadd.f32 0.0, %v1182
      %v1184 = vpop.f32.mrb[0].mxu0
      %1185 = vdwg.mxu0
      %1186 = vrot.lane.b32.xlu0 %v259, 112
      %v1187 = vpop.permute.xlu0 %1186
      %1188 = vrot.lane.b32.xlu0 %v252, 112
      %v1189 = vpop.permute.xlu0 %1188
      %1190 = vrot.lane.b32.xlu0 %v254, 112
      %v1191 = vpop.permute.xlu0 %1190
      %1192 = vrot.lane.b32.xlu0 %v256, 112
      %v1193 = vpop.permute.xlu0 %1192
      %v1194 = vsel %vm271, %v1187, 0
      %v1196 = vsel %vm271, %v1189, 0
      %v1198 = vsel %vm271, %v1191, 0
      %v1200 = vsel %vm271, %v1193, 0
      %1202 = vmatprep.subr.mxu0 0.0
      %1203 = vmatpush1.msra.mxu0 %v237
      %1204 = vmatprep.subr.mxu0 0.0
      %1205 = vmatpush1.msra.mxu0 0.0
      %1206 = vmatprep.subr.mxu0 0.0
      %1207 = vmatpush1.msra.mxu0 0.0
      %1208 = vmatprep.subr.mxu0 0.0
      %1209 = vmatpush1.msra.mxu0 0.0
      %1210 = vmatprep.subr.mxu0 0.0
      %1211 = vmatpush1.msra.mxu0 0.0
      %1212 = vmatprep.subr.mxu0 0.0
      %1213 = vmatpush1.msra.mxu0 0.0
      %1214 = vmatprep.subr.mxu0 0.0
      %1215 = vmatpush1.msra.mxu0 0.0
      %1216 = vmatprep.subr.mxu0 0.0
      %1217 = vmatpush1.msra.mxu0 0.0
      %1218 = vmatprep.subr.mxu0 0.0
      %1219 = vmatpush1.msra.mxu0 0.0
      %1220 = vmatprep.subr.mxu0 0.0
      %1221 = vmatpush1.msra.mxu0 0.0
      %1222 = vmatprep.subr.mxu0 0.0
      %1223 = vmatpush1.msra.mxu0 0.0
      %1224 = vmatprep.subr.mxu0 0.0
      %1225 = vmatpush1.msra.mxu0 0.0
      %1226 = vmatprep.subr.mxu0 0.0
      %1227 = vmatpush1.msra.mxu0 0.0
      %1228 = vmatprep.subr.mxu0 0.0
      %1229 = vmatpush1.msra.mxu0 0.0
      %1230 = vmatprep.subr.mxu0 0.0
      %1231 = vmatpush1.msra.mxu0 0.0
      %1232 = vmatprep.subr.mxu0 0.0
      %1233 = vmatpush1.msra.mxu0 0.0
      %1234 = vmatprep.subr.mxu0 0.0
      %1235 = vmatpush1.msra.mxu0 0.0
      %1236 = vmatprep.subr.mxu0 0.0
      %1237 = vmatpush1.msra.mxu0 0.0
      %1238 = vmatprep.subr.mxu0 0.0
      %1239 = vmatpush1.msra.mxu0 0.0
      %1240 = vmatprep.subr.mxu0 0.0
      %1241 = vmatpush1.msra.mxu0 0.0
      %1242 = vmatprep.subr.mxu0 0.0
      %1243 = vmatpush1.msra.mxu0 0.0
      %1244 = vmatprep.subr.mxu0 0.0
      %1245 = vmatpush1.msra.mxu0 0.0
      %1246 = vmatprep.subr.mxu0 0.0
      %1247 = vmatpush1.msra.mxu0 0.0
      %1248 = vmatprep.subr.mxu0 0.0
      %1249 = vmatpush1.msra.mxu0 0.0
      %1250 = vmatprep.subr.mxu0 0.0
      %1251 = vmatpush1.msra.mxu0 0.0
      %1252 = vmatprep.subr.mxu0 0.0
      %1253 = vmatpush1.msra.mxu0 0.0
      %1254 = vmatprep.subr.mxu0 0.0
      %1255 = vmatpush1.msra.mxu0 0.0
      %1256 = vmatprep.subr.mxu0 0.0
      %1257 = vmatpush1.msra.mxu0 0.0
      %1258 = vmatprep.subr.mxu0 0.0
      %1259 = vmatpush1.msra.mxu0 0.0
      %1260 = vmatprep.subr.mxu0 0.0
      %1261 = vmatpush1.msra.mxu0 0.0
      %1262 = vmatprep.subr.mxu0 0.0
      %1263 = vmatpush1.msra.mxu0 0.0
      %1264 = vmatprep.subr.mxu0 0.0
      %1265 = vmatpush1.msra.mxu0 0.0
      %1266 = vmatprep.mubr.f32.mxu0 0.0
      %1267 = vmatmul.mubr.f32.gmra.mrb[0].mxu0 %v1194
      %v1268 = vpop.f32.mrb[0].mxu0
      %v1269 = vadd.f32 %v1168, %v1268
      %v1270 = vpop.f32.mrb[0].mxu0
      %1271 = vmatprep.mubr.f32.mxu0 0.0
      %1272 = vmatmul.mubr.f32.gmra.mrb[0].mxu0 %v1196
      %v1273 = vpop.f32.mrb[0].mxu0
      %v1274 = vadd.f32 %v1173, %v1273
      %v1275 = vpop.f32.mrb[0].mxu0
      %1276 = vmatprep.mubr.f32.mxu0 0.0
      %1277 = vmatmul.mubr.f32.gmra.mrb[0].mxu0 %v1198
      %v1278 = vpop.f32.mrb[0].mxu0
      %v1279 = vadd.f32 %v1178, %v1278
      %v1280 = vpop.f32.mrb[0].mxu0
      %1281 = vmatprep.mubr.f32.mxu0 0.0
      %1282 = vmatmul.mubr.f32.gmra.mrb[0].mxu0 %v1200
      %v1283 = vpop.f32.mrb[0].mxu0
      %v1284 = vadd.f32 %v1183, %v1283
      %v1285 = vpop.f32.mrb[0].mxu0
      %1286 = vdwg.mxu0
      %1287 = vrot.lane.b32.xlu0 %v462, 112
      %v1288 = vpop.permute.xlu0 %1287
      %1289 = vrot.lane.b32.xlu0 %v464, 112
      %v1290 = vpop.permute.xlu0 %1289
      %1291 = vrot.lane.b32.xlu0 %v466, 112
      %v1292 = vpop.permute.xlu0 %1291
      %1293 = vrot.lane.b32.xlu0 %v468, 112
      %v1294 = vpop.permute.xlu0 %1293
      %v1295 = vsel %vm271, %v1288, 0
      %v1297 = vsel %vm271, %v1290, 0
      %v1299 = vsel %vm271, %v1292, 0
      %v1301 = vsel %vm271, %v1294, 0
      %1303 = vmatprep.subr.mxu0 0.0
      %1304 = vmatpush1.msra.mxu0 %v239
      %1305 = vmatprep.subr.mxu0 0.0
      %1306 = vmatpush1.msra.mxu0 0.0
      %1307 = vmatprep.subr.mxu0 0.0
      %1308 = vmatpush1.msra.mxu0 0.0
      %1309 = vmatprep.subr.mxu0 0.0
      %1310 = vmatpush1.msra.mxu0 0.0
      %1311 = vmatprep.subr.mxu0 0.0
      %1312 = vmatpush1.msra.mxu0 0.0
      %1313 = vmatprep.subr.mxu0 0.0
      %1314 = vmatpush1.msra.mxu0 0.0
      %1315 = vmatprep.subr.mxu0 0.0
      %1316 = vmatpush1.msra.mxu0 0.0
      %1317 = vmatprep.subr.mxu0 0.0
      %1318 = vmatpush1.msra.mxu0 0.0
      %1319 = vmatprep.subr.mxu0 0.0
      %1320 = vmatpush1.msra.mxu0 0.0
      %1321 = vmatprep.subr.mxu0 0.0
      %1322 = vmatpush1.msra.mxu0 0.0
      %1323 = vmatprep.subr.mxu0 0.0
      %1324 = vmatpush1.msra.mxu0 0.0
      %1325 = vmatprep.subr.mxu0 0.0
      %1326 = vmatpush1.msra.mxu0 0.0
      %1327 = vmatprep.subr.mxu0 0.0
      %1328 = vmatpush1.msra.mxu0 0.0
      %1329 = vmatprep.subr.mxu0 0.0
      %1330 = vmatpush1.msra.mxu0 0.0
      %1331 = vmatprep.subr.mxu0 0.0
      %1332 = vmatpush1.msra.mxu0 0.0
      %1333 = vmatprep.subr.mxu0 0.0
      %1334 = vmatpush1.msra.mxu0 0.0
      %1335 = vmatprep.subr.mxu0 0.0
      %1336 = vmatpush1.msra.mxu0 0.0
      %1337 = vmatprep.subr.mxu0 0.0
      %1338 = vmatpush1.msra.mxu0 0.0
      %1339 = vmatprep.subr.mxu0 0.0
      %1340 = vmatpush1.msra.mxu0 0.0
      %1341 = vmatprep.subr.mxu0 0.0
      %1342 = vmatpush1.msra.mxu0 0.0
      %1343 = vmatprep.subr.mxu0 0.0
      %1344 = vmatpush1.msra.mxu0 0.0
      %1345 = vmatprep.subr.mxu0 0.0
      %1346 = vmatpush1.msra.mxu0 0.0
      %1347 = vmatprep.subr.mxu0 0.0
      %1348 = vmatpush1.msra.mxu0 0.0
      %1349 = vmatprep.subr.mxu0 0.0
      %1350 = vmatpush1.msra.mxu0 0.0
      %1351 = vmatprep.subr.mxu0 0.0
      %1352 = vmatpush1.msra.mxu0 0.0
      %1353 = vmatprep.subr.mxu0 0.0
      %1354 = vmatpush1.msra.mxu0 0.0
      %1355 = vmatprep.subr.mxu0 0.0
      %1356 = vmatpush1.msra.mxu0 0.0
      %1357 = vmatprep.subr.mxu0 0.0
      %1358 = vmatpush1.msra.mxu0 0.0
      %1359 = vmatprep.subr.mxu0 0.0
      %1360 = vmatpush1.msra.mxu0 0.0
      %1361 = vmatprep.subr.mxu0 0.0
      %1362 = vmatpush1.msra.mxu0 0.0
      %1363 = vmatprep.subr.mxu0 0.0
      %1364 = vmatpush1.msra.mxu0 0.0
      %1365 = vmatprep.subr.mxu0 0.0
      %1366 = vmatpush1.msra.mxu0 0.0
      %1367 = vmatprep.mubr.f32.mxu0 0.0
      %1368 = vmatmul.mubr.f32.gmra.mrb[0].mxu0 %v1295
      %v1369 = vpop.f32.mrb[0].mxu0
      %v1370 = vadd.f32 0.0, %v1369
      %v1371 = vpop.f32.mrb[0].mxu0
      %1372 = vmatprep.mubr.f32.mxu0 0.0
      %1373 = vmatmul.mubr.f32.gmra.mrb[0].mxu0 %v1297
      %v1374 = vpop.f32.mrb[0].mxu0
      %v1375 = vadd.f32 0.0, %v1374
      %v1376 = vpop.f32.mrb[0].mxu0
      %1377 = vmatprep.mubr.f32.mxu0 0.0
      %1378 = vmatmul.mubr.f32.gmra.mrb[0].mxu0 %v1299
      %v1379 = vpop.f32.mrb[0].mxu0
      %v1380 = vadd.f32 0.0, %v1379
      %v1381 = vpop.f32.mrb[0].mxu0
      %1382 = vmatprep.mubr.f32.mxu0 0.0
      %1383 = vmatmul.mubr.f32.gmra.mrb[0].mxu0 %v1301
      %v1384 = vpop.f32.mrb[0].mxu0
      %v1385 = vadd.f32 0.0, %v1384
      %v1386 = vpop.f32.mrb[0].mxu0
      %1387 = vdwg.mxu0
      %v1388 = vadd.f32 %v1269, %v1370
      %v1389 = vadd.f32 %v1274, %v1375
      %v1390 = vadd.f32 %v1279, %v1380
      %v1391 = vadd.f32 %v1284, %v1385
      %1392 = vrot.lane.b32.xlu0 %v569, 112
      %v1393 = vpop.permute.xlu0 %1392
      %1394 = vrot.lane.b32.xlu0 %v571, 112
      %v1395 = vpop.permute.xlu0 %1394
      %1396 = vrot.lane.b32.xlu0 %v573, 112
      %v1397 = vpop.permute.xlu0 %1396
      %1398 = vrot.lane.b32.xlu0 %v575, 112
      %v1399 = vpop.permute.xlu0 %1398
      %v1400 = vsel %vm271, %v1393, 0
      %v1402 = vsel %vm271, %v1395, 0
      %v1404 = vsel %vm271, %v1397, 0
      %v1406 = vsel %vm271, %v1399, 0
      %1408 = vmatprep.subr.mxu0 0.0
      %1409 = vmatpush1.msra.mxu0 %v240
      %1410 = vmatprep.subr.mxu0 0.0
      %1411 = vmatpush1.msra.mxu0 0.0
      %1412 = vmatprep.subr.mxu0 0.0
      %1413 = vmatpush1.msra.mxu0 0.0
      %1414 = vmatprep.subr.mxu0 0.0
      %1415 = vmatpush1.msra.mxu0 0.0
      %1416 = vmatprep.subr.mxu0 0.0
      %1417 = vmatpush1.msra.mxu0 0.0
      %1418 = vmatprep.subr.mxu0 0.0
      %1419 = vmatpush1.msra.mxu0 0.0
      %1420 = vmatprep.subr.mxu0 0.0
      %1421 = vmatpush1.msra.mxu0 0.0
      %1422 = vmatprep.subr.mxu0 0.0
      %1423 = vmatpush1.msra.mxu0 0.0
      %1424 = vmatprep.subr.mxu0 0.0
      %1425 = vmatpush1.msra.mxu0 0.0
      %1426 = vmatprep.subr.mxu0 0.0
      %1427 = vmatpush1.msra.mxu0 0.0
      %1428 = vmatprep.subr.mxu0 0.0
      %1429 = vmatpush1.msra.mxu0 0.0
      %1430 = vmatprep.subr.mxu0 0.0
      %1431 = vmatpush1.msra.mxu0 0.0
      %1432 = vmatprep.subr.mxu0 0.0
      %1433 = vmatpush1.msra.mxu0 0.0
      %1434 = vmatprep.subr.mxu0 0.0
      %1435 = vmatpush1.msra.mxu0 0.0
      %1436 = vmatprep.subr.mxu0 0.0
      %1437 = vmatpush1.msra.mxu0 0.0
      %1438 = vmatprep.subr.mxu0 0.0
      %1439 = vmatpush1.msra.mxu0 0.0
      %1440 = vmatprep.subr.mxu0 0.0
      %1441 = vmatpush1.msra.mxu0 0.0
      %1442 = vmatprep.subr.mxu0 0.0
      %1443 = vmatpush1.msra.mxu0 0.0
      %1444 = vmatprep.subr.mxu0 0.0
      %1445 = vmatpush1.msra.mxu0 0.0
      %1446 = vmatprep.subr.mxu0 0.0
      %1447 = vmatpush1.msra.mxu0 0.0
      %1448 = vmatprep.subr.mxu0 0.0
      %1449 = vmatpush1.msra.mxu0 0.0
      %1450 = vmatprep.subr.mxu0 0.0
      %1451 = vmatpush1.msra.mxu0 0.0
      %1452 = vmatprep.subr.mxu0 0.0
      %1453 = vmatpush1.msra.mxu0 0.0
      %1454 = vmatprep.subr.mxu0 0.0
      %1455 = vmatpush1.msra.mxu0 0.0
      %1456 = vmatprep.subr.mxu0 0.0
      %1457 = vmatpush1.msra.mxu0 0.0
      %1458 = vmatprep.subr.mxu0 0.0
      %1459 = vmatpush1.msra.mxu0 0.0
      %1460 = vmatprep.subr.mxu0 0.0
      %1461 = vmatpush1.msra.mxu0 0.0
      %1462 = vmatprep.subr.mxu0 0.0
      %1463 = vmatpush1.msra.mxu0 0.0
      %1464 = vmatprep.subr.mxu0 0.0
      %1465 = vmatpush1.msra.mxu0 0.0
      %1466 = vmatprep.subr.mxu0 0.0
      %1467 = vmatpush1.msra.mxu0 0.0
      %1468 = vmatprep.subr.mxu0 0.0
      %1469 = vmatpush1.msra.mxu0 0.0
      %1470 = vmatprep.subr.mxu0 0.0
      %1471 = vmatpush1.msra.mxu0 0.0
      %1472 = vmatprep.mubr.f32.mxu0 0.0
      %1473 = vmatmul.mubr.f32.gmra.mrb[0].mxu0 %v1400
      %v1474 = vpop.f32.mrb[0].mxu0
      %v1475 = vadd.f32 0.0, %v1474
      %v1476 = vpop.f32.mrb[0].mxu0
      %1477 = vmatprep.mubr.f32.mxu0 0.0
      %1478 = vmatmul.mubr.f32.gmra.mrb[0].mxu0 %v1402
      %v1479 = vpop.f32.mrb[0].mxu0
      %v1480 = vadd.f32 0.0, %v1479
      %v1481 = vpop.f32.mrb[0].mxu0
      %1482 = vmatprep.mubr.f32.mxu0 0.0
      %1483 = vmatmul.mubr.f32.gmra.mrb[0].mxu0 %v1404
      %v1484 = vpop.f32.mrb[0].mxu0
      %v1485 = vadd.f32 0.0, %v1484
      %v1486 = vpop.f32.mrb[0].mxu0
      %1487 = vmatprep.mubr.f32.mxu0 0.0
      %1488 = vmatmul.mubr.f32.gmra.mrb[0].mxu0 %v1406
      %v1489 = vpop.f32.mrb[0].mxu0
      %v1490 = vadd.f32 0.0, %v1489
      %v1491 = vpop.f32.mrb[0].mxu0
      %1492 = vdwg.mxu0
      %v1493 = vadd.f32 %v1388, %v1475
      %v1494 = vadd.f32 %v1389, %v1480
      %v1495 = vadd.f32 %v1390, %v1485
      %v1496 = vadd.f32 %v1391, %v1490
      %1497 = vrot.lane.b32.xlu0 %v266, 104
      %v1498 = vpop.permute.xlu0 %1497
      %1499 = vrot.lane.b32.xlu0 %v268, 104
      %v1500 = vpop.permute.xlu0 %1499
      %1501 = vrot.lane.b32.xlu0 %v270, 104
      %v1502 = vpop.permute.xlu0 %1501
      %1503 = vrot.lane.b32.xlu0 %v269, 104
      %v1504 = vpop.permute.xlu0 %1503
      %v1505 = vsel %vm271, %v1498, 0
      %v1507 = vsel %vm271, %v1500, 0
      %v1509 = vsel %vm271, %v1502, 0
      %v1511 = vsel %vm271, %v1504, 0
      %1513 = vmatprep.subr.mxu0 0.0
      %1514 = vmatpush1.msra.mxu0 %v242
      %1515 = vmatprep.subr.mxu0 0.0
      %1516 = vmatpush1.msra.mxu0 0.0
      %1517 = vmatprep.subr.mxu0 0.0
      %1518 = vmatpush1.msra.mxu0 0.0
      %1519 = vmatprep.subr.mxu0 0.0
      %1520 = vmatpush1.msra.mxu0 0.0
      %1521 = vmatprep.subr.mxu0 0.0
      %1522 = vmatpush1.msra.mxu0 0.0
      %1523 = vmatprep.subr.mxu0 0.0
      %1524 = vmatpush1.msra.mxu0 0.0
      %1525 = vmatprep.subr.mxu0 0.0
      %1526 = vmatpush1.msra.mxu0 0.0
      %1527 = vmatprep.subr.mxu0 0.0
      %1528 = vmatpush1.msra.mxu0 0.0
      %1529 = vmatprep.subr.mxu0 0.0
      %1530 = vmatpush1.msra.mxu0 0.0
      %1531 = vmatprep.subr.mxu0 0.0
      %1532 = vmatpush1.msra.mxu0 0.0
      %1533 = vmatprep.subr.mxu0 0.0
      %1534 = vmatpush1.msra.mxu0 0.0
      %1535 = vmatprep.subr.mxu0 0.0
      %1536 = vmatpush1.msra.mxu0 0.0
      %1537 = vmatprep.subr.mxu0 0.0
      %1538 = vmatpush1.msra.mxu0 0.0
      %1539 = vmatprep.subr.mxu0 0.0
      %1540 = vmatpush1.msra.mxu0 0.0
      %1541 = vmatprep.subr.mxu0 0.0
      %1542 = vmatpush1.msra.mxu0 0.0
      %1543 = vmatprep.subr.mxu0 0.0
      %1544 = vmatpush1.msra.mxu0 0.0
      %1545 = vmatprep.subr.mxu0 0.0
      %1546 = vmatpush1.msra.mxu0 0.0
      %1547 = vmatprep.subr.mxu0 0.0
      %1548 = vmatpush1.msra.mxu0 0.0
      %1549 = vmatprep.subr.mxu0 0.0
      %1550 = vmatpush1.msra.mxu0 0.0
      %1551 = vmatprep.subr.mxu0 0.0
      %1552 = vmatpush1.msra.mxu0 0.0
      %1553 = vmatprep.subr.mxu0 0.0
      %1554 = vmatpush1.msra.mxu0 0.0
      %1555 = vmatprep.subr.mxu0 0.0
      %1556 = vmatpush1.msra.mxu0 0.0
      %1557 = vmatprep.subr.mxu0 0.0
      %1558 = vmatpush1.msra.mxu0 0.0
      %1559 = vmatprep.subr.mxu0 0.0
      %1560 = vmatpush1.msra.mxu0 0.0
      %1561 = vmatprep.subr.mxu0 0.0
      %1562 = vmatpush1.msra.mxu0 0.0
      %1563 = vmatprep.subr.mxu0 0.0
      %1564 = vmatpush1.msra.mxu0 0.0
      %1565 = vmatprep.subr.mxu0 0.0
      %1566 = vmatpush1.msra.mxu0 0.0
      %1567 = vmatprep.subr.mxu0 0.0
      %1568 = vmatpush1.msra.mxu0 0.0
      %1569 = vmatprep.subr.mxu0 0.0
      %1570 = vmatpush1.msra.mxu0 0.0
      %1571 = vmatprep.subr.mxu0 0.0
      %1572 = vmatpush1.msra.mxu0 0.0
      %1573 = vmatprep.subr.mxu0 0.0
      %1574 = vmatpush1.msra.mxu0 0.0
      %1575 = vmatprep.subr.mxu0 0.0
      %1576 = vmatpush1.msra.mxu0 0.0
      %1577 = vmatprep.mubr.f32.mxu0 0.0
      %1578 = vmatmul.mubr.f32.gmra.mrb[0].mxu0 %v1505
      %v1579 = vpop.f32.mrb[0].mxu0
      %v1580 = vadd.f32 0.0, %v1579
      %v1581 = vpop.f32.mrb[0].mxu0
      %1582 = vmatprep.mubr.f32.mxu0 0.0
      %1583 = vmatmul.mubr.f32.gmra.mrb[0].mxu0 %v1507
      %v1584 = vpop.f32.mrb[0].mxu0
      %v1585 = vadd.f32 0.0, %v1584
      %v1586 = vpop.f32.mrb[0].mxu0
      %1587 = vmatprep.mubr.f32.mxu0 0.0
      %1588 = vmatmul.mubr.f32.gmra.mrb[0].mxu0 %v1509
      %v1589 = vpop.f32.mrb[0].mxu0
      %v1590 = vadd.f32 0.0, %v1589
      %v1591 = vpop.f32.mrb[0].mxu0
      %1592 = vmatprep.mubr.f32.mxu0 0.0
      %1593 = vmatmul.mubr.f32.gmra.mrb[0].mxu0 %v1511
      %v1594 = vpop.f32.mrb[0].mxu0
      %v1595 = vadd.f32 0.0, %v1594
      %v1596 = vpop.f32.mrb[0].mxu0
      %1597 = vdwg.mxu0
      %1598 = vrot.lane.b32.xlu0 %v259, 104
      %v1599 = vpop.permute.xlu0 %1598
      %1600 = vrot.lane.b32.xlu0 %v252, 104
      %v1601 = vpop.permute.xlu0 %1600
      %1602 = vrot.lane.b32.xlu0 %v254, 104
      %v1603 = vpop.permute.xlu0 %1602
      %1604 = vrot.lane.b32.xlu0 %v256, 104
      %v1605 = vpop.permute.xlu0 %1604
      %v1606 = vsel %vm271, %v1599, 0
      %v1608 = vsel %vm271, %v1601, 0
      %v1610 = vsel %vm271, %v1603, 0
      %v1612 = vsel %vm271, %v1605, 0
      %1614 = vmatprep.subr.mxu0 0.0
      %1615 = vmatpush1.msra.mxu0 %v241
      %1616 = vmatprep.subr.mxu0 0.0
      %1617 = vmatpush1.msra.mxu0 0.0
      %1618 = vmatprep.subr.mxu0 0.0
      %1619 = vmatpush1.msra.mxu0 0.0
      %1620 = vmatprep.subr.mxu0 0.0
      %1621 = vmatpush1.msra.mxu0 0.0
      %1622 = vmatprep.subr.mxu0 0.0
      %1623 = vmatpush1.msra.mxu0 0.0
      %1624 = vmatprep.subr.mxu0 0.0
      %1625 = vmatpush1.msra.mxu0 0.0
      %1626 = vmatprep.subr.mxu0 0.0
      %1627 = vmatpush1.msra.mxu0 0.0
      %1628 = vmatprep.subr.mxu0 0.0
      %1629 = vmatpush1.msra.mxu0 0.0
      %1630 = vmatprep.subr.mxu0 0.0
      %1631 = vmatpush1.msra.mxu0 0.0
      %1632 = vmatprep.subr.mxu0 0.0
      %1633 = vmatpush1.msra.mxu0 0.0
      %1634 = vmatprep.subr.mxu0 0.0
      %1635 = vmatpush1.msra.mxu0 0.0
      %1636 = vmatprep.subr.mxu0 0.0
      %1637 = vmatpush1.msra.mxu0 0.0
      %1638 = vmatprep.subr.mxu0 0.0
      %1639 = vmatpush1.msra.mxu0 0.0
      %1640 = vmatprep.subr.mxu0 0.0
      %1641 = vmatpush1.msra.mxu0 0.0
      %1642 = vmatprep.subr.mxu0 0.0
      %1643 = vmatpush1.msra.mxu0 0.0
      %1644 = vmatprep.subr.mxu0 0.0
      %1645 = vmatpush1.msra.mxu0 0.0
      %1646 = vmatprep.subr.mxu0 0.0
      %1647 = vmatpush1.msra.mxu0 0.0
      %1648 = vmatprep.subr.mxu0 0.0
      %1649 = vmatpush1.msra.mxu0 0.0
      %1650 = vmatprep.subr.mxu0 0.0
      %1651 = vmatpush1.msra.mxu0 0.0
      %1652 = vmatprep.subr.mxu0 0.0
      %1653 = vmatpush1.msra.mxu0 0.0
      %1654 = vmatprep.subr.mxu0 0.0
      %1655 = vmatpush1.msra.mxu0 0.0
      %1656 = vmatprep.subr.mxu0 0.0
      %1657 = vmatpush1.msra.mxu0 0.0
      %1658 = vmatprep.subr.mxu0 0.0
      %1659 = vmatpush1.msra.mxu0 0.0
      %1660 = vmatprep.subr.mxu0 0.0
      %1661 = vmatpush1.msra.mxu0 0.0
      %1662 = vmatprep.subr.mxu0 0.0
      %1663 = vmatpush1.msra.mxu0 0.0
      %1664 = vmatprep.subr.mxu0 0.0
      %1665 = vmatpush1.msra.mxu0 0.0
      %1666 = vmatprep.subr.mxu0 0.0
      %1667 = vmatpush1.msra.mxu0 0.0
      %1668 = vmatprep.subr.mxu0 0.0
      %1669 = vmatpush1.msra.mxu0 0.0
      %1670 = vmatprep.subr.mxu0 0.0
      %1671 = vmatpush1.msra.mxu0 0.0
      %1672 = vmatprep.subr.mxu0 0.0
      %1673 = vmatpush1.msra.mxu0 0.0
      %1674 = vmatprep.subr.mxu0 0.0
      %1675 = vmatpush1.msra.mxu0 0.0
      %1676 = vmatprep.subr.mxu0 0.0
      %1677 = vmatpush1.msra.mxu0 0.0
      %1678 = vmatprep.mubr.f32.mxu0 0.0
      %1679 = vmatmul.mubr.f32.gmra.mrb[0].mxu0 %v1606
      %v1680 = vpop.f32.mrb[0].mxu0
      %v1681 = vadd.f32 %v1580, %v1680
      %v1682 = vpop.f32.mrb[0].mxu0
      %1683 = vmatprep.mubr.f32.mxu0 0.0
      %1684 = vmatmul.mubr.f32.gmra.mrb[0].mxu0 %v1608
      %v1685 = vpop.f32.mrb[0].mxu0
      %v1686 = vadd.f32 %v1585, %v1685
      %v1687 = vpop.f32.mrb[0].mxu0
      %1688 = vmatprep.mubr.f32.mxu0 0.0
      %1689 = vmatmul.mubr.f32.gmra.mrb[0].mxu0 %v1610
      %v1690 = vpop.f32.mrb[0].mxu0
      %v1691 = vadd.f32 %v1590, %v1690
      %v1692 = vpop.f32.mrb[0].mxu0
      %1693 = vmatprep.mubr.f32.mxu0 0.0
      %1694 = vmatmul.mubr.f32.gmra.mrb[0].mxu0 %v1612
      %v1695 = vpop.f32.mrb[0].mxu0
      %v1696 = vadd.f32 %v1595, %v1695
      %v1697 = vpop.f32.mrb[0].mxu0
      %1698 = vdwg.mxu0
      %1699 = vrot.lane.b32.xlu0 %v462, 104
      %v1700 = vpop.permute.xlu0 %1699
      %1701 = vrot.lane.b32.xlu0 %v464, 104
      %v1702 = vpop.permute.xlu0 %1701
      %1703 = vrot.lane.b32.xlu0 %v466, 104
      %v1704 = vpop.permute.xlu0 %1703
      %1705 = vrot.lane.b32.xlu0 %v468, 104
      %v1706 = vpop.permute.xlu0 %1705
      %v1707 = vsel %vm271, %v1700, 0
      %v1709 = vsel %vm271, %v1702, 0
      %v1711 = vsel %vm271, %v1704, 0
      %v1713 = vsel %vm271, %v1706, 0
      %1715 = vmatprep.subr.mxu0 0.0
      %1716 = vmatpush1.msra.mxu0 %v243
      %1717 = vmatprep.subr.mxu0 0.0
      %1718 = vmatpush1.msra.mxu0 0.0
      %1719 = vmatprep.subr.mxu0 0.0
      %1720 = vmatpush1.msra.mxu0 0.0
      %1721 = vmatprep.subr.mxu0 0.0
      %1722 = vmatpush1.msra.mxu0 0.0
      %1723 = vmatprep.subr.mxu0 0.0
      %1724 = vmatpush1.msra.mxu0 0.0
      %1725 = vmatprep.subr.mxu0 0.0
      %1726 = vmatpush1.msra.mxu0 0.0
      %1727 = vmatprep.subr.mxu0 0.0
      %1728 = vmatpush1.msra.mxu0 0.0
      %1729 = vmatprep.subr.mxu0 0.0
      %1730 = vmatpush1.msra.mxu0 0.0
      %1731 = vmatprep.subr.mxu0 0.0
      %1732 = vmatpush1.msra.mxu0 0.0
      %1733 = vmatprep.subr.mxu0 0.0
      %1734 = vmatpush1.msra.mxu0 0.0
      %1735 = vmatprep.subr.mxu0 0.0
      %1736 = vmatpush1.msra.mxu0 0.0
      %1737 = vmatprep.subr.mxu0 0.0
      %1738 = vmatpush1.msra.mxu0 0.0
      %1739 = vmatprep.subr.mxu0 0.0
      %1740 = vmatpush1.msra.mxu0 0.0
      %1741 = vmatprep.subr.mxu0 0.0
      %1742 = vmatpush1.msra.mxu0 0.0
      %1743 = vmatprep.subr.mxu0 0.0
      %1744 = vmatpush1.msra.mxu0 0.0
      %1745 = vmatprep.subr.mxu0 0.0
      %1746 = vmatpush1.msra.mxu0 0.0
      %1747 = vmatprep.subr.mxu0 0.0
      %1748 = vmatpush1.msra.mxu0 0.0
      %1749 = vmatprep.subr.mxu0 0.0
      %1750 = vmatpush1.msra.mxu0 0.0
      %1751 = vmatprep.subr.mxu0 0.0
      %1752 = vmatpush1.msra.mxu0 0.0
      %1753 = vmatprep.subr.mxu0 0.0
      %1754 = vmatpush1.msra.mxu0 0.0
      %1755 = vmatprep.subr.mxu0 0.0
      %1756 = vmatpush1.msra.mxu0 0.0
      %1757 = vmatprep.subr.mxu0 0.0
      %1758 = vmatpush1.msra.mxu0 0.0
      %1759 = vmatprep.subr.mxu0 0.0
      %1760 = vmatpush1.msra.mxu0 0.0
      %1761 = vmatprep.subr.mxu0 0.0
      %1762 = vmatpush1.msra.mxu0 0.0
      %1763 = vmatprep.subr.mxu0 0.0
      %1764 = vmatpush1.msra.mxu0 0.0
      %1765 = vmatprep.subr.mxu0 0.0
      %1766 = vmatpush1.msra.mxu0 0.0
      %1767 = vmatprep.subr.mxu0 0.0
      %1768 = vmatpush1.msra.mxu0 0.0
      %1769 = vmatprep.subr.mxu0 0.0
      %1770 = vmatpush1.msra.mxu0 0.0
      %1771 = vmatprep.subr.mxu0 0.0
      %1772 = vmatpush1.msra.mxu0 0.0
      %1773 = vmatprep.subr.mxu0 0.0
      %1774 = vmatpush1.msra.mxu0 0.0
      %1775 = vmatprep.subr.mxu0 0.0
      %1776 = vmatpush1.msra.mxu0 0.0
      %1777 = vmatprep.subr.mxu0 0.0
      %1778 = vmatpush1.msra.mxu0 0.0
      %1779 = vmatprep.mubr.f32.mxu0 0.0
      %1780 = vmatmul.mubr.f32.gmra.mrb[0].mxu0 %v1707
      %v1781 = vpop.f32.mrb[0].mxu0
      %v1782 = vadd.f32 0.0, %v1781
      %v1783 = vpop.f32.mrb[0].mxu0
      %1784 = vmatprep.mubr.f32.mxu0 0.0
      %1785 = vmatmul.mubr.f32.gmra.mrb[0].mxu0 %v1709
      %v1786 = vpop.f32.mrb[0].mxu0
      %v1787 = vadd.f32 0.0, %v1786
      %v1788 = vpop.f32.mrb[0].mxu0
      %1789 = vmatprep.mubr.f32.mxu0 0.0
      %1790 = vmatmul.mubr.f32.gmra.mrb[0].mxu0 %v1711
      %v1791 = vpop.f32.mrb[0].mxu0
      %v1792 = vadd.f32 0.0, %v1791
      %v1793 = vpop.f32.mrb[0].mxu0
      %1794 = vmatprep.mubr.f32.mxu0 0.0
      %1795 = vmatmul.mubr.f32.gmra.mrb[0].mxu0 %v1713
      %v1796 = vpop.f32.mrb[0].mxu0
      %v1797 = vadd.f32 0.0, %v1796
      %v1798 = vpop.f32.mrb[0].mxu0
      %1799 = vdwg.mxu0
      %v1800 = vadd.f32 %v1681, %v1782
      %v1801 = vadd.f32 %v1686, %v1787
      %v1802 = vadd.f32 %v1691, %v1792
      %v1803 = vadd.f32 %v1696, %v1797
      %1804 = vrot.lane.b32.xlu0 %v569, 104
      %v1805 = vpop.permute.xlu0 %1804
      %1806 = vrot.lane.b32.xlu0 %v571, 104
      %v1807 = vpop.permute.xlu0 %1806
      %1808 = vrot.lane.b32.xlu0 %v573, 104
      %v1809 = vpop.permute.xlu0 %1808
      %1810 = vrot.lane.b32.xlu0 %v575, 104
      %v1811 = vpop.permute.xlu0 %1810
      %v1812 = vsel %vm271, %v1805, 0
      %v1814 = vsel %vm271, %v1807, 0
      %v1816 = vsel %vm271, %v1809, 0
      %v1818 = vsel %vm271, %v1811, 0
      %1820 = vmatprep.subr.mxu0 0.0
      %1821 = vmatpush1.msra.mxu0 %v244
      %1822 = vmatprep.subr.mxu0 0.0
      %1823 = vmatpush1.msra.mxu0 0.0
      %1824 = vmatprep.subr.mxu0 0.0
      %1825 = vmatpush1.msra.mxu0 0.0
      %1826 = vmatprep.subr.mxu0 0.0
      %1827 = vmatpush1.msra.mxu0 0.0
      %1828 = vmatprep.subr.mxu0 0.0
      %1829 = vmatpush1.msra.mxu0 0.0
      %1830 = vmatprep.subr.mxu0 0.0
      %1831 = vmatpush1.msra.mxu0 0.0
      %1832 = vmatprep.subr.mxu0 0.0
      %1833 = vmatpush1.msra.mxu0 0.0
      %1834 = vmatprep.subr.mxu0 0.0
      %1835 = vmatpush1.msra.mxu0 0.0
      %1836 = vmatprep.subr.mxu0 0.0
      %1837 = vmatpush1.msra.mxu0 0.0
      %1838 = vmatprep.subr.mxu0 0.0
      %1839 = vmatpush1.msra.mxu0 0.0
      %1840 = vmatprep.subr.mxu0 0.0
      %1841 = vmatpush1.msra.mxu0 0.0
      %1842 = vmatprep.subr.mxu0 0.0
      %1843 = vmatpush1.msra.mxu0 0.0
      %1844 = vmatprep.subr.mxu0 0.0
      %1845 = vmatpush1.msra.mxu0 0.0
      %1846 = vmatprep.subr.mxu0 0.0
      %1847 = vmatpush1.msra.mxu0 0.0
      %1848 = vmatprep.subr.mxu0 0.0
      %1849 = vmatpush1.msra.mxu0 0.0
      %1850 = vmatprep.subr.mxu0 0.0
      %1851 = vmatpush1.msra.mxu0 0.0
      %1852 = vmatprep.subr.mxu0 0.0
      %1853 = vmatpush1.msra.mxu0 0.0
      %1854 = vmatprep.subr.mxu0 0.0
      %1855 = vmatpush1.msra.mxu0 0.0
      %1856 = vmatprep.subr.mxu0 0.0
      %1857 = vmatpush1.msra.mxu0 0.0
      %1858 = vmatprep.subr.mxu0 0.0
      %1859 = vmatpush1.msra.mxu0 0.0
      %1860 = vmatprep.subr.mxu0 0.0
      %1861 = vmatpush1.msra.mxu0 0.0
      %1862 = vmatprep.subr.mxu0 0.0
      %1863 = vmatpush1.msra.mxu0 0.0
      %1864 = vmatprep.subr.mxu0 0.0
      %1865 = vmatpush1.msra.mxu0 0.0
      %1866 = vmatprep.subr.mxu0 0.0
      %1867 = vmatpush1.msra.mxu0 0.0
      %1868 = vmatprep.subr.mxu0 0.0
      %1869 = vmatpush1.msra.mxu0 0.0
      %1870 = vmatprep.subr.mxu0 0.0
      %1871 = vmatpush1.msra.mxu0 0.0
      %1872 = vmatprep.subr.mxu0 0.0
      %1873 = vmatpush1.msra.mxu0 0.0
      %1874 = vmatprep.subr.mxu0 0.0
      %1875 = vmatpush1.msra.mxu0 0.0
      %1876 = vmatprep.subr.mxu0 0.0
      %1877 = vmatpush1.msra.mxu0 0.0
      %1878 = vmatprep.subr.mxu0 0.0
      %1879 = vmatpush1.msra.mxu0 0.0
      %1880 = vmatprep.subr.mxu0 0.0
      %1881 = vmatpush1.msra.mxu0 0.0
      %1882 = vmatprep.subr.mxu0 0.0
      %1883 = vmatpush1.msra.mxu0 0.0
      %1884 = vmatprep.mubr.f32.mxu0 0.0
      %1885 = vmatmul.mubr.f32.gmra.mrb[0].mxu0 %v1812
      %v1886 = vpop.f32.mrb[0].mxu0
      %v1887 = vadd.f32 0.0, %v1886
      %v1888 = vpop.f32.mrb[0].mxu0
      %1889 = vmatprep.mubr.f32.mxu0 0.0
      %1890 = vmatmul.mubr.f32.gmra.mrb[0].mxu0 %v1814
      %v1891 = vpop.f32.mrb[0].mxu0
      %v1892 = vadd.f32 0.0, %v1891
      %v1893 = vpop.f32.mrb[0].mxu0
      %1894 = vmatprep.mubr.f32.mxu0 0.0
      %1895 = vmatmul.mubr.f32.gmra.mrb[0].mxu0 %v1816
      %v1896 = vpop.f32.mrb[0].mxu0
      %v1897 = vadd.f32 0.0, %v1896
      %v1898 = vpop.f32.mrb[0].mxu0
      %1899 = vmatprep.mubr.f32.mxu0 0.0
      %1900 = vmatmul.mubr.f32.gmra.mrb[0].mxu0 %v1818
      %v1901 = vpop.f32.mrb[0].mxu0
      %v1902 = vadd.f32 0.0, %v1901
      %v1903 = vpop.f32.mrb[0].mxu0
      %1904 = vdwg.mxu0
      %v1905 = vadd.f32 %v1800, %v1887
      %v1906 = vadd.f32 %v1801, %v1892
      %v1907 = vadd.f32 %v1802, %v1897
      %v1908 = vadd.f32 %v1803, %v1902
      %1913 = vrot.lane.b32.xlu0 %v1081, 8
      %v1914 = vpop.permute.xlu0 %1913
      %1915 = vrot.lane.b32.xlu0 %v1082, 8
      %v1916 = vpop.permute.xlu0 %1915
      %1917 = vrot.lane.b32.xlu0 %v1083, 8
      %v1918 = vpop.permute.xlu0 %1917
      %1919 = vrot.lane.b32.xlu0 %v1084, 8
      %v1920 = vpop.permute.xlu0 %1919
      %1929 = vrot.lane.b32.xlu0 %v1493, 16
      %v1930 = vpop.permute.xlu0 %1929
      %1931 = vrot.lane.b32.xlu0 %v1494, 16
      %v1932 = vpop.permute.xlu0 %1931
      %1933 = vrot.lane.b32.xlu0 %v1495, 16
      %v1934 = vpop.permute.xlu0 %1933
      %1935 = vrot.lane.b32.xlu0 %v1496, 16
      %v1936 = vpop.permute.xlu0 %1935
      %1945 = vrot.lane.b32.xlu0 %v1905, 24
      %v1946 = vpop.permute.xlu0 %1945
      %1947 = vrot.lane.b32.xlu0 %v1906, 24
      %v1948 = vpop.permute.xlu0 %1947
      %1949 = vrot.lane.b32.xlu0 %v1907, 24
      %v1950 = vpop.permute.xlu0 %1949
      %1951 = vrot.lane.b32.xlu0 %v1908, 24
      %v1952 = vpop.permute.xlu0 %1951
      %v1957 = vsel %vm271, %v669, %v1914
      %v1958 = vsel %vm271, %v670, %v1916
      %v1959 = vsel %vm271, %v671, %v1918
      %v1960 = vsel %vm271, %v672, %v1920
      %vm1961 = vcmask 130048
      %v1962 = vsel %vm1961, %v1957, %v1930
      %v1963 = vsel %vm1961, %v1958, %v1932
      %v1964 = vsel %vm1961, %v1959, %v1934
      %v1965 = vsel %vm1961, %v1960, %v1936
      %vm1966 = vcmask 195584
      %v1967 = vsel %vm1966, %v1962, %v1946
      %v1968 = vsel %vm1966, %v1963, %v1948
      %v1969 = vsel %vm1966, %v1964, %v1950
      %v1970 = vsel %vm1966, %v1965, %v1952
      %vm1971 = vcmask 261120
      %v1972 = vsel %vm1971, %v1967, 0.0
      %v1973 = vsel %vm1971, %v1968, 0.0
      %v1974 = vsel %vm1971, %v1969, 0.0
      %v1975 = vsel %vm1971, %v1970, 0.0
      %v1976 = vld [vmem:[%s2] sm:$0x1]
      %v1978 = vlaneseq
      %v1979 = vshrl.u32 %v1978, 7
      %v1980 = vsub.s32 0, %v1979
      %v1981 = vrot.slane %v1976, %v1980
      %v1983 = vadd.f32 %v1972, %v1981
      %v1984 = vadd.f32 %v1973, %v1981
      %v1985 = vadd.f32 %v1974, %v1981
      %v1986 = vadd.f32 %v1975, %v1981
      %v1987 = vmul.f32 %v1983, 0.5
      %v1988 = vmul.f32 %v1984, 0.5
      %v1989 = vmul.f32 %v1985, 0.5
      %v1990 = vmul.f32 %v1986, 0.5
      %v1991 = vmul.f32 %v1983, 0.044715
      %v1992 = vmul.f32 %v1984, 0.044715
      %v1993 = vmul.f32 %v1985, 0.044715
      %v1994 = vmul.f32 %v1986, 0.044715
      %v1995 = vmul.f32 %v1991, %v1983
      %v1996 = vmul.f32 %v1992, %v1984
      %v1997 = vmul.f32 %v1993, %v1985
      %v1998 = vmul.f32 %v1994, %v1986
      %v1999 = vmul.f32 %v1995, %v1983
      %v2000 = vmul.f32 %v1996, %v1984
      %v2001 = vmul.f32 %v1997, %v1985
      %v2002 = vmul.f32 %v1998, %v1986
      %v2003 = vadd.f32 %v1983, %v1999
      %v2004 = vadd.f32 %v1984, %v2000
      %v2005 = vadd.f32 %v1985, %v2001
      %v2006 = vadd.f32 %v1986, %v2002
      %v2007 = vmul.f32 %v2003, 0.7978846
      %v2008 = vmul.f32 %v2004, 0.7978846
      %v2009 = vmul.f32 %v2005, 0.7978846
      %v2010 = vmul.f32 %v2006, 0.7978846
      %v2011 = vtanh.pop %v2007
      %v2012 = vtanh.pop %v2008
      %v2013 = vtanh.pop %v2009
      %v2014 = vtanh.pop %v2010
      %v2015 = vadd.f32 %v2011, 1.0
      %v2016 = vadd.f32 %v2012, 1.0
      %v2017 = vadd.f32 %v2013, 1.0
      %v2018 = vadd.f32 %v2014, 1.0
      %v2019 = vmul.f32 %v1987, %v2015
      %v2020 = vmul.f32 %v1988, %v2016
      %v2021 = vmul.f32 %v1989, %v2017
      %v2022 = vmul.f32 %v1990, %v2018
      %v2023 = vadd.f32 %v225, %v2019
      %v2024 = vadd.f32 %v226, %v2020
      %v2025 = vadd.f32 %v227, %v2021
      %v2026 = vadd.f32 %v228, %v2022
      %v2027 = vlaneseq
      %v2028 = vand.u32 %v2027, 127
      %vm2029 = vcmp.lt.s32.totalorder %v2028, 32
      %v2030 = vsel %vm2029, 1, 0
      %v2031 = vcvt.s32.f32 %v2030
      %v2032 = vld [vmem:[%s3] sm:$0x1]
      %v2033 = vld [vmem:[%s4] sm:$0x1]
      %v2034 = vmul.f32 %v2023, %v2031
      %v2035 = vmul.f32 %v2024, %v2031
      %v2036 = vmul.f32 %v2025, %v2031
      %v2037 = vmul.f32 %v2026, %v2031
      %2038 = vadd.xlane.f32.xlu0 %v2034
      %v2039 = vpop.xlane.xlu0 %2038
      %2040 = vadd.xlane.f32.xlu0 %v2035
      %v2041 = vpop.xlane.xlu0 %2040
      %2042 = vadd.xlane.f32.xlu0 %v2036
      %v2043 = vpop.xlane.xlu0 %2042
      %v2044 = vsel %vm263, %v2037, 0.0
      %2045 = vadd.xlane.f32.xlu0 %v2044
      %v2046 = vpop.xlane.xlu0 %2045
      %v2047 = vmul.f32 %v2039, 0.03125
      %v2048 = vmul.f32 %v2041, 0.03125
      %v2049 = vmul.f32 %v2043, 0.03125
      %v2050 = vmul.f32 %v2046, 0.03125
      %v2051 = vsub.f32 %v2023, %v2047
      %v2052 = vsub.f32 %v2024, %v2048
      %v2053 = vsub.f32 %v2025, %v2049
      %v2054 = vsub.f32 %v2026, %v2050
      %v2055 = vmul.f32 %v2051, %v2031
      %v2056 = vmul.f32 %v2052, %v2031
      %v2057 = vmul.f32 %v2053, %v2031
      %v2058 = vmul.f32 %v2054, %v2031
      %v2059 = vmul.f32 %v2055, %v2055
      %v2060 = vmul.f32 %v2056, %v2056
      %v2061 = vmul.f32 %v2057, %v2057
      %v2062 = vmul.f32 %v2058, %v2058
      %2063 = vadd.xlane.f32.xlu0 %v2059
      %v2064 = vpop.xlane.xlu0 %2063
      %2065 = vadd.xlane.f32.xlu0 %v2060
      %v2066 = vpop.xlane.xlu0 %2065
      %2067 = vadd.xlane.f32.xlu0 %v2061
      %v2068 = vpop.xlane.xlu0 %2067
      %v2069 = vsel %vm263, %v2062, 0.0
      %2070 = vadd.xlane.f32.xlu0 %v2069
      %v2071 = vpop.xlane.xlu0 %2070
      %v2072 = vmul.f32 %v2064, 0.03125
      %v2073 = vmul.f32 %v2066, 0.03125
      %v2074 = vmul.f32 %v2068, 0.03125
      %v2075 = vmul.f32 %v2071, 0.03125
      %v2076 = vadd.f32 %v2072, 1e-05
      %v2077 = vadd.f32 %v2073, 1e-05
      %v2078 = vadd.f32 %v2074, 1e-05
      %v2079 = vadd.f32 %v2075, 1e-05
      %v2080 = vrsqrt.pop %v2076
      %v2081 = vrsqrt.pop %v2077
      %v2082 = vrsqrt.pop %v2078
      %v2083 = vrsqrt.pop %v2079
      %v2084 = vmul.f32 %v2055, %v2080
      %v2085 = vmul.f32 %v2056, %v2081
      %v2086 = vmul.f32 %v2057, %v2082
      %v2087 = vmul.f32 %v2058, %v2083
      %v2089 = vlaneseq
      %v2090 = vshrl.u32 %v2089, 7
      %v2091 = vsub.s32 0, %v2090
      %v2092 = vrot.slane %v2032, %v2091
      %v2094 = vmul.f32 %v2084, %v2092
      %v2095 = vmul.f32 %v2085, %v2092
      %v2096 = vmul.f32 %v2086, %v2092
      %v2097 = vmul.f32 %v2087, %v2092
      %v2099 = vlaneseq
      %v2100 = vshrl.u32 %v2099, 7
      %v2101 = vsub.s32 0, %v2100
      %v2102 = vrot.slane %v2033, %v2101
      %v2104 = vadd.f32 %v2094, %v2102
      %v2105 = vadd.f32 %v2095, %v2102
      %v2106 = vadd.f32 %v2096, %v2102
      %v2107 = vadd.f32 %v2097, %v2102
      %2108 = vst [vmem:[%s224] sm:$0xff] %v2104
      %2109 = vst [vmem:[%s224 + $0x8] sm:$0xff] %v2105
      %2110 = vst [vmem:[%s224 + $0x10] sm:$0xff] %v2106
      %2111 = vst [vmem:[%s224 + $0x18] sm:$0x7f] %v2107
      %p2112 = scmp.lt.s32.totalorder %s16, 1
      %s2113 = scalar_select %p2112, %s16, 1
      %s2114 = smul.addr %s2113, 4
      %s2115 = smul.addr %s2114, 8
      %s2116 = scalar_lea.vmem %s5, %s2115
      // Predicated region
      $region41: #{_lambda_.10} parent=39 // pred_check
        %p2117 = pneg %p144
      $region42: #{_lambda_.10} parent=39 // pred_check_branch
        %2119 = sbr.rel (%p2117) target = $region44
      $region43: #{_lambda_.10} parent=39 // pred_region
        _
      $region44: #{_lambda_.10} parent=39 // pred_fallthru
        _
    $region40: #{_lambda_.10} parent=5 // pred_fallthru
      _
    %p2120 = scmp.le.s32.totalorder 2, %s11
    // Predicated region
    $region45: #{_lambda_.10} parent=5 // pred_check
      %p2121 = pneg %p2120
    $region46: #{_lambda_.10} parent=5 // pred_check_branch
      %2123 = sbr.rel (%p2121) target = $region48
    $region47: #{_lambda_.10} parent=5 // pred_region
      %s2124 = ssub.s32 %s11, 2
      // Predicated region
      $region49: #{_lambda_.10} parent=47 // pred_check
        %p2125 = pneg %p150
      $region50: #{_lambda_.10} parent=47 // pred_check_branch
        %2127 = sbr.rel (%p2125) target = $region52
      $region51: #{_lambda_.10} parent=47 // pred_region
        %p2128 = scmp.lt.s32.totalorder %s17, 1
        %s2129 = scalar_select %p2128, %s17, 1
        %s2130 = smul.addr %s2129, 4
        %s2131 = smul.addr %s2130, 8
        %s2132 = scalar_lea.vmem %s5, %s2131
      $region52: #{_lambda_.10} parent=47 // pred_fallthru
        _
    $region48: #{_lambda_.10} parent=5 // pred_fallthru
      _
  $region6: #{_lambda_.10} parent=0 // loop_footer
    %s15 = sadd.s32 1, %s11
  $region7: #{_lambda_.10} parent=0 // loop_footer_branch
    %10 = sbr.rel target = $region3
  $region8: #{_lambda_.10} parent=0 // loop_exit
    _

// kernel: _lambda_.13
$region0: #{_lambda_.13}
  #allocation0 [shape = 'u32[]', space=smem, size = 0x4, offset = 0x4, fixed_abs, tag = 'smem constant byte address 0x4 - core index']
  #allocation1 [shape = 'u32[144,128]{1,0:T(1,128)}', space=vmem, size = 0x12000, scoped, tag = 'internal scratch']
  %s0 = inlined_call_operand.vmem [shape: f32[62,128], index: 0, kind: input, shape index: {}]
  %s1 = inlined_call_operand.vmem [shape: f32[62,128], index: 1, kind: output, shape index: {}]
  %s2 = sld [smem:[#allocation0]]
  $region14: #{_lambda_.13} parent=0
    _
  %s4 = ssub.s32 1, %s2
  %s5 = scalar_select 0, %s4, %s2
  // Predicated region
  $region2: #{_lambda_.13} parent=0 // pred_check
    _
  $region3: #{_lambda_.13} parent=0 // pred_check_branch
    %7 = sbr.rel (0) target = $region5
  $region4: #{_lambda_.13} parent=0 // pred_region
    _
  $region5: #{_lambda_.13} parent=0 // pred_fallthru
    _
  %v8 = vld [vmem:[%s0] sm:$0xff]
  %v9 = vld [vmem:[%s0 + $0x8] sm:$0xff]
  %v10 = vld [vmem:[%s0 + $0x10] sm:$0xff]
  %v11 = vld [vmem:[%s0 + $0x18] sm:$0xff]
  %v12 = vld [vmem:[%s0 + $0x20] sm:$0xff]
  %v13 = vld [vmem:[%s0 + $0x28] sm:$0xff]
  %v14 = vld [vmem:[%s0 + $0x30] sm:$0xff]
  %v15 = vld [vmem:[%s0 + $0x38] sm:$0x3f]
  %v16 = vlaneseq
  %v17 = vand.u32 %v16, 127
  %vm18 = vcmp.lt.s32.totalorder %v17, 32
  %v19 = vsel %vm18, 1, 0
  %v20 = vcvt.s32.f32 %v19
  %v21 = vmul.f32 %v8, %v20
  %v22 = vmul.f32 %v9, %v20
  %v23 = vmul.f32 %v10, %v20
  %v24 = vmul.f32 %v11, %v20
  %v25 = vmul.f32 %v12, %v20
  %v26 = vmul.f32 %v13, %v20
  %v27 = vmul.f32 %v14, %v20
  %v28 = vmul.f32 %v15, %v20
  %v29 = vadd.f32 %v21, %v22
  %v30 = vadd.f32 %v29, %v23
  %v31 = vadd.f32 %v30, %v24
  %v32 = vadd.f32 %v31, %v25
  %v33 = vadd.f32 %v32, %v26
  %v34 = vadd.f32 %v33, %v27
  %vm35 = vcmask 1045504
  %v36 = vsel %vm35, %v28, 0.0
  %v37 = vadd.f32 %v34, %v36
  %38 = vadd.xlane.f32.xlu0 %v37
  %v39 = vpop.xlane.xlu0 %38
  %v40 = vrot.slane %v39, 4
  %v41 = vadd.f32 %v39, %v40
  %v42 = vrot.slane %v41, 2
  %v43 = vadd.f32 %v41, %v42
  %v44 = vrot.slane %v43, 1
  %v45 = vadd.f32 %v43, %v44
  %s46 = vtos %v45
  %v47 = vstv %s46
  %v48 = vmul.f32 %v47, 0.00050403224
  %v49 = vsub.f32 %v8, %v48
  %v50 = vsub.f32 %v9, %v48
  %v51 = vsub.f32 %v10, %v48
  %v52 = vsub.f32 %v11, %v48
  %v53 = vsub.f32 %v12, %v48
  %v54 = vsub.f32 %v13, %v48
  %v55 = vsub.f32 %v14, %v48
  %v56 = vsub.f32 %v15, %v48
  %v57 = vmul.f32 %v49, %v20
  %v58 = vmul.f32 %v50, %v20
  %v59 = vmul.f32 %v51, %v20
  %v60 = vmul.f32 %v52, %v20
  %v61 = vmul.f32 %v53, %v20
  %v62 = vmul.f32 %v54, %v20
  %v63 = vmul.f32 %v55, %v20
  %v64 = vmul.f32 %v56, %v20
  %v65 = vmul.f32 %v57, %v57
  %v66 = vmul.f32 %v58, %v58
  %v67 = vmul.f32 %v59, %v59
  %v68 = vmul.f32 %v60, %v60
  %v69 = vmul.f32 %v61, %v61
  %v70 = vmul.f32 %v62, %v62
  %v71 = vmul.f32 %v63, %v63
  %v72 = vmul.f32 %v64, %v64
  %v73 = vadd.f32 %v65, %v66
  %v74 = vadd.f32 %v73, %v67
  %v75 = vadd.f32 %v74, %v68
  %v76 = vadd.f32 %v75, %v69
  %v77 = vadd.f32 %v76, %v70
  %v78 = vadd.f32 %v77, %v71
  %v79 = vsel %vm35, %v72, 0.0
  %v80 = vadd.f32 %v78, %v79
  %81 = vadd.xlane.f32.xlu0 %v80
  %v82 = vpop.xlane.xlu0 %81
  %v83 = vrot.slane %v82, 4
  %v84 = vadd.f32 %v82, %v83
  %v85 = vrot.slane %v84, 2
  %v86 = vadd.f32 %v84, %v85
  %v87 = vrot.slane %v86, 1
  %v88 = vadd.f32 %v86, %v87
  %s89 = vtos %v88
  %v90 = vstv %s89
  %v91 = vmul.f32 %v90, 0.00050403224
  %v92 = vadd.f32 %v91, 1e-05
  %v93 = vrsqrt.pop %v92
  %v94 = vmul.f32 %v57, %v93
  %v95 = vmul.f32 %v58, %v93
  %v96 = vmul.f32 %v59, %v93
  %v97 = vmul.f32 %v60, %v93
  %v98 = vmul.f32 %v61, %v93
  %v99 = vmul.f32 %v62, %v93
  %v100 = vmul.f32 %v63, %v93
  %v101 = vmul.f32 %v64, %v93
  %102 = vst [vmem:[%s1] sm:$0xff] %v94
  %103 = vst [vmem:[%s1 + $0x8] sm:$0xff] %v95
  %104 = vst [vmem:[%s1 + $0x10] sm:$0xff] %v96
  %105 = vst [vmem:[%s1 + $0x18] sm:$0xff] %v97
  %106 = vst [vmem:[%s1 + $0x20] sm:$0xff] %v98
  %107 = vst [vmem:[%s1 + $0x28] sm:$0xff] %v99
  %108 = vst [vmem:[%s1 + $0x30] sm:$0xff] %v100
  %109 = vst [vmem:[%s1 + $0x38] sm:$0x3f] %v101
  // Predicated region
  $region6: #{_lambda_.13} parent=0 // pred_check
    _
  $region7: #{_lambda_.13} parent=0 // pred_check_branch
    %111 = sbr.rel (0) target = $region9
  $region8: #{_lambda_.13} parent=0 // pred_region
    _
  $region9: #{_lambda_.13} parent=0 // pred_fallthru
    _
  // Predicated region
  $region10: #{_lambda_.13} parent=0 // pred_check
    _
  $region11: #{_lambda_.13} parent=0 // pred_check_branch
    %113 = sbr.rel (0) target = $region13
  $region12: #{_lambda_.13} parent=0 // pred_region
    _
  $region13: #{_lambda_.13} parent=0 // pred_fallthru
    _

// kernel: _lambda_.11
$region0: #{_lambda_.11}
  #allocation0 [shape = 'u32[]', space=smem, size = 0x4, offset = 0x4, fixed_abs, tag = 'smem constant byte address 0x4 - core index']
  #allocation1 [shape = 'u32[144,128]{1,0:T(1,128)}', space=vmem, size = 0x12000, scoped, tag = 'internal scratch']
  %s0 = inlined_call_operand.vmem [shape: f32[2,31,128], index: 0, kind: input, shape index: {}]
  %s1 = inlined_call_operand.vmem [shape: bf16[128,384], index: 1, kind: input, shape index: {}]
  %s2 = inlined_call_operand.vmem [shape: f32[1,384], index: 2, kind: input, shape index: {}]
  %s3 = inlined_call_operand.vmem [shape: bf16[128,128], index: 3, kind: input, shape index: {}]
  %s4 = inlined_call_operand.vmem [shape: f32[1,128], index: 4, kind: input, shape index: {}, may-alias: {4,6,8,10,12}]
  %s5 = inlined_call_operand.vmem [shape: f32[1,128], index: 5, kind: input, shape index: {}, may-alias: {5,11}]
  %s6 = inlined_call_operand.vmem [shape: f32[1,128], index: 6, kind: input, shape index: {}, may-alias: {4,6,8,10,12}]
  %s7 = inlined_call_operand.vmem [shape: bf16[128,128], index: 7, kind: input, shape index: {}]
  %s8 = inlined_call_operand.vmem [shape: f32[1,128], index: 8, kind: input, shape index: {}, may-alias: {4,6,8,10,12}]
  %s9 = inlined_call_operand.vmem [shape: bf16[128,128], index: 9, kind: input, shape index: {}]
  %s10 = inlined_call_operand.vmem [shape: f32[1,128], index: 10, kind: input, shape index: {}, may-alias: {4,6,8,10,12}]
  %s11 = inlined_call_operand.vmem [shape: f32[1,128], index: 11, kind: input, shape index: {}, may-alias: {5,11}]
  %s12 = inlined_call_operand.vmem [shape: f32[1,128], index: 12, kind: input, shape index: {}, may-alias: {4,6,8,10,12}]
  %s13 = inlined_call_operand.vmem [shape: f32[2,31,128], index: 13, kind: output, shape index: {}]
  %s14 = sld [smem:[#allocation0]]
  $region85: #{_lambda_.11} parent=0
    _
  %s16 = ssub.s32 1, %s14
  %s17 = scalar_select 0, %s16, %s14
  loop: start=0, step=1, limit=4
  $region2: #{_lambda_.11} parent=0 // loop_pre_header
    _
  $region3: #{_lambda_.11} parent=0 // loop_header
    %s19 = sphi 0, %s23
    %p20 = scmp.ge.s32.totalorder %s19, 4
    %s29 = sphi 0, %s31
    %s32 = sphi 0, %s29
    %s33 = sphi 0, %s32
    %s49 = sphi 0, %s33
    %s53 = sphi 0, %s53
    %s55 = sphi 0, %s53
    %s56 = sphi 0, %s55
    %s70 = sphi 0, %s56
    %s74 = sphi 0, %s74
    %s76 = sphi 0, %s74
    %s77 = sphi 0, %s76
    %s91 = sphi 0, %s77
    %s95 = sphi 0, %s95
    %s97 = sphi 0, %s95
    %s98 = sphi 0, %s97
    %s112 = sphi 0, %s98
    %s116 = sphi 0, %s116
    %s118 = sphi 0, %s116
    %s119 = sphi 0, %s118
    %s133 = sphi 0, %s119
    %s137 = sphi 0, %s137
    %s139 = sphi 0, %s137
    %s140 = sphi 0, %s139
    %s154 = sphi 0, %s140
    %s158 = sphi 0, %s158
    %s160 = sphi 0, %s158
    %s161 = sphi 0, %s160
    %s175 = sphi 0, %s161
    %s179 = sphi 0, %s179
    %s181 = sphi 0, %s179
    %s182 = sphi 0, %s181
    %s196 = sphi 0, %s182
    %s200 = sphi 0, %s200
    %s202 = sphi 0, %s200
    %s203 = sphi 0, %s202
    %s217 = sphi 0, %s203
    %s221 = sphi 0, %s221
    %s223 = sphi 0, %s221
    %s224 = sphi 0, %s223
    %s238 = sphi 0, %s224
    %s242 = sphi 0, %s242
    %s244 = sphi 0, %s242
    %s245 = sphi 0, %s244
    %s259 = sphi 0, %s245
    %s263 = sphi 0, %s263
    %s265 = sphi 0, %s263
    %s266 = sphi 0, %s265
    %s280 = sphi 0, %s266
    %s284 = sphi 0, %s284
    %s286 = sphi 0, %s284
    %s287 = sphi 0, %s286
    %s301 = sphi 0, %s287
    %s307 = sphi 0, %s309
    %s310 = sphi 0, %s307
    %s311 = sphi 0, %s310
    %s327 = sphi 0, %s311
  $region4: #{_lambda_.11} parent=0 // loop_header_branch
    %22 = sbr.rel (%p20) target = $region8
  $region5: #{_lambda_.11} parent=0 // loop_body
    %s24 = ssub.s32 %s19, 1
    %s25 = ssub.s32 %s19, 2
    %s26 = sadd.s32 %s19, 1
    %s27 = ssub.s32 %s19, %s26
    %p28 = scmp.eq.s32.totalorder %s27, 0
    %s30 = sadd.s32 %s29, 1
    %s31 = scalar_select %p28, %s29, %s30
    %p34 = pneg %p28
    %p35 = scmp.eq.s32.totalorder %s19, 1
    %p36 = por %p34, %p35
    %p37 = scmp.ne.s32.totalorder %s29, %s32
    %p38 = scmp.eq.s32.totalorder %s19, 0
    %p39 = por %p37, %p38
    %p40 = scmp.ne.s32.totalorder %s29, %s32
    %p41 = scmp.eq.s32.totalorder %s24, 1
    %p42 = por %p40, %p41
    %p43 = scmp.ne.s32.totalorder %s32, %s33
    %p44 = scmp.eq.s32.totalorder %s24, 0
    %p45 = por %p43, %p44
    %p46 = scmp.ne.s32.totalorder %s32, %s33
    %p47 = scmp.eq.s32.totalorder %s25, 1
    %p48 = por %p46, %p47
    %p50 = scmp.ne.s32.totalorder %s33, %s49
    %p51 = scmp.eq.s32.totalorder %s25, 0
    %p52 = por %p50, %p51
    %s54 = sadd.s32 %s53, 1
    %p57 = scmp.eq.s32.totalorder %s19, 1
    %p58 = scmp.ne.s32.totalorder %s53, %s55
    %p59 = scmp.eq.s32.totalorder %s19, 0
    %p60 = por %p58, %p59
    %p61 = scmp.ne.s32.totalorder %s53, %s55
    %p62 = scmp.eq.s32.totalorder %s24, 1
    %p63 = por %p61, %p62
    %p64 = scmp.ne.s32.totalorder %s55, %s56
    %p65 = scmp.eq.s32.totalorder %s24, 0
    %p66 = por %p64, %p65
    %p67 = scmp.ne.s32.totalorder %s55, %s56
    %p68 = scmp.eq.s32.totalorder %s25, 1
    %p69 = por %p67, %p68
    %p71 = scmp.ne.s32.totalorder %s56, %s70
    %p72 = scmp.eq.s32.totalorder %s25, 0
    %p73 = por %p71, %p72
    %s75 = sadd.s32 %s74, 1
    %p78 = scmp.eq.s32.totalorder %s19, 1
    %p79 = scmp.ne.s32.totalorder %s74, %s76
    %p80 = scmp.eq.s32.totalorder %s19, 0
    %p81 = por %p79, %p80
    %p82 = scmp.ne.s32.totalorder %s74, %s76
    %p83 = scmp.eq.s32.totalorder %s24, 1
    %p84 = por %p82, %p83
    %p85 = scmp.ne.s32.totalorder %s76, %s77
    %p86 = scmp.eq.s32.totalorder %s24, 0
    %p87 = por %p85, %p86
    %p88 = scmp.ne.s32.totalorder %s76, %s77
    %p89 = scmp.eq.s32.totalorder %s25, 1
    %p90 = por %p88, %p89
    %p92 = scmp.ne.s32.totalorder %s77, %s91
    %p93 = scmp.eq.s32.totalorder %s25, 0
    %p94 = por %p92, %p93
    %s96 = sadd.s32 %s95, 1
    %p99 = scmp.eq.s32.totalorder %s19, 1
    %p100 = scmp.ne.s32.totalorder %s95, %s97
    %p101 = scmp.eq.s32.totalorder %s19, 0
    %p102 = por %p100, %p101
    %p103 = scmp.ne.s32.totalorder %s95, %s97
    %p104 = scmp.eq.s32.totalorder %s24, 1
    %p105 = por %p103, %p104
    %p106 = scmp.ne.s32.totalorder %s97, %s98
    %p107 = scmp.eq.s32.totalorder %s24, 0
    %p108 = por %p106, %p107
    %p109 = scmp.ne.s32.totalorder %s97, %s98
    %p110 = scmp.eq.s32.totalorder %s25, 1
    %p111 = por %p109, %p110
    %p113 = scmp.ne.s32.totalorder %s98, %s112
    %p114 = scmp.eq.s32.totalorder %s25, 0
    %p115 = por %p113, %p114
    %s117 = sadd.s32 %s116, 1
    %p120 = scmp.eq.s32.totalorder %s19, 1
    %p121 = scmp.ne.s32.totalorder %s116, %s118
    %p122 = scmp.eq.s32.totalorder %s19, 0
    %p123 = por %p121, %p122
    %p124 = scmp.ne.s32.totalorder %s116, %s118
    %p125 = scmp.eq.s32.totalorder %s24, 1
    %p126 = por %p124, %p125
    %p127 = scmp.ne.s32.totalorder %s118, %s119
    %p128 = scmp.eq.s32.totalorder %s24, 0
    %p129 = por %p127, %p128
    %p130 = scmp.ne.s32.totalorder %s118, %s119
    %p131 = scmp.eq.s32.totalorder %s25, 1
    %p132 = por %p130, %p131
    %p134 = scmp.ne.s32.totalorder %s119, %s133
    %p135 = scmp.eq.s32.totalorder %s25, 0
    %p136 = por %p134, %p135
    %s138 = sadd.s32 %s137, 1
    %p141 = scmp.eq.s32.totalorder %s19, 1
    %p142 = scmp.ne.s32.totalorder %s137, %s139
    %p143 = scmp.eq.s32.totalorder %s19, 0
    %p144 = por %p142, %p143
    %p145 = scmp.ne.s32.totalorder %s137, %s139
    %p146 = scmp.eq.s32.totalorder %s24, 1
    %p147 = por %p145, %p146
    %p148 = scmp.ne.s32.totalorder %s139, %s140
    %p149 = scmp.eq.s32.totalorder %s24, 0
    %p150 = por %p148, %p149
    %p151 = scmp.ne.s32.totalorder %s139, %s140
    %p152 = scmp.eq.s32.totalorder %s25, 1
    %p153 = por %p151, %p152
    %p155 = scmp.ne.s32.totalorder %s140, %s154
    %p156 = scmp.eq.s32.totalorder %s25, 0
    %p157 = por %p155, %p156
    %s159 = sadd.s32 %s158, 1
    %p162 = scmp.eq.s32.totalorder %s19, 1
    %p163 = scmp.ne.s32.totalorder %s158, %s160
    %p164 = scmp.eq.s32.totalorder %s19, 0
    %p165 = por %p163, %p164
    %p166 = scmp.ne.s32.totalorder %s158, %s160
    %p167 = scmp.eq.s32.totalorder %s24, 1
    %p168 = por %p166, %p167
    %p169 = scmp.ne.s32.totalorder %s160, %s161
    %p170 = scmp.eq.s32.totalorder %s24, 0
    %p171 = por %p169, %p170
    %p172 = scmp.ne.s32.totalorder %s160, %s161
    %p173 = scmp.eq.s32.totalorder %s25, 1
    %p174 = por %p172, %p173
    %p176 = scmp.ne.s32.totalorder %s161, %s175
    %p177 = scmp.eq.s32.totalorder %s25, 0
    %p178 = por %p176, %p177
    %s180 = sadd.s32 %s179, 1
    %p183 = scmp.eq.s32.totalorder %s19, 1
    %p184 = scmp.ne.s32.totalorder %s179, %s181
    %p185 = scmp.eq.s32.totalorder %s19, 0
    %p186 = por %p184, %p185
    %p187 = scmp.ne.s32.totalorder %s179, %s181
    %p188 = scmp.eq.s32.totalorder %s24, 1
    %p189 = por %p187, %p188
    %p190 = scmp.ne.s32.totalorder %s181, %s182
    %p191 = scmp.eq.s32.totalorder %s24, 0
    %p192 = por %p190, %p191
    %p193 = scmp.ne.s32.totalorder %s181, %s182
    %p194 = scmp.eq.s32.totalorder %s25, 1
    %p195 = por %p193, %p194
    %p197 = scmp.ne.s32.totalorder %s182, %s196
    %p198 = scmp.eq.s32.totalorder %s25, 0
    %p199 = por %p197, %p198
    %s201 = sadd.s32 %s200, 1
    %p204 = scmp.eq.s32.totalorder %s19, 1
    %p205 = scmp.ne.s32.totalorder %s200, %s202
    %p206 = scmp.eq.s32.totalorder %s19, 0
    %p207 = por %p205, %p206
    %p208 = scmp.ne.s32.totalorder %s200, %s202
    %p209 = scmp.eq.s32.totalorder %s24, 1
    %p210 = por %p208, %p209
    %p211 = scmp.ne.s32.totalorder %s202, %s203
    %p212 = scmp.eq.s32.totalorder %s24, 0
    %p213 = por %p211, %p212
    %p214 = scmp.ne.s32.totalorder %s202, %s203
    %p215 = scmp.eq.s32.totalorder %s25, 1
    %p216 = por %p214, %p215
    %p218 = scmp.ne.s32.totalorder %s203, %s217
    %p219 = scmp.eq.s32.totalorder %s25, 0
    %p220 = por %p218, %p219
    %s222 = sadd.s32 %s221, 1
    %p225 = scmp.eq.s32.totalorder %s19, 1
    %p226 = scmp.ne.s32.totalorder %s221, %s223
    %p227 = scmp.eq.s32.totalorder %s19, 0
    %p228 = por %p226, %p227
    %p229 = scmp.ne.s32.totalorder %s221, %s223
    %p230 = scmp.eq.s32.totalorder %s24, 1
    %p231 = por %p229, %p230
    %p232 = scmp.ne.s32.totalorder %s223, %s224
    %p233 = scmp.eq.s32.totalorder %s24, 0
    %p234 = por %p232, %p233
    %p235 = scmp.ne.s32.totalorder %s223, %s224
    %p236 = scmp.eq.s32.totalorder %s25, 1
    %p237 = por %p235, %p236
    %p239 = scmp.ne.s32.totalorder %s224, %s238
    %p240 = scmp.eq.s32.totalorder %s25, 0
    %p241 = por %p239, %p240
    %s243 = sadd.s32 %s242, 1
    %p246 = scmp.eq.s32.totalorder %s19, 1
    %p247 = scmp.ne.s32.totalorder %s242, %s244
    %p248 = scmp.eq.s32.totalorder %s19, 0
    %p249 = por %p247, %p248
    %p250 = scmp.ne.s32.totalorder %s242, %s244
    %p251 = scmp.eq.s32.totalorder %s24, 1
    %p252 = por %p250, %p251
    %p253 = scmp.ne.s32.totalorder %s244, %s245
    %p254 = scmp.eq.s32.totalorder %s24, 0
    %p255 = por %p253, %p254
    %p256 = scmp.ne.s32.totalorder %s244, %s245
    %p257 = scmp.eq.s32.totalorder %s25, 1
    %p258 = por %p256, %p257
    %p260 = scmp.ne.s32.totalorder %s245, %s259
    %p261 = scmp.eq.s32.totalorder %s25, 0
    %p262 = por %p260, %p261
    %s264 = sadd.s32 %s263, 1
    %p267 = scmp.eq.s32.totalorder %s19, 1
    %p268 = scmp.ne.s32.totalorder %s263, %s265
    %p269 = scmp.eq.s32.totalorder %s19, 0
    %p270 = por %p268, %p269
    %p271 = scmp.ne.s32.totalorder %s263, %s265
    %p272 = scmp.eq.s32.totalorder %s24, 1
    %p273 = por %p271, %p272
    %p274 = scmp.ne.s32.totalorder %s265, %s266
    %p275 = scmp.eq.s32.totalorder %s24, 0
    %p276 = por %p274, %p275
    %p277 = scmp.ne.s32.totalorder %s265, %s266
    %p278 = scmp.eq.s32.totalorder %s25, 1
    %p279 = por %p277, %p278
    %p281 = scmp.ne.s32.totalorder %s266, %s280
    %p282 = scmp.eq.s32.totalorder %s25, 0
    %p283 = por %p281, %p282
    %s285 = sadd.s32 %s284, 1
    %p288 = scmp.eq.s32.totalorder %s19, 1
    %p289 = scmp.ne.s32.totalorder %s284, %s286
    %p290 = scmp.eq.s32.totalorder %s19, 0
    %p291 = por %p289, %p290
    %p292 = scmp.ne.s32.totalorder %s284, %s286
    %p293 = scmp.eq.s32.totalorder %s24, 1
    %p294 = por %p292, %p293
    %p295 = scmp.ne.s32.totalorder %s286, %s287
    %p296 = scmp.eq.s32.totalorder %s24, 0
    %p297 = por %p295, %p296
    %p298 = scmp.ne.s32.totalorder %s286, %s287
    %p299 = scmp.eq.s32.totalorder %s25, 1
    %p300 = por %p298, %p299
    %p302 = scmp.ne.s32.totalorder %s287, %s301
    %p303 = scmp.eq.s32.totalorder %s25, 0
    %p304 = por %p302, %p303
    %s305 = ssub.s32 %s19, %s26
    %p306 = scmp.eq.s32.totalorder %s305, 0
    %s308 = sadd.s32 %s307, 1
    %s309 = scalar_select %p306, %s307, %s308
    %p312 = pneg %p306
    %p313 = scmp.eq.s32.totalorder %s19, 1
    %p314 = por %p312, %p313
    %p315 = scmp.ne.s32.totalorder %s307, %s310
    %p316 = scmp.eq.s32.totalorder %s19, 0
    %p317 = por %p315, %p316
    %p318 = scmp.ne.s32.totalorder %s307, %s310
    %p319 = scmp.eq.s32.totalorder %s24, 1
    %p320 = por %p318, %p319
    %p321 = scmp.ne.s32.totalorder %s310, %s311
    %p322 = scmp.eq.s32.totalorder %s24, 0
    %p323 = por %p321, %p322
    %p324 = scmp.ne.s32.totalorder %s310, %s311
    %p325 = scmp.eq.s32.totalorder %s25, 1
    %p326 = por %p324, %p325
    %p328 = scmp.ne.s32.totalorder %s311, %s327
    %p329 = scmp.eq.s32.totalorder %s25, 0
    %p330 = por %p328, %p329
    %p331 = scmp.le.s32.totalorder 1, %s19
    %p332 = scmp.lt.s32.totalorder %s19, 3
    %p333 = pnand %p331, %p332
    %p334 = pneg %p333
    // Predicated region
    $region9: #{_lambda_.11} parent=5 // pred_check
      _
    $region10: #{_lambda_.11} parent=5 // pred_check_branch
      %336 = sbr.rel (%p333) target = $region12
    $region11: #{_lambda_.11} parent=5 // pred_region
      %s337 = ssub.s32 %s19, 1
      // Predicated region
      $region13: #{_lambda_.11} parent=11 // pred_check
        %p338 = pneg %p66
      $region14: #{_lambda_.11} parent=11 // pred_check_branch
        %340 = sbr.rel (%p338) target = $region16
      $region15: #{_lambda_.11} parent=11 // pred_region
        _
      $region16: #{_lambda_.11} parent=11 // pred_fallthru
        _
      // Predicated region
      $region17: #{_lambda_.11} parent=11 // pred_check
        %p341 = pneg %p87
      $region18: #{_lambda_.11} parent=11 // pred_check_branch
        %343 = sbr.rel (%p341) target = $region20
      $region19: #{_lambda_.11} parent=11 // pred_region
        _
      $region20: #{_lambda_.11} parent=11 // pred_fallthru
        _
      // Predicated region
      $region21: #{_lambda_.11} parent=11 // pred_check
        %p344 = pneg %p108
      $region22: #{_lambda_.11} parent=11 // pred_check_branch
        %346 = sbr.rel (%p344) target = $region24
      $region23: #{_lambda_.11} parent=11 // pred_region
        _
      $region24: #{_lambda_.11} parent=11 // pred_fallthru
        _
      // Predicated region
      $region25: #{_lambda_.11} parent=11 // pred_check
        %p347 = pneg %p129
      $region26: #{_lambda_.11} parent=11 // pred_check_branch
        %349 = sbr.rel (%p347) target = $region28
      $region27: #{_lambda_.11} parent=11 // pred_region
        _
      $region28: #{_lambda_.11} parent=11 // pred_fallthru
        _
      // Predicated region
      $region29: #{_lambda_.11} parent=11 // pred_check
        %p350 = pneg %p150
      $region30: #{_lambda_.11} parent=11 // pred_check_branch
        %352 = sbr.rel (%p350) target = $region32
      $region31: #{_lambda_.11} parent=11 // pred_region
        _
      $region32: #{_lambda_.11} parent=11 // pred_fallthru
        _
      // Predicated region
      $region33: #{_lambda_.11} parent=11 // pred_check
        %p353 = pneg %p171
      $region34: #{_lambda_.11} parent=11 // pred_check_branch
        %355 = sbr.rel (%p353) target = $region36
      $region35: #{_lambda_.11} parent=11 // pred_region
        _
      $region36: #{_lambda_.11} parent=11 // pred_fallthru
        _
      // Predicated region
      $region37: #{_lambda_.11} parent=11 // pred_check
        %p356 = pneg %p192
      $region38: #{_lambda_.11} parent=11 // pred_check_branch
        %358 = sbr.rel (%p356) target = $region40
      $region39: #{_lambda_.11} parent=11 // pred_region
        _
      $region40: #{_lambda_.11} parent=11 // pred_fallthru
        _
      // Predicated region
      $region41: #{_lambda_.11} parent=11 // pred_check
        %p359 = pneg %p213
      $region42: #{_lambda_.11} parent=11 // pred_check_branch
        %361 = sbr.rel (%p359) target = $region44
      $region43: #{_lambda_.11} parent=11 // pred_region
        _
      $region44: #{_lambda_.11} parent=11 // pred_fallthru
        _
      // Predicated region
      $region45: #{_lambda_.11} parent=11 // pred_check
        %p362 = pneg %p234
      $region46: #{_lambda_.11} parent=11 // pred_check_branch
        %364 = sbr.rel (%p362) target = $region48
      $region47: #{_lambda_.11} parent=11 // pred_region
        _
      $region48: #{_lambda_.11} parent=11 // pred_fallthru
        _
      // Predicated region
      $region49: #{_lambda_.11} parent=11 // pred_check
        %p365 = pneg %p255
      $region50: #{_lambda_.11} parent=11 // pred_check_branch
        %367 = sbr.rel (%p365) target = $region52
      $region51: #{_lambda_.11} parent=11 // pred_region
        _
      $region52: #{_lambda_.11} parent=11 // pred_fallthru
        _
      // Predicated region
      $region53: #{_lambda_.11} parent=11 // pred_check
        %p368 = pneg %p276
      $region54: #{_lambda_.11} parent=11 // pred_check_branch
        %370 = sbr.rel (%p368) target = $region56
      $region55: #{_lambda_.11} parent=11 // pred_region
        _
      $region56: #{_lambda_.11} parent=11 // pred_fallthru
        _
      // Predicated region
      $region57: #{_lambda_.11} parent=11 // pred_check
        %p371 = pneg %p297
      $region58: #{_lambda_.11} parent=11 // pred_check_branch
        %373 = sbr.rel (%p371) target = $region60
      $region59: #{_lambda_.11} parent=11 // pred_region
        _
      $region60: #{_lambda_.11} parent=11 // pred_fallthru
        _
    $region12: #{_lambda_.11} parent=5 // pred_fallthru
      _
    %p374 = scmp.lt.s32.totalorder %s19, 2
    // Predicated region
    $region61: #{_lambda_.11} parent=5 // pred_check
      %p375 = pneg %p374
    $region62: #{_lambda_.11} parent=5 // pred_check_branch
      %377 = sbr.rel (%p375) target = $region64
    $region63: #{_lambda_.11} parent=5 // pred_region
      // Predicated region
      $region65: #{_lambda_.11} parent=63 // pred_check
        %p378 = pneg %p39
      $region66: #{_lambda_.11} parent=63 // pred_check_branch
        %380 = sbr.rel (%p378) target = $region68
      $region67: #{_lambda_.11} parent=63 // pred_region
        %p381 = scmp.lt.s32.totalorder %s19, 1
        %s382 = scalar_select %p381, %s19, 1
        %s383 = smul.addr %s382, 4
        %s384 = smul.addr %s383, 8
        %s385 = scalar_lea.vmem %s0, %s384
      $region68: #{_lambda_.11} parent=63 // pred_fallthru
        _
    $region64: #{_lambda_.11} parent=5 // pred_fallthru
      _
    %p386 = scmp.le.s32.totalorder 1, %s19
    %p387 = scmp.lt.s32.totalorder %s19, 3
    %p388 = pnand %p386, %p387
    %p389 = pneg %p388
    // Predicated region
    $region69: #{_lambda_.11} parent=5 // pred_check
      _
    $region70: #{_lambda_.11} parent=5 // pred_check_branch
      %391 = sbr.rel (%p388) target = $region72
    $region71: #{_lambda_.11} parent=5 // pred_region
      %s392 = ssub.s32 %s19, 1
      %p393 = scmp.lt.s32.totalorder %s24, 1
      %s394 = scalar_select %p393, %s24, 1
      %s395 = smul.addr %s394, 4
      %s396 = smul.addr %s395, 8
      %s397 = scalar_lea.vmem %s0, %s396
      %p398 = pneg %p45
      %p399 = pneg %p42
      %p400 = pneg %p66
      %p401 = pneg %p63
      %p402 = pneg %p87
      %p403 = pneg %p84
      %p404 = pneg %p108
      %p405 = pneg %p105
      %p406 = pneg %p129
      %p407 = pneg %p126
      %p408 = pneg %p150
      %p409 = pneg %p147
      %p410 = pneg %p171
      %p411 = pneg %p168
      %p412 = pneg %p192
      %p413 = pneg %p189
      %p414 = pneg %p213
      %p415 = pneg %p210
      %p416 = pneg %p234
      %p417 = pneg %p231
      %p418 = pneg %p255
      %p419 = pneg %p252
      %p420 = pneg %p276
      %p421 = pneg %p273
      %p422 = pneg %p297
      %p423 = pneg %p294
      %p424 = pneg %p323
      %p425 = pneg %p320
      %p426 = scmp.lt.s32.totalorder %s24, 1
      %s427 = scalar_select %p426, %s24, 1
      %s428 = smul.addr %s427, 4
      %s429 = smul.addr %s428, 8
      %s430 = scalar_lea.vmem %s13, %s429
      %p431 = scmp.lt.s32.totalorder %s24, 1
      %s432 = scalar_select %p431, %s24, 1
      %s433 = smul.addr %s432, 4
      %s434 = smul.addr %s433, 8
      %s435 = scalar_lea.vmem %s0, %s434
      %p436 = scmp.lt.s32.totalorder %s24, 1
      %s437 = scalar_select %p436, %s24, 1
      %s438 = smul.addr %s437, 4
      %s439 = smul.addr %s438, 8
      %s440 = scalar_lea.vmem %s13, %s439
      %v442 = vld [vmem:[%s435] sm:$0xff]
      %v443 = vld [vmem:[%s435 + $0x8] sm:$0xff]
      %v444 = vld [vmem:[%s435 + $0x10] sm:$0xff]
      %v445 = vld [vmem:[%s435 + $0x18] sm:$0x7f]
      %v446 = vlaneseq
      %v447 = vand.u32 %v446, 127
      %vm448 = vcmp.lt.s32.totalorder %v447, 32
      %v449 = vsel %vm448, 1, 0
      %v450 = vcvt.s32.f32 %v449
      %v451 = vpack.c.bf16 %v443, %v442
      %v452 = vpack.c.bf16 %v445, %v444
      %v453 = vld [vmem:[%s1] sm:$0xff]
      %v454 = vld [vmem:[%s1 + $0x8] sm:$0xf]
      %v455 = vld [vmem:[%s1 + $0xc] sm:$0xff]
      %v456 = vld [vmem:[%s1 + $0x14] sm:$0xf]
      %v457 = vld [vmem:[%s1 + $0x18] sm:$0xff]
      %v458 = vld [vmem:[%s1 + $0x20] sm:$0xf]
      %v459 = vld [vmem:[%s1 + $0x24] sm:$0xff]
      %v460 = vld [vmem:[%s1 + $0x2c] sm:$0xf]
      %v461 = vld [vmem:[%s1 + $0x30] sm:$0xff]
      %v462 = vld [vmem:[%s1 + $0x38] sm:$0xf]
      %v463 = vld [vmem:[%s1 + $0x3c] sm:$0xff]
      %v464 = vld [vmem:[%s1 + $0x44] sm:$0xf]
      %v465 = vld [vmem:[%s1 + $0x48] sm:$0xff]
      %v466 = vld [vmem:[%s1 + $0x50] sm:$0xf]
      %v467 = vld [vmem:[%s1 + $0x54] sm:$0xff]
      %v468 = vld [vmem:[%s1 + $0x5c] sm:$0xf]
      %v469 = vld [vmem:[%s1 + $0x60] sm:$0xff]
      %v470 = vld [vmem:[%s1 + $0x68] sm:$0xf]
      %v471 = vld [vmem:[%s1 + $0x6c] sm:$0xff]
      %v472 = vld [vmem:[%s1 + $0x74] sm:$0xf]
      %v473 = vld [vmem:[%s1 + $0x78] sm:$0xff]
      %v474 = vld [vmem:[%s1 + $0x80] sm:$0xf]
      %v475 = vld [vmem:[%s1 + $0x84] sm:$0xff]
      %v476 = vld [vmem:[%s1 + $0x8c] sm:$0xf]
      %v477 = vld [vmem:[%s1 + $0x90] sm:$0xff]
      %v478 = vld [vmem:[%s1 + $0x98] sm:$0xf]
      %v479 = vld [vmem:[%s1 + $0x9c] sm:$0xff]
      %v480 = vld [vmem:[%s1 + $0xa4] sm:$0xf]
      %v481 = vld [vmem:[%s1 + $0xa8] sm:$0xff]
      %v482 = vld [vmem:[%s1 + $0xb0] sm:$0xf]
      %v483 = vld [vmem:[%s1 + $0xb4] sm:$0xff]
      %v484 = vld [vmem:[%s1 + $0xbc] sm:$0xf]
      %v485 = vld [vmem:[%s2] sm:$0x7]
      %v487 = vlaneseq
      %v488 = vshrl.u32 %v487, 7
      %v489 = vsub.s32 0, %v488
      %v490 = vrot.slane %v485, %v489
      %v491 = vlaneseq
      %v492 = vshrl.u32 %v491, 7
      %v493 = vsub.s32 1, %v492
      %v494 = vrot.slane %v485, %v493
      %v495 = vlaneseq
      %v496 = vshrl.u32 %v495, 7
      %v497 = vsub.s32 2, %v496
      %v498 = vrot.slane %v485, %v497
      %v534 = vunpack.c.l.b16 %v453
      %v535 = vunpack.c.h.b16 %v453
      %v536 = vunpack.c.l.b16 %v454
      %v537 = vunpack.c.l.b16 %v455
      %v538 = vunpack.c.h.b16 %v455
      %v539 = vunpack.c.l.b16 %v456
      %v540 = vunpack.c.l.b16 %v457
      %v541 = vunpack.c.h.b16 %v457
      %v542 = vunpack.c.l.b16 %v458
      %v543 = vunpack.c.l.b16 %v459
      %v544 = vunpack.c.h.b16 %v459
      %v545 = vunpack.c.l.b16 %v460
      %v546 = vunpack.c.l.b16 %v461
      %v547 = vunpack.c.h.b16 %v461
      %v548 = vunpack.c.l.b16 %v462
      %v549 = vunpack.c.l.b16 %v463
      %v550 = vunpack.c.h.b16 %v463
      %v551 = vunpack.c.l.b16 %v464
      %v552 = vunpack.c.l.b16 %v465
      %v553 = vunpack.c.h.b16 %v465
      %v554 = vunpack.c.l.b16 %v466
      %v555 = vunpack.c.l.b16 %v467
      %v556 = vunpack.c.h.b16 %v467
      %v557 = vunpack.c.l.b16 %v468
      %v558 = vunpack.c.l.b16 %v469
      %v559 = vunpack.c.h.b16 %v469
      %v560 = vunpack.c.l.b16 %v470
      %v561 = vunpack.c.l.b16 %v471
      %v562 = vunpack.c.h.b16 %v471
      %v563 = vunpack.c.l.b16 %v472
      %v564 = vunpack.c.l.b16 %v473
      %v565 = vunpack.c.h.b16 %v473
      %v566 = vunpack.c.l.b16 %v474
      %v567 = vunpack.c.l.b16 %v475
      %v568 = vunpack.c.h.b16 %v475
      %v569 = vunpack.c.l.b16 %v476
      %v570 = vunpack.c.l.b16 %v477
      %v571 = vunpack.c.h.b16 %v477
      %v572 = vunpack.c.l.b16 %v478
      %v573 = vunpack.c.l.b16 %v479
      %v574 = vunpack.c.h.b16 %v479
      %v575 = vunpack.c.l.b16 %v480
      %v576 = vunpack.c.l.b16 %v481
      %v577 = vunpack.c.h.b16 %v481
      %v578 = vunpack.c.l.b16 %v482
      %v579 = vunpack.c.l.b16 %v483
      %v580 = vunpack.c.h.b16 %v483
      %v581 = vunpack.c.l.b16 %v484
      %v582 = vpack.c.b16 %v537, %v534
      %v583 = vpack.c.b16 %v538, %v535
      %v584 = vpack.c.b16 %v539, %v536
      %v585 = vpack.c.b16 %v543, %v540
      %v586 = vpack.c.b16 %v544, %v541
      %v587 = vpack.c.b16 %v545, %v542
      %v588 = vpack.c.b16 %v549, %v546
      %v589 = vpack.c.b16 %v550, %v547
      %v590 = vpack.c.b16 %v551, %v548
      %v591 = vpack.c.b16 %v555, %v552
      %v592 = vpack.c.b16 %v556, %v553
      %v593 = vpack.c.b16 %v557, %v554
      %v594 = vpack.c.b16 %v561, %v558
      %v595 = vpack.c.b16 %v562, %v559
      %v596 = vpack.c.b16 %v563, %v560
      %v597 = vpack.c.b16 %v567, %v564
      %v598 = vpack.c.b16 %v568, %v565
      %v599 = vpack.c.b16 %v569, %v566
      %v600 = vpack.c.b16 %v573, %v570
      %v601 = vpack.c.b16 %v574, %v571
      %v602 = vpack.c.b16 %v575, %v572
      %v603 = vpack.c.b16 %v579, %v576
      %v604 = vpack.c.b16 %v580, %v577
      %v605 = vpack.c.b16 %v581, %v578
      %630 = vmatprep.subr.bf16.mxu0 %v583
      %631 = vmatpush1.bf16.msra.mxu0 %v582
      %632 = vmatprep.subr.bf16.mxu0 %v586
      %633 = vmatpush1.bf16.msra.mxu0 %v585
      %634 = vmatprep.subr.bf16.mxu0 %v589
      %635 = vmatpush1.bf16.msra.mxu0 %v588
      %636 = vmatprep.subr.bf16.mxu0 %v592
      %637 = vmatpush1.bf16.msra.mxu0 %v591
      %638 = vmatprep.subr.bf16.mxu0 %v595
      %639 = vmatpush1.bf16.msra.mxu0 %v594
      %640 = vmatprep.subr.bf16.mxu0 %v598
      %641 = vmatpush1.bf16.msra.mxu0 %v597
      %642 = vmatprep.subr.bf16.mxu0 %v601
      %643 = vmatpush1.bf16.msra.mxu0 %v600
      %644 = vmatprep.subr.bf16.mxu0 %v604
      %645 = vmatpush1.bf16.msra.mxu0 %v603
      %646 = vmatprep.subr.bf16.mxu0 0
      %647 = vmatpush1.bf16.msra.mxu0 0
      %648 = vmatprep.subr.bf16.mxu0 0
      %649 = vmatpush1.bf16.msra.mxu0 0
      %650 = vmatprep.subr.bf16.mxu0 0
      %651 = vmatpush1.bf16.msra.mxu0 0
      %652 = vmatprep.subr.bf16.mxu0 0
      %653 = vmatpush1.bf16.msra.mxu0 0
      %654 = vmatprep.subr.bf16.mxu0 0
      %655 = vmatpush1.bf16.msra.mxu0 0
      %656 = vmatprep.subr.bf16.mxu0 0
      %657 = vmatpush1.bf16.msra.mxu0 0
      %658 = vmatprep.subr.bf16.mxu0 0
      %659 = vmatpush1.bf16.msra.mxu0 0
      %660 = vmatprep.subr.bf16.mxu0 0
      %661 = vmatpush1.bf16.msra.mxu0 0
      %662 = vmatprep.mubr.bf16.mxu0 0
      %663 = vmatmul.mubr.bf16.gmra.mrb[0].mxu0 %v451
      %v664 = vpop.f32.mrb[0].mxu0
      %v665 = vadd.f32 %v490, %v664
      %v666 = vpop.f32.mrb[0].mxu0
      %v667 = vadd.f32 %v494, %v666
      %v668 = vpop.f32.mrb[0].mxu0
      %v669 = vadd.f32 %v490, %v668
      %v670 = vpop.f32.mrb[0].mxu0
      %v671 = vadd.f32 %v494, %v670
      %672 = vmatprep.mubr.bf16.mxu0 0
      %673 = vmatmul.mubr.bf16.gmra.mrb[0].mxu0 %v452
      %v674 = vpop.f32.mrb[0].mxu0
      %v675 = vadd.f32 %v490, %v674
      %v676 = vpop.f32.mrb[0].mxu0
      %v677 = vadd.f32 %v494, %v676
      %v678 = vpop.f32.mrb[0].mxu0
      %v679 = vadd.f32 %v490, %v678
      %v680 = vpop.f32.mrb[0].mxu0
      %v681 = vadd.f32 %v494, %v680
      %682 = vdwg.mxu0
      %683 = vmatprep.subr.bf16.mxu0 0
      %684 = vmatpush1.bf16.msra.mxu0 %v584
      %685 = vmatprep.subr.bf16.mxu0 0
      %686 = vmatpush1.bf16.msra.mxu0 %v587
      %687 = vmatprep.subr.bf16.mxu0 0
      %688 = vmatpush1.bf16.msra.mxu0 %v590
      %689 = vmatprep.subr.bf16.mxu0 0
      %690 = vmatpush1.bf16.msra.mxu0 %v593
      %691 = vmatprep.subr.bf16.mxu0 0
      %692 = vmatpush1.bf16.msra.mxu0 %v596
      %693 = vmatprep.subr.bf16.mxu0 0
      %694 = vmatpush1.bf16.msra.mxu0 %v599
      %695 = vmatprep.subr.bf16.mxu0 0
      %696 = vmatpush1.bf16.msra.mxu0 %v602
      %697 = vmatprep.subr.bf16.mxu0 0
      %698 = vmatpush1.bf16.msra.mxu0 %v605
      %699 = vmatprep.subr.bf16.mxu0 0
      %700 = vmatpush1.bf16.msra.mxu0 0
      %701 = vmatprep.subr.bf16.mxu0 0
      %702 = vmatpush1.bf16.msra.mxu0 0
      %703 = vmatprep.subr.bf16.mxu0 0
      %704 = vmatpush1.bf16.msra.mxu0 0
      %705 = vmatprep.subr.bf16.mxu0 0
      %706 = vmatpush1.bf16.msra.mxu0 0
      %707 = vmatprep.subr.bf16.mxu0 0
      %708 = vmatpush1.bf16.msra.mxu0 0
      %709 = vmatprep.subr.bf16.mxu0 0
      %710 = vmatpush1.bf16.msra.mxu0 0
      %711 = vmatprep.subr.bf16.mxu0 0
      %712 = vmatpush1.bf16.msra.mxu0 0
      %713 = vmatprep.subr.bf16.mxu0 0
      %714 = vmatpush1.bf16.msra.mxu0 0
      %715 = vmatprep.mubr.bf16.mxu0 0
      %716 = vmatmul.mubr.bf16.gmra.mrb[0].mxu0 %v451
      %v717 = vpop.f32.mrb[0].mxu0
      %v718 = vadd.f32 %v498, %v717
      %v719 = vpop.f32.mrb[0].mxu0
      %v720 = vpop.f32.mrb[0].mxu0
      %v721 = vadd.f32 %v498, %v720
      %v722 = vpop.f32.mrb[0].mxu0
      %723 = vmatprep.mubr.bf16.mxu0 0
      %724 = vmatmul.mubr.bf16.gmra.mrb[0].mxu0 %v452
      %v725 = vpop.f32.mrb[0].mxu0
      %v726 = vadd.f32 %v498, %v725
      %v727 = vpop.f32.mrb[0].mxu0
      %v728 = vpop.f32.mrb[0].mxu0
      %v729 = vadd.f32 %v498, %v728
      %v730 = vpop.f32.mrb[0].mxu0
      %731 = vdwg.mxu0
      %v732 = vpack.c.bf16 %v671, %v667
      %v733 = vpack.c.bf16 %v681, %v677
      %vm734 = vcmp.ge.s32.totalorder %v447, 0
      %vm735 = vcmp.lt.s32.totalorder %v447, 8
      %vm736 = vmand %vm734, %vm735
      %v737 = vsel %vm736, 1, 0
      %v738 = vcvt.s32.f32 %v737
      %v739 = vmul.f32 %v665, %v738
      %v740 = vmul.f32 %v669, %v738
      %v741 = vmul.f32 %v675, %v738
      %v742 = vmul.f32 %v679, %v738
      %v743 = vpack.c.bf16 %v740, %v739
      %v744 = vpack.c.bf16 %v742, %v741
      %745 = vmatprep.subr.bf16.mxu0 0
      %746 = vmatpush1.bf16.xpose.msra.mxu0 %v732
      %747 = vmatprep.subr.bf16.mxu0 0
      %748 = vmatpush1.bf16.xpose.msra.mxu0 %v733
      %749 = vmatprep.subr.bf16.mxu0 0
      %750 = vmatpush1.bf16.xpose.msra.mxu0 0
      %751 = vmatprep.subr.bf16.mxu0 0
      %752 = vmatpush1.bf16.xpose.msra.mxu0 0
      %753 = vmatprep.subr.bf16.mxu0 0
      %754 = vmatpush1.bf16.xpose.msra.mxu0 0
      %755 = vmatprep.subr.bf16.mxu0 0
      %756 = vmatpush1.bf16.xpose.msra.mxu0 0
      %757 = vmatprep.subr.bf16.mxu0 0
      %758 = vmatpush1.bf16.xpose.msra.mxu0 0
      %759 = vmatprep.subr.bf16.mxu0 0
      %760 = vmatpush1.bf16.xpose.msra.mxu0 0
      %761 = vmatprep.subr.bf16.mxu0 0
      %762 = vmatpush1.bf16.xpose.msra.mxu0 0
      %763 = vmatprep.subr.bf16.mxu0 0
      %764 = vmatpush1.bf16.xpose.msra.mxu0 0
      %765 = vmatprep.subr.bf16.mxu0 0
      %766 = vmatpush1.bf16.xpose.msra.mxu0 0
      %767 = vmatprep.subr.bf16.mxu0 0
      %768 = vmatpush1.bf16.xpose.msra.mxu0 0
      %769 = vmatprep.subr.bf16.mxu0 0
      %770 = vmatpush1.bf16.xpose.msra.mxu0 0
      %771 = vmatprep.subr.bf16.mxu0 0
      %772 = vmatpush1.bf16.xpose.msra.mxu0 0
      %773 = vmatprep.subr.bf16.mxu0 0
      %774 = vmatpush1.bf16.xpose.msra.mxu0 0
      %775 = vmatprep.subr.bf16.mxu0 0
      %776 = vmatpush1.bf16.xpose.msra.mxu0 0
      %777 = vmatprep.mubr.bf16.mxu0 0
      %778 = vmatmul.mubr.bf16.gmra.mrb[0].mxu0 %v743
      %v779 = vpop.f32.mrb[0].mxu0
      %v780 = vadd.f32 0.0, %v779
      %v781 = vpop.f32.mrb[0].mxu0
      %v782 = vpop.f32.mrb[0].mxu0
      %v783 = vadd.f32 0.0, %v782
      %v784 = vpop.f32.mrb[0].mxu0
      %785 = vmatprep.mubr.bf16.mxu0 0
      %786 = vmatmul.mubr.bf16.gmra.mrb[0].mxu0 %v744
      %v787 = vpop.f32.mrb[0].mxu0
      %v788 = vadd.f32 0.0, %v787
      %v789 = vpop.f32.mrb[0].mxu0
      %v790 = vpop.f32.mrb[0].mxu0
      %v791 = vadd.f32 0.0, %v790
      %v792 = vpop.f32.mrb[0].mxu0
      %793 = vdwg.mxu0
      %vm794 = vcmask 252928
      %v795 = vsel %vm794, %v780, -inf
      %796 = vmax.xlane.f32.xlu0 %v795
      %v797 = vpop.xlane.xlu0 %796
      %v798 = vsel %vm794, %v783, -inf
      %799 = vmax.xlane.f32.xlu0 %v798
      %v800 = vpop.xlane.xlu0 %799
      %v801 = vsel %vm794, %v788, -inf
      %802 = vmax.xlane.f32.xlu0 %v801
      %v803 = vpop.xlane.xlu0 %802
      %vm804 = vcmask 251904
      %v805 = vsel %vm804, %v791, -inf
      %806 = vmax.xlane.f32.xlu0 %v805
      %v807 = vpop.xlane.xlu0 %806
      %v808 = vsub.f32 %v780, %v797
      %v809 = vsub.f32 %v783, %v800
      %v810 = vsub.f32 %v788, %v803
      %v811 = vsub.f32 %v791, %v807
      %v812 = vmul.f32 %v808, 1.442695
      %v813 = vpow.pop %v812
      %v814 = vmul.f32 %v809, 1.442695
      %v815 = vpow.pop %v814
      %v816 = vmul.f32 %v810, 1.442695
      %v817 = vpow.pop %v816
      %v818 = vmul.f32 %v811, 1.442695
      %v819 = vpow.pop %v818
      %v820 = vsel %vm794, %v813, 0.0
      %821 = vadd.xlane.f32.xlu0 %v820
      %v822 = vpop.xlane.xlu0 %821
      %v823 = vsel %vm794, %v815, 0.0
      %824 = vadd.xlane.f32.xlu0 %v823
      %v825 = vpop.xlane.xlu0 %824
      %v826 = vsel %vm794, %v817, 0.0
      %827 = vadd.xlane.f32.xlu0 %v826
      %v828 = vpop.xlane.xlu0 %827
      %v829 = vsel %vm804, %v819, 0.0
      %830 = vadd.xlane.f32.xlu0 %v829
      %v831 = vpop.xlane.xlu0 %830
      %v832 = vrcp.pop %v822
      %v833 = vrcp.pop %v825
      %v834 = vrcp.pop %v828
      %v835 = vrcp.pop %v831
      %v836 = vmul.f32 %v813, %v832
      %v837 = vmul.f32 %v815, %v833
      %v838 = vmul.f32 %v817, %v834
      %v839 = vmul.f32 %v819, %v835
      %v840 = vpack.c.bf16 %v837, %v836
      %v841 = vpack.c.bf16 %v839, %v838
      %v842 = vmul.f32 %v718, %v738
      %v843 = vmul.f32 %v721, %v738
      %v844 = vmul.f32 %v726, %v738
      %v845 = vmul.f32 %v729, %v738
      %v846 = vpack.c.bf16 %v843, %v842
      %v847 = vpack.c.bf16 %v845, %v844
      %vm848 = vcmp.ge.s32.totalorder %v447, 8
      %vm849 = vcmp.lt.s32.totalorder %v447, 16
      %vm850 = vmand %vm848, %vm849
      %v851 = vsel %vm850, 1, 0
      %v852 = vcvt.s32.f32 %v851
      %v853 = vmul.f32 %v665, %v852
      %v854 = vmul.f32 %v669, %v852
      %v855 = vmul.f32 %v675, %v852
      %v856 = vmul.f32 %v679, %v852
      %v857 = vpack.c.bf16 %v854, %v853
      %v858 = vpack.c.bf16 %v856, %v855
      %859 = vmatprep.subr.bf16.mxu0 0
      %860 = vmatpush1.bf16.xpose.msra.mxu0 %v732
      %861 = vmatprep.subr.bf16.mxu0 0
      %862 = vmatpush1.bf16.xpose.msra.mxu0 %v733
      %863 = vmatprep.subr.bf16.mxu0 0
      %864 = vmatpush1.bf16.xpose.msra.mxu0 0
      %865 = vmatprep.subr.bf16.mxu0 0
      %866 = vmatpush1.bf16.xpose.msra.mxu0 0
      %867 = vmatprep.subr.bf16.mxu0 0
      %868 = vmatpush1.bf16.xpose.msra.mxu0 0
      %869 = vmatprep.subr.bf16.mxu0 0
      %870 = vmatpush1.bf16.xpose.msra.mxu0 0
      %871 = vmatprep.subr.bf16.mxu0 0
      %872 = vmatpush1.bf16.xpose.msra.mxu0 0
      %873 = vmatprep.subr.bf16.mxu0 0
      %874 = vmatpush1.bf16.xpose.msra.mxu0 0
      %875 = vmatprep.subr.bf16.mxu0 0
      %876 = vmatpush1.bf16.xpose.msra.mxu0 0
      %877 = vmatprep.subr.bf16.mxu0 0
      %878 = vmatpush1.bf16.xpose.msra.mxu0 0
      %879 = vmatprep.subr.bf16.mxu0 0
      %880 = vmatpush1.bf16.xpose.msra.mxu0 0
      %881 = vmatprep.subr.bf16.mxu0 0
      %882 = vmatpush1.bf16.xpose.msra.mxu0 0
      %883 = vmatprep.subr.bf16.mxu0 0
      %884 = vmatpush1.bf16.xpose.msra.mxu0 0
      %885 = vmatprep.subr.bf16.mxu0 0
      %886 = vmatpush1.bf16.xpose.msra.mxu0 0
      %887 = vmatprep.subr.bf16.mxu0 0
      %888 = vmatpush1.bf16.xpose.msra.mxu0 0
      %889 = vmatprep.subr.bf16.mxu0 0
      %890 = vmatpush1.bf16.xpose.msra.mxu0 0
      %891 = vmatprep.mubr.bf16.mxu0 0
      %892 = vmatmul.mubr.bf16.gmra.mrb[0].mxu0 %v857
      %v893 = vpop.f32.mrb[0].mxu0
      %v894 = vadd.f32 0.0, %v893
      %v895 = vpop.f32.mrb[0].mxu0
      %v896 = vpop.f32.mrb[0].mxu0
      %v897 = vadd.f32 0.0, %v896
      %v898 = vpop.f32.mrb[0].mxu0
      %899 = vmatprep.mubr.bf16.mxu0 0
      %900 = vmatmul.mubr.bf16.gmra.mrb[0].mxu0 %v858
      %v901 = vpop.f32.mrb[0].mxu0
      %v902 = vadd.f32 0.0, %v901
      %v903 = vpop.f32.mrb[0].mxu0
      %v904 = vpop.f32.mrb[0].mxu0
      %v905 = vadd.f32 0.0, %v904
      %v906 = vpop.f32.mrb[0].mxu0
      %907 = vdwg.mxu0
      %v908 = vsel %vm794, %v894, -inf
      %909 = vmax.xlane.f32.xlu0 %v908
      %v910 = vpop.xlane.xlu0 %909
      %v911 = vsel %vm794, %v897, -inf
      %912 = vmax.xlane.f32.xlu0 %v911
      %v913 = vpop.xlane.xlu0 %912
      %v914 = vsel %vm794, %v902, -inf
      %915 = vmax.xlane.f32.xlu0 %v914
      %v916 = vpop.xlane.xlu0 %915
      %v917 = vsel %vm804, %v905, -inf
      %918 = vmax.xlane.f32.xlu0 %v917
      %v919 = vpop.xlane.xlu0 %918
      %v920 = vsub.f32 %v894, %v910
      %v921 = vsub.f32 %v897, %v913
      %v922 = vsub.f32 %v902, %v916
      %v923 = vsub.f32 %v905, %v919
      %v924 = vmul.f32 %v920, 1.442695
      %v925 = vpow.pop %v924
      %v926 = vmul.f32 %v921, 1.442695
      %v927 = vpow.pop %v926
      %v928 = vmul.f32 %v922, 1.442695
      %v929 = vpow.pop %v928
      %v930 = vmul.f32 %v923, 1.442695
      %v931 = vpow.pop %v930
      %v932 = vsel %vm794, %v925, 0.0
      %933 = vadd.xlane.f32.xlu0 %v932
      %v934 = vpop.xlane.xlu0 %933
      %v935 = vsel %vm794, %v927, 0.0
      %936 = vadd.xlane.f32.xlu0 %v935
      %v937 = vpop.xlane.xlu0 %936
      %v938 = vsel %vm794, %v929, 0.0
      %939 = vadd.xlane.f32.xlu0 %v938
      %v940 = vpop.xlane.xlu0 %939
      %v941 = vsel %vm804, %v931, 0.0
      %942 = vadd.xlane.f32.xlu0 %v941
      %v943 = vpop.xlane.xlu0 %942
      %v944 = vrcp.pop %v934
      %v945 = vrcp.pop %v937
      %v946 = vrcp.pop %v940
      %v947 = vrcp.pop %v943
      %v948 = vmul.f32 %v925, %v944
      %v949 = vmul.f32 %v927, %v945
      %v950 = vmul.f32 %v929, %v946
      %v951 = vmul.f32 %v931, %v947
      %v952 = vpack.c.bf16 %v949, %v948
      %v953 = vpack.c.bf16 %v951, %v950
      %v954 = vmul.f32 %v718, %v852
      %v955 = vmul.f32 %v721, %v852
      %v956 = vmul.f32 %v726, %v852
      %v957 = vmul.f32 %v729, %v852
      %v958 = vpack.c.bf16 %v955, %v954
      %v959 = vpack.c.bf16 %v957, %v956
      %v961 = vsel %vm794, %v952, 0
      %v964 = vsel %vm794, %v953, 0
      %vm966 = vcmask 1046528
      %vm967 = vcmask 1047552
      %v968 = vsel %vm966, 4294967295, 65535
      %v969 = vsel %vm967, %v968, 0
      %v971 = vand.u32 %v959, %v969
      %973 = vmatprep.subr.bf16.mxu0 0
      %974 = vmatpush1.bf16.msra.mxu0 %v958
      %975 = vmatprep.subr.bf16.mxu0 0
      %976 = vmatpush1.bf16.msra.mxu0 %v971
      %977 = vmatprep.subr.bf16.mxu0 0
      %978 = vmatpush1.bf16.msra.mxu0 0
      %979 = vmatprep.subr.bf16.mxu0 0
      %980 = vmatpush1.bf16.msra.mxu0 0
      %981 = vmatprep.subr.bf16.mxu0 0
      %982 = vmatpush1.bf16.msra.mxu0 0
      %983 = vmatprep.subr.bf16.mxu0 0
      %984 = vmatpush1.bf16.msra.mxu0 0
      %985 = vmatprep.subr.bf16.mxu0 0
      %986 = vmatpush1.bf16.msra.mxu0 0
      %987 = vmatprep.subr.bf16.mxu0 0
      %988 = vmatpush1.bf16.msra.mxu0 0
      %989 = vmatprep.subr.bf16.mxu0 0
      %990 = vmatpush1.bf16.msra.mxu0 0
      %991 = vmatprep.subr.bf16.mxu0 0
      %992 = vmatpush1.bf16.msra.mxu0 0
      %993 = vmatprep.subr.bf16.mxu0 0
      %994 = vmatpush1.bf16.msra.mxu0 0
      %995 = vmatprep.subr.bf16.mxu0 0
      %996 = vmatpush1.bf16.msra.mxu0 0
      %997 = vmatprep.subr.bf16.mxu0 0
      %998 = vmatpush1.bf16.msra.mxu0 0
      %999 = vmatprep.subr.bf16.mxu0 0
      %1000 = vmatpush1.bf16.msra.mxu0 0
      %1001 = vmatprep.subr.bf16.mxu0 0
      %1002 = vmatpush1.bf16.msra.mxu0 0
      %1003 = vmatprep.subr.bf16.mxu0 0
      %1004 = vmatpush1.bf16.msra.mxu0 0
      %1005 = vmatprep.mubr.bf16.mxu0 0
      %1006 = vmatmul.mubr.bf16.gmra.mrb[0].mxu0 %v961
      %v1007 = vpop.f32.mrb[0].mxu0
      %v1008 = vadd.f32 0.0, %v1007
      %v1009 = vpop.f32.mrb[0].mxu0
      %v1010 = vpop.f32.mrb[0].mxu0
      %v1011 = vadd.f32 0.0, %v1010
      %v1012 = vpop.f32.mrb[0].mxu0
      %1013 = vmatprep.mubr.bf16.mxu0 0
      %1014 = vmatmul.mubr.bf16.gmra.mrb[0].mxu0 %v964
      %v1015 = vpop.f32.mrb[0].mxu0
      %v1016 = vadd.f32 0.0, %v1015
      %v1017 = vpop.f32.mrb[0].mxu0
      %v1018 = vpop.f32.mrb[0].mxu0
      %v1019 = vadd.f32 0.0, %v1018
      %v1020 = vpop.f32.mrb[0].mxu0
      %1021 = vdwg.mxu0
      %v1023 = vsel %vm794, %v840, 0
      %v1026 = vsel %vm794, %v841, 0
      %v1029 = vand.u32 %v847, %v969
      %1031 = vmatprep.subr.bf16.mxu0 0
      %1032 = vmatpush1.bf16.msra.mxu0 %v846
      %1033 = vmatprep.subr.bf16.mxu0 0
      %1034 = vmatpush1.bf16.msra.mxu0 %v1029
      %1035 = vmatprep.subr.bf16.mxu0 0
      %1036 = vmatpush1.bf16.msra.mxu0 0
      %1037 = vmatprep.subr.bf16.mxu0 0
      %1038 = vmatpush1.bf16.msra.mxu0 0
      %1039 = vmatprep.subr.bf16.mxu0 0
      %1040 = vmatpush1.bf16.msra.mxu0 0
      %1041 = vmatprep.subr.bf16.mxu0 0
      %1042 = vmatpush1.bf16.msra.mxu0 0
      %1043 = vmatprep.subr.bf16.mxu0 0
      %1044 = vmatpush1.bf16.msra.mxu0 0
      %1045 = vmatprep.subr.bf16.mxu0 0
      %1046 = vmatpush1.bf16.msra.mxu0 0
      %1047 = vmatprep.subr.bf16.mxu0 0
      %1048 = vmatpush1.bf16.msra.mxu0 0
      %1049 = vmatprep.subr.bf16.mxu0 0
      %1050 = vmatpush1.bf16.msra.mxu0 0
      %1051 = vmatprep.subr.bf16.mxu0 0
      %1052 = vmatpush1.bf16.msra.mxu0 0
      %1053 = vmatprep.subr.bf16.mxu0 0
      %1054 = vmatpush1.bf16.msra.mxu0 0
      %1055 = vmatprep.subr.bf16.mxu0 0
      %1056 = vmatpush1.bf16.msra.mxu0 0
      %1057 = vmatprep.subr.bf16.mxu0 0
      %1058 = vmatpush1.bf16.msra.mxu0 0
      %1059 = vmatprep.subr.bf16.mxu0 0
      %1060 = vmatpush1.bf16.msra.mxu0 0
      %1061 = vmatprep.subr.bf16.mxu0 0
      %1062 = vmatpush1.bf16.msra.mxu0 0
      %1063 = vmatprep.mubr.bf16.mxu0 0
      %1064 = vmatmul.mubr.bf16.gmra.mrb[0].mxu0 %v1023
      %v1065 = vpop.f32.mrb[0].mxu0
      %v1066 = vadd.f32 %v1008, %v1065
      %v1067 = vpop.f32.mrb[0].mxu0
      %v1068 = vpop.f32.mrb[0].mxu0
      %v1069 = vadd.f32 %v1011, %v1068
      %v1070 = vpop.f32.mrb[0].mxu0
      %1071 = vmatprep.mubr.bf16.mxu0 0
      %1072 = vmatmul.mubr.bf16.gmra.mrb[0].mxu0 %v1026
      %v1073 = vpop.f32.mrb[0].mxu0
      %v1074 = vadd.f32 %v1016, %v1073
      %v1075 = vpop.f32.mrb[0].mxu0
      %v1076 = vpop.f32.mrb[0].mxu0
      %v1077 = vadd.f32 %v1019, %v1076
      %v1078 = vpop.f32.mrb[0].mxu0
      %1079 = vdwg.mxu0
      %vm1080 = vcmp.ge.s32.totalorder %v447, 16
      %vm1081 = vcmp.lt.s32.totalorder %v447, 24
      %vm1082 = vmand %vm1080, %vm1081
      %v1083 = vsel %vm1082, 1, 0
      %v1084 = vcvt.s32.f32 %v1083
      %v1085 = vmul.f32 %v665, %v1084
      %v1086 = vmul.f32 %v669, %v1084
      %v1087 = vmul.f32 %v675, %v1084
      %v1088 = vmul.f32 %v679, %v1084
      %v1089 = vpack.c.bf16 %v1086, %v1085
      %v1090 = vpack.c.bf16 %v1088, %v1087
      %1091 = vmatprep.subr.bf16.mxu0 0
      %1092 = vmatpush1.bf16.xpose.msra.mxu0 %v732
      %1093 = vmatprep.subr.bf16.mxu0 0
      %1094 = vmatpush1.bf16.xpose.msra.mxu0 %v733
      %1095 = vmatprep.subr.bf16.mxu0 0
      %1096 = vmatpush1.bf16.xpose.msra.mxu0 0
      %1097 = vmatprep.subr.bf16.mxu0 0
      %1098 = vmatpush1.bf16.xpose.msra.mxu0 0
      %1099 = vmatprep.subr.bf16.mxu0 0
      %1100 = vmatpush1.bf16.xpose.msra.mxu0 0
      %1101 = vmatprep.subr.bf16.mxu0 0
      %1102 = vmatpush1.bf16.xpose.msra.mxu0 0
      %1103 = vmatprep.subr.bf16.mxu0 0
      %1104 = vmatpush1.bf16.xpose.msra.mxu0 0
      %1105 = vmatprep.subr.bf16.mxu0 0
      %1106 = vmatpush1.bf16.xpose.msra.mxu0 0
      %1107 = vmatprep.subr.bf16.mxu0 0
      %1108 = vmatpush1.bf16.xpose.msra.mxu0 0
      %1109 = vmatprep.subr.bf16.mxu0 0
      %1110 = vmatpush1.bf16.xpose.msra.mxu0 0
      %1111 = vmatprep.subr.bf16.mxu0 0
      %1112 = vmatpush1.bf16.xpose.msra.mxu0 0
      %1113 = vmatprep.subr.bf16.mxu0 0
      %1114 = vmatpush1.bf16.xpose.msra.mxu0 0
      %1115 = vmatprep.subr.bf16.mxu0 0
      %1116 = vmatpush1.bf16.xpose.msra.mxu0 0
      %1117 = vmatprep.subr.bf16.mxu0 0
      %1118 = vmatpush1.bf16.xpose.msra.mxu0 0
      %1119 = vmatprep.subr.bf16.mxu0 0
      %1120 = vmatpush1.bf16.xpose.msra.mxu0 0
      %1121 = vmatprep.subr.bf16.mxu0 0
      %1122 = vmatpush1.bf16.xpose.msra.mxu0 0
      %1123 = vmatprep.mubr.bf16.mxu0 0
      %1124 = vmatmul.mubr.bf16.gmra.mrb[0].mxu0 %v1089
      %v1125 = vpop.f32.mrb[0].mxu0
      %v1126 = vadd.f32 0.0, %v1125
      %v1127 = vpop.f32.mrb[0].mxu0
      %v1128 = vpop.f32.mrb[0].mxu0
      %v1129 = vadd.f32 0.0, %v1128
      %v1130 = vpop.f32.mrb[0].mxu0
      %1131 = vmatprep.mubr.bf16.mxu0 0
      %1132 = vmatmul.mubr.bf16.gmra.mrb[0].mxu0 %v1090
      %v1133 = vpop.f32.mrb[0].mxu0
      %v1134 = vadd.f32 0.0, %v1133
      %v1135 = vpop.f32.mrb[0].mxu0
      %v1136 = vpop.f32.mrb[0].mxu0
      %v1137 = vadd.f32 0.0, %v1136
      %v1138 = vpop.f32.mrb[0].mxu0
      %1139 = vdwg.mxu0
      %v1140 = vsel %vm794, %v1126, -inf
      %1141 = vmax.xlane.f32.xlu0 %v1140
      %v1142 = vpop.xlane.xlu0 %1141
      %v1143 = vsel %vm794, %v1129, -inf
      %1144 = vmax.xlane.f32.xlu0 %v1143
      %v1145 = vpop.xlane.xlu0 %1144
      %v1146 = vsel %vm794, %v1134, -inf
      %1147 = vmax.xlane.f32.xlu0 %v1146
      %v1148 = vpop.xlane.xlu0 %1147
      %v1149 = vsel %vm804, %v1137, -inf
      %1150 = vmax.xlane.f32.xlu0 %v1149
      %v1151 = vpop.xlane.xlu0 %1150
      %v1152 = vsub.f32 %v1126, %v1142
      %v1153 = vsub.f32 %v1129, %v1145
      %v1154 = vsub.f32 %v1134, %v1148
      %v1155 = vsub.f32 %v1137, %v1151
      %v1156 = vmul.f32 %v1152, 1.442695
      %v1157 = vpow.pop %v1156
      %v1158 = vmul.f32 %v1153, 1.442695
      %v1159 = vpow.pop %v1158
      %v1160 = vmul.f32 %v1154, 1.442695
      %v1161 = vpow.pop %v1160
      %v1162 = vmul.f32 %v1155, 1.442695
      %v1163 = vpow.pop %v1162
      %v1164 = vsel %vm794, %v1157, 0.0
      %1165 = vadd.xlane.f32.xlu0 %v1164
      %v1166 = vpop.xlane.xlu0 %1165
      %v1167 = vsel %vm794, %v1159, 0.0
      %1168 = vadd.xlane.f32.xlu0 %v1167
      %v1169 = vpop.xlane.xlu0 %1168
      %v1170 = vsel %vm794, %v1161, 0.0
      %1171 = vadd.xlane.f32.xlu0 %v1170
      %v1172 = vpop.xlane.xlu0 %1171
      %v1173 = vsel %vm804, %v1163, 0.0
      %1174 = vadd.xlane.f32.xlu0 %v1173
      %v1175 = vpop.xlane.xlu0 %1174
      %v1176 = vrcp.pop %v1166
      %v1177 = vrcp.pop %v1169
      %v1178 = vrcp.pop %v1172
      %v1179 = vrcp.pop %v1175
      %v1180 = vmul.f32 %v1157, %v1176
      %v1181 = vmul.f32 %v1159, %v1177
      %v1182 = vmul.f32 %v1161, %v1178
      %v1183 = vmul.f32 %v1163, %v1179
      %v1184 = vpack.c.bf16 %v1181, %v1180
      %v1185 = vpack.c.bf16 %v1183, %v1182
      %v1186 = vmul.f32 %v718, %v1084
      %v1187 = vmul.f32 %v721, %v1084
      %v1188 = vmul.f32 %v726, %v1084
      %v1189 = vmul.f32 %v729, %v1084
      %v1190 = vpack.c.bf16 %v1187, %v1186
      %v1191 = vpack.c.bf16 %v1189, %v1188
      %v1193 = vsel %vm794, %v1184, 0
      %v1196 = vsel %vm794, %v1185, 0
      %v1199 = vand.u32 %v1191, %v969
      %1201 = vmatprep.subr.bf16.mxu0 0
      %1202 = vmatpush1.bf16.msra.mxu0 %v1190
      %1203 = vmatprep.subr.bf16.mxu0 0
      %1204 = vmatpush1.bf16.msra.mxu0 %v1199
      %1205 = vmatprep.subr.bf16.mxu0 0
      %1206 = vmatpush1.bf16.msra.mxu0 0
      %1207 = vmatprep.subr.bf16.mxu0 0
      %1208 = vmatpush1.bf16.msra.mxu0 0
      %1209 = vmatprep.subr.bf16.mxu0 0
      %1210 = vmatpush1.bf16.msra.mxu0 0
      %1211 = vmatprep.subr.bf16.mxu0 0
      %1212 = vmatpush1.bf16.msra.mxu0 0
      %1213 = vmatprep.subr.bf16.mxu0 0
      %1214 = vmatpush1.bf16.msra.mxu0 0
      %1215 = vmatprep.subr.bf16.mxu0 0
      %1216 = vmatpush1.bf16.msra.mxu0 0
      %1217 = vmatprep.subr.bf16.mxu0 0
      %1218 = vmatpush1.bf16.msra.mxu0 0
      %1219 = vmatprep.subr.bf16.mxu0 0
      %1220 = vmatpush1.bf16.msra.mxu0 0
      %1221 = vmatprep.subr.bf16.mxu0 0
      %1222 = vmatpush1.bf16.msra.mxu0 0
      %1223 = vmatprep.subr.bf16.mxu0 0
      %1224 = vmatpush1.bf16.msra.mxu0 0
      %1225 = vmatprep.subr.bf16.mxu0 0
      %1226 = vmatpush1.bf16.msra.mxu0 0
      %1227 = vmatprep.subr.bf16.mxu0 0
      %1228 = vmatpush1.bf16.msra.mxu0 0
      %1229 = vmatprep.subr.bf16.mxu0 0
      %1230 = vmatpush1.bf16.msra.mxu0 0
      %1231 = vmatprep.subr.bf16.mxu0 0
      %1232 = vmatpush1.bf16.msra.mxu0 0
      %1233 = vmatprep.mubr.bf16.mxu0 0
      %1234 = vmatmul.mubr.bf16.gmra.mrb[0].mxu0 %v1193
      %v1235 = vpop.f32.mrb[0].mxu0
      %v1236 = vadd.f32 0.0, %v1235
      %v1237 = vpop.f32.mrb[0].mxu0
      %v1238 = vpop.f32.mrb[0].mxu0
      %v1239 = vadd.f32 0.0, %v1238
      %v1240 = vpop.f32.mrb[0].mxu0
      %1241 = vmatprep.mubr.bf16.mxu0 0
      %1242 = vmatmul.mubr.bf16.gmra.mrb[0].mxu0 %v1196
      %v1243 = vpop.f32.mrb[0].mxu0
      %v1244 = vadd.f32 0.0, %v1243
      %v1245 = vpop.f32.mrb[0].mxu0
      %v1246 = vpop.f32.mrb[0].mxu0
      %v1247 = vadd.f32 0.0, %v1246
      %v1248 = vpop.f32.mrb[0].mxu0
      %1249 = vdwg.mxu0
      %v1250 = vadd.f32 %v1066, %v1236
      %v1251 = vadd.f32 %v1069, %v1239
      %v1252 = vadd.f32 %v1074, %v1244
      %v1253 = vadd.f32 %v1077, %v1247
      %vm1254 = vcmp.ge.s32.totalorder %v447, 24
      %vm1255 = vmand %vm1254, %vm448
      %v1256 = vsel %vm1255, 1, 0
      %v1257 = vcvt.s32.f32 %v1256
      %v1258 = vmul.f32 %v665, %v1257
      %v1259 = vmul.f32 %v669, %v1257
      %v1260 = vmul.f32 %v675, %v1257
      %v1261 = vmul.f32 %v679, %v1257
      %v1262 = vpack.c.bf16 %v1259, %v1258
      %v1263 = vpack.c.bf16 %v1261, %v1260
      %1264 = vmatprep.subr.bf16.mxu0 0
      %1265 = vmatpush1.bf16.xpose.msra.mxu0 %v732
      %1266 = vmatprep.subr.bf16.mxu0 0
      %1267 = vmatpush1.bf16.xpose.msra.mxu0 %v733
      %1268 = vmatprep.subr.bf16.mxu0 0
      %1269 = vmatpush1.bf16.xpose.msra.mxu0 0
      %1270 = vmatprep.subr.bf16.mxu0 0
      %1271 = vmatpush1.bf16.xpose.msra.mxu0 0
      %1272 = vmatprep.subr.bf16.mxu0 0
      %1273 = vmatpush1.bf16.xpose.msra.mxu0 0
      %1274 = vmatprep.subr.bf16.mxu0 0
      %1275 = vmatpush1.bf16.xpose.msra.mxu0 0
      %1276 = vmatprep.subr.bf16.mxu0 0
      %1277 = vmatpush1.bf16.xpose.msra.mxu0 0
      %1278 = vmatprep.subr.bf16.mxu0 0
      %1279 = vmatpush1.bf16.xpose.msra.mxu0 0
      %1280 = vmatprep.subr.bf16.mxu0 0
      %1281 = vmatpush1.bf16.xpose.msra.mxu0 0
      %1282 = vmatprep.subr.bf16.mxu0 0
      %1283 = vmatpush1.bf16.xpose.msra.mxu0 0
      %1284 = vmatprep.subr.bf16.mxu0 0
      %1285 = vmatpush1.bf16.xpose.msra.mxu0 0
      %1286 = vmatprep.subr.bf16.mxu0 0
      %1287 = vmatpush1.bf16.xpose.msra.mxu0 0
      %1288 = vmatprep.subr.bf16.mxu0 0
      %1289 = vmatpush1.bf16.xpose.msra.mxu0 0
      %1290 = vmatprep.subr.bf16.mxu0 0
      %1291 = vmatpush1.bf16.xpose.msra.mxu0 0
      %1292 = vmatprep.subr.bf16.mxu0 0
      %1293 = vmatpush1.bf16.xpose.msra.mxu0 0
      %1294 = vmatprep.subr.bf16.mxu0 0
      %1295 = vmatpush1.bf16.xpose.msra.mxu0 0
      %1296 = vmatprep.mubr.bf16.mxu0 0
      %1297 = vmatmul.mubr.bf16.gmra.mrb[0].mxu0 %v1262
      %v1298 = vpop.f32.mrb[0].mxu0
      %v1299 = vadd.f32 0.0, %v1298
      %v1300 = vpop.f32.mrb[0].mxu0
      %v1301 = vpop.f32.mrb[0].mxu0
      %v1302 = vadd.f32 0.0, %v1301
      %v1303 = vpop.f32.mrb[0].mxu0
      %1304 = vmatprep.mubr.bf16.mxu0 0
      %1305 = vmatmul.mubr.bf16.gmra.mrb[0].mxu0 %v1263
      %v1306 = vpop.f32.mrb[0].mxu0
      %v1307 = vadd.f32 0.0, %v1306
      %v1308 = vpop.f32.mrb[0].mxu0
      %v1309 = vpop.f32.mrb[0].mxu0
      %v1310 = vadd.f32 0.0, %v1309
      %v1311 = vpop.f32.mrb[0].mxu0
      %1312 = vdwg.mxu0
      %v1313 = vsel %vm794, %v1299, -inf
      %1314 = vmax.xlane.f32.xlu0 %v1313
      %v1315 = vpop.xlane.xlu0 %1314
      %v1316 = vsel %vm794, %v1302, -inf
      %1317 = vmax.xlane.f32.xlu0 %v1316
      %v1318 = vpop.xlane.xlu0 %1317
      %v1319 = vsel %vm794, %v1307, -inf
      %1320 = vmax.xlane.f32.xlu0 %v1319
      %v1321 = vpop.xlane.xlu0 %1320
      %v1322 = vsel %vm804, %v1310, -inf
      %1323 = vmax.xlane.f32.xlu0 %v1322
      %v1324 = vpop.xlane.xlu0 %1323
      %v1325 = vsub.f32 %v1299, %v1315
      %v1326 = vsub.f32 %v1302, %v1318
      %v1327 = vsub.f32 %v1307, %v1321
      %v1328 = vsub.f32 %v1310, %v1324
      %v1329 = vmul.f32 %v1325, 1.442695
      %v1330 = vpow.pop %v1329
      %v1331 = vmul.f32 %v1326, 1.442695
      %v1332 = vpow.pop %v1331
      %v1333 = vmul.f32 %v1327, 1.442695
      %v1334 = vpow.pop %v1333
      %v1335 = vmul.f32 %v1328, 1.442695
      %v1336 = vpow.pop %v1335
      %v1337 = vsel %vm794, %v1330, 0.0
      %1338 = vadd.xlane.f32.xlu0 %v1337
      %v1339 = vpop.xlane.xlu0 %1338
      %v1340 = vsel %vm794, %v1332, 0.0
      %1341 = vadd.xlane.f32.xlu0 %v1340
      %v1342 = vpop.xlane.xlu0 %1341
      %v1343 = vsel %vm794, %v1334, 0.0
      %1344 = vadd.xlane.f32.xlu0 %v1343
      %v1345 = vpop.xlane.xlu0 %1344
      %v1346 = vsel %vm804, %v1336, 0.0
      %1347 = vadd.xlane.f32.xlu0 %v1346
      %v1348 = vpop.xlane.xlu0 %1347
      %v1349 = vrcp.pop %v1339
      %v1350 = vrcp.pop %v1342
      %v1351 = vrcp.pop %v1345
      %v1352 = vrcp.pop %v1348
      %v1353 = vmul.f32 %v1330, %v1349
      %v1354 = vmul.f32 %v1332, %v1350
      %v1355 = vmul.f32 %v1334, %v1351
      %v1356 = vmul.f32 %v1336, %v1352
      %v1357 = vpack.c.bf16 %v1354, %v1353
      %v1358 = vpack.c.bf16 %v1356, %v1355
      %v1359 = vmul.f32 %v718, %v1257
      %v1360 = vmul.f32 %v721, %v1257
      %v1361 = vmul.f32 %v726, %v1257
      %v1362 = vmul.f32 %v729, %v1257
      %v1363 = vpack.c.bf16 %v1360, %v1359
      %v1364 = vpack.c.bf16 %v1362, %v1361
      %v1366 = vsel %vm794, %v1357, 0
      %v1369 = vsel %vm794, %v1358, 0
      %v1372 = vand.u32 %v1364, %v969
      %1374 = vmatprep.subr.bf16.mxu0 0
      %1375 = vmatpush1.bf16.msra.mxu0 %v1363
      %1376 = vmatprep.subr.bf16.mxu0 0
      %1377 = vmatpush1.bf16.msra.mxu0 %v1372
      %1378 = vmatprep.subr.bf16.mxu0 0
      %1379 = vmatpush1.bf16.msra.mxu0 0
      %1380 = vmatprep.subr.bf16.mxu0 0
      %1381 = vmatpush1.bf16.msra.mxu0 0
      %1382 = vmatprep.subr.bf16.mxu0 0
      %1383 = vmatpush1.bf16.msra.mxu0 0
      %1384 = vmatprep.subr.bf16.mxu0 0
      %1385 = vmatpush1.bf16.msra.mxu0 0
      %1386 = vmatprep.subr.bf16.mxu0 0
      %1387 = vmatpush1.bf16.msra.mxu0 0
      %1388 = vmatprep.subr.bf16.mxu0 0
      %1389 = vmatpush1.bf16.msra.mxu0 0
      %1390 = vmatprep.subr.bf16.mxu0 0
      %1391 = vmatpush1.bf16.msra.mxu0 0
      %1392 = vmatprep.subr.bf16.mxu0 0
      %1393 = vmatpush1.bf16.msra.mxu0 0
      %1394 = vmatprep.subr.bf16.mxu0 0
      %1395 = vmatpush1.bf16.msra.mxu0 0
      %1396 = vmatprep.subr.bf16.mxu0 0
      %1397 = vmatpush1.bf16.msra.mxu0 0
      %1398 = vmatprep.subr.bf16.mxu0 0
      %1399 = vmatpush1.bf16.msra.mxu0 0
      %1400 = vmatprep.subr.bf16.mxu0 0
      %1401 = vmatpush1.bf16.msra.mxu0 0
      %1402 = vmatprep.subr.bf16.mxu0 0
      %1403 = vmatpush1.bf16.msra.mxu0 0
      %1404 = vmatprep.subr.bf16.mxu0 0
      %1405 = vmatpush1.bf16.msra.mxu0 0
      %1406 = vmatprep.mubr.bf16.mxu0 0
      %1407 = vmatmul.mubr.bf16.gmra.mrb[0].mxu0 %v1366
      %v1408 = vpop.f32.mrb[0].mxu0
      %v1409 = vadd.f32 0.0, %v1408
      %v1410 = vpop.f32.mrb[0].mxu0
      %v1411 = vpop.f32.mrb[0].mxu0
      %v1412 = vadd.f32 0.0, %v1411
      %v1413 = vpop.f32.mrb[0].mxu0
      %1414 = vmatprep.mubr.bf16.mxu0 0
      %1415 = vmatmul.mubr.bf16.gmra.mrb[0].mxu0 %v1369
      %v1416 = vpop.f32.mrb[0].mxu0
      %v1417 = vadd.f32 0.0, %v1416
      %v1418 = vpop.f32.mrb[0].mxu0
      %v1419 = vpop.f32.mrb[0].mxu0
      %v1420 = vadd.f32 0.0, %v1419
      %v1421 = vpop.f32.mrb[0].mxu0
      %1422 = vdwg.mxu0
      %v1423 = vadd.f32 %v1250, %v1409
      %v1424 = vadd.f32 %v1251, %v1412
      %v1425 = vadd.f32 %v1252, %v1417
      %v1426 = vadd.f32 %v1253, %v1420
      %v1427 = vpack.c.bf16 %v1424, %v1423
      %v1428 = vpack.c.bf16 %v1426, %v1425
      %v1429 = vld [vmem:[%s3] sm:$0xf]
      %v1430 = vld [vmem:[%s3 + $0x4] sm:$0xf]
      %v1431 = vld [vmem:[%s3 + $0x8] sm:$0xf]
      %v1432 = vld [vmem:[%s3 + $0xc] sm:$0xf]
      %v1433 = vld [vmem:[%s3 + $0x10] sm:$0xf]
      %v1434 = vld [vmem:[%s3 + $0x14] sm:$0xf]
      %v1435 = vld [vmem:[%s3 + $0x18] sm:$0xf]
      %v1436 = vld [vmem:[%s3 + $0x1c] sm:$0xf]
      %v1437 = vld [vmem:[%s3 + $0x20] sm:$0xf]
      %v1438 = vld [vmem:[%s3 + $0x24] sm:$0xf]
      %v1439 = vld [vmem:[%s3 + $0x28] sm:$0xf]
      %v1440 = vld [vmem:[%s3 + $0x2c] sm:$0xf]
      %v1441 = vld [vmem:[%s3 + $0x30] sm:$0xf]
      %v1442 = vld [vmem:[%s3 + $0x34] sm:$0xf]
      %v1443 = vld [vmem:[%s3 + $0x38] sm:$0xf]
      %v1444 = vld [vmem:[%s3 + $0x3c] sm:$0xf]
      %v1445 = vld [vmem:[%s4] sm:$0x1]
      %v1447 = vlaneseq
      %v1448 = vshrl.u32 %v1447, 7
      %v1449 = vsub.s32 0, %v1448
      %v1450 = vrot.slane %v1445, %v1449
      %v1468 = vunpack.c.l.b16 %v1429
      %v1469 = vunpack.c.l.b16 %v1430
      %v1470 = vunpack.c.l.b16 %v1431
      %v1471 = vunpack.c.l.b16 %v1432
      %v1472 = vunpack.c.l.b16 %v1433
      %v1473 = vunpack.c.l.b16 %v1434
      %v1474 = vunpack.c.l.b16 %v1435
      %v1475 = vunpack.c.l.b16 %v1436
      %v1476 = vunpack.c.l.b16 %v1437
      %v1477 = vunpack.c.l.b16 %v1438
      %v1478 = vunpack.c.l.b16 %v1439
      %v1479 = vunpack.c.l.b16 %v1440
      %v1480 = vunpack.c.l.b16 %v1441
      %v1481 = vunpack.c.l.b16 %v1442
      %v1482 = vunpack.c.l.b16 %v1443
      %v1483 = vunpack.c.l.b16 %v1444
      %v1484 = vpack.c.b16 %v1469, %v1468
      %v1485 = vpack.c.b16 %v1471, %v1470
      %v1486 = vpack.c.b16 %v1473, %v1472
      %v1487 = vpack.c.b16 %v1475, %v1474
      %v1488 = vpack.c.b16 %v1477, %v1476
      %v1489 = vpack.c.b16 %v1479, %v1478
      %v1490 = vpack.c.b16 %v1481, %v1480
      %v1491 = vpack.c.b16 %v1483, %v1482
      %1500 = vmatprep.subr.bf16.mxu0 0
      %1501 = vmatpush1.bf16.msra.mxu0 %v1484
      %1502 = vmatprep.subr.bf16.mxu0 0
      %1503 = vmatpush1.bf16.msra.mxu0 %v1485
      %1504 = vmatprep.subr.bf16.mxu0 0
      %1505 = vmatpush1.bf16.msra.mxu0 %v1486
      %1506 = vmatprep.subr.bf16.mxu0 0
      %1507 = vmatpush1.bf16.msra.mxu0 %v1487
      %1508 = vmatprep.subr.bf16.mxu0 0
      %1509 = vmatpush1.bf16.msra.mxu0 %v1488
      %1510 = vmatprep.subr.bf16.mxu0 0
      %1511 = vmatpush1.bf16.msra.mxu0 %v1489
      %1512 = vmatprep.subr.bf16.mxu0 0
      %1513 = vmatpush1.bf16.msra.mxu0 %v1490
      %1514 = vmatprep.subr.bf16.mxu0 0
      %1515 = vmatpush1.bf16.msra.mxu0 %v1491
      %1516 = vmatprep.subr.bf16.mxu0 0
      %1517 = vmatpush1.bf16.msra.mxu0 0
      %1518 = vmatprep.subr.bf16.mxu0 0
      %1519 = vmatpush1.bf16.msra.mxu0 0
      %1520 = vmatprep.subr.bf16.mxu0 0
      %1521 = vmatpush1.bf16.msra.mxu0 0
      %1522 = vmatprep.subr.bf16.mxu0 0
      %1523 = vmatpush1.bf16.msra.mxu0 0
      %1524 = vmatprep.subr.bf16.mxu0 0
      %1525 = vmatpush1.bf16.msra.mxu0 0
      %1526 = vmatprep.subr.bf16.mxu0 0
      %1527 = vmatpush1.bf16.msra.mxu0 0
      %1528 = vmatprep.subr.bf16.mxu0 0
      %1529 = vmatpush1.bf16.msra.mxu0 0
      %1530 = vmatprep.subr.bf16.mxu0 0
      %1531 = vmatpush1.bf16.msra.mxu0 0
      %1532 = vmatprep.mubr.bf16.mxu0 0
      %1533 = vmatmul.mubr.bf16.gmra.mrb[0].mxu0 %v1427
      %v1534 = vpop.f32.mrb[0].mxu0
      %v1535 = vadd.f32 %v1450, %v1534
      %v1536 = vpop.f32.mrb[0].mxu0
      %v1537 = vpop.f32.mrb[0].mxu0
      %v1538 = vadd.f32 %v1450, %v1537
      %v1539 = vpop.f32.mrb[0].mxu0
      %1540 = vmatprep.mubr.bf16.mxu0 0
      %1541 = vmatmul.mubr.bf16.gmra.mrb[0].mxu0 %v1428
      %v1542 = vpop.f32.mrb[0].mxu0
      %v1543 = vadd.f32 %v1450, %v1542
      %v1544 = vpop.f32.mrb[0].mxu0
      %v1545 = vpop.f32.mrb[0].mxu0
      %v1546 = vadd.f32 %v1450, %v1545
      %v1547 = vpop.f32.mrb[0].mxu0
      %1548 = vdwg.mxu0
      %v1549 = vadd.f32 %v442, %v1535
      %v1550 = vadd.f32 %v443, %v1538
      %v1551 = vadd.f32 %v444, %v1543
      %v1552 = vadd.f32 %v445, %v1546
      %v1553 = vld [vmem:[%s5] sm:$0x1]
      %v1554 = vld [vmem:[%s6] sm:$0x1]
      %v1555 = vmul.f32 %v1549, %v450
      %v1556 = vmul.f32 %v1550, %v450
      %v1557 = vmul.f32 %v1551, %v450
      %v1558 = vmul.f32 %v1552, %v450
      %1559 = vadd.xlane.f32.xlu0 %v1555
      %v1560 = vpop.xlane.xlu0 %1559
      %1561 = vadd.xlane.f32.xlu0 %v1556
      %v1562 = vpop.xlane.xlu0 %1561
      %1563 = vadd.xlane.f32.xlu0 %v1557
      %v1564 = vpop.xlane.xlu0 %1563
      %v1565 = vsel %vm966, %v1558, 0.0
      %1566 = vadd.xlane.f32.xlu0 %v1565
      %v1567 = vpop.xlane.xlu0 %1566
      %v1568 = vmul.f32 %v1560, 0.03125
      %v1569 = vmul.f32 %v1562, 0.03125
      %v1570 = vmul.f32 %v1564, 0.03125
      %v1571 = vmul.f32 %v1567, 0.03125
      %v1572 = vsub.f32 %v1549, %v1568
      %v1573 = vsub.f32 %v1550, %v1569
      %v1574 = vsub.f32 %v1551, %v1570
      %v1575 = vsub.f32 %v1552, %v1571
      %v1576 = vmul.f32 %v1572, %v450
      %v1577 = vmul.f32 %v1573, %v450
      %v1578 = vmul.f32 %v1574, %v450
      %v1579 = vmul.f32 %v1575, %v450
      %v1580 = vmul.f32 %v1576, %v1576
      %v1581 = vmul.f32 %v1577, %v1577
      %v1582 = vmul.f32 %v1578, %v1578
      %v1583 = vmul.f32 %v1579, %v1579
      %1584 = vadd.xlane.f32.xlu0 %v1580
      %v1585 = vpop.xlane.xlu0 %1584
      %1586 = vadd.xlane.f32.xlu0 %v1581
      %v1587 = vpop.xlane.xlu0 %1586
      %1588 = vadd.xlane.f32.xlu0 %v1582
      %v1589 = vpop.xlane.xlu0 %1588
      %v1590 = vsel %vm966, %v1583, 0.0
      %1591 = vadd.xlane.f32.xlu0 %v1590
      %v1592 = vpop.xlane.xlu0 %1591
      %v1593 = vmul.f32 %v1585, 0.03125
      %v1594 = vmul.f32 %v1587, 0.03125
      %v1595 = vmul.f32 %v1589, 0.03125
      %v1596 = vmul.f32 %v1592, 0.03125
      %v1597 = vadd.f32 %v1593, 1e-05
      %v1598 = vadd.f32 %v1594, 1e-05
      %v1599 = vadd.f32 %v1595, 1e-05
      %v1600 = vadd.f32 %v1596, 1e-05
      %v1601 = vrsqrt.pop %v1597
      %v1602 = vrsqrt.pop %v1598
      %v1603 = vrsqrt.pop %v1599
      %v1604 = vrsqrt.pop %v1600
      %v1605 = vmul.f32 %v1576, %v1601
      %v1606 = vmul.f32 %v1577, %v1602
      %v1607 = vmul.f32 %v1578, %v1603
      %v1608 = vmul.f32 %v1579, %v1604
      %v1610 = vlaneseq
      %v1611 = vshrl.u32 %v1610, 7
      %v1612 = vsub.s32 0, %v1611
      %v1613 = vrot.slane %v1553, %v1612
      %v1615 = vmul.f32 %v1605, %v1613
      %v1616 = vmul.f32 %v1606, %v1613
      %v1617 = vmul.f32 %v1607, %v1613
      %v1618 = vmul.f32 %v1608, %v1613
      %v1620 = vlaneseq
      %v1621 = vshrl.u32 %v1620, 7
      %v1622 = vsub.s32 0, %v1621
      %v1623 = vrot.slane %v1554, %v1622
      %v1625 = vadd.f32 %v1615, %v1623
      %v1626 = vadd.f32 %v1616, %v1623
      %v1627 = vadd.f32 %v1617, %v1623
      %v1628 = vadd.f32 %v1618, %v1623
      %v1629 = vpack.c.bf16 %v1626, %v1625
      %v1630 = vpack.c.bf16 %v1628, %v1627
      %v1631 = vld [vmem:[%s7] sm:$0xf]
      %v1632 = vld [vmem:[%s7 + $0x4] sm:$0xf]
      %v1633 = vld [vmem:[%s7 + $0x8] sm:$0xf]
      %v1634 = vld [vmem:[%s7 + $0xc] sm:$0xf]
      %v1635 = vld [vmem:[%s7 + $0x10] sm:$0xf]
      %v1636 = vld [vmem:[%s7 + $0x14] sm:$0xf]
      %v1637 = vld [vmem:[%s7 + $0x18] sm:$0xf]
      %v1638 = vld [vmem:[%s7 + $0x1c] sm:$0xf]
      %v1639 = vld [vmem:[%s7 + $0x20] sm:$0xf]
      %v1640 = vld [vmem:[%s7 + $0x24] sm:$0xf]
      %v1641 = vld [vmem:[%s7 + $0x28] sm:$0xf]
      %v1642 = vld [vmem:[%s7 + $0x2c] sm:$0xf]
      %v1643 = vld [vmem:[%s7 + $0x30] sm:$0xf]
      %v1644 = vld [vmem:[%s7 + $0x34] sm:$0xf]
      %v1645 = vld [vmem:[%s7 + $0x38] sm:$0xf]
      %v1646 = vld [vmem:[%s7 + $0x3c] sm:$0xf]
      %v1647 = vld [vmem:[%s8] sm:$0x1]
      %v1649 = vlaneseq
      %v1650 = vshrl.u32 %v1649, 7
      %v1651 = vsub.s32 0, %v1650
      %v1652 = vrot.slane %v1647, %v1651
      %v1670 = vunpack.c.l.b16 %v1631
      %v1671 = vunpack.c.l.b16 %v1632
      %v1672 = vunpack.c.l.b16 %v1633
      %v1673 = vunpack.c.l.b16 %v1634
      %v1674 = vunpack.c.l.b16 %v1635
      %v1675 = vunpack.c.l.b16 %v1636
      %v1676 = vunpack.c.l.b16 %v1637
      %v1677 = vunpack.c.l.b16 %v1638
      %v1678 = vunpack.c.l.b16 %v1639
      %v1679 = vunpack.c.l.b16 %v1640
      %v1680 = vunpack.c.l.b16 %v1641
      %v1681 = vunpack.c.l.b16 %v1642
      %v1682 = vunpack.c.l.b16 %v1643
      %v1683 = vunpack.c.l.b16 %v1644
      %v1684 = vunpack.c.l.b16 %v1645
      %v1685 = vunpack.c.l.b16 %v1646
      %v1686 = vpack.c.b16 %v1671, %v1670
      %v1687 = vpack.c.b16 %v1673, %v1672
      %v1688 = vpack.c.b16 %v1675, %v1674
      %v1689 = vpack.c.b16 %v1677, %v1676
      %v1690 = vpack.c.b16 %v1679, %v1678
      %v1691 = vpack.c.b16 %v1681, %v1680
      %v1692 = vpack.c.b16 %v1683, %v1682
      %v1693 = vpack.c.b16 %v1685, %v1684
      %1702 = vmatprep.subr.bf16.mxu0 0
      %1703 = vmatpush1.bf16.msra.mxu0 %v1686
      %1704 = vmatprep.subr.bf16.mxu0 0
      %1705 = vmatpush1.bf16.msra.mxu0 %v1687
      %1706 = vmatprep.subr.bf16.mxu0 0
      %1707 = vmatpush1.bf16.msra.mxu0 %v1688
      %1708 = vmatprep.subr.bf16.mxu0 0
      %1709 = vmatpush1.bf16.msra.mxu0 %v1689
      %1710 = vmatprep.subr.bf16.mxu0 0
      %1711 = vmatpush1.bf16.msra.mxu0 %v1690
      %1712 = vmatprep.subr.bf16.mxu0 0
      %1713 = vmatpush1.bf16.msra.mxu0 %v1691
      %1714 = vmatprep.subr.bf16.mxu0 0
      %1715 = vmatpush1.bf16.msra.mxu0 %v1692
      %1716 = vmatprep.subr.bf16.mxu0 0
      %1717 = vmatpush1.bf16.msra.mxu0 %v1693
      %1718 = vmatprep.subr.bf16.mxu0 0
      %1719 = vmatpush1.bf16.msra.mxu0 0
      %1720 = vmatprep.subr.bf16.mxu0 0
      %1721 = vmatpush1.bf16.msra.mxu0 0
      %1722 = vmatprep.subr.bf16.mxu0 0
      %1723 = vmatpush1.bf16.msra.mxu0 0
      %1724 = vmatprep.subr.bf16.mxu0 0
      %1725 = vmatpush1.bf16.msra.mxu0 0
      %1726 = vmatprep.subr.bf16.mxu0 0
      %1727 = vmatpush1.bf16.msra.mxu0 0
      %1728 = vmatprep.subr.bf16.mxu0 0
      %1729 = vmatpush1.bf16.msra.mxu0 0
      %1730 = vmatprep.subr.bf16.mxu0 0
      %1731 = vmatpush1.bf16.msra.mxu0 0
      %1732 = vmatprep.subr.bf16.mxu0 0
      %1733 = vmatpush1.bf16.msra.mxu0 0
      %1734 = vmatprep.mubr.bf16.mxu0 0
      %1735 = vmatmul.mubr.bf16.gmra.mrb[0].mxu0 %v1629
      %v1736 = vpop.f32.mrb[0].mxu0
      %v1737 = vadd.f32 %v1652, %v1736
      %v1738 = vpop.f32.mrb[0].mxu0
      %v1739 = vpop.f32.mrb[0].mxu0
      %v1740 = vadd.f32 %v1652, %v1739
      %v1741 = vpop.f32.mrb[0].mxu0
      %1742 = vmatprep.mubr.bf16.mxu0 0
      %1743 = vmatmul.mubr.bf16.gmra.mrb[0].mxu0 %v1630
      %v1744 = vpop.f32.mrb[0].mxu0
      %v1745 = vadd.f32 %v1652, %v1744
      %v1746 = vpop.f32.mrb[0].mxu0
      %v1747 = vpop.f32.mrb[0].mxu0
      %v1748 = vadd.f32 %v1652, %v1747
      %v1749 = vpop.f32.mrb[0].mxu0
      %1750 = vdwg.mxu0
      %v1751 = vmul.f32 %v1737, 0.5
      %v1752 = vmul.f32 %v1740, 0.5
      %v1753 = vmul.f32 %v1745, 0.5
      %v1754 = vmul.f32 %v1748, 0.5
      %v1755 = vmul.f32 %v1737, 0.044715
      %v1756 = vmul.f32 %v1740, 0.044715
      %v1757 = vmul.f32 %v1745, 0.044715
      %v1758 = vmul.f32 %v1748, 0.044715
      %v1759 = vmul.f32 %v1755, %v1737
      %v1760 = vmul.f32 %v1756, %v1740
      %v1761 = vmul.f32 %v1757, %v1745
      %v1762 = vmul.f32 %v1758, %v1748
      %v1763 = vmul.f32 %v1759, %v1737
      %v1764 = vmul.f32 %v1760, %v1740
      %v1765 = vmul.f32 %v1761, %v1745
      %v1766 = vmul.f32 %v1762, %v1748
      %v1767 = vadd.f32 %v1737, %v1763
      %v1768 = vadd.f32 %v1740, %v1764
      %v1769 = vadd.f32 %v1745, %v1765
      %v1770 = vadd.f32 %v1748, %v1766
      %v1771 = vmul.f32 %v1767, 0.7978846
      %v1772 = vmul.f32 %v1768, 0.7978846
      %v1773 = vmul.f32 %v1769, 0.7978846
      %v1774 = vmul.f32 %v1770, 0.7978846
      %v1775 = vtanh.pop %v1771
      %v1776 = vtanh.pop %v1772
      %v1777 = vtanh.pop %v1773
      %v1778 = vtanh.pop %v1774
      %v1779 = vadd.f32 %v1775, 1.0
      %v1780 = vadd.f32 %v1776, 1.0
      %v1781 = vadd.f32 %v1777, 1.0
      %v1782 = vadd.f32 %v1778, 1.0
      %v1783 = vmul.f32 %v1751, %v1779
      %v1784 = vmul.f32 %v1752, %v1780
      %v1785 = vmul.f32 %v1753, %v1781
      %v1786 = vmul.f32 %v1754, %v1782
      %v1787 = vpack.c.bf16 %v1784, %v1783
      %v1788 = vpack.c.bf16 %v1786, %v1785
      %v1789 = vld [vmem:[%s9] sm:$0xf]
      %v1790 = vld [vmem:[%s9 + $0x4] sm:$0xf]
      %v1791 = vld [vmem:[%s9 + $0x8] sm:$0xf]
      %v1792 = vld [vmem:[%s9 + $0xc] sm:$0xf]
      %v1793 = vld [vmem:[%s9 + $0x10] sm:$0xf]
      %v1794 = vld [vmem:[%s9 + $0x14] sm:$0xf]
      %v1795 = vld [vmem:[%s9 + $0x18] sm:$0xf]
      %v1796 = vld [vmem:[%s9 + $0x1c] sm:$0xf]
      %v1797 = vld [vmem:[%s9 + $0x20] sm:$0xf]
      %v1798 = vld [vmem:[%s9 + $0x24] sm:$0xf]
      %v1799 = vld [vmem:[%s9 + $0x28] sm:$0xf]
      %v1800 = vld [vmem:[%s9 + $0x2c] sm:$0xf]
      %v1801 = vld [vmem:[%s9 + $0x30] sm:$0xf]
      %v1802 = vld [vmem:[%s9 + $0x34] sm:$0xf]
      %v1803 = vld [vmem:[%s9 + $0x38] sm:$0xf]
      %v1804 = vld [vmem:[%s9 + $0x3c] sm:$0xf]
      %v1805 = vld [vmem:[%s10] sm:$0x1]
      %v1807 = vlaneseq
      %v1808 = vshrl.u32 %v1807, 7
      %v1809 = vsub.s32 0, %v1808
      %v1810 = vrot.slane %v1805, %v1809
      %v1828 = vunpack.c.l.b16 %v1789
      %v1829 = vunpack.c.l.b16 %v1790
      %v1830 = vunpack.c.l.b16 %v1791
      %v1831 = vunpack.c.l.b16 %v1792
      %v1832 = vunpack.c.l.b16 %v1793
      %v1833 = vunpack.c.l.b16 %v1794
      %v1834 = vunpack.c.l.b16 %v1795
      %v1835 = vunpack.c.l.b16 %v1796
      %v1836 = vunpack.c.l.b16 %v1797
      %v1837 = vunpack.c.l.b16 %v1798
      %v1838 = vunpack.c.l.b16 %v1799
      %v1839 = vunpack.c.l.b16 %v1800
      %v1840 = vunpack.c.l.b16 %v1801
      %v1841 = vunpack.c.l.b16 %v1802
      %v1842 = vunpack.c.l.b16 %v1803
      %v1843 = vunpack.c.l.b16 %v1804
      %v1844 = vpack.c.b16 %v1829, %v1828
      %v1845 = vpack.c.b16 %v1831, %v1830
      %v1846 = vpack.c.b16 %v1833, %v1832
      %v1847 = vpack.c.b16 %v1835, %v1834
      %v1848 = vpack.c.b16 %v1837, %v1836
      %v1849 = vpack.c.b16 %v1839, %v1838
      %v1850 = vpack.c.b16 %v1841, %v1840
      %v1851 = vpack.c.b16 %v1843, %v1842
      %1860 = vmatprep.subr.bf16.mxu0 0
      %1861 = vmatpush1.bf16.msra.mxu0 %v1844
      %1862 = vmatprep.subr.bf16.mxu0 0
      %1863 = vmatpush1.bf16.msra.mxu0 %v1845
      %1864 = vmatprep.subr.bf16.mxu0 0
      %1865 = vmatpush1.bf16.msra.mxu0 %v1846
      %1866 = vmatprep.subr.bf16.mxu0 0
      %1867 = vmatpush1.bf16.msra.mxu0 %v1847
      %1868 = vmatprep.subr.bf16.mxu0 0
      %1869 = vmatpush1.bf16.msra.mxu0 %v1848
      %1870 = vmatprep.subr.bf16.mxu0 0
      %1871 = vmatpush1.bf16.msra.mxu0 %v1849
      %1872 = vmatprep.subr.bf16.mxu0 0
      %1873 = vmatpush1.bf16.msra.mxu0 %v1850
      %1874 = vmatprep.subr.bf16.mxu0 0
      %1875 = vmatpush1.bf16.msra.mxu0 %v1851
      %1876 = vmatprep.subr.bf16.mxu0 0
      %1877 = vmatpush1.bf16.msra.mxu0 0
      %1878 = vmatprep.subr.bf16.mxu0 0
      %1879 = vmatpush1.bf16.msra.mxu0 0
      %1880 = vmatprep.subr.bf16.mxu0 0
      %1881 = vmatpush1.bf16.msra.mxu0 0
      %1882 = vmatprep.subr.bf16.mxu0 0
      %1883 = vmatpush1.bf16.msra.mxu0 0
      %1884 = vmatprep.subr.bf16.mxu0 0
      %1885 = vmatpush1.bf16.msra.mxu0 0
      %1886 = vmatprep.subr.bf16.mxu0 0
      %1887 = vmatpush1.bf16.msra.mxu0 0
      %1888 = vmatprep.subr.bf16.mxu0 0
      %1889 = vmatpush1.bf16.msra.mxu0 0
      %1890 = vmatprep.subr.bf16.mxu0 0
      %1891 = vmatpush1.bf16.msra.mxu0 0
      %1892 = vmatprep.mubr.bf16.mxu0 0
      %1893 = vmatmul.mubr.bf16.gmra.mrb[0].mxu0 %v1787
      %v1894 = vpop.f32.mrb[0].mxu0
      %v1895 = vadd.f32 %v1810, %v1894
      %v1896 = vpop.f32.mrb[0].mxu0
      %v1897 = vpop.f32.mrb[0].mxu0
      %v1898 = vadd.f32 %v1810, %v1897
      %v1899 = vpop.f32.mrb[0].mxu0
      %1900 = vmatprep.mubr.bf16.mxu0 0
      %1901 = vmatmul.mubr.bf16.gmra.mrb[0].mxu0 %v1788
      %v1902 = vpop.f32.mrb[0].mxu0
      %v1903 = vadd.f32 %v1810, %v1902
      %v1904 = vpop.f32.mrb[0].mxu0
      %v1905 = vpop.f32.mrb[0].mxu0
      %v1906 = vadd.f32 %v1810, %v1905
      %v1907 = vpop.f32.mrb[0].mxu0
      %1908 = vdwg.mxu0
      %v1909 = vadd.f32 %v1625, %v1895
      %v1910 = vadd.f32 %v1626, %v1898
      %v1911 = vadd.f32 %v1627, %v1903
      %v1912 = vadd.f32 %v1628, %v1906
      %v1913 = vld [vmem:[%s11] sm:$0x1]
      %v1914 = vld [vmem:[%s12] sm:$0x1]
      %v1915 = vmul.f32 %v1909, %v450
      %v1916 = vmul.f32 %v1910, %v450
      %v1917 = vmul.f32 %v1911, %v450
      %v1918 = vmul.f32 %v1912, %v450
      %1919 = vadd.xlane.f32.xlu0 %v1915
      %v1920 = vpop.xlane.xlu0 %1919
      %1921 = vadd.xlane.f32.xlu0 %v1916
      %v1922 = vpop.xlane.xlu0 %1921
      %1923 = vadd.xlane.f32.xlu0 %v1917
      %v1924 = vpop.xlane.xlu0 %1923
      %v1925 = vsel %vm966, %v1918, 0.0
      %1926 = vadd.xlane.f32.xlu0 %v1925
      %v1927 = vpop.xlane.xlu0 %1926
      %v1928 = vmul.f32 %v1920, 0.03125
      %v1929 = vmul.f32 %v1922, 0.03125
      %v1930 = vmul.f32 %v1924, 0.03125
      %v1931 = vmul.f32 %v1927, 0.03125
      %v1932 = vsub.f32 %v1909, %v1928
      %v1933 = vsub.f32 %v1910, %v1929
      %v1934 = vsub.f32 %v1911, %v1930
      %v1935 = vsub.f32 %v1912, %v1931
      %v1936 = vmul.f32 %v1932, %v450
      %v1937 = vmul.f32 %v1933, %v450
      %v1938 = vmul.f32 %v1934, %v450
      %v1939 = vmul.f32 %v1935, %v450
      %v1940 = vmul.f32 %v1936, %v1936
      %v1941 = vmul.f32 %v1937, %v1937
      %v1942 = vmul.f32 %v1938, %v1938
      %v1943 = vmul.f32 %v1939, %v1939
      %1944 = vadd.xlane.f32.xlu0 %v1940
      %v1945 = vpop.xlane.xlu0 %1944
      %1946 = vadd.xlane.f32.xlu0 %v1941
      %v1947 = vpop.xlane.xlu0 %1946
      %1948 = vadd.xlane.f32.xlu0 %v1942
      %v1949 = vpop.xlane.xlu0 %1948
      %v1950 = vsel %vm966, %v1943, 0.0
      %1951 = vadd.xlane.f32.xlu0 %v1950
      %v1952 = vpop.xlane.xlu0 %1951
      %v1953 = vmul.f32 %v1945, 0.03125
      %v1954 = vmul.f32 %v1947, 0.03125
      %v1955 = vmul.f32 %v1949, 0.03125
      %v1956 = vmul.f32 %v1952, 0.03125
      %v1957 = vadd.f32 %v1953, 1e-05
      %v1958 = vadd.f32 %v1954, 1e-05
      %v1959 = vadd.f32 %v1955, 1e-05
      %v1960 = vadd.f32 %v1956, 1e-05
      %v1961 = vrsqrt.pop %v1957
      %v1962 = vrsqrt.pop %v1958
      %v1963 = vrsqrt.pop %v1959
      %v1964 = vrsqrt.pop %v1960
      %v1965 = vmul.f32 %v1936, %v1961
      %v1966 = vmul.f32 %v1937, %v1962
      %v1967 = vmul.f32 %v1938, %v1963
      %v1968 = vmul.f32 %v1939, %v1964
      %v1970 = vlaneseq
      %v1971 = vshrl.u32 %v1970, 7
      %v1972 = vsub.s32 0, %v1971
      %v1973 = vrot.slane %v1913, %v1972
      %v1975 = vmul.f32 %v1965, %v1973
      %v1976 = vmul.f32 %v1966, %v1973
      %v1977 = vmul.f32 %v1967, %v1973
      %v1978 = vmul.f32 %v1968, %v1973
      %v1980 = vlaneseq
      %v1981 = vshrl.u32 %v1980, 7
      %v1982 = vsub.s32 0, %v1981
      %v1983 = vrot.slane %v1914, %v1982
      %v1985 = vadd.f32 %v1975, %v1983
      %v1986 = vadd.f32 %v1976, %v1983
      %v1987 = vadd.f32 %v1977, %v1983
      %v1988 = vadd.f32 %v1978, %v1983
      %1989 = vst [vmem:[%s440] sm:$0xff] %v1985
      %1990 = vst [vmem:[%s440 + $0x8] sm:$0xff] %v1986
      %1991 = vst [vmem:[%s440 + $0x10] sm:$0xff] %v1987
      %1992 = vst [vmem:[%s440 + $0x18] sm:$0x7f] %v1988
      %p1993 = scmp.lt.s32.totalorder %s24, 1
      %s1994 = scalar_select %p1993, %s24, 1
      %s1995 = smul.addr %s1994, 4
      %s1996 = smul.addr %s1995, 8
      %s1997 = scalar_lea.vmem %s13, %s1996
      // Predicated region
      $region73: #{_lambda_.11} parent=71 // pred_check
        %p1998 = pneg %p320
      $region74: #{_lambda_.11} parent=71 // pred_check_branch
        %2000 = sbr.rel (%p1998) target = $region76
      $region75: #{_lambda_.11} parent=71 // pred_region
        _
      $region76: #{_lambda_.11} parent=71 // pred_fallthru
        _
    $region72: #{_lambda_.11} parent=5 // pred_fallthru
      _
    %p2001 = scmp.le.s32.totalorder 2, %s19
    // Predicated region
    $region77: #{_lambda_.11} parent=5 // pred_check
      %p2002 = pneg %p2001
    $region78: #{_lambda_.11} parent=5 // pred_check_branch
      %2004 = sbr.rel (%p2002) target = $region80
    $region79: #{_lambda_.11} parent=5 // pred_region
      %s2005 = ssub.s32 %s19, 2
      // Predicated region
      $region81: #{_lambda_.11} parent=79 // pred_check
        %p2006 = pneg %p326
      $region82: #{_lambda_.11} parent=79 // pred_check_branch
        %2008 = sbr.rel (%p2006) target = $region84
      $region83: #{_lambda_.11} parent=79 // pred_region
        %p2009 = scmp.lt.s32.totalorder %s25, 1
        %s2010 = scalar_select %p2009, %s25, 1
        %s2011 = smul.addr %s2010, 4
        %s2012 = smul.addr %s2011, 8
        %s2013 = scalar_lea.vmem %s13, %s2012
      $region84: #{_lambda_.11} parent=79 // pred_fallthru
        _
    $region80: #{_lambda_.11} parent=5 // pred_fallthru
      _
  $region6: #{_lambda_.11} parent=0 // loop_footer
    %s23 = sadd.s32 1, %s19
  $region7: #{_lambda_.11} parent=0 // loop_footer_branch
    %18 = sbr.rel target = $region3
  $region8: #{_lambda_.11} parent=0 // loop_exit
    _

</llo_original>
